<compile_context>
chip_gen: v6e
topology: v6e:2x2x1
jax: 0.10.0
libtpu: 0.0.40
codegen_flags: <defaults>
</compile_context>

<pallas_src>
import jax
import jax.numpy as jnp
from jax import lax
from jax.experimental import pallas as pl
from jax.experimental.pallas import tpu as pltpu

HIDDEN = 128
CLASSES = 11


def _is_v5e():
    """Trace-time chip check: split the layer-1 K=256 GEMM on 128-deep MXUs (v5e)."""
    try:
        kind = jax.devices()[0].device_kind.lower()
    except Exception:
        return False
    return ("v5e" in kind) or ("v5 lite" in kind) or ("v5litepod" in kind)


# ---------------------------------------------------------------------------
# Fused Pallas kernel: input projection + layer-0/layer-1 recurrence + FC head
# ---------------------------------------------------------------------------
def _make_kernel(split_l1: bool):
    def fused_lstm_fc_kernel(x_ref, wih0_ref, b0_ref, whh0_ref, wcat1_ref,
                             b1_ref, fcw_ref, fcb_ref, out_ref, gin0_ref):
        """
        x_ref    : (T*B, 2)   f32   time-major flattened input
        wih0_ref : (2, 4H)    f32   layer-0 input weights (transposed)
        b0_ref   : (1, 4H)    f32   layer-0 bias (b_ih + b_hh)
        whh0_ref : (H, 4H)    bf16  layer-0 recurrent weights (transposed)
        wcat1_ref: (2H, 4H)   bf16  layer-1 [W_ih^T ; W_hh^T] stacked along K
        b1_ref   : (1, 4H)    f32   layer-1 bias (b_ih + b_hh)
        fcw_ref  : (H, C)     f32   fc weight (transposed)
        fcb_ref  : (1, C)     f32   fc bias
        out_ref  : (B, C)     f32   logits for the last timestep
        gin0_ref : (T, B, 4H) f32   VMEM scratch for the hoisted input projection
        """
        T, B, _ = gin0_ref.shape
        H = whh0_ref.shape[0]

        # ---- prologue: hoisted layer-0 input projection (one tiny K=2 GEMM). ----
        gin0_ref[...] = (jnp.dot(x_ref[...], wih0_ref[...],
                                 preferred_element_type=jnp.float32)
                         + b0_ref[...]).reshape(T, B, 4 * H)

        # Hoist the bias broadcast out of the (unrolled) time loop.
        bias1 = jnp.broadcast_to(b1_ref[...], (B, 4 * H))

        def sigmoid(v):
            # exp (EUP) + approx reciprocal (EUP): stays off the VALU slots.
            return pl.reciprocal(1.0 + jnp.exp(-v), approx=True)

        def cell(gates, c):
            i_g = sigmoid(gates[:, 0 * H:1 * H])
            f_g = sigmoid(gates[:, 1 * H:2 * H])
            g_g = jnp.tanh(gates[:, 2 * H:3 * H])
            o_g = sigmoid(gates[:, 3 * H:4 * H])
            c_new = f_g * c + i_g * g_g
            h_new = o_g * jnp.tanh(c_new)
            return h_new, c_new

        def step(t, carry):
            h0, c0, h1, c1 = carry

            # --- layer 0: input term precomputed; only the recurrent GEMM here.
            g0 = gin0_ref[t] + jnp.dot(h0.astype(jnp.bfloat16), whh0_ref[...],
                                       preferred_element_type=jnp.float32)
            h0, c0 = cell(g0, c0)

            h0b = h0.astype(jnp.bfloat16)
            h1b = h1.astype(jnp.bfloat16)
            if split_l1:
                # v5e: the 128-deep MXU splits K=256 anyway; skip the concat.
                g1 = (jnp.dot(h0b, wcat1_ref[0:H, :],
                              preferred_element_type=jnp.float32)
                      + jnp.dot(h1b, wcat1_ref[H:2 * H, :],
                                preferred_element_type=jnp.float32)
                      + bias1)
            else:
                # v6e/v7x: single K=2H GEMM matches the 256-deep MXU.
                cat = jnp.concatenate([h0b, h1b], axis=1)          # (B, 2H)
                g1 = jnp.dot(cat, wcat1_ref[...],
                             preferred_element_type=jnp.float32) + bias1
            h1, c1 = cell(g1, c1)
            return h0, c0, h1, c1

        z = jnp.zeros((B, H), jnp.float32)
        # Fully unrolled: T is small and fixed, giving the scheduler cross-step
        # MXU/EUP/VPU overlap.  (Switch to partial unroll if T grows past ~32-64.)
        _, _, h1, _ = lax.fori_loop(0, T, step, (z, z, z, z), unroll=True)

        # ---- fused FC head on the last hidden state (kept in f32). ----
        out_ref[...] = (jnp.dot(h1, fcw_ref[...],
                                preferred_element_type=jnp.float32)
                        + fcb_ref[...])

    return fused_lstm_fc_kernel


# ---------------------------------------------------------------------------
# Wrapper
# ---------------------------------------------------------------------------
def lstm_model_forward(x, params):
    """x: (B, 1, 2, T) float32 -> (B, CLASSES) logits."""
    H = HIDDEN
    x = jnp.squeeze(x, axis=1)                       # (B, 2, T)
    B, _, T = x.shape
    # Time-major flatten: 1 KiB of layout plumbing only; the heavy input
    # projection happens inside the kernel prologue.
    x_tm = jnp.transpose(x, (2, 0, 1)).reshape(T * B, 2)

    kernel = _make_kernel(split_l1=_is_v5e())
    vmem = pl.BlockSpec(memory_space=pltpu.MemorySpace.VMEM)

    # Note (v7x): for multi-sequence serving, add a leading 'parallel' batch grid
    # axis so both TensorCores run independent recurrence shards; at B<=8 the
    # grid-less single-invocation form is latency-optimal.
    return pl.pallas_call(
        kernel,
        out_shape=jax.ShapeDtypeStruct((B, CLASSES), jnp.float32),
        in_specs=[vmem] * 8,
        out_specs=vmem,
        scratch_shapes=[pltpu.VMEM((T, B, 4 * H), jnp.float32)],
    )(x_tm, params["l0_wih_t"], params["l0_b"], params["l0_whh_bf16"],
      params["l1_wcat_bf16"], params["l1_b"], params["fc_w_t"], params["fc_b"])


def init_params(key):
    """Deterministic init matching PyTorch shapes (uniform(-1/sqrt(H), 1/sqrt(H))).

    Stores canonical f32 weights (reference / PyTorch semantics) plus kernel-side
    copies prepared ONCE here: bf16 recurrent weights and the pre-concatenated
    layer-1 [W_ih^T ; W_hh^T] block (so the jitted forward never rebuilds them).
    """
    k = 1.0 / jnp.sqrt(jnp.float32(HIDDEN))
    keys = jax.random.split(key, 10)

    def u(kk, shape):
        return jax.random.uniform(kk, shape, jnp.float32, -k, k)

    l0_wih_t = u(keys[0], (2, 4 * HIDDEN))                     # = W_ih0^T
    l0_whh_t = u(keys[1], (HIDDEN, 4 * HIDDEN))                # = W_hh0^T
    l0_b = u(keys[2], (1, 4 * HIDDEN)) + u(keys[3], (1, 4 * HIDDEN))
    l1_wih_t = u(keys[4], (HIDDEN, 4 * HIDDEN))
    l1_whh_t = u(keys[5], (HIDDEN, 4 * HIDDEN))
    l1_b = u(keys[6], (1, 4 * HIDDEN)) + u(keys[7], (1, 4 * HIDDEN))
    fc_w_t = u(keys[8], (HIDDEN, CLASSES))
    fc_b = u(keys[9], (1, CLASSES))

    return {
        # canonical f32 params (reference semantics)
        "l0_wih_t": l0_wih_t, "l0_whh_t": l0_whh_t, "l0_b": l0_b,
        "l1_wih_t": l1_wih_t, "l1_whh_t": l1_whh_t, "l1_b": l1_b,
        "fc_w_t": fc_w_t, "fc_b": fc_b,
        # kernel-side copies, prepared once (not per forward call)
        "l0_whh_bf16": l0_whh_t.astype(jnp.bfloat16),
        "l1_wcat_bf16": jnp.concatenate([l1_wih_t, l1_whh_t],
                                        axis=0).astype(jnp.bfloat16),
    }


# ---------------------------------------------------------------------------
# Pure-JAX f32 reference (PyTorch-faithful, for correctness check)
# ---------------------------------------------------------------------------
def _ref_forward(x, params):
    x = jnp.squeeze(x, axis=1)
    x = jnp.transpose(x, (0, 2, 1))          # (B, T, 2)
    B, T, _ = x.shape

    def run_layer(seq, wih_t, whh_t, b):
        def step(carry, x_t):
            h, c = carry
            gates = x_t @ wih_t + h @ whh_t + b
            H = h.shape[-1]
            i = jax.nn.sigmoid(gates[:, :H])
            f = jax.nn.sigmoid(gates[:, H:2 * H])
            g = jnp.tanh(gates[:, 2 * H:3 * H])
            o = jax.nn.sigmoid(gates[:, 3 * H:])
            c_new = f * c + i * g
            h_new = o * jnp.tanh(c_new)
            return (h_new, c_new), h_new

        h0 = jnp.zeros((B, HIDDEN), jnp.float32)
        (_, _), hs = jax.lax.scan(step, (h0, h0), jnp.transpose(seq, (1, 0, 2)))
        return jnp.transpose(hs, (1, 0, 2))

    h1 = run_layer(x, params["l0_wih_t"], params["l0_whh_t"], params["l0_b"])
    h2 = run_layer(h1, params["l1_wih_t"], params["l1_whh_t"], params["l1_b"])
    return h2[:, -1, :] @ params["fc_w_t"] + params["fc_b"]


# ---------------------------------------------------------------------------
if __name__ == "__main__":
    key = jax.random.PRNGKey(0)
    k_x, k_p = jax.random.split(key)

    B, T = 8, 16   # B=8 fills the 8-sublane vreg height
    x = jax.random.normal(k_x, (B, 1, 2, T), jnp.float32)   # (B, 1, 2, T)
    params = init_params(k_p)

    fwd = jax.jit(lstm_model_forward)
    out = jax.block_until_ready(fwd(x, params))
    assert out.shape == (B, CLASSES), out.shape

    ref = jax.block_until_ready(_ref_forward(x, params))
    max_err = float(jnp.max(jnp.abs(out - ref)))
    # Tolerance reflects bf16 operands on the recurrent MXU dots (16 steps x 2
    # layers) vs. the all-f32 reference; gate math / cell state stay in f32.
    assert jnp.allclose(out, ref, atol=5e-3, rtol=5e-3), \
        f"mismatch vs reference: max|d|={max_err}"

    print("KERNEL_OK")
</pallas_src>

<mosaic_0001>
module attributes {stable_mosaic.version = 11 : i64} {
  func.func @fused_lstm_fc_kernel(%arg0: memref<128x2xf32, #tpu.memory_space<vmem>>, %arg1: memref<2x512xf32, #tpu.memory_space<vmem>>, %arg2: memref<1x512xf32, #tpu.memory_space<vmem>>, %arg3: memref<128x512xbf16, #tpu.memory_space<vmem>>, %arg4: memref<256x512xbf16, #tpu.memory_space<vmem>>, %arg5: memref<1x512xf32, #tpu.memory_space<vmem>>, %arg6: memref<128x11xf32, #tpu.memory_space<vmem>>, %arg7: memref<1x11xf32, #tpu.memory_space<vmem>>, %arg8: memref<8x11xf32, #tpu.memory_space<vmem>>, %arg9: memref<16x8x512xf32, #tpu.memory_space<vmem>>) attributes {dimension_semantics = [], scalar_prefetch = 0 : i64, scratch_operands = 1 : i64, tpu.core_type = #tpu.core_type<tc>} {
    %c0 = arith.constant 0 : index
    %c0_0 = arith.constant 0 : index
    %0 = vector.load %arg0[%c0, %c0_0] : memref<128x2xf32, #tpu.memory_space<vmem>>, vector<128x2xf32>
    %c0_1 = arith.constant 0 : index
    %c0_2 = arith.constant 0 : index
    %1 = vector.load %arg1[%c0_1, %c0_2] : memref<2x512xf32, #tpu.memory_space<vmem>>, vector<2x512xf32>
    %cst = arith.constant dense<0.000000e+00> : vector<128x512xf32>
    %2 = tpu.matmul %0, %1, %cst {dimension_numbers = #tpu.dot_dimension_numbers<[1], [0], [0], [1], [0, 0, 1, 1], [], []>} : vector<128x2xf32>, vector<2x512xf32>, vector<128x512xf32> -> vector<128x512xf32>
    %c0_3 = arith.constant 0 : index
    %c0_4 = arith.constant 0 : index
    %3 = vector.load %arg2[%c0_3, %c0_4] : memref<1x512xf32, #tpu.memory_space<vmem>>, vector<1x512xf32>
    %4 = vector.broadcast %3 : vector<1x512xf32> to vector<128x512xf32>
    %5 = arith.addf %2, %4 : vector<128x512xf32>
    %6 = vector.shape_cast %5 : vector<128x512xf32> to vector<16x8x512xf32>
    %c0_5 = arith.constant 0 : index
    %c0_6 = arith.constant 0 : index
    %c0_7 = arith.constant 0 : index
    %7 = vector.load %arg9[%c0_5, %c0_6, %c0_7] : memref<16x8x512xf32, #tpu.memory_space<vmem>>, vector<16x8x512xf32>
    tpu.vector_store %arg9[%c0_5, %c0_6, %c0_7], %6 {strides = array<i32>} : memref<16x8x512xf32, #tpu.memory_space<vmem>>, vector<16x8x512xf32>,
    %c0_8 = arith.constant 0 : index
    %c0_9 = arith.constant 0 : index
    %8 = vector.load %arg5[%c0_8, %c0_9] : memref<1x512xf32, #tpu.memory_space<vmem>>, vector<1x512xf32>
    %9 = vector.shape_cast %8 : vector<1x512xf32> to vector<1x512xf32>
    %10 = vector.broadcast %9 : vector<1x512xf32> to vector<8x512xf32>
    %cst_10 = arith.constant 0.000000e+00 : f32
    %11 = vector.broadcast %cst_10 : f32 to vector<8x128xf32>
    %c0_i32 = arith.constant 0 : i32
    %12 = arith.index_cast %c0_i32 : i32 to index
    %c0_11 = arith.constant 0 : index
    %c0_12 = arith.constant 0 : index
    %13 = vector.load %arg9[%12, %c0_11, %c0_12] : memref<16x8x512xf32, #tpu.memory_space<vmem>>, vector<1x8x512xf32>
    %14 = vector.shape_cast %13 : vector<1x8x512xf32> to vector<8x512xf32>
    %15 = arith.truncf %11 : vector<8x128xf32> to vector<8x128xbf16>
    %c0_13 = arith.constant 0 : index
    %c0_14 = arith.constant 0 : index
    %16 = vector.load %arg3[%c0_13, %c0_14] : memref<128x512xbf16, #tpu.memory_space<vmem>>, vector<128x512xbf16>
    %cst_15 = arith.constant dense<0.000000e+00> : vector<8x512xf32>
    %17 = tpu.matmul %15, %16, %cst_15 {dimension_numbers = #tpu.dot_dimension_numbers<[1], [0], [0], [1], [0, 0, 1, 1], [], []>} : vector<8x128xbf16>, vector<128x512xbf16>, vector<8x512xf32> -> vector<8x512xf32>
    %18 = arith.addf %14, %17 : vector<8x512xf32>
    %19 = vector.extract_strided_slice %18 {offsets = [0, 0], sizes = [8, 128], strides = [1, 1]} : vector<8x512xf32> to vector<8x128xf32>
    %cst_16 = arith.constant 0.000000e+00 : f32
    %20 = vector.broadcast %cst_16 : f32 to vector<8x128xf32>
    %21 = arith.subf %20, %19 : vector<8x128xf32>
    %22 = math.exp %21 : vector<8x128xf32>
    %cst_17 = arith.constant 1.000000e+00 : f32
    %23 = vector.broadcast %cst_17 : f32 to vector<8x128xf32>
    %24 = arith.addf %23, %22 : vector<8x128xf32>
    %25 = tpu.reciprocal %24 {approx = true} : vector<8x128xf32> -> vector<8x128xf32>
    %26 = vector.extract_strided_slice %18 {offsets = [0, 128], sizes = [8, 128], strides = [1, 1]} : vector<8x512xf32> to vector<8x128xf32>
    %cst_18 = arith.constant 0.000000e+00 : f32
    %27 = vector.broadcast %cst_18 : f32 to vector<8x128xf32>
    %28 = arith.subf %27, %26 : vector<8x128xf32>
    %29 = math.exp %28 : vector<8x128xf32>
    %cst_19 = arith.constant 1.000000e+00 : f32
    %30 = vector.broadcast %cst_19 : f32 to vector<8x128xf32>
    %31 = arith.addf %30, %29 : vector<8x128xf32>
    %32 = tpu.reciprocal %31 {approx = true} : vector<8x128xf32> -> vector<8x128xf32>
    %33 = vector.extract_strided_slice %18 {offsets = [0, 256], sizes = [8, 128], strides = [1, 1]} : vector<8x512xf32> to vector<8x128xf32>
    %34 = math.tanh %33 : vector<8x128xf32>
    %35 = vector.extract_strided_slice %18 {offsets = [0, 384], sizes = [8, 128], strides = [1, 1]} : vector<8x512xf32> to vector<8x128xf32>
    %cst_20 = arith.constant 0.000000e+00 : f32
    %36 = vector.broadcast %cst_20 : f32 to vector<8x128xf32>
    %37 = arith.subf %36, %35 : vector<8x128xf32>
    %38 = math.exp %37 : vector<8x128xf32>
    %cst_21 = arith.constant 1.000000e+00 : f32
    %39 = vector.broadcast %cst_21 : f32 to vector<8x128xf32>
    %40 = arith.addf %39, %38 : vector<8x128xf32>
    %41 = tpu.reciprocal %40 {approx = true} : vector<8x128xf32> -> vector<8x128xf32>
    %42 = arith.mulf %32, %11 : vector<8x128xf32>
    %43 = arith.mulf %25, %34 : vector<8x128xf32>
    %44 = arith.addf %42, %43 : vector<8x128xf32>
    %45 = math.tanh %44 : vector<8x128xf32>
    %46 = arith.mulf %41, %45 : vector<8x128xf32>
    %47 = arith.truncf %46 : vector<8x128xf32> to vector<8x128xbf16>
    %48 = arith.truncf %11 : vector<8x128xf32> to vector<8x128xbf16>
    %49 = tpu.concatenate %47, %48 in 1 : vector<8x128xbf16>, vector<8x128xbf16> -> vector<8x256xbf16>
    %c0_22 = arith.constant 0 : index
    %c0_23 = arith.constant 0 : index
    %50 = vector.load %arg4[%c0_22, %c0_23] : memref<256x512xbf16, #tpu.memory_space<vmem>>, vector<256x512xbf16>
    %cst_24 = arith.constant dense<0.000000e+00> : vector<8x512xf32>
    %51 = tpu.matmul %49, %50, %cst_24 {dimension_numbers = #tpu.dot_dimension_numbers<[1], [0], [0], [1], [0, 0, 1, 1], [], []>} : vector<8x256xbf16>, vector<256x512xbf16>, vector<8x512xf32> -> vector<8x512xf32>
    %52 = arith.addf %51, %10 : vector<8x512xf32>
    %53 = vector.extract_strided_slice %52 {offsets = [0, 0], sizes = [8, 128], strides = [1, 1]} : vector<8x512xf32> to vector<8x128xf32>
    %cst_25 = arith.constant 0.000000e+00 : f32
    %54 = vector.broadcast %cst_25 : f32 to vector<8x128xf32>
    %55 = arith.subf %54, %53 : vector<8x128xf32>
    %56 = math.exp %55 : vector<8x128xf32>
    %cst_26 = arith.constant 1.000000e+00 : f32
    %57 = vector.broadcast %cst_26 : f32 to vector<8x128xf32>
    %58 = arith.addf %57, %56 : vector<8x128xf32>
    %59 = tpu.reciprocal %58 {approx = true} : vector<8x128xf32> -> vector<8x128xf32>
    %60 = vector.extract_strided_slice %52 {offsets = [0, 128], sizes = [8, 128], strides = [1, 1]} : vector<8x512xf32> to vector<8x128xf32>
    %cst_27 = arith.constant 0.000000e+00 : f32
    %61 = vector.broadcast %cst_27 : f32 to vector<8x128xf32>
    %62 = arith.subf %61, %60 : vector<8x128xf32>
    %63 = math.exp %62 : vector<8x128xf32>
    %cst_28 = arith.constant 1.000000e+00 : f32
    %64 = vector.broadcast %cst_28 : f32 to vector<8x128xf32>
    %65 = arith.addf %64, %63 : vector<8x128xf32>
    %66 = tpu.reciprocal %65 {approx = true} : vector<8x128xf32> -> vector<8x128xf32>
    %67 = vector.extract_strided_slice %52 {offsets = [0, 256], sizes = [8, 128], strides = [1, 1]} : vector<8x512xf32> to vector<8x128xf32>
    %68 = math.tanh %67 : vector<8x128xf32>
    %69 = vector.extract_strided_slice %52 {offsets = [0, 384], sizes = [8, 128], strides = [1, 1]} : vector<8x512xf32> to vector<8x128xf32>
    %cst_29 = arith.constant 0.000000e+00 : f32
    %70 = vector.broadcast %cst_29 : f32 to vector<8x128xf32>
    %71 = arith.subf %70, %69 : vector<8x128xf32>
    %72 = math.exp %71 : vector<8x128xf32>
    %cst_30 = arith.constant 1.000000e+00 : f32
    %73 = vector.broadcast %cst_30 : f32 to vector<8x128xf32>
    %74 = arith.addf %73, %72 : vector<8x128xf32>
    %75 = tpu.reciprocal %74 {approx = true} : vector<8x128xf32> -> vector<8x128xf32>
    %76 = arith.mulf %66, %11 : vector<8x128xf32>
    %77 = arith.mulf %59, %68 : vector<8x128xf32>
    %78 = arith.addf %76, %77 : vector<8x128xf32>
    %79 = math.tanh %78 : vector<8x128xf32>
    %80 = arith.mulf %75, %79 : vector<8x128xf32>
    %c1_i32 = arith.constant 1 : i32
    %81 = arith.index_cast %c1_i32 : i32 to index
    %c0_31 = arith.constant 0 : index
    %c0_32 = arith.constant 0 : index
    %82 = vector.load %arg9[%81, %c0_31, %c0_32] : memref<16x8x512xf32, #tpu.memory_space<vmem>>, vector<1x8x512xf32>
    %83 = vector.shape_cast %82 : vector<1x8x512xf32> to vector<8x512xf32>
    %84 = arith.truncf %46 : vector<8x128xf32> to vector<8x128xbf16>
    %c0_33 = arith.constant 0 : index
    %c0_34 = arith.constant 0 : index
    %85 = vector.load %arg3[%c0_33, %c0_34] : memref<128x512xbf16, #tpu.memory_space<vmem>>, vector<128x512xbf16>
    %cst_35 = arith.constant dense<0.000000e+00> : vector<8x512xf32>
    %86 = tpu.matmul %84, %85, %cst_35 {dimension_numbers = #tpu.dot_dimension_numbers<[1], [0], [0], [1], [0, 0, 1, 1], [], []>} : vector<8x128xbf16>, vector<128x512xbf16>, vector<8x512xf32> -> vector<8x512xf32>
    %87 = arith.addf %83, %86 : vector<8x512xf32>
    %88 = vector.extract_strided_slice %87 {offsets = [0, 0], sizes = [8, 128], strides = [1, 1]} : vector<8x512xf32> to vector<8x128xf32>
    %cst_36 = arith.constant 0.000000e+00 : f32
    %89 = vector.broadcast %cst_36 : f32 to vector<8x128xf32>
    %90 = arith.subf %89, %88 : vector<8x128xf32>
    %91 = math.exp %90 : vector<8x128xf32>
    %cst_37 = arith.constant 1.000000e+00 : f32
    %92 = vector.broadcast %cst_37 : f32 to vector<8x128xf32>
    %93 = arith.addf %92, %91 : vector<8x128xf32>
    %94 = tpu.reciprocal %93 {approx = true} : vector<8x128xf32> -> vector<8x128xf32>
    %95 = vector.extract_strided_slice %87 {offsets = [0, 128], sizes = [8, 128], strides = [1, 1]} : vector<8x512xf32> to vector<8x128xf32>
    %cst_38 = arith.constant 0.000000e+00 : f32
    %96 = vector.broadcast %cst_38 : f32 to vector<8x128xf32>
    %97 = arith.subf %96, %95 : vector<8x128xf32>
    %98 = math.exp %97 : vector<8x128xf32>
    %cst_39 = arith.constant 1.000000e+00 : f32
    %99 = vector.broadcast %cst_39 : f32 to vector<8x128xf32>
    %100 = arith.addf %99, %98 : vector<8x128xf32>
    %101 = tpu.reciprocal %100 {approx = true} : vector<8x128xf32> -> vector<8x128xf32>
    %102 = vector.extract_strided_slice %87 {offsets = [0, 256], sizes = [8, 128], strides = [1, 1]} : vector<8x512xf32> to vector<8x128xf32>
    %103 = math.tanh %102 : vector<8x128xf32>
    %104 = vector.extract_strided_slice %87 {offsets = [0, 384], sizes = [8, 128], strides = [1, 1]} : vector<8x512xf32> to vector<8x128xf32>
    %cst_40 = arith.constant 0.000000e+00 : f32
    %105 = vector.broadcast %cst_40 : f32 to vector<8x128xf32>
    %106 = arith.subf %105, %104 : vector<8x128xf32>
    %107 = math.exp %106 : vector<8x128xf32>
    %cst_41 = arith.constant 1.000000e+00 : f32
    %108 = vector.broadcast %cst_41 : f32 to vector<8x128xf32>
    %109 = arith.addf %108, %107 : vector<8x128xf32>
    %110 = tpu.reciprocal %109 {approx = true} : vector<8x128xf32> -> vector<8x128xf32>
    %111 = arith.mulf %101, %44 : vector<8x128xf32>
    %112 = arith.mulf %94, %103 : vector<8x128xf32>
    %113 = arith.addf %111, %112 : vector<8x128xf32>
    %114 = math.tanh %113 : vector<8x128xf32>
    %115 = arith.mulf %110, %114 : vector<8x128xf32>
    %116 = arith.truncf %115 : vector<8x128xf32> to vector<8x128xbf16>
    %117 = arith.truncf %80 : vector<8x128xf32> to vector<8x128xbf16>
    %118 = tpu.concatenate %116, %117 in 1 : vector<8x128xbf16>, vector<8x128xbf16> -> vector<8x256xbf16>
    %c0_42 = arith.constant 0 : index
    %c0_43 = arith.constant 0 : index
    %119 = vector.load %arg4[%c0_42, %c0_43] : memref<256x512xbf16, #tpu.memory_space<vmem>>, vector<256x512xbf16>
    %cst_44 = arith.constant dense<0.000000e+00> : vector<8x512xf32>
    %120 = tpu.matmul %118, %119, %cst_44 {dimension_numbers = #tpu.dot_dimension_numbers<[1], [0], [0], [1], [0, 0, 1, 1], [], []>} : vector<8x256xbf16>, vector<256x512xbf16>, vector<8x512xf32> -> vector<8x512xf32>
    %121 = arith.addf %120, %10 : vector<8x512xf32>
    %122 = vector.extract_strided_slice %121 {offsets = [0, 0], sizes = [8, 128], strides = [1, 1]} : vector<8x512xf32> to vector<8x128xf32>
    %cst_45 = arith.constant 0.000000e+00 : f32
    %123 = vector.broadcast %cst_45 : f32 to vector<8x128xf32>
    %124 = arith.subf %123, %122 : vector<8x128xf32>
    %125 = math.exp %124 : vector<8x128xf32>
    %cst_46 = arith.constant 1.000000e+00 : f32
    %126 = vector.broadcast %cst_46 : f32 to vector<8x128xf32>
    %127 = arith.addf %126, %125 : vector<8x128xf32>
    %128 = tpu.reciprocal %127 {approx = true} : vector<8x128xf32> -> vector<8x128xf32>
    %129 = vector.extract_strided_slice %121 {offsets = [0, 128], sizes = [8, 128], strides = [1, 1]} : vector<8x512xf32> to vector<8x128xf32>
    %cst_47 = arith.constant 0.000000e+00 : f32
    %130 = vector.broadcast %cst_47 : f32 to vector<8x128xf32>
    %131 = arith.subf %130, %129 : vector<8x128xf32>
    %132 = math.exp %131 : vector<8x128xf32>
    %cst_48 = arith.constant 1.000000e+00 : f32
    %133 = vector.broadcast %cst_48 : f32 to vector<8x128xf32>
    %134 = arith.addf %133, %132 : vector<8x128xf32>
    %135 = tpu.reciprocal %134 {approx = true} : vector<8x128xf32> -> vector<8x128xf32>
    %136 = vector.extract_strided_slice %121 {offsets = [0, 256], sizes = [8, 128], strides = [1, 1]} : vector<8x512xf32> to vector<8x128xf32>
    %137 = math.tanh %136 : vector<8x128xf32>
    %138 = vector.extract_strided_slice %121 {offsets = [0, 384], sizes = [8, 128], strides = [1, 1]} : vector<8x512xf32> to vector<8x128xf32>
    %cst_49 = arith.constant 0.000000e+00 : f32
    %139 = vector.broadcast %cst_49 : f32 to vector<8x128xf32>
    %140 = arith.subf %139, %138 : vector<8x128xf32>
    %141 = math.exp %140 : vector<8x128xf32>
    %cst_50 = arith.constant 1.000000e+00 : f32
    %142 = vector.broadcast %cst_50 : f32 to vector<8x128xf32>
    %143 = arith.addf %142, %141 : vector<8x128xf32>
    %144 = tpu.reciprocal %143 {approx = true} : vector<8x128xf32> -> vector<8x128xf32>
    %145 = arith.mulf %135, %78 : vector<8x128xf32>
    %146 = arith.mulf %128, %137 : vector<8x128xf32>
    %147 = arith.addf %145, %146 : vector<8x128xf32>
    %148 = math.tanh %147 : vector<8x128xf32>
    %149 = arith.mulf %144, %148 : vector<8x128xf32>
    %c2_i32 = arith.constant 2 : i32
    %150 = arith.index_cast %c2_i32 : i32 to index
    %c0_51 = arith.constant 0 : index
    %c0_52 = arith.constant 0 : index
    %151 = vector.load %arg9[%150, %c0_51, %c0_52] : memref<16x8x512xf32, #tpu.memory_space<vmem>>, vector<1x8x512xf32>
    %152 = vector.shape_cast %151 : vector<1x8x512xf32> to vector<8x512xf32>
    %153 = arith.truncf %115 : vector<8x128xf32> to vector<8x128xbf16>
    %c0_53 = arith.constant 0 : index
    %c0_54 = arith.constant 0 : index
    %154 = vector.load %arg3[%c0_53, %c0_54] : memref<128x512xbf16, #tpu.memory_space<vmem>>, vector<128x512xbf16>
    %cst_55 = arith.constant dense<0.000000e+00> : vector<8x512xf32>
    %155 = tpu.matmul %153, %154, %cst_55 {dimension_numbers = #tpu.dot_dimension_numbers<[1], [0], [0], [1], [0, 0, 1, 1], [], []>} : vector<8x128xbf16>, vector<128x512xbf16>, vector<8x512xf32> -> vector<8x512xf32>
    %156 = arith.addf %152, %155 : vector<8x512xf32>
    %157 = vector.extract_strided_slice %156 {offsets = [0, 0], sizes = [8, 128], strides = [1, 1]} : vector<8x512xf32> to vector<8x128xf32>
    %cst_56 = arith.constant 0.000000e+00 : f32
    %158 = vector.broadcast %cst_56 : f32 to vector<8x128xf32>
    %159 = arith.subf %158, %157 : vector<8x128xf32>
    %160 = math.exp %159 : vector<8x128xf32>
    %cst_57 = arith.constant 1.000000e+00 : f32
    %161 = vector.broadcast %cst_57 : f32 to vector<8x128xf32>
    %162 = arith.addf %161, %160 : vector<8x128xf32>
    %163 = tpu.reciprocal %162 {approx = true} : vector<8x128xf32> -> vector<8x128xf32>
    %164 = vector.extract_strided_slice %156 {offsets = [0, 128], sizes = [8, 128], strides = [1, 1]} : vector<8x512xf32> to vector<8x128xf32>
    %cst_58 = arith.constant 0.000000e+00 : f32
    %165 = vector.broadcast %cst_58 : f32 to vector<8x128xf32>
    %166 = arith.subf %165, %164 : vector<8x128xf32>
    %167 = math.exp %166 : vector<8x128xf32>
    %cst_59 = arith.constant 1.000000e+00 : f32
    %168 = vector.broadcast %cst_59 : f32 to vector<8x128xf32>
    %169 = arith.addf %168, %167 : vector<8x128xf32>
    %170 = tpu.reciprocal %169 {approx = true} : vector<8x128xf32> -> vector<8x128xf32>
    %171 = vector.extract_strided_slice %156 {offsets = [0, 256], sizes = [8, 128], strides = [1, 1]} : vector<8x512xf32> to vector<8x128xf32>
    %172 = math.tanh %171 : vector<8x128xf32>
    %173 = vector.extract_strided_slice %156 {offsets = [0, 384], sizes = [8, 128], strides = [1, 1]} : vector<8x512xf32> to vector<8x128xf32>
    %cst_60 = arith.constant 0.000000e+00 : f32
    %174 = vector.broadcast %cst_60 : f32 to vector<8x128xf32>
    %175 = arith.subf %174, %173 : vector<8x128xf32>
    %176 = math.exp %175 : vector<8x128xf32>
    %cst_61 = arith.constant 1.000000e+00 : f32
    %177 = vector.broadcast %cst_61 : f32 to vector<8x128xf32>
    %178 = arith.addf %177, %176 : vector<8x128xf32>
    %179 = tpu.reciprocal %178 {approx = true} : vector<8x128xf32> -> vector<8x128xf32>
    %180 = arith.mulf %170, %113 : vector<8x128xf32>
    %181 = arith.mulf %163, %172 : vector<8x128xf32>
    %182 = arith.addf %180, %181 : vector<8x128xf32>
    %183 = math.tanh %182 : vector<8x128xf32>
    %184 = arith.mulf %179, %183 : vector<8x128xf32>
    %185 = arith.truncf %184 : vector<8x128xf32> to vector<8x128xbf16>
    %186 = arith.truncf %149 : vector<8x128xf32> to vector<8x128xbf16>
    %187 = tpu.concatenate %185, %186 in 1 : vector<8x128xbf16>, vector<8x128xbf16> -> vector<8x256xbf16>
    %c0_62 = arith.constant 0 : index
    %c0_63 = arith.constant 0 : index
    %188 = vector.load %arg4[%c0_62, %c0_63] : memref<256x512xbf16, #tpu.memory_space<vmem>>, vector<256x512xbf16>
    %cst_64 = arith.constant dense<0.000000e+00> : vector<8x512xf32>
    %189 = tpu.matmul %187, %188, %cst_64 {dimension_numbers = #tpu.dot_dimension_numbers<[1], [0], [0], [1], [0, 0, 1, 1], [], []>} : vector<8x256xbf16>, vector<256x512xbf16>, vector<8x512xf32> -> vector<8x512xf32>
    %190 = arith.addf %189, %10 : vector<8x512xf32>
    %191 = vector.extract_strided_slice %190 {offsets = [0, 0], sizes = [8, 128], strides = [1, 1]} : vector<8x512xf32> to vector<8x128xf32>
    %cst_65 = arith.constant 0.000000e+00 : f32
    %192 = vector.broadcast %cst_65 : f32 to vector<8x128xf32>
    %193 = arith.subf %192, %191 : vector<8x128xf32>
    %194 = math.exp %193 : vector<8x128xf32>
    %cst_66 = arith.constant 1.000000e+00 : f32
    %195 = vector.broadcast %cst_66 : f32 to vector<8x128xf32>
    %196 = arith.addf %195, %194 : vector<8x128xf32>
    %197 = tpu.reciprocal %196 {approx = true} : vector<8x128xf32> -> vector<8x128xf32>
    %198 = vector.extract_strided_slice %190 {offsets = [0, 128], sizes = [8, 128], strides = [1, 1]} : vector<8x512xf32> to vector<8x128xf32>
    %cst_67 = arith.constant 0.000000e+00 : f32
    %199 = vector.broadcast %cst_67 : f32 to vector<8x128xf32>
    %200 = arith.subf %199, %198 : vector<8x128xf32>
    %201 = math.exp %200 : vector<8x128xf32>
    %cst_68 = arith.constant 1.000000e+00 : f32
    %202 = vector.broadcast %cst_68 : f32 to vector<8x128xf32>
    %203 = arith.addf %202, %201 : vector<8x128xf32>
    %204 = tpu.reciprocal %203 {approx = true} : vector<8x128xf32> -> vector<8x128xf32>
    %205 = vector.extract_strided_slice %190 {offsets = [0, 256], sizes = [8, 128], strides = [1, 1]} : vector<8x512xf32> to vector<8x128xf32>
    %206 = math.tanh %205 : vector<8x128xf32>
    %207 = vector.extract_strided_slice %190 {offsets = [0, 384], sizes = [8, 128], strides = [1, 1]} : vector<8x512xf32> to vector<8x128xf32>
    %cst_69 = arith.constant 0.000000e+00 : f32
    %208 = vector.broadcast %cst_69 : f32 to vector<8x128xf32>
    %209 = arith.subf %208, %207 : vector<8x128xf32>
    %210 = math.exp %209 : vector<8x128xf32>
    %cst_70 = arith.constant 1.000000e+00 : f32
    %211 = vector.broadcast %cst_70 : f32 to vector<8x128xf32>
    %212 = arith.addf %211, %210 : vector<8x128xf32>
    %213 = tpu.reciprocal %212 {approx = true} : vector<8x128xf32> -> vector<8x128xf32>
    %214 = arith.mulf %204, %147 : vector<8x128xf32>
    %215 = arith.mulf %197, %206 : vector<8x128xf32>
    %216 = arith.addf %214, %215 : vector<8x128xf32>
    %217 = math.tanh %216 : vector<8x128xf32>
    %218 = arith.mulf %213, %217 : vector<8x128xf32>
    %c3_i32 = arith.constant 3 : i32
    %219 = arith.index_cast %c3_i32 : i32 to index
    %c0_71 = arith.constant 0 : index
    %c0_72 = arith.constant 0 : index
    %220 = vector.load %arg9[%219, %c0_71, %c0_72] : memref<16x8x512xf32, #tpu.memory_space<vmem>>, vector<1x8x512xf32>
    %221 = vector.shape_cast %220 : vector<1x8x512xf32> to vector<8x512xf32>
    %222 = arith.truncf %184 : vector<8x128xf32> to vector<8x128xbf16>
    %c0_73 = arith.constant 0 : index
    %c0_74 = arith.constant 0 : index
    %223 = vector.load %arg3[%c0_73, %c0_74] : memref<128x512xbf16, #tpu.memory_space<vmem>>, vector<128x512xbf16>
    %cst_75 = arith.constant dense<0.000000e+00> : vector<8x512xf32>
    %224 = tpu.matmul %222, %223, %cst_75 {dimension_numbers = #tpu.dot_dimension_numbers<[1], [0], [0], [1], [0, 0, 1, 1], [], []>} : vector<8x128xbf16>, vector<128x512xbf16>, vector<8x512xf32> -> vector<8x512xf32>
    %225 = arith.addf %221, %224 : vector<8x512xf32>
    %226 = vector.extract_strided_slice %225 {offsets = [0, 0], sizes = [8, 128], strides = [1, 1]} : vector<8x512xf32> to vector<8x128xf32>
    %cst_76 = arith.constant 0.000000e+00 : f32
    %227 = vector.broadcast %cst_76 : f32 to vector<8x128xf32>
    %228 = arith.subf %227, %226 : vector<8x128xf32>
    %229 = math.exp %228 : vector<8x128xf32>
    %cst_77 = arith.constant 1.000000e+00 : f32
    %230 = vector.broadcast %cst_77 : f32 to vector<8x128xf32>
    %231 = arith.addf %230, %229 : vector<8x128xf32>
    %232 = tpu.reciprocal %231 {approx = true} : vector<8x128xf32> -> vector<8x128xf32>
    %233 = vector.extract_strided_slice %225 {offsets = [0, 128], sizes = [8, 128], strides = [1, 1]} : vector<8x512xf32> to vector<8x128xf32>
    %cst_78 = arith.constant 0.000000e+00 : f32
    %234 = vector.broadcast %cst_78 : f32 to vector<8x128xf32>
    %235 = arith.subf %234, %233 : vector<8x128xf32>
    %236 = math.exp %235 : vector<8x128xf32>
    %cst_79 = arith.constant 1.000000e+00 : f32
    %237 = vector.broadcast %cst_79 : f32 to vector<8x128xf32>
    %238 = arith.addf %237, %236 : vector<8x128xf32>
    %239 = tpu.reciprocal %238 {approx = true} : vector<8x128xf32> -> vector<8x128xf32>
    %240 = vector.extract_strided_slice %225 {offsets = [0, 256], sizes = [8, 128], strides = [1, 1]} : vector<8x512xf32> to vector<8x128xf32>
    %241 = math.tanh %240 : vector<8x128xf32>
    %242 = vector.extract_strided_slice %225 {offsets = [0, 384], sizes = [8, 128], strides = [1, 1]} : vector<8x512xf32> to vector<8x128xf32>
    %cst_80 = arith.constant 0.000000e+00 : f32
    %243 = vector.broadcast %cst_80 : f32 to vector<8x128xf32>
    %244 = arith.subf %243, %242 : vector<8x128xf32>
    %245 = math.exp %244 : vector<8x128xf32>
    %cst_81 = arith.constant 1.000000e+00 : f32
    %246 = vector.broadcast %cst_81 : f32 to vector<8x128xf32>
    %247 = arith.addf %246, %245 : vector<8x128xf32>
    %248 = tpu.reciprocal %247 {approx = true} : vector<8x128xf32> -> vector<8x128xf32>
    %249 = arith.mulf %239, %182 : vector<8x128xf32>
    %250 = arith.mulf %232, %241 : vector<8x128xf32>
    %251 = arith.addf %249, %250 : vector<8x128xf32>
    %252 = math.tanh %251 : vector<8x128xf32>
    %253 = arith.mulf %248, %252 : vector<8x128xf32>
    %254 = arith.truncf %253 : vector<8x128xf32> to vector<8x128xbf16>
    %255 = arith.truncf %218 : vector<8x128xf32> to vector<8x128xbf16>
    %256 = tpu.concatenate %254, %255 in 1 : vector<8x128xbf16>, vector<8x128xbf16> -> vector<8x256xbf16>
    %c0_82 = arith.constant 0 : index
    %c0_83 = arith.constant 0 : index
    %257 = vector.load %arg4[%c0_82, %c0_83] : memref<256x512xbf16, #tpu.memory_space<vmem>>, vector<256x512xbf16>
    %cst_84 = arith.constant dense<0.000000e+00> : vector<8x512xf32>
    %258 = tpu.matmul %256, %257, %cst_84 {dimension_numbers = #tpu.dot_dimension_numbers<[1], [0], [0], [1], [0, 0, 1, 1], [], []>} : vector<8x256xbf16>, vector<256x512xbf16>, vector<8x512xf32> -> vector<8x512xf32>
    %259 = arith.addf %258, %10 : vector<8x512xf32>
    %260 = vector.extract_strided_slice %259 {offsets = [0, 0], sizes = [8, 128], strides = [1, 1]} : vector<8x512xf32> to vector<8x128xf32>
    %cst_85 = arith.constant 0.000000e+00 : f32
    %261 = vector.broadcast %cst_85 : f32 to vector<8x128xf32>
    %262 = arith.subf %261, %260 : vector<8x128xf32>
    %263 = math.exp %262 : vector<8x128xf32>
    %cst_86 = arith.constant 1.000000e+00 : f32
    %264 = vector.broadcast %cst_86 : f32 to vector<8x128xf32>
    %265 = arith.addf %264, %263 : vector<8x128xf32>
    %266 = tpu.reciprocal %265 {approx = true} : vector<8x128xf32> -> vector<8x128xf32>
    %267 = vector.extract_strided_slice %259 {offsets = [0, 128], sizes = [8, 128], strides = [1, 1]} : vector<8x512xf32> to vector<8x128xf32>
    %cst_87 = arith.constant 0.000000e+00 : f32
    %268 = vector.broadcast %cst_87 : f32 to vector<8x128xf32>
    %269 = arith.subf %268, %267 : vector<8x128xf32>
    %270 = math.exp %269 : vector<8x128xf32>
    %cst_88 = arith.constant 1.000000e+00 : f32
    %271 = vector.broadcast %cst_88 : f32 to vector<8x128xf32>
    %272 = arith.addf %271, %270 : vector<8x128xf32>
    %273 = tpu.reciprocal %272 {approx = true} : vector<8x128xf32> -> vector<8x128xf32>
    %274 = vector.extract_strided_slice %259 {offsets = [0, 256], sizes = [8, 128], strides = [1, 1]} : vector<8x512xf32> to vector<8x128xf32>
    %275 = math.tanh %274 : vector<8x128xf32>
    %276 = vector.extract_strided_slice %259 {offsets = [0, 384], sizes = [8, 128], strides = [1, 1]} : vector<8x512xf32> to vector<8x128xf32>
    %cst_89 = arith.constant 0.000000e+00 : f32
    %277 = vector.broadcast %cst_89 : f32 to vector<8x128xf32>
    %278 = arith.subf %277, %276 : vector<8x128xf32>
    %279 = math.exp %278 : vector<8x128xf32>
    %cst_90 = arith.constant 1.000000e+00 : f32
    %280 = vector.broadcast %cst_90 : f32 to vector<8x128xf32>
    %281 = arith.addf %280, %279 : vector<8x128xf32>
    %282 = tpu.reciprocal %281 {approx = true} : vector<8x128xf32> -> vector<8x128xf32>
    %283 = arith.mulf %273, %216 : vector<8x128xf32>
    %284 = arith.mulf %266, %275 : vector<8x128xf32>
    %285 = arith.addf %283, %284 : vector<8x128xf32>
    %286 = math.tanh %285 : vector<8x128xf32>
    %287 = arith.mulf %282, %286 : vector<8x128xf32>
    %c4_i32 = arith.constant 4 : i32
    %288 = arith.index_cast %c4_i32 : i32 to index
    %c0_91 = arith.constant 0 : index
    %c0_92 = arith.constant 0 : index
    %289 = vector.load %arg9[%288, %c0_91, %c0_92] : memref<16x8x512xf32, #tpu.memory_space<vmem>>, vector<1x8x512xf32>
    %290 = vector.shape_cast %289 : vector<1x8x512xf32> to vector<8x512xf32>
    %291 = arith.truncf %253 : vector<8x128xf32> to vector<8x128xbf16>
    %c0_93 = arith.constant 0 : index
    %c0_94 = arith.constant 0 : index
    %292 = vector.load %arg3[%c0_93, %c0_94] : memref<128x512xbf16, #tpu.memory_space<vmem>>, vector<128x512xbf16>
    %cst_95 = arith.constant dense<0.000000e+00> : vector<8x512xf32>
    %293 = tpu.matmul %291, %292, %cst_95 {dimension_numbers = #tpu.dot_dimension_numbers<[1], [0], [0], [1], [0, 0, 1, 1], [], []>} : vector<8x128xbf16>, vector<128x512xbf16>, vector<8x512xf32> -> vector<8x512xf32>
    %294 = arith.addf %290, %293 : vector<8x512xf32>
    %295 = vector.extract_strided_slice %294 {offsets = [0, 0], sizes = [8, 128], strides = [1, 1]} : vector<8x512xf32> to vector<8x128xf32>
    %cst_96 = arith.constant 0.000000e+00 : f32
    %296 = vector.broadcast %cst_96 : f32 to vector<8x128xf32>
    %297 = arith.subf %296, %295 : vector<8x128xf32>
    %298 = math.exp %297 : vector<8x128xf32>
    %cst_97 = arith.constant 1.000000e+00 : f32
    %299 = vector.broadcast %cst_97 : f32 to vector<8x128xf32>
    %300 = arith.addf %299, %298 : vector<8x128xf32>
    %301 = tpu.reciprocal %300 {approx = true} : vector<8x128xf32> -> vector<8x128xf32>
    %302 = vector.extract_strided_slice %294 {offsets = [0, 128], sizes = [8, 128], strides = [1, 1]} : vector<8x512xf32> to vector<8x128xf32>
    %cst_98 = arith.constant 0.000000e+00 : f32
    %303 = vector.broadcast %cst_98 : f32 to vector<8x128xf32>
    %304 = arith.subf %303, %302 : vector<8x128xf32>
    %305 = math.exp %304 : vector<8x128xf32>
    %cst_99 = arith.constant 1.000000e+00 : f32
    %306 = vector.broadcast %cst_99 : f32 to vector<8x128xf32>
    %307 = arith.addf %306, %305 : vector<8x128xf32>
    %308 = tpu.reciprocal %307 {approx = true} : vector<8x128xf32> -> vector<8x128xf32>
    %309 = vector.extract_strided_slice %294 {offsets = [0, 256], sizes = [8, 128], strides = [1, 1]} : vector<8x512xf32> to vector<8x128xf32>
    %310 = math.tanh %309 : vector<8x128xf32>
    %311 = vector.extract_strided_slice %294 {offsets = [0, 384], sizes = [8, 128], strides = [1, 1]} : vector<8x512xf32> to vector<8x128xf32>
    %cst_100 = arith.constant 0.000000e+00 : f32
    %312 = vector.broadcast %cst_100 : f32 to vector<8x128xf32>
    %313 = arith.subf %312, %311 : vector<8x128xf32>
    %314 = math.exp %313 : vector<8x128xf32>
    %cst_101 = arith.constant 1.000000e+00 : f32
    %315 = vector.broadcast %cst_101 : f32 to vector<8x128xf32>
    %316 = arith.addf %315, %314 : vector<8x128xf32>
    %317 = tpu.reciprocal %316 {approx = true} : vector<8x128xf32> -> vector<8x128xf32>
    %318 = arith.mulf %308, %251 : vector<8x128xf32>
    %319 = arith.mulf %301, %310 : vector<8x128xf32>
    %320 = arith.addf %318, %319 : vector<8x128xf32>
    %321 = math.tanh %320 : vector<8x128xf32>
    %322 = arith.mulf %317, %321 : vector<8x128xf32>
    %323 = arith.truncf %322 : vector<8x128xf32> to vector<8x128xbf16>
    %324 = arith.truncf %287 : vector<8x128xf32> to vector<8x128xbf16>
    %325 = tpu.concatenate %323, %324 in 1 : vector<8x128xbf16>, vector<8x128xbf16> -> vector<8x256xbf16>
    %c0_102 = arith.constant 0 : index
    %c0_103 = arith.constant 0 : index
    %326 = vector.load %arg4[%c0_102, %c0_103] : memref<256x512xbf16, #tpu.memory_space<vmem>>, vector<256x512xbf16>
    %cst_104 = arith.constant dense<0.000000e+00> : vector<8x512xf32>
    %327 = tpu.matmul %325, %326, %cst_104 {dimension_numbers = #tpu.dot_dimension_numbers<[1], [0], [0], [1], [0, 0, 1, 1], [], []>} : vector<8x256xbf16>, vector<256x512xbf16>, vector<8x512xf32> -> vector<8x512xf32>
    %328 = arith.addf %327, %10 : vector<8x512xf32>
    %329 = vector.extract_strided_slice %328 {offsets = [0, 0], sizes = [8, 128], strides = [1, 1]} : vector<8x512xf32> to vector<8x128xf32>
    %cst_105 = arith.constant 0.000000e+00 : f32
    %330 = vector.broadcast %cst_105 : f32 to vector<8x128xf32>
    %331 = arith.subf %330, %329 : vector<8x128xf32>
    %332 = math.exp %331 : vector<8x128xf32>
    %cst_106 = arith.constant 1.000000e+00 : f32
    %333 = vector.broadcast %cst_106 : f32 to vector<8x128xf32>
    %334 = arith.addf %333, %332 : vector<8x128xf32>
    %335 = tpu.reciprocal %334 {approx = true} : vector<8x128xf32> -> vector<8x128xf32>
    %336 = vector.extract_strided_slice %328 {offsets = [0, 128], sizes = [8, 128], strides = [1, 1]} : vector<8x512xf32> to vector<8x128xf32>
    %cst_107 = arith.constant 0.000000e+00 : f32
    %337 = vector.broadcast %cst_107 : f32 to vector<8x128xf32>
    %338 = arith.subf %337, %336 : vector<8x128xf32>
    %339 = math.exp %338 : vector<8x128xf32>
    %cst_108 = arith.constant 1.000000e+00 : f32
    %340 = vector.broadcast %cst_108 : f32 to vector<8x128xf32>
    %341 = arith.addf %340, %339 : vector<8x128xf32>
    %342 = tpu.reciprocal %341 {approx = true} : vector<8x128xf32> -> vector<8x128xf32>
    %343 = vector.extract_strided_slice %328 {offsets = [0, 256], sizes = [8, 128], strides = [1, 1]} : vector<8x512xf32> to vector<8x128xf32>
    %344 = math.tanh %343 : vector<8x128xf32>
    %345 = vector.extract_strided_slice %328 {offsets = [0, 384], sizes = [8, 128], strides = [1, 1]} : vector<8x512xf32> to vector<8x128xf32>
    %cst_109 = arith.constant 0.000000e+00 : f32
    %346 = vector.broadcast %cst_109 : f32 to vector<8x128xf32>
    %347 = arith.subf %346, %345 : vector<8x128xf32>
    %348 = math.exp %347 : vector<8x128xf32>
    %cst_110 = arith.constant 1.000000e+00 : f32
    %349 = vector.broadcast %cst_110 : f32 to vector<8x128xf32>
    %350 = arith.addf %349, %348 : vector<8x128xf32>
    %351 = tpu.reciprocal %350 {approx = true} : vector<8x128xf32> -> vector<8x128xf32>
    %352 = arith.mulf %342, %285 : vector<8x128xf32>
    %353 = arith.mulf %335, %344 : vector<8x128xf32>
    %354 = arith.addf %352, %353 : vector<8x128xf32>
    %355 = math.tanh %354 : vector<8x128xf32>
    %356 = arith.mulf %351, %355 : vector<8x128xf32>
    %c5_i32 = arith.constant 5 : i32
    %357 = arith.index_cast %c5_i32 : i32 to index
    %c0_111 = arith.constant 0 : index
    %c0_112 = arith.constant 0 : index
    %358 = vector.load %arg9[%357, %c0_111, %c0_112] : memref<16x8x512xf32, #tpu.memory_space<vmem>>, vector<1x8x512xf32>
    %359 = vector.shape_cast %358 : vector<1x8x512xf32> to vector<8x512xf32>
    %360 = arith.truncf %322 : vector<8x128xf32> to vector<8x128xbf16>
    %c0_113 = arith.constant 0 : index
    %c0_114 = arith.constant 0 : index
    %361 = vector.load %arg3[%c0_113, %c0_114] : memref<128x512xbf16, #tpu.memory_space<vmem>>, vector<128x512xbf16>
    %cst_115 = arith.constant dense<0.000000e+00> : vector<8x512xf32>
    %362 = tpu.matmul %360, %361, %cst_115 {dimension_numbers = #tpu.dot_dimension_numbers<[1], [0], [0], [1], [0, 0, 1, 1], [], []>} : vector<8x128xbf16>, vector<128x512xbf16>, vector<8x512xf32> -> vector<8x512xf32>
    %363 = arith.addf %359, %362 : vector<8x512xf32>
    %364 = vector.extract_strided_slice %363 {offsets = [0, 0], sizes = [8, 128], strides = [1, 1]} : vector<8x512xf32> to vector<8x128xf32>
    %cst_116 = arith.constant 0.000000e+00 : f32
    %365 = vector.broadcast %cst_116 : f32 to vector<8x128xf32>
    %366 = arith.subf %365, %364 : vector<8x128xf32>
    %367 = math.exp %366 : vector<8x128xf32>
    %cst_117 = arith.constant 1.000000e+00 : f32
    %368 = vector.broadcast %cst_117 : f32 to vector<8x128xf32>
    %369 = arith.addf %368, %367 : vector<8x128xf32>
    %370 = tpu.reciprocal %369 {approx = true} : vector<8x128xf32> -> vector<8x128xf32>
    %371 = vector.extract_strided_slice %363 {offsets = [0, 128], sizes = [8, 128], strides = [1, 1]} : vector<8x512xf32> to vector<8x128xf32>
    %cst_118 = arith.constant 0.000000e+00 : f32
    %372 = vector.broadcast %cst_118 : f32 to vector<8x128xf32>
    %373 = arith.subf %372, %371 : vector<8x128xf32>
    %374 = math.exp %373 : vector<8x128xf32>
    %cst_119 = arith.constant 1.000000e+00 : f32
    %375 = vector.broadcast %cst_119 : f32 to vector<8x128xf32>
    %376 = arith.addf %375, %374 : vector<8x128xf32>
    %377 = tpu.reciprocal %376 {approx = true} : vector<8x128xf32> -> vector<8x128xf32>
    %378 = vector.extract_strided_slice %363 {offsets = [0, 256], sizes = [8, 128], strides = [1, 1]} : vector<8x512xf32> to vector<8x128xf32>
    %379 = math.tanh %378 : vector<8x128xf32>
    %380 = vector.extract_strided_slice %363 {offsets = [0, 384], sizes = [8, 128], strides = [1, 1]} : vector<8x512xf32> to vector<8x128xf32>
    %cst_120 = arith.constant 0.000000e+00 : f32
    %381 = vector.broadcast %cst_120 : f32 to vector<8x128xf32>
    %382 = arith.subf %381, %380 : vector<8x128xf32>
    %383 = math.exp %382 : vector<8x128xf32>
    %cst_121 = arith.constant 1.000000e+00 : f32
    %384 = vector.broadcast %cst_121 : f32 to vector<8x128xf32>
    %385 = arith.addf %384, %383 : vector<8x128xf32>
    %386 = tpu.reciprocal %385 {approx = true} : vector<8x128xf32> -> vector<8x128xf32>
    %387 = arith.mulf %377, %320 : vector<8x128xf32>
    %388 = arith.mulf %370, %379 : vector<8x128xf32>
    %389 = arith.addf %387, %388 : vector<8x128xf32>
    %390 = math.tanh %389 : vector<8x128xf32>
    %391 = arith.mulf %386, %390 : vector<8x128xf32>
    %392 = arith.truncf %391 : vector<8x128xf32> to vector<8x128xbf16>
    %393 = arith.truncf %356 : vector<8x128xf32> to vector<8x128xbf16>
    %394 = tpu.concatenate %392, %393 in 1 : vector<8x128xbf16>, vector<8x128xbf16> -> vector<8x256xbf16>
    %c0_122 = arith.constant 0 : index
    %c0_123 = arith.constant 0 : index
    %395 = vector.load %arg4[%c0_122, %c0_123] : memref<256x512xbf16, #tpu.memory_space<vmem>>, vector<256x512xbf16>
    %cst_124 = arith.constant dense<0.000000e+00> : vector<8x512xf32>
    %396 = tpu.matmul %394, %395, %cst_124 {dimension_numbers = #tpu.dot_dimension_numbers<[1], [0], [0], [1], [0, 0, 1, 1], [], []>} : vector<8x256xbf16>, vector<256x512xbf16>, vector<8x512xf32> -> vector<8x512xf32>
    %397 = arith.addf %396, %10 : vector<8x512xf32>
    %398 = vector.extract_strided_slice %397 {offsets = [0, 0], sizes = [8, 128], strides = [1, 1]} : vector<8x512xf32> to vector<8x128xf32>
    %cst_125 = arith.constant 0.000000e+00 : f32
    %399 = vector.broadcast %cst_125 : f32 to vector<8x128xf32>
    %400 = arith.subf %399, %398 : vector<8x128xf32>
    %401 = math.exp %400 : vector<8x128xf32>
    %cst_126 = arith.constant 1.000000e+00 : f32
    %402 = vector.broadcast %cst_126 : f32 to vector<8x128xf32>
    %403 = arith.addf %402, %401 : vector<8x128xf32>
    %404 = tpu.reciprocal %403 {approx = true} : vector<8x128xf32> -> vector<8x128xf32>
    %405 = vector.extract_strided_slice %397 {offsets = [0, 128], sizes = [8, 128], strides = [1, 1]} : vector<8x512xf32> to vector<8x128xf32>
    %cst_127 = arith.constant 0.000000e+00 : f32
    %406 = vector.broadcast %cst_127 : f32 to vector<8x128xf32>
    %407 = arith.subf %406, %405 : vector<8x128xf32>
    %408 = math.exp %407 : vector<8x128xf32>
    %cst_128 = arith.constant 1.000000e+00 : f32
    %409 = vector.broadcast %cst_128 : f32 to vector<8x128xf32>
    %410 = arith.addf %409, %408 : vector<8x128xf32>
    %411 = tpu.reciprocal %410 {approx = true} : vector<8x128xf32> -> vector<8x128xf32>
    %412 = vector.extract_strided_slice %397 {offsets = [0, 256], sizes = [8, 128], strides = [1, 1]} : vector<8x512xf32> to vector<8x128xf32>
    %413 = math.tanh %412 : vector<8x128xf32>
    %414 = vector.extract_strided_slice %397 {offsets = [0, 384], sizes = [8, 128], strides = [1, 1]} : vector<8x512xf32> to vector<8x128xf32>
    %cst_129 = arith.constant 0.000000e+00 : f32
    %415 = vector.broadcast %cst_129 : f32 to vector<8x128xf32>
    %416 = arith.subf %415, %414 : vector<8x128xf32>
    %417 = math.exp %416 : vector<8x128xf32>
    %cst_130 = arith.constant 1.000000e+00 : f32
    %418 = vector.broadcast %cst_130 : f32 to vector<8x128xf32>
    %419 = arith.addf %418, %417 : vector<8x128xf32>
    %420 = tpu.reciprocal %419 {approx = true} : vector<8x128xf32> -> vector<8x128xf32>
    %421 = arith.mulf %411, %354 : vector<8x128xf32>
    %422 = arith.mulf %404, %413 : vector<8x128xf32>
    %423 = arith.addf %421, %422 : vector<8x128xf32>
    %424 = math.tanh %423 : vector<8x128xf32>
    %425 = arith.mulf %420, %424 : vector<8x128xf32>
    %c6_i32 = arith.constant 6 : i32
    %426 = arith.index_cast %c6_i32 : i32 to index
    %c0_131 = arith.constant 0 : index
    %c0_132 = arith.constant 0 : index
    %427 = vector.load %arg9[%426, %c0_131, %c0_132] : memref<16x8x512xf32, #tpu.memory_space<vmem>>, vector<1x8x512xf32>
    %428 = vector.shape_cast %427 : vector<1x8x512xf32> to vector<8x512xf32>
    %429 = arith.truncf %391 : vector<8x128xf32> to vector<8x128xbf16>
    %c0_133 = arith.constant 0 : index
    %c0_134 = arith.constant 0 : index
    %430 = vector.load %arg3[%c0_133, %c0_134] : memref<128x512xbf16, #tpu.memory_space<vmem>>, vector<128x512xbf16>
    %cst_135 = arith.constant dense<0.000000e+00> : vector<8x512xf32>
    %431 = tpu.matmul %429, %430, %cst_135 {dimension_numbers = #tpu.dot_dimension_numbers<[1], [0], [0], [1], [0, 0, 1, 1], [], []>} : vector<8x128xbf16>, vector<128x512xbf16>, vector<8x512xf32> -> vector<8x512xf32>
    %432 = arith.addf %428, %431 : vector<8x512xf32>
    %433 = vector.extract_strided_slice %432 {offsets = [0, 0], sizes = [8, 128], strides = [1, 1]} : vector<8x512xf32> to vector<8x128xf32>
    %cst_136 = arith.constant 0.000000e+00 : f32
    %434 = vector.broadcast %cst_136 : f32 to vector<8x128xf32>
    %435 = arith.subf %434, %433 : vector<8x128xf32>
    %436 = math.exp %435 : vector<8x128xf32>
    %cst_137 = arith.constant 1.000000e+00 : f32
    %437 = vector.broadcast %cst_137 : f32 to vector<8x128xf32>
    %438 = arith.addf %437, %436 : vector<8x128xf32>
    %439 = tpu.reciprocal %438 {approx = true} : vector<8x128xf32> -> vector<8x128xf32>
    %440 = vector.extract_strided_slice %432 {offsets = [0, 128], sizes = [8, 128], strides = [1, 1]} : vector<8x512xf32> to vector<8x128xf32>
    %cst_138 = arith.constant 0.000000e+00 : f32
    %441 = vector.broadcast %cst_138 : f32 to vector<8x128xf32>
    %442 = arith.subf %441, %440 : vector<8x128xf32>
    %443 = math.exp %442 : vector<8x128xf32>
    %cst_139 = arith.constant 1.000000e+00 : f32
    %444 = vector.broadcast %cst_139 : f32 to vector<8x128xf32>
    %445 = arith.addf %444, %443 : vector<8x128xf32>
    %446 = tpu.reciprocal %445 {approx = true} : vector<8x128xf32> -> vector<8x128xf32>
    %447 = vector.extract_strided_slice %432 {offsets = [0, 256], sizes = [8, 128], strides = [1, 1]} : vector<8x512xf32> to vector<8x128xf32>
    %448 = math.tanh %447 : vector<8x128xf32>
    %449 = vector.extract_strided_slice %432 {offsets = [0, 384], sizes = [8, 128], strides = [1, 1]} : vector<8x512xf32> to vector<8x128xf32>
    %cst_140 = arith.constant 0.000000e+00 : f32
    %450 = vector.broadcast %cst_140 : f32 to vector<8x128xf32>
    %451 = arith.subf %450, %449 : vector<8x128xf32>
    %452 = math.exp %451 : vector<8x128xf32>
    %cst_141 = arith.constant 1.000000e+00 : f32
    %453 = vector.broadcast %cst_141 : f32 to vector<8x128xf32>
    %454 = arith.addf %453, %452 : vector<8x128xf32>
    %455 = tpu.reciprocal %454 {approx = true} : vector<8x128xf32> -> vector<8x128xf32>
    %456 = arith.mulf %446, %389 : vector<8x128xf32>
    %457 = arith.mulf %439, %448 : vector<8x128xf32>
    %458 = arith.addf %456, %457 : vector<8x128xf32>
    %459 = math.tanh %458 : vector<8x128xf32>
    %460 = arith.mulf %455, %459 : vector<8x128xf32>
    %461 = arith.truncf %460 : vector<8x128xf32> to vector<8x128xbf16>
    %462 = arith.truncf %425 : vector<8x128xf32> to vector<8x128xbf16>
    %463 = tpu.concatenate %461, %462 in 1 : vector<8x128xbf16>, vector<8x128xbf16> -> vector<8x256xbf16>
    %c0_142 = arith.constant 0 : index
    %c0_143 = arith.constant 0 : index
    %464 = vector.load %arg4[%c0_142, %c0_143] : memref<256x512xbf16, #tpu.memory_space<vmem>>, vector<256x512xbf16>
    %cst_144 = arith.constant dense<0.000000e+00> : vector<8x512xf32>
    %465 = tpu.matmul %463, %464, %cst_144 {dimension_numbers = #tpu.dot_dimension_numbers<[1], [0], [0], [1], [0, 0, 1, 1], [], []>} : vector<8x256xbf16>, vector<256x512xbf16>, vector<8x512xf32> -> vector<8x512xf32>
    %466 = arith.addf %465, %10 : vector<8x512xf32>
    %467 = vector.extract_strided_slice %466 {offsets = [0, 0], sizes = [8, 128], strides = [1, 1]} : vector<8x512xf32> to vector<8x128xf32>
    %cst_145 = arith.constant 0.000000e+00 : f32
    %468 = vector.broadcast %cst_145 : f32 to vector<8x128xf32>
    %469 = arith.subf %468, %467 : vector<8x128xf32>
    %470 = math.exp %469 : vector<8x128xf32>
    %cst_146 = arith.constant 1.000000e+00 : f32
    %471 = vector.broadcast %cst_146 : f32 to vector<8x128xf32>
    %472 = arith.addf %471, %470 : vector<8x128xf32>
    %473 = tpu.reciprocal %472 {approx = true} : vector<8x128xf32> -> vector<8x128xf32>
    %474 = vector.extract_strided_slice %466 {offsets = [0, 128], sizes = [8, 128], strides = [1, 1]} : vector<8x512xf32> to vector<8x128xf32>
    %cst_147 = arith.constant 0.000000e+00 : f32
    %475 = vector.broadcast %cst_147 : f32 to vector<8x128xf32>
    %476 = arith.subf %475, %474 : vector<8x128xf32>
    %477 = math.exp %476 : vector<8x128xf32>
    %cst_148 = arith.constant 1.000000e+00 : f32
    %478 = vector.broadcast %cst_148 : f32 to vector<8x128xf32>
    %479 = arith.addf %478, %477 : vector<8x128xf32>
    %480 = tpu.reciprocal %479 {approx = true} : vector<8x128xf32> -> vector<8x128xf32>
    %481 = vector.extract_strided_slice %466 {offsets = [0, 256], sizes = [8, 128], strides = [1, 1]} : vector<8x512xf32> to vector<8x128xf32>
    %482 = math.tanh %481 : vector<8x128xf32>
    %483 = vector.extract_strided_slice %466 {offsets = [0, 384], sizes = [8, 128], strides = [1, 1]} : vector<8x512xf32> to vector<8x128xf32>
    %cst_149 = arith.constant 0.000000e+00 : f32
    %484 = vector.broadcast %cst_149 : f32 to vector<8x128xf32>
    %485 = arith.subf %484, %483 : vector<8x128xf32>
    %486 = math.exp %485 : vector<8x128xf32>
    %cst_150 = arith.constant 1.000000e+00 : f32
    %487 = vector.broadcast %cst_150 : f32 to vector<8x128xf32>
    %488 = arith.addf %487, %486 : vector<8x128xf32>
    %489 = tpu.reciprocal %488 {approx = true} : vector<8x128xf32> -> vector<8x128xf32>
    %490 = arith.mulf %480, %423 : vector<8x128xf32>
    %491 = arith.mulf %473, %482 : vector<8x128xf32>
    %492 = arith.addf %490, %491 : vector<8x128xf32>
    %493 = math.tanh %492 : vector<8x128xf32>
    %494 = arith.mulf %489, %493 : vector<8x128xf32>
    %c7_i32 = arith.constant 7 : i32
    %495 = arith.index_cast %c7_i32 : i32 to index
    %c0_151 = arith.constant 0 : index
    %c0_152 = arith.constant 0 : index
    %496 = vector.load %arg9[%495, %c0_151, %c0_152] : memref<16x8x512xf32, #tpu.memory_space<vmem>>, vector<1x8x512xf32>
    %497 = vector.shape_cast %496 : vector<1x8x512xf32> to vector<8x512xf32>
    %498 = arith.truncf %460 : vector<8x128xf32> to vector<8x128xbf16>
    %c0_153 = arith.constant 0 : index
    %c0_154 = arith.constant 0 : index
    %499 = vector.load %arg3[%c0_153, %c0_154] : memref<128x512xbf16, #tpu.memory_space<vmem>>, vector<128x512xbf16>
    %cst_155 = arith.constant dense<0.000000e+00> : vector<8x512xf32>
    %500 = tpu.matmul %498, %499, %cst_155 {dimension_numbers = #tpu.dot_dimension_numbers<[1], [0], [0], [1], [0, 0, 1, 1], [], []>} : vector<8x128xbf16>, vector<128x512xbf16>, vector<8x512xf32> -> vector<8x512xf32>
    %501 = arith.addf %497, %500 : vector<8x512xf32>
    %502 = vector.extract_strided_slice %501 {offsets = [0, 0], sizes = [8, 128], strides = [1, 1]} : vector<8x512xf32> to vector<8x128xf32>
    %cst_156 = arith.constant 0.000000e+00 : f32
    %503 = vector.broadcast %cst_156 : f32 to vector<8x128xf32>
    %504 = arith.subf %503, %502 : vector<8x128xf32>
    %505 = math.exp %504 : vector<8x128xf32>
    %cst_157 = arith.constant 1.000000e+00 : f32
    %506 = vector.broadcast %cst_157 : f32 to vector<8x128xf32>
    %507 = arith.addf %506, %505 : vector<8x128xf32>
    %508 = tpu.reciprocal %507 {approx = true} : vector<8x128xf32> -> vector<8x128xf32>
    %509 = vector.extract_strided_slice %501 {offsets = [0, 128], sizes = [8, 128], strides = [1, 1]} : vector<8x512xf32> to vector<8x128xf32>
    %cst_158 = arith.constant 0.000000e+00 : f32
    %510 = vector.broadcast %cst_158 : f32 to vector<8x128xf32>
    %511 = arith.subf %510, %509 : vector<8x128xf32>
    %512 = math.exp %511 : vector<8x128xf32>
    %cst_159 = arith.constant 1.000000e+00 : f32
    %513 = vector.broadcast %cst_159 : f32 to vector<8x128xf32>
    %514 = arith.addf %513, %512 : vector<8x128xf32>
    %515 = tpu.reciprocal %514 {approx = true} : vector<8x128xf32> -> vector<8x128xf32>
    %516 = vector.extract_strided_slice %501 {offsets = [0, 256], sizes = [8, 128], strides = [1, 1]} : vector<8x512xf32> to vector<8x128xf32>
    %517 = math.tanh %516 : vector<8x128xf32>
    %518 = vector.extract_strided_slice %501 {offsets = [0, 384], sizes = [8, 128], strides = [1, 1]} : vector<8x512xf32> to vector<8x128xf32>
    %cst_160 = arith.constant 0.000000e+00 : f32
    %519 = vector.broadcast %cst_160 : f32 to vector<8x128xf32>
    %520 = arith.subf %519, %518 : vector<8x128xf32>
    %521 = math.exp %520 : vector<8x128xf32>
    %cst_161 = arith.constant 1.000000e+00 : f32
    %522 = vector.broadcast %cst_161 : f32 to vector<8x128xf32>
    %523 = arith.addf %522, %521 : vector<8x128xf32>
    %524 = tpu.reciprocal %523 {approx = true} : vector<8x128xf32> -> vector<8x128xf32>
    %525 = arith.mulf %515, %458 : vector<8x128xf32>
    %526 = arith.mulf %508, %517 : vector<8x128xf32>
    %527 = arith.addf %525, %526 : vector<8x128xf32>
    %528 = math.tanh %527 : vector<8x128xf32>
    %529 = arith.mulf %524, %528 : vector<8x128xf32>
    %530 = arith.truncf %529 : vector<8x128xf32> to vector<8x128xbf16>
    %531 = arith.truncf %494 : vector<8x128xf32> to vector<8x128xbf16>
    %532 = tpu.concatenate %530, %531 in 1 : vector<8x128xbf16>, vector<8x128xbf16> -> vector<8x256xbf16>
    %c0_162 = arith.constant 0 : index
    %c0_163 = arith.constant 0 : index
    %533 = vector.load %arg4[%c0_162, %c0_163] : memref<256x512xbf16, #tpu.memory_space<vmem>>, vector<256x512xbf16>
    %cst_164 = arith.constant dense<0.000000e+00> : vector<8x512xf32>
    %534 = tpu.matmul %532, %533, %cst_164 {dimension_numbers = #tpu.dot_dimension_numbers<[1], [0], [0], [1], [0, 0, 1, 1], [], []>} : vector<8x256xbf16>, vector<256x512xbf16>, vector<8x512xf32> -> vector<8x512xf32>
    %535 = arith.addf %534, %10 : vector<8x512xf32>
    %536 = vector.extract_strided_slice %535 {offsets = [0, 0], sizes = [8, 128], strides = [1, 1]} : vector<8x512xf32> to vector<8x128xf32>
    %cst_165 = arith.constant 0.000000e+00 : f32
    %537 = vector.broadcast %cst_165 : f32 to vector<8x128xf32>
    %538 = arith.subf %537, %536 : vector<8x128xf32>
    %539 = math.exp %538 : vector<8x128xf32>
    %cst_166 = arith.constant 1.000000e+00 : f32
    %540 = vector.broadcast %cst_166 : f32 to vector<8x128xf32>
    %541 = arith.addf %540, %539 : vector<8x128xf32>
    %542 = tpu.reciprocal %541 {approx = true} : vector<8x128xf32> -> vector<8x128xf32>
    %543 = vector.extract_strided_slice %535 {offsets = [0, 128], sizes = [8, 128], strides = [1, 1]} : vector<8x512xf32> to vector<8x128xf32>
    %cst_167 = arith.constant 0.000000e+00 : f32
    %544 = vector.broadcast %cst_167 : f32 to vector<8x128xf32>
    %545 = arith.subf %544, %543 : vector<8x128xf32>
    %546 = math.exp %545 : vector<8x128xf32>
    %cst_168 = arith.constant 1.000000e+00 : f32
    %547 = vector.broadcast %cst_168 : f32 to vector<8x128xf32>
    %548 = arith.addf %547, %546 : vector<8x128xf32>
    %549 = tpu.reciprocal %548 {approx = true} : vector<8x128xf32> -> vector<8x128xf32>
    %550 = vector.extract_strided_slice %535 {offsets = [0, 256], sizes = [8, 128], strides = [1, 1]} : vector<8x512xf32> to vector<8x128xf32>
    %551 = math.tanh %550 : vector<8x128xf32>
    %552 = vector.extract_strided_slice %535 {offsets = [0, 384], sizes = [8, 128], strides = [1, 1]} : vector<8x512xf32> to vector<8x128xf32>
    %cst_169 = arith.constant 0.000000e+00 : f32
    %553 = vector.broadcast %cst_169 : f32 to vector<8x128xf32>
    %554 = arith.subf %553, %552 : vector<8x128xf32>
    %555 = math.exp %554 : vector<8x128xf32>
    %cst_170 = arith.constant 1.000000e+00 : f32
    %556 = vector.broadcast %cst_170 : f32 to vector<8x128xf32>
    %557 = arith.addf %556, %555 : vector<8x128xf32>
    %558 = tpu.reciprocal %557 {approx = true} : vector<8x128xf32> -> vector<8x128xf32>
    %559 = arith.mulf %549, %492 : vector<8x128xf32>
    %560 = arith.mulf %542, %551 : vector<8x128xf32>
    %561 = arith.addf %559, %560 : vector<8x128xf32>
    %562 = math.tanh %561 : vector<8x128xf32>
    %563 = arith.mulf %558, %562 : vector<8x128xf32>
    %c8_i32 = arith.constant 8 : i32
    %564 = arith.index_cast %c8_i32 : i32 to index
    %c0_171 = arith.constant 0 : index
    %c0_172 = arith.constant 0 : index
    %565 = vector.load %arg9[%564, %c0_171, %c0_172] : memref<16x8x512xf32, #tpu.memory_space<vmem>>, vector<1x8x512xf32>
    %566 = vector.shape_cast %565 : vector<1x8x512xf32> to vector<8x512xf32>
    %567 = arith.truncf %529 : vector<8x128xf32> to vector<8x128xbf16>
    %c0_173 = arith.constant 0 : index
    %c0_174 = arith.constant 0 : index
    %568 = vector.load %arg3[%c0_173, %c0_174] : memref<128x512xbf16, #tpu.memory_space<vmem>>, vector<128x512xbf16>
    %cst_175 = arith.constant dense<0.000000e+00> : vector<8x512xf32>
    %569 = tpu.matmul %567, %568, %cst_175 {dimension_numbers = #tpu.dot_dimension_numbers<[1], [0], [0], [1], [0, 0, 1, 1], [], []>} : vector<8x128xbf16>, vector<128x512xbf16>, vector<8x512xf32> -> vector<8x512xf32>
    %570 = arith.addf %566, %569 : vector<8x512xf32>
    %571 = vector.extract_strided_slice %570 {offsets = [0, 0], sizes = [8, 128], strides = [1, 1]} : vector<8x512xf32> to vector<8x128xf32>
    %cst_176 = arith.constant 0.000000e+00 : f32
    %572 = vector.broadcast %cst_176 : f32 to vector<8x128xf32>
    %573 = arith.subf %572, %571 : vector<8x128xf32>
    %574 = math.exp %573 : vector<8x128xf32>
    %cst_177 = arith.constant 1.000000e+00 : f32
    %575 = vector.broadcast %cst_177 : f32 to vector<8x128xf32>
    %576 = arith.addf %575, %574 : vector<8x128xf32>
    %577 = tpu.reciprocal %576 {approx = true} : vector<8x128xf32> -> vector<8x128xf32>
    %578 = vector.extract_strided_slice %570 {offsets = [0, 128], sizes = [8, 128], strides = [1, 1]} : vector<8x512xf32> to vector<8x128xf32>
    %cst_178 = arith.constant 0.000000e+00 : f32
    %579 = vector.broadcast %cst_178 : f32 to vector<8x128xf32>
    %580 = arith.subf %579, %578 : vector<8x128xf32>
    %581 = math.exp %580 : vector<8x128xf32>
    %cst_179 = arith.constant 1.000000e+00 : f32
    %582 = vector.broadcast %cst_179 : f32 to vector<8x128xf32>
    %583 = arith.addf %582, %581 : vector<8x128xf32>
    %584 = tpu.reciprocal %583 {approx = true} : vector<8x128xf32> -> vector<8x128xf32>
    %585 = vector.extract_strided_slice %570 {offsets = [0, 256], sizes = [8, 128], strides = [1, 1]} : vector<8x512xf32> to vector<8x128xf32>
    %586 = math.tanh %585 : vector<8x128xf32>
    %587 = vector.extract_strided_slice %570 {offsets = [0, 384], sizes = [8, 128], strides = [1, 1]} : vector<8x512xf32> to vector<8x128xf32>
    %cst_180 = arith.constant 0.000000e+00 : f32
    %588 = vector.broadcast %cst_180 : f32 to vector<8x128xf32>
    %589 = arith.subf %588, %587 : vector<8x128xf32>
    %590 = math.exp %589 : vector<8x128xf32>
    %cst_181 = arith.constant 1.000000e+00 : f32
    %591 = vector.broadcast %cst_181 : f32 to vector<8x128xf32>
    %592 = arith.addf %591, %590 : vector<8x128xf32>
    %593 = tpu.reciprocal %592 {approx = true} : vector<8x128xf32> -> vector<8x128xf32>
    %594 = arith.mulf %584, %527 : vector<8x128xf32>
    %595 = arith.mulf %577, %586 : vector<8x128xf32>
    %596 = arith.addf %594, %595 : vector<8x128xf32>
    %597 = math.tanh %596 : vector<8x128xf32>
    %598 = arith.mulf %593, %597 : vector<8x128xf32>
    %599 = arith.truncf %598 : vector<8x128xf32> to vector<8x128xbf16>
    %600 = arith.truncf %563 : vector<8x128xf32> to vector<8x128xbf16>
    %601 = tpu.concatenate %599, %600 in 1 : vector<8x128xbf16>, vector<8x128xbf16> -> vector<8x256xbf16>
    %c0_182 = arith.constant 0 : index
    %c0_183 = arith.constant 0 : index
    %602 = vector.load %arg4[%c0_182, %c0_183] : memref<256x512xbf16, #tpu.memory_space<vmem>>, vector<256x512xbf16>
    %cst_184 = arith.constant dense<0.000000e+00> : vector<8x512xf32>
    %603 = tpu.matmul %601, %602, %cst_184 {dimension_numbers = #tpu.dot_dimension_numbers<[1], [0], [0], [1], [0, 0, 1, 1], [], []>} : vector<8x256xbf16>, vector<256x512xbf16>, vector<8x512xf32> -> vector<8x512xf32>
    %604 = arith.addf %603, %10 : vector<8x512xf32>
    %605 = vector.extract_strided_slice %604 {offsets = [0, 0], sizes = [8, 128], strides = [1, 1]} : vector<8x512xf32> to vector<8x128xf32>
    %cst_185 = arith.constant 0.000000e+00 : f32
    %606 = vector.broadcast %cst_185 : f32 to vector<8x128xf32>
    %607 = arith.subf %606, %605 : vector<8x128xf32>
    %608 = math.exp %607 : vector<8x128xf32>
    %cst_186 = arith.constant 1.000000e+00 : f32
    %609 = vector.broadcast %cst_186 : f32 to vector<8x128xf32>
    %610 = arith.addf %609, %608 : vector<8x128xf32>
    %611 = tpu.reciprocal %610 {approx = true} : vector<8x128xf32> -> vector<8x128xf32>
    %612 = vector.extract_strided_slice %604 {offsets = [0, 128], sizes = [8, 128], strides = [1, 1]} : vector<8x512xf32> to vector<8x128xf32>
    %cst_187 = arith.constant 0.000000e+00 : f32
    %613 = vector.broadcast %cst_187 : f32 to vector<8x128xf32>
    %614 = arith.subf %613, %612 : vector<8x128xf32>
    %615 = math.exp %614 : vector<8x128xf32>
    %cst_188 = arith.constant 1.000000e+00 : f32
    %616 = vector.broadcast %cst_188 : f32 to vector<8x128xf32>
    %617 = arith.addf %616, %615 : vector<8x128xf32>
    %618 = tpu.reciprocal %617 {approx = true} : vector<8x128xf32> -> vector<8x128xf32>
    %619 = vector.extract_strided_slice %604 {offsets = [0, 256], sizes = [8, 128], strides = [1, 1]} : vector<8x512xf32> to vector<8x128xf32>
    %620 = math.tanh %619 : vector<8x128xf32>
    %621 = vector.extract_strided_slice %604 {offsets = [0, 384], sizes = [8, 128], strides = [1, 1]} : vector<8x512xf32> to vector<8x128xf32>
    %cst_189 = arith.constant 0.000000e+00 : f32
    %622 = vector.broadcast %cst_189 : f32 to vector<8x128xf32>
    %623 = arith.subf %622, %621 : vector<8x128xf32>
    %624 = math.exp %623 : vector<8x128xf32>
    %cst_190 = arith.constant 1.000000e+00 : f32
    %625 = vector.broadcast %cst_190 : f32 to vector<8x128xf32>
    %626 = arith.addf %625, %624 : vector<8x128xf32>
    %627 = tpu.reciprocal %626 {approx = true} : vector<8x128xf32> -> vector<8x128xf32>
    %628 = arith.mulf %618, %561 : vector<8x128xf32>
    %629 = arith.mulf %611, %620 : vector<8x128xf32>
    %630 = arith.addf %628, %629 : vector<8x128xf32>
    %631 = math.tanh %630 : vector<8x128xf32>
    %632 = arith.mulf %627, %631 : vector<8x128xf32>
    %c9_i32 = arith.constant 9 : i32
    %633 = arith.index_cast %c9_i32 : i32 to index
    %c0_191 = arith.constant 0 : index
    %c0_192 = arith.constant 0 : index
    %634 = vector.load %arg9[%633, %c0_191, %c0_192] : memref<16x8x512xf32, #tpu.memory_space<vmem>>, vector<1x8x512xf32>
    %635 = vector.shape_cast %634 : vector<1x8x512xf32> to vector<8x512xf32>
    %636 = arith.truncf %598 : vector<8x128xf32> to vector<8x128xbf16>
    %c0_193 = arith.constant 0 : index
    %c0_194 = arith.constant 0 : index
    %637 = vector.load %arg3[%c0_193, %c0_194] : memref<128x512xbf16, #tpu.memory_space<vmem>>, vector<128x512xbf16>
    %cst_195 = arith.constant dense<0.000000e+00> : vector<8x512xf32>
    %638 = tpu.matmul %636, %637, %cst_195 {dimension_numbers = #tpu.dot_dimension_numbers<[1], [0], [0], [1], [0, 0, 1, 1], [], []>} : vector<8x128xbf16>, vector<128x512xbf16>, vector<8x512xf32> -> vector<8x512xf32>
    %639 = arith.addf %635, %638 : vector<8x512xf32>
    %640 = vector.extract_strided_slice %639 {offsets = [0, 0], sizes = [8, 128], strides = [1, 1]} : vector<8x512xf32> to vector<8x128xf32>
    %cst_196 = arith.constant 0.000000e+00 : f32
    %641 = vector.broadcast %cst_196 : f32 to vector<8x128xf32>
    %642 = arith.subf %641, %640 : vector<8x128xf32>
    %643 = math.exp %642 : vector<8x128xf32>
    %cst_197 = arith.constant 1.000000e+00 : f32
    %644 = vector.broadcast %cst_197 : f32 to vector<8x128xf32>
    %645 = arith.addf %644, %643 : vector<8x128xf32>
    %646 = tpu.reciprocal %645 {approx = true} : vector<8x128xf32> -> vector<8x128xf32>
    %647 = vector.extract_strided_slice %639 {offsets = [0, 128], sizes = [8, 128], strides = [1, 1]} : vector<8x512xf32> to vector<8x128xf32>
    %cst_198 = arith.constant 0.000000e+00 : f32
    %648 = vector.broadcast %cst_198 : f32 to vector<8x128xf32>
    %649 = arith.subf %648, %647 : vector<8x128xf32>
    %650 = math.exp %649 : vector<8x128xf32>
    %cst_199 = arith.constant 1.000000e+00 : f32
    %651 = vector.broadcast %cst_199 : f32 to vector<8x128xf32>
    %652 = arith.addf %651, %650 : vector<8x128xf32>
    %653 = tpu.reciprocal %652 {approx = true} : vector<8x128xf32> -> vector<8x128xf32>
    %654 = vector.extract_strided_slice %639 {offsets = [0, 256], sizes = [8, 128], strides = [1, 1]} : vector<8x512xf32> to vector<8x128xf32>
    %655 = math.tanh %654 : vector<8x128xf32>
    %656 = vector.extract_strided_slice %639 {offsets = [0, 384], sizes = [8, 128], strides = [1, 1]} : vector<8x512xf32> to vector<8x128xf32>
    %cst_200 = arith.constant 0.000000e+00 : f32
    %657 = vector.broadcast %cst_200 : f32 to vector<8x128xf32>
    %658 = arith.subf %657, %656 : vector<8x128xf32>
    %659 = math.exp %658 : vector<8x128xf32>
    %cst_201 = arith.constant 1.000000e+00 : f32
    %660 = vector.broadcast %cst_201 : f32 to vector<8x128xf32>
    %661 = arith.addf %660, %659 : vector<8x128xf32>
    %662 = tpu.reciprocal %661 {approx = true} : vector<8x128xf32> -> vector<8x128xf32>
    %663 = arith.mulf %653, %596 : vector<8x128xf32>
    %664 = arith.mulf %646, %655 : vector<8x128xf32>
    %665 = arith.addf %663, %664 : vector<8x128xf32>
    %666 = math.tanh %665 : vector<8x128xf32>
    %667 = arith.mulf %662, %666 : vector<8x128xf32>
    %668 = arith.truncf %667 : vector<8x128xf32> to vector<8x128xbf16>
    %669 = arith.truncf %632 : vector<8x128xf32> to vector<8x128xbf16>
    %670 = tpu.concatenate %668, %669 in 1 : vector<8x128xbf16>, vector<8x128xbf16> -> vector<8x256xbf16>
    %c0_202 = arith.constant 0 : index
    %c0_203 = arith.constant 0 : index
    %671 = vector.load %arg4[%c0_202, %c0_203] : memref<256x512xbf16, #tpu.memory_space<vmem>>, vector<256x512xbf16>
    %cst_204 = arith.constant dense<0.000000e+00> : vector<8x512xf32>
    %672 = tpu.matmul %670, %671, %cst_204 {dimension_numbers = #tpu.dot_dimension_numbers<[1], [0], [0], [1], [0, 0, 1, 1], [], []>} : vector<8x256xbf16>, vector<256x512xbf16>, vector<8x512xf32> -> vector<8x512xf32>
    %673 = arith.addf %672, %10 : vector<8x512xf32>
    %674 = vector.extract_strided_slice %673 {offsets = [0, 0], sizes = [8, 128], strides = [1, 1]} : vector<8x512xf32> to vector<8x128xf32>
    %cst_205 = arith.constant 0.000000e+00 : f32
    %675 = vector.broadcast %cst_205 : f32 to vector<8x128xf32>
    %676 = arith.subf %675, %674 : vector<8x128xf32>
    %677 = math.exp %676 : vector<8x128xf32>
    %cst_206 = arith.constant 1.000000e+00 : f32
    %678 = vector.broadcast %cst_206 : f32 to vector<8x128xf32>
    %679 = arith.addf %678, %677 : vector<8x128xf32>
    %680 = tpu.reciprocal %679 {approx = true} : vector<8x128xf32> -> vector<8x128xf32>
    %681 = vector.extract_strided_slice %673 {offsets = [0, 128], sizes = [8, 128], strides = [1, 1]} : vector<8x512xf32> to vector<8x128xf32>
    %cst_207 = arith.constant 0.000000e+00 : f32
    %682 = vector.broadcast %cst_207 : f32 to vector<8x128xf32>
    %683 = arith.subf %682, %681 : vector<8x128xf32>
    %684 = math.exp %683 : vector<8x128xf32>
    %cst_208 = arith.constant 1.000000e+00 : f32
    %685 = vector.broadcast %cst_208 : f32 to vector<8x128xf32>
    %686 = arith.addf %685, %684 : vector<8x128xf32>
    %687 = tpu.reciprocal %686 {approx = true} : vector<8x128xf32> -> vector<8x128xf32>
    %688 = vector.extract_strided_slice %673 {offsets = [0, 256], sizes = [8, 128], strides = [1, 1]} : vector<8x512xf32> to vector<8x128xf32>
    %689 = math.tanh %688 : vector<8x128xf32>
    %690 = vector.extract_strided_slice %673 {offsets = [0, 384], sizes = [8, 128], strides = [1, 1]} : vector<8x512xf32> to vector<8x128xf32>
    %cst_209 = arith.constant 0.000000e+00 : f32
    %691 = vector.broadcast %cst_209 : f32 to vector<8x128xf32>
    %692 = arith.subf %691, %690 : vector<8x128xf32>
    %693 = math.exp %692 : vector<8x128xf32>
    %cst_210 = arith.constant 1.000000e+00 : f32
    %694 = vector.broadcast %cst_210 : f32 to vector<8x128xf32>
    %695 = arith.addf %694, %693 : vector<8x128xf32>
    %696 = tpu.reciprocal %695 {approx = true} : vector<8x128xf32> -> vector<8x128xf32>
    %697 = arith.mulf %687, %630 : vector<8x128xf32>
    %698 = arith.mulf %680, %689 : vector<8x128xf32>
    %699 = arith.addf %697, %698 : vector<8x128xf32>
    %700 = math.tanh %699 : vector<8x128xf32>
    %701 = arith.mulf %696, %700 : vector<8x128xf32>
    %c10_i32 = arith.constant 10 : i32
    %702 = arith.index_cast %c10_i32 : i32 to index
    %c0_211 = arith.constant 0 : index
    %c0_212 = arith.constant 0 : index
    %703 = vector.load %arg9[%702, %c0_211, %c0_212] : memref<16x8x512xf32, #tpu.memory_space<vmem>>, vector<1x8x512xf32>
    %704 = vector.shape_cast %703 : vector<1x8x512xf32> to vector<8x512xf32>
    %705 = arith.truncf %667 : vector<8x128xf32> to vector<8x128xbf16>
    %c0_213 = arith.constant 0 : index
    %c0_214 = arith.constant 0 : index
    %706 = vector.load %arg3[%c0_213, %c0_214] : memref<128x512xbf16, #tpu.memory_space<vmem>>, vector<128x512xbf16>
    %cst_215 = arith.constant dense<0.000000e+00> : vector<8x512xf32>
    %707 = tpu.matmul %705, %706, %cst_215 {dimension_numbers = #tpu.dot_dimension_numbers<[1], [0], [0], [1], [0, 0, 1, 1], [], []>} : vector<8x128xbf16>, vector<128x512xbf16>, vector<8x512xf32> -> vector<8x512xf32>
    %708 = arith.addf %704, %707 : vector<8x512xf32>
    %709 = vector.extract_strided_slice %708 {offsets = [0, 0], sizes = [8, 128], strides = [1, 1]} : vector<8x512xf32> to vector<8x128xf32>
    %cst_216 = arith.constant 0.000000e+00 : f32
    %710 = vector.broadcast %cst_216 : f32 to vector<8x128xf32>
    %711 = arith.subf %710, %709 : vector<8x128xf32>
    %712 = math.exp %711 : vector<8x128xf32>
    %cst_217 = arith.constant 1.000000e+00 : f32
    %713 = vector.broadcast %cst_217 : f32 to vector<8x128xf32>
    %714 = arith.addf %713, %712 : vector<8x128xf32>
    %715 = tpu.reciprocal %714 {approx = true} : vector<8x128xf32> -> vector<8x128xf32>
    %716 = vector.extract_strided_slice %708 {offsets = [0, 128], sizes = [8, 128], strides = [1, 1]} : vector<8x512xf32> to vector<8x128xf32>
    %cst_218 = arith.constant 0.000000e+00 : f32
    %717 = vector.broadcast %cst_218 : f32 to vector<8x128xf32>
    %718 = arith.subf %717, %716 : vector<8x128xf32>
    %719 = math.exp %718 : vector<8x128xf32>
    %cst_219 = arith.constant 1.000000e+00 : f32
    %720 = vector.broadcast %cst_219 : f32 to vector<8x128xf32>
    %721 = arith.addf %720, %719 : vector<8x128xf32>
    %722 = tpu.reciprocal %721 {approx = true} : vector<8x128xf32> -> vector<8x128xf32>
    %723 = vector.extract_strided_slice %708 {offsets = [0, 256], sizes = [8, 128], strides = [1, 1]} : vector<8x512xf32> to vector<8x128xf32>
    %724 = math.tanh %723 : vector<8x128xf32>
    %725 = vector.extract_strided_slice %708 {offsets = [0, 384], sizes = [8, 128], strides = [1, 1]} : vector<8x512xf32> to vector<8x128xf32>
    %cst_220 = arith.constant 0.000000e+00 : f32
    %726 = vector.broadcast %cst_220 : f32 to vector<8x128xf32>
    %727 = arith.subf %726, %725 : vector<8x128xf32>
    %728 = math.exp %727 : vector<8x128xf32>
    %cst_221 = arith.constant 1.000000e+00 : f32
    %729 = vector.broadcast %cst_221 : f32 to vector<8x128xf32>
    %730 = arith.addf %729, %728 : vector<8x128xf32>
    %731 = tpu.reciprocal %730 {approx = true} : vector<8x128xf32> -> vector<8x128xf32>
    %732 = arith.mulf %722, %665 : vector<8x128xf32>
    %733 = arith.mulf %715, %724 : vector<8x128xf32>
    %734 = arith.addf %732, %733 : vector<8x128xf32>
    %735 = math.tanh %734 : vector<8x128xf32>
    %736 = arith.mulf %731, %735 : vector<8x128xf32>
    %737 = arith.truncf %736 : vector<8x128xf32> to vector<8x128xbf16>
    %738 = arith.truncf %701 : vector<8x128xf32> to vector<8x128xbf16>
    %739 = tpu.concatenate %737, %738 in 1 : vector<8x128xbf16>, vector<8x128xbf16> -> vector<8x256xbf16>
    %c0_222 = arith.constant 0 : index
    %c0_223 = arith.constant 0 : index
    %740 = vector.load %arg4[%c0_222, %c0_223] : memref<256x512xbf16, #tpu.memory_space<vmem>>, vector<256x512xbf16>
    %cst_224 = arith.constant dense<0.000000e+00> : vector<8x512xf32>
    %741 = tpu.matmul %739, %740, %cst_224 {dimension_numbers = #tpu.dot_dimension_numbers<[1], [0], [0], [1], [0, 0, 1, 1], [], []>} : vector<8x256xbf16>, vector<256x512xbf16>, vector<8x512xf32> -> vector<8x512xf32>
    %742 = arith.addf %741, %10 : vector<8x512xf32>
    %743 = vector.extract_strided_slice %742 {offsets = [0, 0], sizes = [8, 128], strides = [1, 1]} : vector<8x512xf32> to vector<8x128xf32>
    %cst_225 = arith.constant 0.000000e+00 : f32
    %744 = vector.broadcast %cst_225 : f32 to vector<8x128xf32>
    %745 = arith.subf %744, %743 : vector<8x128xf32>
    %746 = math.exp %745 : vector<8x128xf32>
    %cst_226 = arith.constant 1.000000e+00 : f32
    %747 = vector.broadcast %cst_226 : f32 to vector<8x128xf32>
    %748 = arith.addf %747, %746 : vector<8x128xf32>
    %749 = tpu.reciprocal %748 {approx = true} : vector<8x128xf32> -> vector<8x128xf32>
    %750 = vector.extract_strided_slice %742 {offsets = [0, 128], sizes = [8, 128], strides = [1, 1]} : vector<8x512xf32> to vector<8x128xf32>
    %cst_227 = arith.constant 0.000000e+00 : f32
    %751 = vector.broadcast %cst_227 : f32 to vector<8x128xf32>
    %752 = arith.subf %751, %750 : vector<8x128xf32>
    %753 = math.exp %752 : vector<8x128xf32>
    %cst_228 = arith.constant 1.000000e+00 : f32
    %754 = vector.broadcast %cst_228 : f32 to vector<8x128xf32>
    %755 = arith.addf %754, %753 : vector<8x128xf32>
    %756 = tpu.reciprocal %755 {approx = true} : vector<8x128xf32> -> vector<8x128xf32>
    %757 = vector.extract_strided_slice %742 {offsets = [0, 256], sizes = [8, 128], strides = [1, 1]} : vector<8x512xf32> to vector<8x128xf32>
    %758 = math.tanh %757 : vector<8x128xf32>
    %759 = vector.extract_strided_slice %742 {offsets = [0, 384], sizes = [8, 128], strides = [1, 1]} : vector<8x512xf32> to vector<8x128xf32>
    %cst_229 = arith.constant 0.000000e+00 : f32
    %760 = vector.broadcast %cst_229 : f32 to vector<8x128xf32>
    %761 = arith.subf %760, %759 : vector<8x128xf32>
    %762 = math.exp %761 : vector<8x128xf32>
    %cst_230 = arith.constant 1.000000e+00 : f32
    %763 = vector.broadcast %cst_230 : f32 to vector<8x128xf32>
    %764 = arith.addf %763, %762 : vector<8x128xf32>
    %765 = tpu.reciprocal %764 {approx = true} : vector<8x128xf32> -> vector<8x128xf32>
    %766 = arith.mulf %756, %699 : vector<8x128xf32>
    %767 = arith.mulf %749, %758 : vector<8x128xf32>
    %768 = arith.addf %766, %767 : vector<8x128xf32>
    %769 = math.tanh %768 : vector<8x128xf32>
    %770 = arith.mulf %765, %769 : vector<8x128xf32>
    %c11_i32 = arith.constant 11 : i32
    %771 = arith.index_cast %c11_i32 : i32 to index
    %c0_231 = arith.constant 0 : index
    %c0_232 = arith.constant 0 : index
    %772 = vector.load %arg9[%771, %c0_231, %c0_232] : memref<16x8x512xf32, #tpu.memory_space<vmem>>, vector<1x8x512xf32>
    %773 = vector.shape_cast %772 : vector<1x8x512xf32> to vector<8x512xf32>
    %774 = arith.truncf %736 : vector<8x128xf32> to vector<8x128xbf16>
    %c0_233 = arith.constant 0 : index
    %c0_234 = arith.constant 0 : index
    %775 = vector.load %arg3[%c0_233, %c0_234] : memref<128x512xbf16, #tpu.memory_space<vmem>>, vector<128x512xbf16>
    %cst_235 = arith.constant dense<0.000000e+00> : vector<8x512xf32>
    %776 = tpu.matmul %774, %775, %cst_235 {dimension_numbers = #tpu.dot_dimension_numbers<[1], [0], [0], [1], [0, 0, 1, 1], [], []>} : vector<8x128xbf16>, vector<128x512xbf16>, vector<8x512xf32> -> vector<8x512xf32>
    %777 = arith.addf %773, %776 : vector<8x512xf32>
    %778 = vector.extract_strided_slice %777 {offsets = [0, 0], sizes = [8, 128], strides = [1, 1]} : vector<8x512xf32> to vector<8x128xf32>
    %cst_236 = arith.constant 0.000000e+00 : f32
    %779 = vector.broadcast %cst_236 : f32 to vector<8x128xf32>
    %780 = arith.subf %779, %778 : vector<8x128xf32>
    %781 = math.exp %780 : vector<8x128xf32>
    %cst_237 = arith.constant 1.000000e+00 : f32
    %782 = vector.broadcast %cst_237 : f32 to vector<8x128xf32>
    %783 = arith.addf %782, %781 : vector<8x128xf32>
    %784 = tpu.reciprocal %783 {approx = true} : vector<8x128xf32> -> vector<8x128xf32>
    %785 = vector.extract_strided_slice %777 {offsets = [0, 128], sizes = [8, 128], strides = [1, 1]} : vector<8x512xf32> to vector<8x128xf32>
    %cst_238 = arith.constant 0.000000e+00 : f32
    %786 = vector.broadcast %cst_238 : f32 to vector<8x128xf32>
    %787 = arith.subf %786, %785 : vector<8x128xf32>
    %788 = math.exp %787 : vector<8x128xf32>
    %cst_239 = arith.constant 1.000000e+00 : f32
    %789 = vector.broadcast %cst_239 : f32 to vector<8x128xf32>
    %790 = arith.addf %789, %788 : vector<8x128xf32>
    %791 = tpu.reciprocal %790 {approx = true} : vector<8x128xf32> -> vector<8x128xf32>
    %792 = vector.extract_strided_slice %777 {offsets = [0, 256], sizes = [8, 128], strides = [1, 1]} : vector<8x512xf32> to vector<8x128xf32>
    %793 = math.tanh %792 : vector<8x128xf32>
    %794 = vector.extract_strided_slice %777 {offsets = [0, 384], sizes = [8, 128], strides = [1, 1]} : vector<8x512xf32> to vector<8x128xf32>
    %cst_240 = arith.constant 0.000000e+00 : f32
    %795 = vector.broadcast %cst_240 : f32 to vector<8x128xf32>
    %796 = arith.subf %795, %794 : vector<8x128xf32>
    %797 = math.exp %796 : vector<8x128xf32>
    %cst_241 = arith.constant 1.000000e+00 : f32
    %798 = vector.broadcast %cst_241 : f32 to vector<8x128xf32>
    %799 = arith.addf %798, %797 : vector<8x128xf32>
    %800 = tpu.reciprocal %799 {approx = true} : vector<8x128xf32> -> vector<8x128xf32>
    %801 = arith.mulf %791, %734 : vector<8x128xf32>
    %802 = arith.mulf %784, %793 : vector<8x128xf32>
    %803 = arith.addf %801, %802 : vector<8x128xf32>
    %804 = math.tanh %803 : vector<8x128xf32>
    %805 = arith.mulf %800, %804 : vector<8x128xf32>
    %806 = arith.truncf %805 : vector<8x128xf32> to vector<8x128xbf16>
    %807 = arith.truncf %770 : vector<8x128xf32> to vector<8x128xbf16>
    %808 = tpu.concatenate %806, %807 in 1 : vector<8x128xbf16>, vector<8x128xbf16> -> vector<8x256xbf16>
    %c0_242 = arith.constant 0 : index
    %c0_243 = arith.constant 0 : index
    %809 = vector.load %arg4[%c0_242, %c0_243] : memref<256x512xbf16, #tpu.memory_space<vmem>>, vector<256x512xbf16>
    %cst_244 = arith.constant dense<0.000000e+00> : vector<8x512xf32>
    %810 = tpu.matmul %808, %809, %cst_244 {dimension_numbers = #tpu.dot_dimension_numbers<[1], [0], [0], [1], [0, 0, 1, 1], [], []>} : vector<8x256xbf16>, vector<256x512xbf16>, vector<8x512xf32> -> vector<8x512xf32>
    %811 = arith.addf %810, %10 : vector<8x512xf32>
    %812 = vector.extract_strided_slice %811 {offsets = [0, 0], sizes = [8, 128], strides = [1, 1]} : vector<8x512xf32> to vector<8x128xf32>
    %cst_245 = arith.constant 0.000000e+00 : f32
    %813 = vector.broadcast %cst_245 : f32 to vector<8x128xf32>
    %814 = arith.subf %813, %812 : vector<8x128xf32>
    %815 = math.exp %814 : vector<8x128xf32>
    %cst_246 = arith.constant 1.000000e+00 : f32
    %816 = vector.broadcast %cst_246 : f32 to vector<8x128xf32>
    %817 = arith.addf %816, %815 : vector<8x128xf32>
    %818 = tpu.reciprocal %817 {approx = true} : vector<8x128xf32> -> vector<8x128xf32>
    %819 = vector.extract_strided_slice %811 {offsets = [0, 128], sizes = [8, 128], strides = [1, 1]} : vector<8x512xf32> to vector<8x128xf32>
    %cst_247 = arith.constant 0.000000e+00 : f32
    %820 = vector.broadcast %cst_247 : f32 to vector<8x128xf32>
    %821 = arith.subf %820, %819 : vector<8x128xf32>
    %822 = math.exp %821 : vector<8x128xf32>
    %cst_248 = arith.constant 1.000000e+00 : f32
    %823 = vector.broadcast %cst_248 : f32 to vector<8x128xf32>
    %824 = arith.addf %823, %822 : vector<8x128xf32>
    %825 = tpu.reciprocal %824 {approx = true} : vector<8x128xf32> -> vector<8x128xf32>
    %826 = vector.extract_strided_slice %811 {offsets = [0, 256], sizes = [8, 128], strides = [1, 1]} : vector<8x512xf32> to vector<8x128xf32>
    %827 = math.tanh %826 : vector<8x128xf32>
    %828 = vector.extract_strided_slice %811 {offsets = [0, 384], sizes = [8, 128], strides = [1, 1]} : vector<8x512xf32> to vector<8x128xf32>
    %cst_249 = arith.constant 0.000000e+00 : f32
    %829 = vector.broadcast %cst_249 : f32 to vector<8x128xf32>
    %830 = arith.subf %829, %828 : vector<8x128xf32>
    %831 = math.exp %830 : vector<8x128xf32>
    %cst_250 = arith.constant 1.000000e+00 : f32
    %832 = vector.broadcast %cst_250 : f32 to vector<8x128xf32>
    %833 = arith.addf %832, %831 : vector<8x128xf32>
    %834 = tpu.reciprocal %833 {approx = true} : vector<8x128xf32> -> vector<8x128xf32>
    %835 = arith.mulf %825, %768 : vector<8x128xf32>
    %836 = arith.mulf %818, %827 : vector<8x128xf32>
    %837 = arith.addf %835, %836 : vector<8x128xf32>
    %838 = math.tanh %837 : vector<8x128xf32>
    %839 = arith.mulf %834, %838 : vector<8x128xf32>
    %c12_i32 = arith.constant 12 : i32
    %840 = arith.index_cast %c12_i32 : i32 to index
    %c0_251 = arith.constant 0 : index
    %c0_252 = arith.constant 0 : index
    %841 = vector.load %arg9[%840, %c0_251, %c0_252] : memref<16x8x512xf32, #tpu.memory_space<vmem>>, vector<1x8x512xf32>
    %842 = vector.shape_cast %841 : vector<1x8x512xf32> to vector<8x512xf32>
    %843 = arith.truncf %805 : vector<8x128xf32> to vector<8x128xbf16>
    %c0_253 = arith.constant 0 : index
    %c0_254 = arith.constant 0 : index
    %844 = vector.load %arg3[%c0_253, %c0_254] : memref<128x512xbf16, #tpu.memory_space<vmem>>, vector<128x512xbf16>
    %cst_255 = arith.constant dense<0.000000e+00> : vector<8x512xf32>
    %845 = tpu.matmul %843, %844, %cst_255 {dimension_numbers = #tpu.dot_dimension_numbers<[1], [0], [0], [1], [0, 0, 1, 1], [], []>} : vector<8x128xbf16>, vector<128x512xbf16>, vector<8x512xf32> -> vector<8x512xf32>
    %846 = arith.addf %842, %845 : vector<8x512xf32>
    %847 = vector.extract_strided_slice %846 {offsets = [0, 0], sizes = [8, 128], strides = [1, 1]} : vector<8x512xf32> to vector<8x128xf32>
    %cst_256 = arith.constant 0.000000e+00 : f32
    %848 = vector.broadcast %cst_256 : f32 to vector<8x128xf32>
    %849 = arith.subf %848, %847 : vector<8x128xf32>
    %850 = math.exp %849 : vector<8x128xf32>
    %cst_257 = arith.constant 1.000000e+00 : f32
    %851 = vector.broadcast %cst_257 : f32 to vector<8x128xf32>
    %852 = arith.addf %851, %850 : vector<8x128xf32>
    %853 = tpu.reciprocal %852 {approx = true} : vector<8x128xf32> -> vector<8x128xf32>
    %854 = vector.extract_strided_slice %846 {offsets = [0, 128], sizes = [8, 128], strides = [1, 1]} : vector<8x512xf32> to vector<8x128xf32>
    %cst_258 = arith.constant 0.000000e+00 : f32
    %855 = vector.broadcast %cst_258 : f32 to vector<8x128xf32>
    %856 = arith.subf %855, %854 : vector<8x128xf32>
    %857 = math.exp %856 : vector<8x128xf32>
    %cst_259 = arith.constant 1.000000e+00 : f32
    %858 = vector.broadcast %cst_259 : f32 to vector<8x128xf32>
    %859 = arith.addf %858, %857 : vector<8x128xf32>
    %860 = tpu.reciprocal %859 {approx = true} : vector<8x128xf32> -> vector<8x128xf32>
    %861 = vector.extract_strided_slice %846 {offsets = [0, 256], sizes = [8, 128], strides = [1, 1]} : vector<8x512xf32> to vector<8x128xf32>
    %862 = math.tanh %861 : vector<8x128xf32>
    %863 = vector.extract_strided_slice %846 {offsets = [0, 384], sizes = [8, 128], strides = [1, 1]} : vector<8x512xf32> to vector<8x128xf32>
    %cst_260 = arith.constant 0.000000e+00 : f32
    %864 = vector.broadcast %cst_260 : f32 to vector<8x128xf32>
    %865 = arith.subf %864, %863 : vector<8x128xf32>
    %866 = math.exp %865 : vector<8x128xf32>
    %cst_261 = arith.constant 1.000000e+00 : f32
    %867 = vector.broadcast %cst_261 : f32 to vector<8x128xf32>
    %868 = arith.addf %867, %866 : vector<8x128xf32>
    %869 = tpu.reciprocal %868 {approx = true} : vector<8x128xf32> -> vector<8x128xf32>
    %870 = arith.mulf %860, %803 : vector<8x128xf32>
    %871 = arith.mulf %853, %862 : vector<8x128xf32>
    %872 = arith.addf %870, %871 : vector<8x128xf32>
    %873 = math.tanh %872 : vector<8x128xf32>
    %874 = arith.mulf %869, %873 : vector<8x128xf32>
    %875 = arith.truncf %874 : vector<8x128xf32> to vector<8x128xbf16>
    %876 = arith.truncf %839 : vector<8x128xf32> to vector<8x128xbf16>
    %877 = tpu.concatenate %875, %876 in 1 : vector<8x128xbf16>, vector<8x128xbf16> -> vector<8x256xbf16>
    %c0_262 = arith.constant 0 : index
    %c0_263 = arith.constant 0 : index
    %878 = vector.load %arg4[%c0_262, %c0_263] : memref<256x512xbf16, #tpu.memory_space<vmem>>, vector<256x512xbf16>
    %cst_264 = arith.constant dense<0.000000e+00> : vector<8x512xf32>
    %879 = tpu.matmul %877, %878, %cst_264 {dimension_numbers = #tpu.dot_dimension_numbers<[1], [0], [0], [1], [0, 0, 1, 1], [], []>} : vector<8x256xbf16>, vector<256x512xbf16>, vector<8x512xf32> -> vector<8x512xf32>
    %880 = arith.addf %879, %10 : vector<8x512xf32>
    %881 = vector.extract_strided_slice %880 {offsets = [0, 0], sizes = [8, 128], strides = [1, 1]} : vector<8x512xf32> to vector<8x128xf32>
    %cst_265 = arith.constant 0.000000e+00 : f32
    %882 = vector.broadcast %cst_265 : f32 to vector<8x128xf32>
    %883 = arith.subf %882, %881 : vector<8x128xf32>
    %884 = math.exp %883 : vector<8x128xf32>
    %cst_266 = arith.constant 1.000000e+00 : f32
    %885 = vector.broadcast %cst_266 : f32 to vector<8x128xf32>
    %886 = arith.addf %885, %884 : vector<8x128xf32>
    %887 = tpu.reciprocal %886 {approx = true} : vector<8x128xf32> -> vector<8x128xf32>
    %888 = vector.extract_strided_slice %880 {offsets = [0, 128], sizes = [8, 128], strides = [1, 1]} : vector<8x512xf32> to vector<8x128xf32>
    %cst_267 = arith.constant 0.000000e+00 : f32
    %889 = vector.broadcast %cst_267 : f32 to vector<8x128xf32>
    %890 = arith.subf %889, %888 : vector<8x128xf32>
    %891 = math.exp %890 : vector<8x128xf32>
    %cst_268 = arith.constant 1.000000e+00 : f32
    %892 = vector.broadcast %cst_268 : f32 to vector<8x128xf32>
    %893 = arith.addf %892, %891 : vector<8x128xf32>
    %894 = tpu.reciprocal %893 {approx = true} : vector<8x128xf32> -> vector<8x128xf32>
    %895 = vector.extract_strided_slice %880 {offsets = [0, 256], sizes = [8, 128], strides = [1, 1]} : vector<8x512xf32> to vector<8x128xf32>
    %896 = math.tanh %895 : vector<8x128xf32>
    %897 = vector.extract_strided_slice %880 {offsets = [0, 384], sizes = [8, 128], strides = [1, 1]} : vector<8x512xf32> to vector<8x128xf32>
    %cst_269 = arith.constant 0.000000e+00 : f32
    %898 = vector.broadcast %cst_269 : f32 to vector<8x128xf32>
    %899 = arith.subf %898, %897 : vector<8x128xf32>
    %900 = math.exp %899 : vector<8x128xf32>
    %cst_270 = arith.constant 1.000000e+00 : f32
    %901 = vector.broadcast %cst_270 : f32 to vector<8x128xf32>
    %902 = arith.addf %901, %900 : vector<8x128xf32>
    %903 = tpu.reciprocal %902 {approx = true} : vector<8x128xf32> -> vector<8x128xf32>
    %904 = arith.mulf %894, %837 : vector<8x128xf32>
    %905 = arith.mulf %887, %896 : vector<8x128xf32>
    %906 = arith.addf %904, %905 : vector<8x128xf32>
    %907 = math.tanh %906 : vector<8x128xf32>
    %908 = arith.mulf %903, %907 : vector<8x128xf32>
    %c13_i32 = arith.constant 13 : i32
    %909 = arith.index_cast %c13_i32 : i32 to index
    %c0_271 = arith.constant 0 : index
    %c0_272 = arith.constant 0 : index
    %910 = vector.load %arg9[%909, %c0_271, %c0_272] : memref<16x8x512xf32, #tpu.memory_space<vmem>>, vector<1x8x512xf32>
    %911 = vector.shape_cast %910 : vector<1x8x512xf32> to vector<8x512xf32>
    %912 = arith.truncf %874 : vector<8x128xf32> to vector<8x128xbf16>
    %c0_273 = arith.constant 0 : index
    %c0_274 = arith.constant 0 : index
    %913 = vector.load %arg3[%c0_273, %c0_274] : memref<128x512xbf16, #tpu.memory_space<vmem>>, vector<128x512xbf16>
    %cst_275 = arith.constant dense<0.000000e+00> : vector<8x512xf32>
    %914 = tpu.matmul %912, %913, %cst_275 {dimension_numbers = #tpu.dot_dimension_numbers<[1], [0], [0], [1], [0, 0, 1, 1], [], []>} : vector<8x128xbf16>, vector<128x512xbf16>, vector<8x512xf32> -> vector<8x512xf32>
    %915 = arith.addf %911, %914 : vector<8x512xf32>
    %916 = vector.extract_strided_slice %915 {offsets = [0, 0], sizes = [8, 128], strides = [1, 1]} : vector<8x512xf32> to vector<8x128xf32>
    %cst_276 = arith.constant 0.000000e+00 : f32
    %917 = vector.broadcast %cst_276 : f32 to vector<8x128xf32>
    %918 = arith.subf %917, %916 : vector<8x128xf32>
    %919 = math.exp %918 : vector<8x128xf32>
    %cst_277 = arith.constant 1.000000e+00 : f32
    %920 = vector.broadcast %cst_277 : f32 to vector<8x128xf32>
    %921 = arith.addf %920, %919 : vector<8x128xf32>
    %922 = tpu.reciprocal %921 {approx = true} : vector<8x128xf32> -> vector<8x128xf32>
    %923 = vector.extract_strided_slice %915 {offsets = [0, 128], sizes = [8, 128], strides = [1, 1]} : vector<8x512xf32> to vector<8x128xf32>
    %cst_278 = arith.constant 0.000000e+00 : f32
    %924 = vector.broadcast %cst_278 : f32 to vector<8x128xf32>
    %925 = arith.subf %924, %923 : vector<8x128xf32>
    %926 = math.exp %925 : vector<8x128xf32>
    %cst_279 = arith.constant 1.000000e+00 : f32
    %927 = vector.broadcast %cst_279 : f32 to vector<8x128xf32>
    %928 = arith.addf %927, %926 : vector<8x128xf32>
    %929 = tpu.reciprocal %928 {approx = true} : vector<8x128xf32> -> vector<8x128xf32>
    %930 = vector.extract_strided_slice %915 {offsets = [0, 256], sizes = [8, 128], strides = [1, 1]} : vector<8x512xf32> to vector<8x128xf32>
    %931 = math.tanh %930 : vector<8x128xf32>
    %932 = vector.extract_strided_slice %915 {offsets = [0, 384], sizes = [8, 128], strides = [1, 1]} : vector<8x512xf32> to vector<8x128xf32>
    %cst_280 = arith.constant 0.000000e+00 : f32
    %933 = vector.broadcast %cst_280 : f32 to vector<8x128xf32>
    %934 = arith.subf %933, %932 : vector<8x128xf32>
    %935 = math.exp %934 : vector<8x128xf32>
    %cst_281 = arith.constant 1.000000e+00 : f32
    %936 = vector.broadcast %cst_281 : f32 to vector<8x128xf32>
    %937 = arith.addf %936, %935 : vector<8x128xf32>
    %938 = tpu.reciprocal %937 {approx = true} : vector<8x128xf32> -> vector<8x128xf32>
    %939 = arith.mulf %929, %872 : vector<8x128xf32>
    %940 = arith.mulf %922, %931 : vector<8x128xf32>
    %941 = arith.addf %939, %940 : vector<8x128xf32>
    %942 = math.tanh %941 : vector<8x128xf32>
    %943 = arith.mulf %938, %942 : vector<8x128xf32>
    %944 = arith.truncf %943 : vector<8x128xf32> to vector<8x128xbf16>
    %945 = arith.truncf %908 : vector<8x128xf32> to vector<8x128xbf16>
    %946 = tpu.concatenate %944, %945 in 1 : vector<8x128xbf16>, vector<8x128xbf16> -> vector<8x256xbf16>
    %c0_282 = arith.constant 0 : index
    %c0_283 = arith.constant 0 : index
    %947 = vector.load %arg4[%c0_282, %c0_283] : memref<256x512xbf16, #tpu.memory_space<vmem>>, vector<256x512xbf16>
    %cst_284 = arith.constant dense<0.000000e+00> : vector<8x512xf32>
    %948 = tpu.matmul %946, %947, %cst_284 {dimension_numbers = #tpu.dot_dimension_numbers<[1], [0], [0], [1], [0, 0, 1, 1], [], []>} : vector<8x256xbf16>, vector<256x512xbf16>, vector<8x512xf32> -> vector<8x512xf32>
    %949 = arith.addf %948, %10 : vector<8x512xf32>
    %950 = vector.extract_strided_slice %949 {offsets = [0, 0], sizes = [8, 128], strides = [1, 1]} : vector<8x512xf32> to vector<8x128xf32>
    %cst_285 = arith.constant 0.000000e+00 : f32
    %951 = vector.broadcast %cst_285 : f32 to vector<8x128xf32>
    %952 = arith.subf %951, %950 : vector<8x128xf32>
    %953 = math.exp %952 : vector<8x128xf32>
    %cst_286 = arith.constant 1.000000e+00 : f32
    %954 = vector.broadcast %cst_286 : f32 to vector<8x128xf32>
    %955 = arith.addf %954, %953 : vector<8x128xf32>
    %956 = tpu.reciprocal %955 {approx = true} : vector<8x128xf32> -> vector<8x128xf32>
    %957 = vector.extract_strided_slice %949 {offsets = [0, 128], sizes = [8, 128], strides = [1, 1]} : vector<8x512xf32> to vector<8x128xf32>
    %cst_287 = arith.constant 0.000000e+00 : f32
    %958 = vector.broadcast %cst_287 : f32 to vector<8x128xf32>
    %959 = arith.subf %958, %957 : vector<8x128xf32>
    %960 = math.exp %959 : vector<8x128xf32>
    %cst_288 = arith.constant 1.000000e+00 : f32
    %961 = vector.broadcast %cst_288 : f32 to vector<8x128xf32>
    %962 = arith.addf %961, %960 : vector<8x128xf32>
    %963 = tpu.reciprocal %962 {approx = true} : vector<8x128xf32> -> vector<8x128xf32>
    %964 = vector.extract_strided_slice %949 {offsets = [0, 256], sizes = [8, 128], strides = [1, 1]} : vector<8x512xf32> to vector<8x128xf32>
    %965 = math.tanh %964 : vector<8x128xf32>
    %966 = vector.extract_strided_slice %949 {offsets = [0, 384], sizes = [8, 128], strides = [1, 1]} : vector<8x512xf32> to vector<8x128xf32>
    %cst_289 = arith.constant 0.000000e+00 : f32
    %967 = vector.broadcast %cst_289 : f32 to vector<8x128xf32>
    %968 = arith.subf %967, %966 : vector<8x128xf32>
    %969 = math.exp %968 : vector<8x128xf32>
    %cst_290 = arith.constant 1.000000e+00 : f32
    %970 = vector.broadcast %cst_290 : f32 to vector<8x128xf32>
    %971 = arith.addf %970, %969 : vector<8x128xf32>
    %972 = tpu.reciprocal %971 {approx = true} : vector<8x128xf32> -> vector<8x128xf32>
    %973 = arith.mulf %963, %906 : vector<8x128xf32>
    %974 = arith.mulf %956, %965 : vector<8x128xf32>
    %975 = arith.addf %973, %974 : vector<8x128xf32>
    %976 = math.tanh %975 : vector<8x128xf32>
    %977 = arith.mulf %972, %976 : vector<8x128xf32>
    %c14_i32 = arith.constant 14 : i32
    %978 = arith.index_cast %c14_i32 : i32 to index
    %c0_291 = arith.constant 0 : index
    %c0_292 = arith.constant 0 : index
    %979 = vector.load %arg9[%978, %c0_291, %c0_292] : memref<16x8x512xf32, #tpu.memory_space<vmem>>, vector<1x8x512xf32>
    %980 = vector.shape_cast %979 : vector<1x8x512xf32> to vector<8x512xf32>
    %981 = arith.truncf %943 : vector<8x128xf32> to vector<8x128xbf16>
    %c0_293 = arith.constant 0 : index
    %c0_294 = arith.constant 0 : index
    %982 = vector.load %arg3[%c0_293, %c0_294] : memref<128x512xbf16, #tpu.memory_space<vmem>>, vector<128x512xbf16>
    %cst_295 = arith.constant dense<0.000000e+00> : vector<8x512xf32>
    %983 = tpu.matmul %981, %982, %cst_295 {dimension_numbers = #tpu.dot_dimension_numbers<[1], [0], [0], [1], [0, 0, 1, 1], [], []>} : vector<8x128xbf16>, vector<128x512xbf16>, vector<8x512xf32> -> vector<8x512xf32>
    %984 = arith.addf %980, %983 : vector<8x512xf32>
    %985 = vector.extract_strided_slice %984 {offsets = [0, 0], sizes = [8, 128], strides = [1, 1]} : vector<8x512xf32> to vector<8x128xf32>
    %cst_296 = arith.constant 0.000000e+00 : f32
    %986 = vector.broadcast %cst_296 : f32 to vector<8x128xf32>
    %987 = arith.subf %986, %985 : vector<8x128xf32>
    %988 = math.exp %987 : vector<8x128xf32>
    %cst_297 = arith.constant 1.000000e+00 : f32
    %989 = vector.broadcast %cst_297 : f32 to vector<8x128xf32>
    %990 = arith.addf %989, %988 : vector<8x128xf32>
    %991 = tpu.reciprocal %990 {approx = true} : vector<8x128xf32> -> vector<8x128xf32>
    %992 = vector.extract_strided_slice %984 {offsets = [0, 128], sizes = [8, 128], strides = [1, 1]} : vector<8x512xf32> to vector<8x128xf32>
    %cst_298 = arith.constant 0.000000e+00 : f32
    %993 = vector.broadcast %cst_298 : f32 to vector<8x128xf32>
    %994 = arith.subf %993, %992 : vector<8x128xf32>
    %995 = math.exp %994 : vector<8x128xf32>
    %cst_299 = arith.constant 1.000000e+00 : f32
    %996 = vector.broadcast %cst_299 : f32 to vector<8x128xf32>
    %997 = arith.addf %996, %995 : vector<8x128xf32>
    %998 = tpu.reciprocal %997 {approx = true} : vector<8x128xf32> -> vector<8x128xf32>
    %999 = vector.extract_strided_slice %984 {offsets = [0, 256], sizes = [8, 128], strides = [1, 1]} : vector<8x512xf32> to vector<8x128xf32>
    %1000 = math.tanh %999 : vector<8x128xf32>
    %1001 = vector.extract_strided_slice %984 {offsets = [0, 384], sizes = [8, 128], strides = [1, 1]} : vector<8x512xf32> to vector<8x128xf32>
    %cst_300 = arith.constant 0.000000e+00 : f32
    %1002 = vector.broadcast %cst_300 : f32 to vector<8x128xf32>
    %1003 = arith.subf %1002, %1001 : vector<8x128xf32>
    %1004 = math.exp %1003 : vector<8x128xf32>
    %cst_301 = arith.constant 1.000000e+00 : f32
    %1005 = vector.broadcast %cst_301 : f32 to vector<8x128xf32>
    %1006 = arith.addf %1005, %1004 : vector<8x128xf32>
    %1007 = tpu.reciprocal %1006 {approx = true} : vector<8x128xf32> -> vector<8x128xf32>
    %1008 = arith.mulf %998, %941 : vector<8x128xf32>
    %1009 = arith.mulf %991, %1000 : vector<8x128xf32>
    %1010 = arith.addf %1008, %1009 : vector<8x128xf32>
    %1011 = math.tanh %1010 : vector<8x128xf32>
    %1012 = arith.mulf %1007, %1011 : vector<8x128xf32>
    %1013 = arith.truncf %1012 : vector<8x128xf32> to vector<8x128xbf16>
    %1014 = arith.truncf %977 : vector<8x128xf32> to vector<8x128xbf16>
    %1015 = tpu.concatenate %1013, %1014 in 1 : vector<8x128xbf16>, vector<8x128xbf16> -> vector<8x256xbf16>
    %c0_302 = arith.constant 0 : index
    %c0_303 = arith.constant 0 : index
    %1016 = vector.load %arg4[%c0_302, %c0_303] : memref<256x512xbf16, #tpu.memory_space<vmem>>, vector<256x512xbf16>
    %cst_304 = arith.constant dense<0.000000e+00> : vector<8x512xf32>
    %1017 = tpu.matmul %1015, %1016, %cst_304 {dimension_numbers = #tpu.dot_dimension_numbers<[1], [0], [0], [1], [0, 0, 1, 1], [], []>} : vector<8x256xbf16>, vector<256x512xbf16>, vector<8x512xf32> -> vector<8x512xf32>
    %1018 = arith.addf %1017, %10 : vector<8x512xf32>
    %1019 = vector.extract_strided_slice %1018 {offsets = [0, 0], sizes = [8, 128], strides = [1, 1]} : vector<8x512xf32> to vector<8x128xf32>
    %cst_305 = arith.constant 0.000000e+00 : f32
    %1020 = vector.broadcast %cst_305 : f32 to vector<8x128xf32>
    %1021 = arith.subf %1020, %1019 : vector<8x128xf32>
    %1022 = math.exp %1021 : vector<8x128xf32>
    %cst_306 = arith.constant 1.000000e+00 : f32
    %1023 = vector.broadcast %cst_306 : f32 to vector<8x128xf32>
    %1024 = arith.addf %1023, %1022 : vector<8x128xf32>
    %1025 = tpu.reciprocal %1024 {approx = true} : vector<8x128xf32> -> vector<8x128xf32>
    %1026 = vector.extract_strided_slice %1018 {offsets = [0, 128], sizes = [8, 128], strides = [1, 1]} : vector<8x512xf32> to vector<8x128xf32>
    %cst_307 = arith.constant 0.000000e+00 : f32
    %1027 = vector.broadcast %cst_307 : f32 to vector<8x128xf32>
    %1028 = arith.subf %1027, %1026 : vector<8x128xf32>
    %1029 = math.exp %1028 : vector<8x128xf32>
    %cst_308 = arith.constant 1.000000e+00 : f32
    %1030 = vector.broadcast %cst_308 : f32 to vector<8x128xf32>
    %1031 = arith.addf %1030, %1029 : vector<8x128xf32>
    %1032 = tpu.reciprocal %1031 {approx = true} : vector<8x128xf32> -> vector<8x128xf32>
    %1033 = vector.extract_strided_slice %1018 {offsets = [0, 256], sizes = [8, 128], strides = [1, 1]} : vector<8x512xf32> to vector<8x128xf32>
    %1034 = math.tanh %1033 : vector<8x128xf32>
    %1035 = vector.extract_strided_slice %1018 {offsets = [0, 384], sizes = [8, 128], strides = [1, 1]} : vector<8x512xf32> to vector<8x128xf32>
    %cst_309 = arith.constant 0.000000e+00 : f32
    %1036 = vector.broadcast %cst_309 : f32 to vector<8x128xf32>
    %1037 = arith.subf %1036, %1035 : vector<8x128xf32>
    %1038 = math.exp %1037 : vector<8x128xf32>
    %cst_310 = arith.constant 1.000000e+00 : f32
    %1039 = vector.broadcast %cst_310 : f32 to vector<8x128xf32>
    %1040 = arith.addf %1039, %1038 : vector<8x128xf32>
    %1041 = tpu.reciprocal %1040 {approx = true} : vector<8x128xf32> -> vector<8x128xf32>
    %1042 = arith.mulf %1032, %975 : vector<8x128xf32>
    %1043 = arith.mulf %1025, %1034 : vector<8x128xf32>
    %1044 = arith.addf %1042, %1043 : vector<8x128xf32>
    %1045 = math.tanh %1044 : vector<8x128xf32>
    %1046 = arith.mulf %1041, %1045 : vector<8x128xf32>
    %c15_i32 = arith.constant 15 : i32
    %1047 = arith.index_cast %c15_i32 : i32 to index
    %c0_311 = arith.constant 0 : index
    %c0_312 = arith.constant 0 : index
    %1048 = vector.load %arg9[%1047, %c0_311, %c0_312] : memref<16x8x512xf32, #tpu.memory_space<vmem>>, vector<1x8x512xf32>
    %1049 = vector.shape_cast %1048 : vector<1x8x512xf32> to vector<8x512xf32>
    %1050 = arith.truncf %1012 : vector<8x128xf32> to vector<8x128xbf16>
    %c0_313 = arith.constant 0 : index
    %c0_314 = arith.constant 0 : index
    %1051 = vector.load %arg3[%c0_313, %c0_314] : memref<128x512xbf16, #tpu.memory_space<vmem>>, vector<128x512xbf16>
    %cst_315 = arith.constant dense<0.000000e+00> : vector<8x512xf32>
    %1052 = tpu.matmul %1050, %1051, %cst_315 {dimension_numbers = #tpu.dot_dimension_numbers<[1], [0], [0], [1], [0, 0, 1, 1], [], []>} : vector<8x128xbf16>, vector<128x512xbf16>, vector<8x512xf32> -> vector<8x512xf32>
    %1053 = arith.addf %1049, %1052 : vector<8x512xf32>
    %1054 = vector.extract_strided_slice %1053 {offsets = [0, 0], sizes = [8, 128], strides = [1, 1]} : vector<8x512xf32> to vector<8x128xf32>
    %cst_316 = arith.constant 0.000000e+00 : f32
    %1055 = vector.broadcast %cst_316 : f32 to vector<8x128xf32>
    %1056 = arith.subf %1055, %1054 : vector<8x128xf32>
    %1057 = math.exp %1056 : vector<8x128xf32>
    %cst_317 = arith.constant 1.000000e+00 : f32
    %1058 = vector.broadcast %cst_317 : f32 to vector<8x128xf32>
    %1059 = arith.addf %1058, %1057 : vector<8x128xf32>
    %1060 = tpu.reciprocal %1059 {approx = true} : vector<8x128xf32> -> vector<8x128xf32>
    %1061 = vector.extract_strided_slice %1053 {offsets = [0, 128], sizes = [8, 128], strides = [1, 1]} : vector<8x512xf32> to vector<8x128xf32>
    %cst_318 = arith.constant 0.000000e+00 : f32
    %1062 = vector.broadcast %cst_318 : f32 to vector<8x128xf32>
    %1063 = arith.subf %1062, %1061 : vector<8x128xf32>
    %1064 = math.exp %1063 : vector<8x128xf32>
    %cst_319 = arith.constant 1.000000e+00 : f32
    %1065 = vector.broadcast %cst_319 : f32 to vector<8x128xf32>
    %1066 = arith.addf %1065, %1064 : vector<8x128xf32>
    %1067 = tpu.reciprocal %1066 {approx = true} : vector<8x128xf32> -> vector<8x128xf32>
    %1068 = vector.extract_strided_slice %1053 {offsets = [0, 256], sizes = [8, 128], strides = [1, 1]} : vector<8x512xf32> to vector<8x128xf32>
    %1069 = math.tanh %1068 : vector<8x128xf32>
    %1070 = vector.extract_strided_slice %1053 {offsets = [0, 384], sizes = [8, 128], strides = [1, 1]} : vector<8x512xf32> to vector<8x128xf32>
    %cst_320 = arith.constant 0.000000e+00 : f32
    %1071 = vector.broadcast %cst_320 : f32 to vector<8x128xf32>
    %1072 = arith.subf %1071, %1070 : vector<8x128xf32>
    %1073 = math.exp %1072 : vector<8x128xf32>
    %cst_321 = arith.constant 1.000000e+00 : f32
    %1074 = vector.broadcast %cst_321 : f32 to vector<8x128xf32>
    %1075 = arith.addf %1074, %1073 : vector<8x128xf32>
    %1076 = tpu.reciprocal %1075 {approx = true} : vector<8x128xf32> -> vector<8x128xf32>
    %1077 = arith.mulf %1067, %1010 : vector<8x128xf32>
    %1078 = arith.mulf %1060, %1069 : vector<8x128xf32>
    %1079 = arith.addf %1077, %1078 : vector<8x128xf32>
    %1080 = math.tanh %1079 : vector<8x128xf32>
    %1081 = arith.mulf %1076, %1080 : vector<8x128xf32>
    %1082 = arith.truncf %1081 : vector<8x128xf32> to vector<8x128xbf16>
    %1083 = arith.truncf %1046 : vector<8x128xf32> to vector<8x128xbf16>
    %1084 = tpu.concatenate %1082, %1083 in 1 : vector<8x128xbf16>, vector<8x128xbf16> -> vector<8x256xbf16>
    %c0_322 = arith.constant 0 : index
    %c0_323 = arith.constant 0 : index
    %1085 = vector.load %arg4[%c0_322, %c0_323] : memref<256x512xbf16, #tpu.memory_space<vmem>>, vector<256x512xbf16>
    %cst_324 = arith.constant dense<0.000000e+00> : vector<8x512xf32>
    %1086 = tpu.matmul %1084, %1085, %cst_324 {dimension_numbers = #tpu.dot_dimension_numbers<[1], [0], [0], [1], [0, 0, 1, 1], [], []>} : vector<8x256xbf16>, vector<256x512xbf16>, vector<8x512xf32> -> vector<8x512xf32>
    %1087 = arith.addf %1086, %10 : vector<8x512xf32>
    %1088 = vector.extract_strided_slice %1087 {offsets = [0, 0], sizes = [8, 128], strides = [1, 1]} : vector<8x512xf32> to vector<8x128xf32>
    %cst_325 = arith.constant 0.000000e+00 : f32
    %1089 = vector.broadcast %cst_325 : f32 to vector<8x128xf32>
    %1090 = arith.subf %1089, %1088 : vector<8x128xf32>
    %1091 = math.exp %1090 : vector<8x128xf32>
    %cst_326 = arith.constant 1.000000e+00 : f32
    %1092 = vector.broadcast %cst_326 : f32 to vector<8x128xf32>
    %1093 = arith.addf %1092, %1091 : vector<8x128xf32>
    %1094 = tpu.reciprocal %1093 {approx = true} : vector<8x128xf32> -> vector<8x128xf32>
    %1095 = vector.extract_strided_slice %1087 {offsets = [0, 128], sizes = [8, 128], strides = [1, 1]} : vector<8x512xf32> to vector<8x128xf32>
    %cst_327 = arith.constant 0.000000e+00 : f32
    %1096 = vector.broadcast %cst_327 : f32 to vector<8x128xf32>
    %1097 = arith.subf %1096, %1095 : vector<8x128xf32>
    %1098 = math.exp %1097 : vector<8x128xf32>
    %cst_328 = arith.constant 1.000000e+00 : f32
    %1099 = vector.broadcast %cst_328 : f32 to vector<8x128xf32>
    %1100 = arith.addf %1099, %1098 : vector<8x128xf32>
    %1101 = tpu.reciprocal %1100 {approx = true} : vector<8x128xf32> -> vector<8x128xf32>
    %1102 = vector.extract_strided_slice %1087 {offsets = [0, 256], sizes = [8, 128], strides = [1, 1]} : vector<8x512xf32> to vector<8x128xf32>
    %1103 = math.tanh %1102 : vector<8x128xf32>
    %1104 = vector.extract_strided_slice %1087 {offsets = [0, 384], sizes = [8, 128], strides = [1, 1]} : vector<8x512xf32> to vector<8x128xf32>
    %cst_329 = arith.constant 0.000000e+00 : f32
    %1105 = vector.broadcast %cst_329 : f32 to vector<8x128xf32>
    %1106 = arith.subf %1105, %1104 : vector<8x128xf32>
    %1107 = math.exp %1106 : vector<8x128xf32>
    %cst_330 = arith.constant 1.000000e+00 : f32
    %1108 = vector.broadcast %cst_330 : f32 to vector<8x128xf32>
    %1109 = arith.addf %1108, %1107 : vector<8x128xf32>
    %1110 = tpu.reciprocal %1109 {approx = true} : vector<8x128xf32> -> vector<8x128xf32>
    %1111 = arith.mulf %1101, %1044 : vector<8x128xf32>
    %1112 = arith.mulf %1094, %1103 : vector<8x128xf32>
    %1113 = arith.addf %1111, %1112 : vector<8x128xf32>
    %1114 = math.tanh %1113 : vector<8x128xf32>
    %1115 = arith.mulf %1110, %1114 : vector<8x128xf32>
    %c16_i32 = arith.constant 16 : i32
    %c0_331 = arith.constant 0 : index
    %c0_332 = arith.constant 0 : index
    %1116 = vector.load %arg6[%c0_331, %c0_332] : memref<128x11xf32, #tpu.memory_space<vmem>>, vector<128x11xf32>
    %cst_333 = arith.constant dense<0.000000e+00> : vector<8x11xf32>
    %1117 = tpu.matmul %1115, %1116, %cst_333 {dimension_numbers = #tpu.dot_dimension_numbers<[1], [0], [0], [1], [0, 0, 1, 1], [], []>} : vector<8x128xf32>, vector<128x11xf32>, vector<8x11xf32> -> vector<8x11xf32>
    %c0_334 = arith.constant 0 : index
    %c0_335 = arith.constant 0 : index
    %1118 = vector.load %arg7[%c0_334, %c0_335] : memref<1x11xf32, #tpu.memory_space<vmem>>, vector<1x11xf32>
    %1119 = vector.broadcast %1118 : vector<1x11xf32> to vector<8x11xf32>
    %1120 = arith.addf %1117, %1119 : vector<8x11xf32>
    %c0_336 = arith.constant 0 : index
    %c0_337 = arith.constant 0 : index
    %1121 = vector.load %arg8[%c0_336, %c0_337] : memref<8x11xf32, #tpu.memory_space<vmem>>, vector<8x11xf32>
    tpu.vector_store %arg8[%c0_336, %c0_337], %1120 {strides = array<i32>} : memref<8x11xf32, #tpu.memory_space<vmem>>, vector<8x11xf32>,
    return
  }
}

</mosaic_0001>

<llo_original>
// kernel: lstm_model_forward.1
$region0: #{lstm_model_forward.1}
  #allocation0 [shape = 'u32[]', space=smem, size = 0x4, offset = 0x4, fixed_abs, tag = 'smem constant byte address 0x4 - core index']
  #allocation1 [shape = 'u32[144,128]{1,0:T(1,128)}', space=vmem, size = 0x12000, scoped, tag = 'internal scratch']
  #allocation2 [shape = 'f32[16,8,512]{2,1,0:T(8,128)}', space=vmem, size = 0x40000, scoped, tag = 'scratch operand']
  %s0 = inlined_call_operand.vmem [shape: f32[128,2], index: 0, kind: input, shape index: {}]
  %s1 = inlined_call_operand.vmem [shape: f32[2,512], index: 1, kind: input, shape index: {}]
  %s2 = inlined_call_operand.vmem [shape: f32[1,512], index: 2, kind: input, shape index: {}]
  %s3 = inlined_call_operand.vmem [shape: bf16[128,512], index: 3, kind: input, shape index: {}]
  %s4 = inlined_call_operand.hbm [shape: bf16[256,512], index: 4, kind: input, shape index: {}]
  %s5 = inlined_call_operand.vmem [shape: f32[1,512], index: 5, kind: input, shape index: {}]
  %s6 = inlined_call_operand.vmem [shape: f32[128,11], index: 6, kind: input, shape index: {}]
  %s7 = inlined_call_operand.vmem [shape: f32[1,11], index: 7, kind: input, shape index: {}]
  %s8 = inlined_call_operand.hbm [shape: f32[8,11], index: 8, kind: output, shape index: {}]
  %s9 = sld [smem:[#allocation0]]
  $region46: #{lstm_model_forward.1} parent=0
    _
  %s11 = ssub.s32 1, %s9
  %s12 = scalar_select 0, %s11, %s9
  $region1: #{lstm_model_forward.1} parent=0
    #allocation3 [shape = 'u8[262144]{0}', space=vmem, size = 0x40000, scoped, tag = 'input window, operand 4, single buffered']
    #allocation4 [shape = 's32[1]{0}', space=sflag, size = 0x4, scoped, tag = 'scoped memory for lstm_model_forward.1']
    #allocation5 [shape = 's32[1]{0}', space=sflag, size = 0x4, scoped, tag = 'scoped memory for lstm_model_forward.1']
    #allocation6 [shape = 'u8[4096]{0}', space=vmem, size = 0x1000, scoped, tag = 'output window, operand 0, single buffered']
    %13 = vsyncpa [#allocation4], 0
    %14 = vsyncpa [#allocation5], 0
    // Predicated region
    $region2: #{lstm_model_forward.1} parent=1 // pred_check
      _
    $region3: #{lstm_model_forward.1} parent=1 // pred_check_branch
      %16 = sbr.rel (0) target = $region5
    $region4: #{lstm_model_forward.1} parent=1 // pred_region
      _
    $region5: #{lstm_model_forward.1} parent=1 // pred_fallthru
      _
    // Predicated region
    $region6: #{lstm_model_forward.1} parent=1 // pred_check
      _
    $region7: #{lstm_model_forward.1} parent=1 // pred_check_branch
      %18 = sbr.rel (0) target = $region9
    $region8: #{lstm_model_forward.1} parent=1 // pred_region
      _
    $region9: #{lstm_model_forward.1} parent=1 // pred_fallthru
      _
    // Predicated region
    $region10: #{lstm_model_forward.1} parent=1 // pred_check
      _
    $region11: #{lstm_model_forward.1} parent=1 // pred_check_branch
      %20 = sbr.rel (0) target = $region13
    $region12: #{lstm_model_forward.1} parent=1 // pred_region
      _
    $region13: #{lstm_model_forward.1} parent=1 // pred_fallthru
      _
    // Predicated region
    $region14: #{lstm_model_forward.1} parent=1 // pred_check
      _
    $region15: #{lstm_model_forward.1} parent=1 // pred_check_branch
      %22 = sbr.rel (0) target = $region17
    $region16: #{lstm_model_forward.1} parent=1 // pred_region
      _
    $region17: #{lstm_model_forward.1} parent=1 // pred_fallthru
      _
    // Predicated region
    $region18: #{lstm_model_forward.1} parent=1 // pred_check
      _
    $region19: #{lstm_model_forward.1} parent=1 // pred_check_branch
      %24 = sbr.rel (0) target = $region21
    $region20: #{lstm_model_forward.1} parent=1 // pred_region
      %s26 = ssub.s32 8192, 8192
      %27 = vsyncadd [#allocation4], %s26
      %s28 = sshll.u32 [#allocation3], 4
      %s29 = int_to_ptr.vmem [resolvable:$true] %s28
      %34 = dma.hbm_to_vmem [thread:$0]  %s4, 8192, %s29, [#allocation4], 256, 256, 16
    $region21: #{lstm_model_forward.1} parent=1 // pred_fallthru
      _
    // Predicated region
    $region22: #{lstm_model_forward.1} parent=1 // pred_check
      _
    $region23: #{lstm_model_forward.1} parent=1 // pred_check_branch
      %36 = sbr.rel (0) target = $region25
    $region24: #{lstm_model_forward.1} parent=1 // pred_region
      _
    $region25: #{lstm_model_forward.1} parent=1 // pred_fallthru
      _
    // Predicated region
    $region26: #{lstm_model_forward.1} parent=1 // pred_check
      _
    $region27: #{lstm_model_forward.1} parent=1 // pred_check_branch
      %38 = sbr.rel (0) target = $region29
    $region28: #{lstm_model_forward.1} parent=1 // pred_region
      _
    $region29: #{lstm_model_forward.1} parent=1 // pred_fallthru
      _
    // Predicated region
    $region30: #{lstm_model_forward.1} parent=1 // pred_check
      _
    $region31: #{lstm_model_forward.1} parent=1 // pred_check_branch
      %40 = sbr.rel (0) target = $region33
    $region32: #{lstm_model_forward.1} parent=1 // pred_region
      _
    $region33: #{lstm_model_forward.1} parent=1 // pred_fallthru
      _
    // Predicated region
    $region34: #{lstm_model_forward.1} parent=1 // pred_check
      _
    $region35: #{lstm_model_forward.1} parent=1 // pred_check_branch
      %42 = sbr.rel (0) target = $region37
    $region36: #{lstm_model_forward.1} parent=1 // pred_region
      %43 = dma.done [#allocation4], 8192
    $region37: #{lstm_model_forward.1} parent=1 // pred_fallthru
      _
    %v45 = vld [vmem:[%s0] sm:$0xff]
    %v46 = vld [vmem:[%s0 + $0x8] sm:$0xff]
    %v47 = vld [vmem:[%s0 + $0x10] sm:$0xff]
    %v48 = vld [vmem:[%s0 + $0x18] sm:$0xff]
    %v49 = vld [vmem:[%s0 + $0x20] sm:$0xff]
    %v50 = vld [vmem:[%s0 + $0x28] sm:$0xff]
    %v51 = vld [vmem:[%s0 + $0x30] sm:$0xff]
    %v52 = vld [vmem:[%s0 + $0x38] sm:$0xff]
    %v53 = vld [vmem:[%s0 + $0x40] sm:$0xff]
    %v54 = vld [vmem:[%s0 + $0x48] sm:$0xff]
    %v55 = vld [vmem:[%s0 + $0x50] sm:$0xff]
    %v56 = vld [vmem:[%s0 + $0x58] sm:$0xff]
    %v57 = vld [vmem:[%s0 + $0x60] sm:$0xff]
    %v58 = vld [vmem:[%s0 + $0x68] sm:$0xff]
    %v59 = vld [vmem:[%s0 + $0x70] sm:$0xff]
    %v60 = vld [vmem:[%s0 + $0x78] sm:$0xff]
    %v61 = vld [vmem:[%s1] sm:$0xff]
    %v62 = vld [vmem:[%s2] sm:$0xf]
    %v64 = vlaneseq
    %v65 = vshrl.u32 %v64, 7
    %v66 = vsub.s32 0, %v65
    %v67 = vrot.slane %v62, %v66
    %v68 = vlaneseq
    %v69 = vshrl.u32 %v68, 7
    %v70 = vsub.s32 1, %v69
    %v71 = vrot.slane %v62, %v70
    %v72 = vlaneseq
    %v73 = vshrl.u32 %v72, 7
    %v74 = vsub.s32 2, %v73
    %v75 = vrot.slane %v62, %v74
    %v76 = vlaneseq
    %v77 = vshrl.u32 %v76, 7
    %v78 = vsub.s32 3, %v77
    %v79 = vrot.slane %v62, %v78
    %v85 = vcombine.high %v61, %v61
    %v87 = vunpack.c.l.s4 1983009808
    %v88 = vunpack.c.0.s8 %v87
    %v89 = vlaneseq
    %v90 = vshrl.u32 %v89, 7
    %v91 = vsub.s32 %v88, %v90
    %v92 = vrot.slane %v61, %v91
    %v94 = vunpack.c.l.s4 1983009808
    %v95 = vunpack.c.0.s8 %v94
    %v96 = vlaneseq
    %v97 = vshrl.u32 %v96, 7
    %v98 = vsub.s32 %v95, %v97
    %v99 = vrot.slane %v85, %v98
    %v100 = vcombine.high %v92, %v92
    %v101 = vcombine.high %v99, %v99
    %vm102 = vcmask 15360
    %v104 = vsel %vm102, %v45, 0
    %v107 = vsel %vm102, %v46, 0
    %v110 = vsel %vm102, %v47, 0
    %v113 = vsel %vm102, %v48, 0
    %v116 = vsel %vm102, %v49, 0
    %v119 = vsel %vm102, %v50, 0
    %v122 = vsel %vm102, %v51, 0
    %v125 = vsel %vm102, %v52, 0
    %v128 = vsel %vm102, %v53, 0
    %v131 = vsel %vm102, %v54, 0
    %v134 = vsel %vm102, %v55, 0
    %v137 = vsel %vm102, %v56, 0
    %v140 = vsel %vm102, %v57, 0
    %v143 = vsel %vm102, %v58, 0
    %v146 = vsel %vm102, %v59, 0
    %v149 = vsel %vm102, %v60, 0
    %vm151 = vcmask 1041408
    %v152 = vsel %vm151, %v92, 0
    %v154 = vsel %vm151, %v100, 0
    %v156 = vsel %vm151, %v99, 0
    %v158 = vsel %vm151, %v101, 0
    %160 = vmatprep.subr.mxu0 0.0
    %161 = vmatpush1.msra.mxu0 0.0
    %162 = vmatprep.subr.mxu0 0.0
    %163 = vmatpush1.msra.mxu0 0.0
    %164 = vmatprep.subr.mxu0 0.0
    %165 = vmatpush1.msra.mxu0 0.0
    %166 = vmatprep.subr.mxu0 0.0
    %167 = vmatpush1.msra.mxu0 0.0
    %168 = vmatprep.subr.mxu0 0.0
    %169 = vmatpush1.msra.mxu0 0.0
    %170 = vmatprep.subr.mxu0 0.0
    %171 = vmatpush1.msra.mxu0 0.0
    %172 = vmatprep.subr.mxu0 0.0
    %173 = vmatpush1.msra.mxu0 0.0
    %174 = vmatprep.subr.mxu0 0.0
    %175 = vmatpush1.msra.mxu0 0.0
    %176 = vmatprep.subr.mxu0 0.0
    %177 = vmatpush1.msra.mxu0 0.0
    %178 = vmatprep.subr.mxu0 0.0
    %179 = vmatpush1.msra.mxu0 0.0
    %180 = vmatprep.subr.mxu0 0.0
    %181 = vmatpush1.msra.mxu0 0.0
    %182 = vmatprep.subr.mxu0 0.0
    %183 = vmatpush1.msra.mxu0 0.0
    %184 = vmatprep.subr.mxu0 0.0
    %185 = vmatpush1.msra.mxu0 0.0
    %186 = vmatprep.subr.mxu0 0.0
    %187 = vmatpush1.msra.mxu0 0.0
    %188 = vmatprep.subr.mxu0 0.0
    %189 = vmatpush1.msra.mxu0 0.0
    %190 = vmatprep.subr.mxu0 %v154
    %191 = vmatpush1.msra.mxu0 %v152
    %192 = vmatprep.subr.mxu0 0.0
    %193 = vmatpush2.msra.mxu0 0.0
    %194 = vmatprep.subr.mxu0 0.0
    %195 = vmatpush2.msra.mxu0 0.0
    %196 = vmatprep.subr.mxu0 0.0
    %197 = vmatpush2.msra.mxu0 0.0
    %198 = vmatprep.subr.mxu0 0.0
    %199 = vmatpush2.msra.mxu0 0.0
    %200 = vmatprep.subr.mxu0 0.0
    %201 = vmatpush2.msra.mxu0 0.0
    %202 = vmatprep.subr.mxu0 0.0
    %203 = vmatpush2.msra.mxu0 0.0
    %204 = vmatprep.subr.mxu0 0.0
    %205 = vmatpush2.msra.mxu0 0.0
    %206 = vmatprep.subr.mxu0 0.0
    %207 = vmatpush2.msra.mxu0 0.0
    %208 = vmatprep.subr.mxu0 0.0
    %209 = vmatpush2.msra.mxu0 0.0
    %210 = vmatprep.subr.mxu0 0.0
    %211 = vmatpush2.msra.mxu0 0.0
    %212 = vmatprep.subr.mxu0 0.0
    %213 = vmatpush2.msra.mxu0 0.0
    %214 = vmatprep.subr.mxu0 0.0
    %215 = vmatpush2.msra.mxu0 0.0
    %216 = vmatprep.subr.mxu0 0.0
    %217 = vmatpush2.msra.mxu0 0.0
    %218 = vmatprep.subr.mxu0 0.0
    %219 = vmatpush2.msra.mxu0 0.0
    %220 = vmatprep.subr.mxu0 0.0
    %221 = vmatpush2.msra.mxu0 0.0
    %222 = vmatprep.subr.mxu0 0.0
    %223 = vmatpush2.msra.mxu0 0.0
    %224 = vmatprep.mubr.f32.mxu0 0.0
    %225 = vmatmul.mubr.f32.gmra.mxu0 %v104
    %v226 = vpop.f32.mrf.mxu0
    %v227 = vadd.f32 %v67, %v226
    %v228 = vpop.f32.mrf.mxu0
    %v229 = vadd.f32 %v71, %v228
    %230 = vmatprep.mubr.f32.mxu0 0.0
    %231 = vmatmul.mubr.f32.gmra.mxu0 %v107
    %v232 = vpop.f32.mrf.mxu0
    %v233 = vadd.f32 %v67, %v232
    %v234 = vpop.f32.mrf.mxu0
    %v235 = vadd.f32 %v71, %v234
    %236 = vmatprep.mubr.f32.mxu0 0.0
    %237 = vmatmul.mubr.f32.gmra.mxu0 %v110
    %v238 = vpop.f32.mrf.mxu0
    %v239 = vadd.f32 %v67, %v238
    %v240 = vpop.f32.mrf.mxu0
    %v241 = vadd.f32 %v71, %v240
    %242 = vmatprep.mubr.f32.mxu0 0.0
    %243 = vmatmul.mubr.f32.gmra.mxu0 %v113
    %v244 = vpop.f32.mrf.mxu0
    %v245 = vadd.f32 %v67, %v244
    %v246 = vpop.f32.mrf.mxu0
    %v247 = vadd.f32 %v71, %v246
    %248 = vmatprep.mubr.f32.mxu0 0.0
    %249 = vmatmul.mubr.f32.gmra.mxu0 %v116
    %v250 = vpop.f32.mrf.mxu0
    %v251 = vadd.f32 %v67, %v250
    %v252 = vpop.f32.mrf.mxu0
    %v253 = vadd.f32 %v71, %v252
    %254 = vmatprep.mubr.f32.mxu0 0.0
    %255 = vmatmul.mubr.f32.gmra.mxu0 %v119
    %v256 = vpop.f32.mrf.mxu0
    %v257 = vadd.f32 %v67, %v256
    %v258 = vpop.f32.mrf.mxu0
    %v259 = vadd.f32 %v71, %v258
    %260 = vmatprep.mubr.f32.mxu0 0.0
    %261 = vmatmul.mubr.f32.gmra.mxu0 %v122
    %v262 = vpop.f32.mrf.mxu0
    %v263 = vadd.f32 %v67, %v262
    %v264 = vpop.f32.mrf.mxu0
    %v265 = vadd.f32 %v71, %v264
    %266 = vmatprep.mubr.f32.mxu0 0.0
    %267 = vmatmul.mubr.f32.gmra.mxu0 %v125
    %v268 = vpop.f32.mrf.mxu0
    %v269 = vadd.f32 %v67, %v268
    %v270 = vpop.f32.mrf.mxu0
    %v271 = vadd.f32 %v71, %v270
    %272 = vmatprep.mubr.f32.mxu0 0.0
    %273 = vmatmul.mubr.f32.gmra.mxu0 %v128
    %v274 = vpop.f32.mrf.mxu0
    %v275 = vadd.f32 %v67, %v274
    %v276 = vpop.f32.mrf.mxu0
    %v277 = vadd.f32 %v71, %v276
    %278 = vmatprep.mubr.f32.mxu0 0.0
    %279 = vmatmul.mubr.f32.gmra.mxu0 %v131
    %v280 = vpop.f32.mrf.mxu0
    %v281 = vadd.f32 %v67, %v280
    %v282 = vpop.f32.mrf.mxu0
    %v283 = vadd.f32 %v71, %v282
    %284 = vmatprep.mubr.f32.mxu0 0.0
    %285 = vmatmul.mubr.f32.gmra.mxu0 %v134
    %v286 = vpop.f32.mrf.mxu0
    %v287 = vadd.f32 %v67, %v286
    %v288 = vpop.f32.mrf.mxu0
    %v289 = vadd.f32 %v71, %v288
    %290 = vmatprep.mubr.f32.mxu0 0.0
    %291 = vmatmul.mubr.f32.gmra.mxu0 %v137
    %v292 = vpop.f32.mrf.mxu0
    %v293 = vadd.f32 %v67, %v292
    %v294 = vpop.f32.mrf.mxu0
    %v295 = vadd.f32 %v71, %v294
    %296 = vmatprep.mubr.f32.mxu0 0.0
    %297 = vmatmul.mubr.f32.gmra.mxu0 %v140
    %v298 = vpop.f32.mrf.mxu0
    %v299 = vadd.f32 %v67, %v298
    %v300 = vpop.f32.mrf.mxu0
    %v301 = vadd.f32 %v71, %v300
    %302 = vmatprep.mubr.f32.mxu0 0.0
    %303 = vmatmul.mubr.f32.gmra.mxu0 %v143
    %v304 = vpop.f32.mrf.mxu0
    %v305 = vadd.f32 %v67, %v304
    %v306 = vpop.f32.mrf.mxu0
    %v307 = vadd.f32 %v71, %v306
    %308 = vmatprep.mubr.f32.mxu0 0.0
    %309 = vmatmul.mubr.f32.gmra.mxu0 %v146
    %v310 = vpop.f32.mrf.mxu0
    %v311 = vadd.f32 %v67, %v310
    %v312 = vpop.f32.mrf.mxu0
    %v313 = vadd.f32 %v71, %v312
    %314 = vmatprep.mubr.f32.mxu0 0.0
    %315 = vmatmul.mubr.f32.gmra.mxu0 %v149
    %v316 = vpop.f32.mrf.mxu0
    %v317 = vadd.f32 %v67, %v316
    %v318 = vpop.f32.mrf.mxu0
    %v319 = vadd.f32 %v71, %v318
    %320 = vdwg.mxu0
    %321 = vmatprep.subr.mxu0 0.0
    %322 = vmatpush1.msra.mxu0 0.0
    %323 = vmatprep.subr.mxu0 0.0
    %324 = vmatpush1.msra.mxu0 0.0
    %325 = vmatprep.subr.mxu0 0.0
    %326 = vmatpush1.msra.mxu0 0.0
    %327 = vmatprep.subr.mxu0 0.0
    %328 = vmatpush1.msra.mxu0 0.0
    %329 = vmatprep.subr.mxu0 0.0
    %330 = vmatpush1.msra.mxu0 0.0
    %331 = vmatprep.subr.mxu0 0.0
    %332 = vmatpush1.msra.mxu0 0.0
    %333 = vmatprep.subr.mxu0 0.0
    %334 = vmatpush1.msra.mxu0 0.0
    %335 = vmatprep.subr.mxu0 0.0
    %336 = vmatpush1.msra.mxu0 0.0
    %337 = vmatprep.subr.mxu0 0.0
    %338 = vmatpush1.msra.mxu0 0.0
    %339 = vmatprep.subr.mxu0 0.0
    %340 = vmatpush1.msra.mxu0 0.0
    %341 = vmatprep.subr.mxu0 0.0
    %342 = vmatpush1.msra.mxu0 0.0
    %343 = vmatprep.subr.mxu0 0.0
    %344 = vmatpush1.msra.mxu0 0.0
    %345 = vmatprep.subr.mxu0 0.0
    %346 = vmatpush1.msra.mxu0 0.0
    %347 = vmatprep.subr.mxu0 0.0
    %348 = vmatpush1.msra.mxu0 0.0
    %349 = vmatprep.subr.mxu0 0.0
    %350 = vmatpush1.msra.mxu0 0.0
    %351 = vmatprep.subr.mxu0 %v158
    %352 = vmatpush1.msra.mxu0 %v156
    %353 = vmatprep.subr.mxu0 0.0
    %354 = vmatpush2.msra.mxu0 0.0
    %355 = vmatprep.subr.mxu0 0.0
    %356 = vmatpush2.msra.mxu0 0.0
    %357 = vmatprep.subr.mxu0 0.0
    %358 = vmatpush2.msra.mxu0 0.0
    %359 = vmatprep.subr.mxu0 0.0
    %360 = vmatpush2.msra.mxu0 0.0
    %361 = vmatprep.subr.mxu0 0.0
    %362 = vmatpush2.msra.mxu0 0.0
    %363 = vmatprep.subr.mxu0 0.0
    %364 = vmatpush2.msra.mxu0 0.0
    %365 = vmatprep.subr.mxu0 0.0
    %366 = vmatpush2.msra.mxu0 0.0
    %367 = vmatprep.subr.mxu0 0.0
    %368 = vmatpush2.msra.mxu0 0.0
    %369 = vmatprep.subr.mxu0 0.0
    %370 = vmatpush2.msra.mxu0 0.0
    %371 = vmatprep.subr.mxu0 0.0
    %372 = vmatpush2.msra.mxu0 0.0
    %373 = vmatprep.subr.mxu0 0.0
    %374 = vmatpush2.msra.mxu0 0.0
    %375 = vmatprep.subr.mxu0 0.0
    %376 = vmatpush2.msra.mxu0 0.0
    %377 = vmatprep.subr.mxu0 0.0
    %378 = vmatpush2.msra.mxu0 0.0
    %379 = vmatprep.subr.mxu0 0.0
    %380 = vmatpush2.msra.mxu0 0.0
    %381 = vmatprep.subr.mxu0 0.0
    %382 = vmatpush2.msra.mxu0 0.0
    %383 = vmatprep.subr.mxu0 0.0
    %384 = vmatpush2.msra.mxu0 0.0
    %385 = vmatprep.mubr.f32.mxu0 0.0
    %386 = vmatmul.mubr.f32.gmra.mxu0 %v104
    %v387 = vpop.f32.mrf.mxu0
    %v388 = vadd.f32 %v75, %v387
    %v389 = vpop.f32.mrf.mxu0
    %v390 = vadd.f32 %v79, %v389
    %391 = vmatprep.mubr.f32.mxu0 0.0
    %392 = vmatmul.mubr.f32.gmra.mxu0 %v107
    %v393 = vpop.f32.mrf.mxu0
    %v394 = vadd.f32 %v75, %v393
    %v395 = vpop.f32.mrf.mxu0
    %v396 = vadd.f32 %v79, %v395
    %397 = vmatprep.mubr.f32.mxu0 0.0
    %398 = vmatmul.mubr.f32.gmra.mxu0 %v110
    %v399 = vpop.f32.mrf.mxu0
    %v400 = vadd.f32 %v75, %v399
    %v401 = vpop.f32.mrf.mxu0
    %v402 = vadd.f32 %v79, %v401
    %403 = vmatprep.mubr.f32.mxu0 0.0
    %404 = vmatmul.mubr.f32.gmra.mxu0 %v113
    %v405 = vpop.f32.mrf.mxu0
    %v406 = vadd.f32 %v75, %v405
    %v407 = vpop.f32.mrf.mxu0
    %v408 = vadd.f32 %v79, %v407
    %409 = vmatprep.mubr.f32.mxu0 0.0
    %410 = vmatmul.mubr.f32.gmra.mxu0 %v116
    %v411 = vpop.f32.mrf.mxu0
    %v412 = vadd.f32 %v75, %v411
    %v413 = vpop.f32.mrf.mxu0
    %v414 = vadd.f32 %v79, %v413
    %415 = vmatprep.mubr.f32.mxu0 0.0
    %416 = vmatmul.mubr.f32.gmra.mxu0 %v119
    %v417 = vpop.f32.mrf.mxu0
    %v418 = vadd.f32 %v75, %v417
    %v419 = vpop.f32.mrf.mxu0
    %v420 = vadd.f32 %v79, %v419
    %421 = vmatprep.mubr.f32.mxu0 0.0
    %422 = vmatmul.mubr.f32.gmra.mxu0 %v122
    %v423 = vpop.f32.mrf.mxu0
    %v424 = vadd.f32 %v75, %v423
    %v425 = vpop.f32.mrf.mxu0
    %v426 = vadd.f32 %v79, %v425
    %427 = vmatprep.mubr.f32.mxu0 0.0
    %428 = vmatmul.mubr.f32.gmra.mxu0 %v125
    %v429 = vpop.f32.mrf.mxu0
    %v430 = vadd.f32 %v75, %v429
    %v431 = vpop.f32.mrf.mxu0
    %v432 = vadd.f32 %v79, %v431
    %433 = vmatprep.mubr.f32.mxu0 0.0
    %434 = vmatmul.mubr.f32.gmra.mxu0 %v128
    %v435 = vpop.f32.mrf.mxu0
    %v436 = vadd.f32 %v75, %v435
    %v437 = vpop.f32.mrf.mxu0
    %v438 = vadd.f32 %v79, %v437
    %439 = vmatprep.mubr.f32.mxu0 0.0
    %440 = vmatmul.mubr.f32.gmra.mxu0 %v131
    %v441 = vpop.f32.mrf.mxu0
    %v442 = vadd.f32 %v75, %v441
    %v443 = vpop.f32.mrf.mxu0
    %v444 = vadd.f32 %v79, %v443
    %445 = vmatprep.mubr.f32.mxu0 0.0
    %446 = vmatmul.mubr.f32.gmra.mxu0 %v134
    %v447 = vpop.f32.mrf.mxu0
    %v448 = vadd.f32 %v75, %v447
    %v449 = vpop.f32.mrf.mxu0
    %v450 = vadd.f32 %v79, %v449
    %451 = vmatprep.mubr.f32.mxu0 0.0
    %452 = vmatmul.mubr.f32.gmra.mxu0 %v137
    %v453 = vpop.f32.mrf.mxu0
    %v454 = vadd.f32 %v75, %v453
    %v455 = vpop.f32.mrf.mxu0
    %v456 = vadd.f32 %v79, %v455
    %457 = vmatprep.mubr.f32.mxu0 0.0
    %458 = vmatmul.mubr.f32.gmra.mxu0 %v140
    %v459 = vpop.f32.mrf.mxu0
    %v460 = vadd.f32 %v75, %v459
    %v461 = vpop.f32.mrf.mxu0
    %v462 = vadd.f32 %v79, %v461
    %463 = vmatprep.mubr.f32.mxu0 0.0
    %464 = vmatmul.mubr.f32.gmra.mxu0 %v143
    %v465 = vpop.f32.mrf.mxu0
    %v466 = vadd.f32 %v75, %v465
    %v467 = vpop.f32.mrf.mxu0
    %v468 = vadd.f32 %v79, %v467
    %469 = vmatprep.mubr.f32.mxu0 0.0
    %470 = vmatmul.mubr.f32.gmra.mxu0 %v146
    %v471 = vpop.f32.mrf.mxu0
    %v472 = vadd.f32 %v75, %v471
    %v473 = vpop.f32.mrf.mxu0
    %v474 = vadd.f32 %v79, %v473
    %475 = vmatprep.mubr.f32.mxu0 0.0
    %476 = vmatmul.mubr.f32.gmra.mxu0 %v149
    %v477 = vpop.f32.mrf.mxu0
    %v478 = vadd.f32 %v75, %v477
    %v479 = vpop.f32.mrf.mxu0
    %v480 = vadd.f32 %v79, %v479
    %481 = vdwg.mxu0
    %482 = vst [vmem:[#allocation2] sm:$0xff] %v227
    %483 = vst [vmem:[#allocation2 + $0x8] sm:$0xff] %v229
    %484 = vst [vmem:[#allocation2 + $0x10] sm:$0xff] %v388
    %485 = vst [vmem:[#allocation2 + $0x18] sm:$0xff] %v390
    %486 = vst [vmem:[#allocation2 + $0x20] sm:$0xff] %v233
    %487 = vst [vmem:[#allocation2 + $0x28] sm:$0xff] %v235
    %488 = vst [vmem:[#allocation2 + $0x30] sm:$0xff] %v394
    %489 = vst [vmem:[#allocation2 + $0x38] sm:$0xff] %v396
    %490 = vst [vmem:[#allocation2 + $0x40] sm:$0xff] %v239
    %491 = vst [vmem:[#allocation2 + $0x48] sm:$0xff] %v241
    %492 = vst [vmem:[#allocation2 + $0x50] sm:$0xff] %v400
    %493 = vst [vmem:[#allocation2 + $0x58] sm:$0xff] %v402
    %494 = vst [vmem:[#allocation2 + $0x60] sm:$0xff] %v245
    %495 = vst [vmem:[#allocation2 + $0x68] sm:$0xff] %v247
    %496 = vst [vmem:[#allocation2 + $0x70] sm:$0xff] %v406
    %497 = vst [vmem:[#allocation2 + $0x78] sm:$0xff] %v408
    %498 = vst [vmem:[#allocation2 + $0x80] sm:$0xff] %v251
    %499 = vst [vmem:[#allocation2 + $0x88] sm:$0xff] %v253
    %500 = vst [vmem:[#allocation2 + $0x90] sm:$0xff] %v412
    %501 = vst [vmem:[#allocation2 + $0x98] sm:$0xff] %v414
    %502 = vst [vmem:[#allocation2 + $0xa0] sm:$0xff] %v257
    %503 = vst [vmem:[#allocation2 + $0xa8] sm:$0xff] %v259
    %504 = vst [vmem:[#allocation2 + $0xb0] sm:$0xff] %v418
    %505 = vst [vmem:[#allocation2 + $0xb8] sm:$0xff] %v420
    %506 = vst [vmem:[#allocation2 + $0xc0] sm:$0xff] %v263
    %507 = vst [vmem:[#allocation2 + $0xc8] sm:$0xff] %v265
    %508 = vst [vmem:[#allocation2 + $0xd0] sm:$0xff] %v424
    %509 = vst [vmem:[#allocation2 + $0xd8] sm:$0xff] %v426
    %510 = vst [vmem:[#allocation2 + $0xe0] sm:$0xff] %v269
    %511 = vst [vmem:[#allocation2 + $0xe8] sm:$0xff] %v271
    %512 = vst [vmem:[#allocation2 + $0xf0] sm:$0xff] %v430
    %513 = vst [vmem:[#allocation2 + $0xf8] sm:$0xff] %v432
    %514 = vst [vmem:[#allocation2 + $0x100] sm:$0xff] %v275
    %515 = vst [vmem:[#allocation2 + $0x108] sm:$0xff] %v277
    %516 = vst [vmem:[#allocation2 + $0x110] sm:$0xff] %v436
    %517 = vst [vmem:[#allocation2 + $0x118] sm:$0xff] %v438
    %518 = vst [vmem:[#allocation2 + $0x120] sm:$0xff] %v281
    %519 = vst [vmem:[#allocation2 + $0x128] sm:$0xff] %v283
    %520 = vst [vmem:[#allocation2 + $0x130] sm:$0xff] %v442
    %521 = vst [vmem:[#allocation2 + $0x138] sm:$0xff] %v444
    %522 = vst [vmem:[#allocation2 + $0x140] sm:$0xff] %v287
    %523 = vst [vmem:[#allocation2 + $0x148] sm:$0xff] %v289
    %524 = vst [vmem:[#allocation2 + $0x150] sm:$0xff] %v448
    %525 = vst [vmem:[#allocation2 + $0x158] sm:$0xff] %v450
    %526 = vst [vmem:[#allocation2 + $0x160] sm:$0xff] %v293
    %527 = vst [vmem:[#allocation2 + $0x168] sm:$0xff] %v295
    %528 = vst [vmem:[#allocation2 + $0x170] sm:$0xff] %v454
    %529 = vst [vmem:[#allocation2 + $0x178] sm:$0xff] %v456
    %530 = vst [vmem:[#allocation2 + $0x180] sm:$0xff] %v299
    %531 = vst [vmem:[#allocation2 + $0x188] sm:$0xff] %v301
    %532 = vst [vmem:[#allocation2 + $0x190] sm:$0xff] %v460
    %533 = vst [vmem:[#allocation2 + $0x198] sm:$0xff] %v462
    %534 = vst [vmem:[#allocation2 + $0x1a0] sm:$0xff] %v305
    %535 = vst [vmem:[#allocation2 + $0x1a8] sm:$0xff] %v307
    %536 = vst [vmem:[#allocation2 + $0x1b0] sm:$0xff] %v466
    %537 = vst [vmem:[#allocation2 + $0x1b8] sm:$0xff] %v468
    %538 = vst [vmem:[#allocation2 + $0x1c0] sm:$0xff] %v311
    %539 = vst [vmem:[#allocation2 + $0x1c8] sm:$0xff] %v313
    %540 = vst [vmem:[#allocation2 + $0x1d0] sm:$0xff] %v472
    %541 = vst [vmem:[#allocation2 + $0x1d8] sm:$0xff] %v474
    %542 = vst [vmem:[#allocation2 + $0x1e0] sm:$0xff] %v317
    %543 = vst [vmem:[#allocation2 + $0x1e8] sm:$0xff] %v319
    %544 = vst [vmem:[#allocation2 + $0x1f0] sm:$0xff] %v478
    %545 = vst [vmem:[#allocation2 + $0x1f8] sm:$0xff] %v480
    %v546 = vld [vmem:[%s5] sm:$0xf]
    %v548 = vlaneseq
    %v549 = vshrl.u32 %v548, 7
    %v550 = vsub.s32 0, %v549
    %v551 = vrot.slane %v546, %v550
    %v552 = vlaneseq
    %v553 = vshrl.u32 %v552, 7
    %v554 = vsub.s32 1, %v553
    %v555 = vrot.slane %v546, %v554
    %v556 = vlaneseq
    %v557 = vshrl.u32 %v556, 7
    %v558 = vsub.s32 2, %v557
    %v559 = vrot.slane %v546, %v558
    %v560 = vlaneseq
    %v561 = vshrl.u32 %v560, 7
    %v562 = vsub.s32 3, %v561
    %v563 = vrot.slane %v546, %v562
    %v568 = vld [vmem:[#allocation2] sm:$0xff]
    %v569 = vld [vmem:[#allocation2 + $0x8] sm:$0xff]
    %v570 = vld [vmem:[#allocation2 + $0x10] sm:$0xff]
    %v571 = vld [vmem:[#allocation2 + $0x18] sm:$0xff]
    %v572 = vld [vmem:[%s3] sm:$0xff]
    %v573 = vld [vmem:[%s3 + $0x8] sm:$0xff]
    %v574 = vld [vmem:[%s3 + $0x10] sm:$0xff]
    %v575 = vld [vmem:[%s3 + $0x18] sm:$0xff]
    %v576 = vld [vmem:[%s3 + $0x20] sm:$0xff]
    %v577 = vld [vmem:[%s3 + $0x28] sm:$0xff]
    %v578 = vld [vmem:[%s3 + $0x30] sm:$0xff]
    %v579 = vld [vmem:[%s3 + $0x38] sm:$0xff]
    %v580 = vld [vmem:[%s3 + $0x40] sm:$0xff]
    %v581 = vld [vmem:[%s3 + $0x48] sm:$0xff]
    %v582 = vld [vmem:[%s3 + $0x50] sm:$0xff]
    %v583 = vld [vmem:[%s3 + $0x58] sm:$0xff]
    %v584 = vld [vmem:[%s3 + $0x60] sm:$0xff]
    %v585 = vld [vmem:[%s3 + $0x68] sm:$0xff]
    %v586 = vld [vmem:[%s3 + $0x70] sm:$0xff]
    %v587 = vld [vmem:[%s3 + $0x78] sm:$0xff]
    %v588 = vld [vmem:[%s3 + $0x80] sm:$0xff]
    %v589 = vld [vmem:[%s3 + $0x88] sm:$0xff]
    %v590 = vld [vmem:[%s3 + $0x90] sm:$0xff]
    %v591 = vld [vmem:[%s3 + $0x98] sm:$0xff]
    %v592 = vld [vmem:[%s3 + $0xa0] sm:$0xff]
    %v593 = vld [vmem:[%s3 + $0xa8] sm:$0xff]
    %v594 = vld [vmem:[%s3 + $0xb0] sm:$0xff]
    %v595 = vld [vmem:[%s3 + $0xb8] sm:$0xff]
    %v596 = vld [vmem:[%s3 + $0xc0] sm:$0xff]
    %v597 = vld [vmem:[%s3 + $0xc8] sm:$0xff]
    %v598 = vld [vmem:[%s3 + $0xd0] sm:$0xff]
    %v599 = vld [vmem:[%s3 + $0xd8] sm:$0xff]
    %v600 = vld [vmem:[%s3 + $0xe0] sm:$0xff]
    %v601 = vld [vmem:[%s3 + $0xe8] sm:$0xff]
    %v602 = vld [vmem:[%s3 + $0xf0] sm:$0xff]
    %v603 = vld [vmem:[%s3 + $0xf8] sm:$0xff]
    %v636 = vunpack.c.l.b16 %v572
    %v637 = vunpack.c.h.b16 %v572
    %v638 = vunpack.c.l.b16 %v573
    %v639 = vunpack.c.h.b16 %v573
    %v640 = vunpack.c.l.b16 %v574
    %v641 = vunpack.c.h.b16 %v574
    %v642 = vunpack.c.l.b16 %v575
    %v643 = vunpack.c.h.b16 %v575
    %v644 = vunpack.c.l.b16 %v576
    %v645 = vunpack.c.h.b16 %v576
    %v646 = vunpack.c.l.b16 %v577
    %v647 = vunpack.c.h.b16 %v577
    %v648 = vunpack.c.l.b16 %v578
    %v649 = vunpack.c.h.b16 %v578
    %v650 = vunpack.c.l.b16 %v579
    %v651 = vunpack.c.h.b16 %v579
    %v652 = vunpack.c.l.b16 %v580
    %v653 = vunpack.c.h.b16 %v580
    %v654 = vunpack.c.l.b16 %v581
    %v655 = vunpack.c.h.b16 %v581
    %v656 = vunpack.c.l.b16 %v582
    %v657 = vunpack.c.h.b16 %v582
    %v658 = vunpack.c.l.b16 %v583
    %v659 = vunpack.c.h.b16 %v583
    %v660 = vunpack.c.l.b16 %v584
    %v661 = vunpack.c.h.b16 %v584
    %v662 = vunpack.c.l.b16 %v585
    %v663 = vunpack.c.h.b16 %v585
    %v664 = vunpack.c.l.b16 %v586
    %v665 = vunpack.c.h.b16 %v586
    %v666 = vunpack.c.l.b16 %v587
    %v667 = vunpack.c.h.b16 %v587
    %v668 = vunpack.c.l.b16 %v588
    %v669 = vunpack.c.h.b16 %v588
    %v670 = vunpack.c.l.b16 %v589
    %v671 = vunpack.c.h.b16 %v589
    %v672 = vunpack.c.l.b16 %v590
    %v673 = vunpack.c.h.b16 %v590
    %v674 = vunpack.c.l.b16 %v591
    %v675 = vunpack.c.h.b16 %v591
    %v676 = vunpack.c.l.b16 %v592
    %v677 = vunpack.c.h.b16 %v592
    %v678 = vunpack.c.l.b16 %v593
    %v679 = vunpack.c.h.b16 %v593
    %v680 = vunpack.c.l.b16 %v594
    %v681 = vunpack.c.h.b16 %v594
    %v682 = vunpack.c.l.b16 %v595
    %v683 = vunpack.c.h.b16 %v595
    %v684 = vunpack.c.l.b16 %v596
    %v685 = vunpack.c.h.b16 %v596
    %v686 = vunpack.c.l.b16 %v597
    %v687 = vunpack.c.h.b16 %v597
    %v688 = vunpack.c.l.b16 %v598
    %v689 = vunpack.c.h.b16 %v598
    %v690 = vunpack.c.l.b16 %v599
    %v691 = vunpack.c.h.b16 %v599
    %v692 = vunpack.c.l.b16 %v600
    %v693 = vunpack.c.h.b16 %v600
    %v694 = vunpack.c.l.b16 %v601
    %v695 = vunpack.c.h.b16 %v601
    %v696 = vunpack.c.l.b16 %v602
    %v697 = vunpack.c.h.b16 %v602
    %v698 = vunpack.c.l.b16 %v603
    %v699 = vunpack.c.h.b16 %v603
    %v700 = vpack.c.b16 %v640, %v636
    %v701 = vpack.c.b16 %v641, %v637
    %v702 = vpack.c.b16 %v642, %v638
    %v703 = vpack.c.b16 %v643, %v639
    %v704 = vpack.c.b16 %v648, %v644
    %v705 = vpack.c.b16 %v649, %v645
    %v706 = vpack.c.b16 %v650, %v646
    %v707 = vpack.c.b16 %v651, %v647
    %v708 = vpack.c.b16 %v656, %v652
    %v709 = vpack.c.b16 %v657, %v653
    %v710 = vpack.c.b16 %v658, %v654
    %v711 = vpack.c.b16 %v659, %v655
    %v712 = vpack.c.b16 %v664, %v660
    %v713 = vpack.c.b16 %v665, %v661
    %v714 = vpack.c.b16 %v666, %v662
    %v715 = vpack.c.b16 %v667, %v663
    %v716 = vpack.c.b16 %v672, %v668
    %v717 = vpack.c.b16 %v673, %v669
    %v718 = vpack.c.b16 %v674, %v670
    %v719 = vpack.c.b16 %v675, %v671
    %v720 = vpack.c.b16 %v680, %v676
    %v721 = vpack.c.b16 %v681, %v677
    %v722 = vpack.c.b16 %v682, %v678
    %v723 = vpack.c.b16 %v683, %v679
    %v724 = vpack.c.b16 %v688, %v684
    %v725 = vpack.c.b16 %v689, %v685
    %v726 = vpack.c.b16 %v690, %v686
    %v727 = vpack.c.b16 %v691, %v687
    %v728 = vpack.c.b16 %v696, %v692
    %v729 = vpack.c.b16 %v697, %v693
    %v730 = vpack.c.b16 %v698, %v694
    %v731 = vpack.c.b16 %v699, %v695
    %764 = vmatprep.subr.bf16.mxu0 %v729
    %765 = vmatpush1.bf16.msra.mxu0 %v728
    %766 = vmatprep.subr.bf16.mxu0 %v725
    %767 = vmatpush1.bf16.msra.mxu0 %v724
    %768 = vmatprep.subr.bf16.mxu0 %v721
    %769 = vmatpush1.bf16.msra.mxu0 %v720
    %770 = vmatprep.subr.bf16.mxu0 %v717
    %771 = vmatpush1.bf16.msra.mxu0 %v716
    %772 = vmatprep.subr.bf16.mxu0 %v713
    %773 = vmatpush1.bf16.msra.mxu0 %v712
    %774 = vmatprep.subr.bf16.mxu0 %v709
    %775 = vmatpush1.bf16.msra.mxu0 %v708
    %776 = vmatprep.subr.bf16.mxu0 %v705
    %777 = vmatpush1.bf16.msra.mxu0 %v704
    %778 = vmatprep.subr.bf16.mxu0 %v701
    %779 = vmatpush1.bf16.msra.mxu0 %v700
    %780 = vmatprep.subr.bf16.mxu0 0
    %781 = vmatpush2.bf16.msra.mxu0 0
    %782 = vmatprep.subr.bf16.mxu0 0
    %783 = vmatpush2.bf16.msra.mxu0 0
    %784 = vmatprep.subr.bf16.mxu0 0
    %785 = vmatpush2.bf16.msra.mxu0 0
    %786 = vmatprep.subr.bf16.mxu0 0
    %787 = vmatpush2.bf16.msra.mxu0 0
    %788 = vmatprep.subr.bf16.mxu0 0
    %789 = vmatpush2.bf16.msra.mxu0 0
    %790 = vmatprep.subr.bf16.mxu0 0
    %791 = vmatpush2.bf16.msra.mxu0 0
    %792 = vmatprep.subr.bf16.mxu0 0
    %793 = vmatpush2.bf16.msra.mxu0 0
    %794 = vmatprep.subr.bf16.mxu0 0
    %795 = vmatpush2.bf16.msra.mxu0 0
    %796 = vmatprep.mubr.bf16.mxu0 0
    %797 = vmatmul.mubr.bf16.gmra.mxu0 0
    %v798 = vpop.f32.mrf.mxu0
    %v799 = vadd.f32 0.0, %v798
    %v800 = vpop.f32.mrf.mxu0
    %v801 = vadd.f32 0.0, %v800
    %v802 = vpop.f32.mrf.mxu0
    %v803 = vpop.f32.mrf.mxu0
    %804 = vdwg.mxu0
    %805 = vmatprep.subr.bf16.mxu0 %v731
    %806 = vmatpush1.bf16.msra.mxu0 %v730
    %807 = vmatprep.subr.bf16.mxu0 %v727
    %808 = vmatpush1.bf16.msra.mxu0 %v726
    %809 = vmatprep.subr.bf16.mxu0 %v723
    %810 = vmatpush1.bf16.msra.mxu0 %v722
    %811 = vmatprep.subr.bf16.mxu0 %v719
    %812 = vmatpush1.bf16.msra.mxu0 %v718
    %813 = vmatprep.subr.bf16.mxu0 %v715
    %814 = vmatpush1.bf16.msra.mxu0 %v714
    %815 = vmatprep.subr.bf16.mxu0 %v711
    %816 = vmatpush1.bf16.msra.mxu0 %v710
    %817 = vmatprep.subr.bf16.mxu0 %v707
    %818 = vmatpush1.bf16.msra.mxu0 %v706
    %819 = vmatprep.subr.bf16.mxu0 %v703
    %820 = vmatpush1.bf16.msra.mxu0 %v702
    %821 = vmatprep.subr.bf16.mxu0 0
    %822 = vmatpush2.bf16.msra.mxu0 0
    %823 = vmatprep.subr.bf16.mxu0 0
    %824 = vmatpush2.bf16.msra.mxu0 0
    %825 = vmatprep.subr.bf16.mxu0 0
    %826 = vmatpush2.bf16.msra.mxu0 0
    %827 = vmatprep.subr.bf16.mxu0 0
    %828 = vmatpush2.bf16.msra.mxu0 0
    %829 = vmatprep.subr.bf16.mxu0 0
    %830 = vmatpush2.bf16.msra.mxu0 0
    %831 = vmatprep.subr.bf16.mxu0 0
    %832 = vmatpush2.bf16.msra.mxu0 0
    %833 = vmatprep.subr.bf16.mxu0 0
    %834 = vmatpush2.bf16.msra.mxu0 0
    %835 = vmatprep.subr.bf16.mxu0 0
    %836 = vmatpush2.bf16.msra.mxu0 0
    %837 = vmatprep.mubr.bf16.mxu0 0
    %838 = vmatmul.mubr.bf16.gmra.mxu0 0
    %v839 = vpop.f32.mrf.mxu0
    %v840 = vadd.f32 0.0, %v839
    %v841 = vpop.f32.mrf.mxu0
    %v842 = vadd.f32 0.0, %v841
    %v843 = vpop.f32.mrf.mxu0
    %v844 = vpop.f32.mrf.mxu0
    %845 = vdwg.mxu0
    %v846 = vadd.f32 %v568, %v799
    %v847 = vadd.f32 %v569, %v801
    %v848 = vadd.f32 %v570, %v840
    %v849 = vadd.f32 %v571, %v842
    %v850 = vsub.f32 0.0, %v846
    %v851 = vmul.f32 %v850, 1.442695
    %v852 = vpow.pop %v851
    %v853 = vadd.f32 %v852, 1.0
    %v854 = vrcp.pop %v853
    %v855 = vsub.f32 0.0, %v847
    %v856 = vmul.f32 %v855, 1.442695
    %v857 = vpow.pop %v856
    %v858 = vadd.f32 %v857, 1.0
    %v859 = vrcp.pop %v858
    %v860 = vtanh.pop %v848
    %v861 = vsub.f32 0.0, %v849
    %v862 = vmul.f32 %v861, 1.442695
    %v863 = vpow.pop %v862
    %v864 = vadd.f32 %v863, 1.0
    %v865 = vrcp.pop %v864
    %v866 = vmul.f32 %v859, 0.0
    %v867 = vmul.f32 %v854, %v860
    %v868 = vadd.f32 %v866, %v867
    %v869 = vtanh.pop %v868
    %v870 = vmul.f32 %v865, %v869
    %v871 = vpack.c.bf16 %v870, %v870
    %v872 = vld [vmem:[#allocation3] sm:$0xff]
    %v873 = vld [vmem:[#allocation3 + $0x8] sm:$0xff]
    %v874 = vld [vmem:[#allocation3 + $0x10] sm:$0xff]
    %v875 = vld [vmem:[#allocation3 + $0x18] sm:$0xff]
    %v876 = vld [vmem:[#allocation3 + $0x20] sm:$0xff]
    %v877 = vld [vmem:[#allocation3 + $0x28] sm:$0xff]
    %v878 = vld [vmem:[#allocation3 + $0x30] sm:$0xff]
    %v879 = vld [vmem:[#allocation3 + $0x38] sm:$0xff]
    %v880 = vld [vmem:[#allocation3 + $0x40] sm:$0xff]
    %v881 = vld [vmem:[#allocation3 + $0x48] sm:$0xff]
    %v882 = vld [vmem:[#allocation3 + $0x50] sm:$0xff]
    %v883 = vld [vmem:[#allocation3 + $0x58] sm:$0xff]
    %v884 = vld [vmem:[#allocation3 + $0x60] sm:$0xff]
    %v885 = vld [vmem:[#allocation3 + $0x68] sm:$0xff]
    %v886 = vld [vmem:[#allocation3 + $0x70] sm:$0xff]
    %v887 = vld [vmem:[#allocation3 + $0x78] sm:$0xff]
    %v888 = vld [vmem:[#allocation3 + $0x80] sm:$0xff]
    %v889 = vld [vmem:[#allocation3 + $0x88] sm:$0xff]
    %v890 = vld [vmem:[#allocation3 + $0x90] sm:$0xff]
    %v891 = vld [vmem:[#allocation3 + $0x98] sm:$0xff]
    %v892 = vld [vmem:[#allocation3 + $0xa0] sm:$0xff]
    %v893 = vld [vmem:[#allocation3 + $0xa8] sm:$0xff]
    %v894 = vld [vmem:[#allocation3 + $0xb0] sm:$0xff]
    %v895 = vld [vmem:[#allocation3 + $0xb8] sm:$0xff]
    %v896 = vld [vmem:[#allocation3 + $0xc0] sm:$0xff]
    %v897 = vld [vmem:[#allocation3 + $0xc8] sm:$0xff]
    %v898 = vld [vmem:[#allocation3 + $0xd0] sm:$0xff]
    %v899 = vld [vmem:[#allocation3 + $0xd8] sm:$0xff]
    %v900 = vld [vmem:[#allocation3 + $0xe0] sm:$0xff]
    %v901 = vld [vmem:[#allocation3 + $0xe8] sm:$0xff]
    %v902 = vld [vmem:[#allocation3 + $0xf0] sm:$0xff]
    %v903 = vld [vmem:[#allocation3 + $0xf8] sm:$0xff]
    %v904 = vld [vmem:[#allocation3 + $0x100] sm:$0xff]
    %v905 = vld [vmem:[#allocation3 + $0x108] sm:$0xff]
    %v906 = vld [vmem:[#allocation3 + $0x110] sm:$0xff]
    %v907 = vld [vmem:[#allocation3 + $0x118] sm:$0xff]
    %v908 = vld [vmem:[#allocation3 + $0x120] sm:$0xff]
    %v909 = vld [vmem:[#allocation3 + $0x128] sm:$0xff]
    %v910 = vld [vmem:[#allocation3 + $0x130] sm:$0xff]
    %v911 = vld [vmem:[#allocation3 + $0x138] sm:$0xff]
    %v912 = vld [vmem:[#allocation3 + $0x140] sm:$0xff]
    %v913 = vld [vmem:[#allocation3 + $0x148] sm:$0xff]
    %v914 = vld [vmem:[#allocation3 + $0x150] sm:$0xff]
    %v915 = vld [vmem:[#allocation3 + $0x158] sm:$0xff]
    %v916 = vld [vmem:[#allocation3 + $0x160] sm:$0xff]
    %v917 = vld [vmem:[#allocation3 + $0x168] sm:$0xff]
    %v918 = vld [vmem:[#allocation3 + $0x170] sm:$0xff]
    %v919 = vld [vmem:[#allocation3 + $0x178] sm:$0xff]
    %v920 = vld [vmem:[#allocation3 + $0x180] sm:$0xff]
    %v921 = vld [vmem:[#allocation3 + $0x188] sm:$0xff]
    %v922 = vld [vmem:[#allocation3 + $0x190] sm:$0xff]
    %v923 = vld [vmem:[#allocation3 + $0x198] sm:$0xff]
    %v924 = vld [vmem:[#allocation3 + $0x1a0] sm:$0xff]
    %v925 = vld [vmem:[#allocation3 + $0x1a8] sm:$0xff]
    %v926 = vld [vmem:[#allocation3 + $0x1b0] sm:$0xff]
    %v927 = vld [vmem:[#allocation3 + $0x1b8] sm:$0xff]
    %v928 = vld [vmem:[#allocation3 + $0x1c0] sm:$0xff]
    %v929 = vld [vmem:[#allocation3 + $0x1c8] sm:$0xff]
    %v930 = vld [vmem:[#allocation3 + $0x1d0] sm:$0xff]
    %v931 = vld [vmem:[#allocation3 + $0x1d8] sm:$0xff]
    %v932 = vld [vmem:[#allocation3 + $0x1e0] sm:$0xff]
    %v933 = vld [vmem:[#allocation3 + $0x1e8] sm:$0xff]
    %v934 = vld [vmem:[#allocation3 + $0x1f0] sm:$0xff]
    %v935 = vld [vmem:[#allocation3 + $0x1f8] sm:$0xff]
    %v1000 = vunpack.c.l.b16 %v872
    %v1001 = vunpack.c.h.b16 %v872
    %v1002 = vunpack.c.l.b16 %v873
    %v1003 = vunpack.c.h.b16 %v873
    %v1004 = vunpack.c.l.b16 %v874
    %v1005 = vunpack.c.h.b16 %v874
    %v1006 = vunpack.c.l.b16 %v875
    %v1007 = vunpack.c.h.b16 %v875
    %v1008 = vunpack.c.l.b16 %v876
    %v1009 = vunpack.c.h.b16 %v876
    %v1010 = vunpack.c.l.b16 %v877
    %v1011 = vunpack.c.h.b16 %v877
    %v1012 = vunpack.c.l.b16 %v878
    %v1013 = vunpack.c.h.b16 %v878
    %v1014 = vunpack.c.l.b16 %v879
    %v1015 = vunpack.c.h.b16 %v879
    %v1016 = vunpack.c.l.b16 %v880
    %v1017 = vunpack.c.h.b16 %v880
    %v1018 = vunpack.c.l.b16 %v881
    %v1019 = vunpack.c.h.b16 %v881
    %v1020 = vunpack.c.l.b16 %v882
    %v1021 = vunpack.c.h.b16 %v882
    %v1022 = vunpack.c.l.b16 %v883
    %v1023 = vunpack.c.h.b16 %v883
    %v1024 = vunpack.c.l.b16 %v884
    %v1025 = vunpack.c.h.b16 %v884
    %v1026 = vunpack.c.l.b16 %v885
    %v1027 = vunpack.c.h.b16 %v885
    %v1028 = vunpack.c.l.b16 %v886
    %v1029 = vunpack.c.h.b16 %v886
    %v1030 = vunpack.c.l.b16 %v887
    %v1031 = vunpack.c.h.b16 %v887
    %v1032 = vunpack.c.l.b16 %v888
    %v1033 = vunpack.c.h.b16 %v888
    %v1034 = vunpack.c.l.b16 %v889
    %v1035 = vunpack.c.h.b16 %v889
    %v1036 = vunpack.c.l.b16 %v890
    %v1037 = vunpack.c.h.b16 %v890
    %v1038 = vunpack.c.l.b16 %v891
    %v1039 = vunpack.c.h.b16 %v891
    %v1040 = vunpack.c.l.b16 %v892
    %v1041 = vunpack.c.h.b16 %v892
    %v1042 = vunpack.c.l.b16 %v893
    %v1043 = vunpack.c.h.b16 %v893
    %v1044 = vunpack.c.l.b16 %v894
    %v1045 = vunpack.c.h.b16 %v894
    %v1046 = vunpack.c.l.b16 %v895
    %v1047 = vunpack.c.h.b16 %v895
    %v1048 = vunpack.c.l.b16 %v896
    %v1049 = vunpack.c.h.b16 %v896
    %v1050 = vunpack.c.l.b16 %v897
    %v1051 = vunpack.c.h.b16 %v897
    %v1052 = vunpack.c.l.b16 %v898
    %v1053 = vunpack.c.h.b16 %v898
    %v1054 = vunpack.c.l.b16 %v899
    %v1055 = vunpack.c.h.b16 %v899
    %v1056 = vunpack.c.l.b16 %v900
    %v1057 = vunpack.c.h.b16 %v900
    %v1058 = vunpack.c.l.b16 %v901
    %v1059 = vunpack.c.h.b16 %v901
    %v1060 = vunpack.c.l.b16 %v902
    %v1061 = vunpack.c.h.b16 %v902
    %v1062 = vunpack.c.l.b16 %v903
    %v1063 = vunpack.c.h.b16 %v903
    %v1064 = vunpack.c.l.b16 %v904
    %v1065 = vunpack.c.h.b16 %v904
    %v1066 = vunpack.c.l.b16 %v905
    %v1067 = vunpack.c.h.b16 %v905
    %v1068 = vunpack.c.l.b16 %v906
    %v1069 = vunpack.c.h.b16 %v906
    %v1070 = vunpack.c.l.b16 %v907
    %v1071 = vunpack.c.h.b16 %v907
    %v1072 = vunpack.c.l.b16 %v908
    %v1073 = vunpack.c.h.b16 %v908
    %v1074 = vunpack.c.l.b16 %v909
    %v1075 = vunpack.c.h.b16 %v909
    %v1076 = vunpack.c.l.b16 %v910
    %v1077 = vunpack.c.h.b16 %v910
    %v1078 = vunpack.c.l.b16 %v911
    %v1079 = vunpack.c.h.b16 %v911
    %v1080 = vunpack.c.l.b16 %v912
    %v1081 = vunpack.c.h.b16 %v912
    %v1082 = vunpack.c.l.b16 %v913
    %v1083 = vunpack.c.h.b16 %v913
    %v1084 = vunpack.c.l.b16 %v914
    %v1085 = vunpack.c.h.b16 %v914
    %v1086 = vunpack.c.l.b16 %v915
    %v1087 = vunpack.c.h.b16 %v915
    %v1088 = vunpack.c.l.b16 %v916
    %v1089 = vunpack.c.h.b16 %v916
    %v1090 = vunpack.c.l.b16 %v917
    %v1091 = vunpack.c.h.b16 %v917
    %v1092 = vunpack.c.l.b16 %v918
    %v1093 = vunpack.c.h.b16 %v918
    %v1094 = vunpack.c.l.b16 %v919
    %v1095 = vunpack.c.h.b16 %v919
    %v1096 = vunpack.c.l.b16 %v920
    %v1097 = vunpack.c.h.b16 %v920
    %v1098 = vunpack.c.l.b16 %v921
    %v1099 = vunpack.c.h.b16 %v921
    %v1100 = vunpack.c.l.b16 %v922
    %v1101 = vunpack.c.h.b16 %v922
    %v1102 = vunpack.c.l.b16 %v923
    %v1103 = vunpack.c.h.b16 %v923
    %v1104 = vunpack.c.l.b16 %v924
    %v1105 = vunpack.c.h.b16 %v924
    %v1106 = vunpack.c.l.b16 %v925
    %v1107 = vunpack.c.h.b16 %v925
    %v1108 = vunpack.c.l.b16 %v926
    %v1109 = vunpack.c.h.b16 %v926
    %v1110 = vunpack.c.l.b16 %v927
    %v1111 = vunpack.c.h.b16 %v927
    %v1112 = vunpack.c.l.b16 %v928
    %v1113 = vunpack.c.h.b16 %v928
    %v1114 = vunpack.c.l.b16 %v929
    %v1115 = vunpack.c.h.b16 %v929
    %v1116 = vunpack.c.l.b16 %v930
    %v1117 = vunpack.c.h.b16 %v930
    %v1118 = vunpack.c.l.b16 %v931
    %v1119 = vunpack.c.h.b16 %v931
    %v1120 = vunpack.c.l.b16 %v932
    %v1121 = vunpack.c.h.b16 %v932
    %v1122 = vunpack.c.l.b16 %v933
    %v1123 = vunpack.c.h.b16 %v933
    %v1124 = vunpack.c.l.b16 %v934
    %v1125 = vunpack.c.h.b16 %v934
    %v1126 = vunpack.c.l.b16 %v935
    %v1127 = vunpack.c.h.b16 %v935
    %v1128 = vpack.c.b16 %v1004, %v1000
    %v1129 = vpack.c.b16 %v1005, %v1001
    %v1130 = vpack.c.b16 %v1006, %v1002
    %v1131 = vpack.c.b16 %v1007, %v1003
    %v1132 = vpack.c.b16 %v1012, %v1008
    %v1133 = vpack.c.b16 %v1013, %v1009
    %v1134 = vpack.c.b16 %v1014, %v1010
    %v1135 = vpack.c.b16 %v1015, %v1011
    %v1136 = vpack.c.b16 %v1020, %v1016
    %v1137 = vpack.c.b16 %v1021, %v1017
    %v1138 = vpack.c.b16 %v1022, %v1018
    %v1139 = vpack.c.b16 %v1023, %v1019
    %v1140 = vpack.c.b16 %v1028, %v1024
    %v1141 = vpack.c.b16 %v1029, %v1025
    %v1142 = vpack.c.b16 %v1030, %v1026
    %v1143 = vpack.c.b16 %v1031, %v1027
    %v1144 = vpack.c.b16 %v1036, %v1032
    %v1145 = vpack.c.b16 %v1037, %v1033
    %v1146 = vpack.c.b16 %v1038, %v1034
    %v1147 = vpack.c.b16 %v1039, %v1035
    %v1148 = vpack.c.b16 %v1044, %v1040
    %v1149 = vpack.c.b16 %v1045, %v1041
    %v1150 = vpack.c.b16 %v1046, %v1042
    %v1151 = vpack.c.b16 %v1047, %v1043
    %v1152 = vpack.c.b16 %v1052, %v1048
    %v1153 = vpack.c.b16 %v1053, %v1049
    %v1154 = vpack.c.b16 %v1054, %v1050
    %v1155 = vpack.c.b16 %v1055, %v1051
    %v1156 = vpack.c.b16 %v1060, %v1056
    %v1157 = vpack.c.b16 %v1061, %v1057
    %v1158 = vpack.c.b16 %v1062, %v1058
    %v1159 = vpack.c.b16 %v1063, %v1059
    %v1160 = vpack.c.b16 %v1068, %v1064
    %v1161 = vpack.c.b16 %v1069, %v1065
    %v1162 = vpack.c.b16 %v1070, %v1066
    %v1163 = vpack.c.b16 %v1071, %v1067
    %v1164 = vpack.c.b16 %v1076, %v1072
    %v1165 = vpack.c.b16 %v1077, %v1073
    %v1166 = vpack.c.b16 %v1078, %v1074
    %v1167 = vpack.c.b16 %v1079, %v1075
    %v1168 = vpack.c.b16 %v1084, %v1080
    %v1169 = vpack.c.b16 %v1085, %v1081
    %v1170 = vpack.c.b16 %v1086, %v1082
    %v1171 = vpack.c.b16 %v1087, %v1083
    %v1172 = vpack.c.b16 %v1092, %v1088
    %v1173 = vpack.c.b16 %v1093, %v1089
    %v1174 = vpack.c.b16 %v1094, %v1090
    %v1175 = vpack.c.b16 %v1095, %v1091
    %v1176 = vpack.c.b16 %v1100, %v1096
    %v1177 = vpack.c.b16 %v1101, %v1097
    %v1178 = vpack.c.b16 %v1102, %v1098
    %v1179 = vpack.c.b16 %v1103, %v1099
    %v1180 = vpack.c.b16 %v1108, %v1104
    %v1181 = vpack.c.b16 %v1109, %v1105
    %v1182 = vpack.c.b16 %v1110, %v1106
    %v1183 = vpack.c.b16 %v1111, %v1107
    %v1184 = vpack.c.b16 %v1116, %v1112
    %v1185 = vpack.c.b16 %v1117, %v1113
    %v1186 = vpack.c.b16 %v1118, %v1114
    %v1187 = vpack.c.b16 %v1119, %v1115
    %v1188 = vpack.c.b16 %v1124, %v1120
    %v1189 = vpack.c.b16 %v1125, %v1121
    %v1190 = vpack.c.b16 %v1126, %v1122
    %v1191 = vpack.c.b16 %v1127, %v1123
    %1256 = vmatprep.subr.bf16.mxu0 %v1157
    %1257 = vmatpush1.bf16.msra.mxu0 %v1156
    %1258 = vmatprep.subr.bf16.mxu0 %v1153
    %1259 = vmatpush1.bf16.msra.mxu0 %v1152
    %1260 = vmatprep.subr.bf16.mxu0 %v1149
    %1261 = vmatpush1.bf16.msra.mxu0 %v1148
    %1262 = vmatprep.subr.bf16.mxu0 %v1145
    %1263 = vmatpush1.bf16.msra.mxu0 %v1144
    %1264 = vmatprep.subr.bf16.mxu0 %v1141
    %1265 = vmatpush1.bf16.msra.mxu0 %v1140
    %1266 = vmatprep.subr.bf16.mxu0 %v1137
    %1267 = vmatpush1.bf16.msra.mxu0 %v1136
    %1268 = vmatprep.subr.bf16.mxu0 %v1133
    %1269 = vmatpush1.bf16.msra.mxu0 %v1132
    %1270 = vmatprep.subr.bf16.mxu0 %v1129
    %1271 = vmatpush1.bf16.msra.mxu0 %v1128
    %1272 = vmatprep.subr.bf16.mxu0 %v1189
    %1273 = vmatpush2.bf16.msra.mxu0 %v1188
    %1274 = vmatprep.subr.bf16.mxu0 %v1185
    %1275 = vmatpush2.bf16.msra.mxu0 %v1184
    %1276 = vmatprep.subr.bf16.mxu0 %v1181
    %1277 = vmatpush2.bf16.msra.mxu0 %v1180
    %1278 = vmatprep.subr.bf16.mxu0 %v1177
    %1279 = vmatpush2.bf16.msra.mxu0 %v1176
    %1280 = vmatprep.subr.bf16.mxu0 %v1173
    %1281 = vmatpush2.bf16.msra.mxu0 %v1172
    %1282 = vmatprep.subr.bf16.mxu0 %v1169
    %1283 = vmatpush2.bf16.msra.mxu0 %v1168
    %1284 = vmatprep.subr.bf16.mxu0 %v1165
    %1285 = vmatpush2.bf16.msra.mxu0 %v1164
    %1286 = vmatprep.subr.bf16.mxu0 %v1161
    %1287 = vmatpush2.bf16.msra.mxu0 %v1160
    %1288 = vmatprep.mubr.bf16.mxu0 0
    %1289 = vmatmul.mubr.bf16.gmra.mxu0 %v871
    %v1290 = vpop.f32.mrf.mxu0
    %v1291 = vadd.f32 %v551, %v1290
    %v1292 = vpop.f32.mrf.mxu0
    %v1293 = vadd.f32 %v555, %v1292
    %v1294 = vpop.f32.mrf.mxu0
    %v1295 = vpop.f32.mrf.mxu0
    %1296 = vdwg.mxu0
    %1297 = vmatprep.subr.bf16.mxu0 %v1159
    %1298 = vmatpush1.bf16.msra.mxu0 %v1158
    %1299 = vmatprep.subr.bf16.mxu0 %v1155
    %1300 = vmatpush1.bf16.msra.mxu0 %v1154
    %1301 = vmatprep.subr.bf16.mxu0 %v1151
    %1302 = vmatpush1.bf16.msra.mxu0 %v1150
    %1303 = vmatprep.subr.bf16.mxu0 %v1147
    %1304 = vmatpush1.bf16.msra.mxu0 %v1146
    %1305 = vmatprep.subr.bf16.mxu0 %v1143
    %1306 = vmatpush1.bf16.msra.mxu0 %v1142
    %1307 = vmatprep.subr.bf16.mxu0 %v1139
    %1308 = vmatpush1.bf16.msra.mxu0 %v1138
    %1309 = vmatprep.subr.bf16.mxu0 %v1135
    %1310 = vmatpush1.bf16.msra.mxu0 %v1134
    %1311 = vmatprep.subr.bf16.mxu0 %v1131
    %1312 = vmatpush1.bf16.msra.mxu0 %v1130
    %1313 = vmatprep.subr.bf16.mxu0 %v1191
    %1314 = vmatpush2.bf16.msra.mxu0 %v1190
    %1315 = vmatprep.subr.bf16.mxu0 %v1187
    %1316 = vmatpush2.bf16.msra.mxu0 %v1186
    %1317 = vmatprep.subr.bf16.mxu0 %v1183
    %1318 = vmatpush2.bf16.msra.mxu0 %v1182
    %1319 = vmatprep.subr.bf16.mxu0 %v1179
    %1320 = vmatpush2.bf16.msra.mxu0 %v1178
    %1321 = vmatprep.subr.bf16.mxu0 %v1175
    %1322 = vmatpush2.bf16.msra.mxu0 %v1174
    %1323 = vmatprep.subr.bf16.mxu0 %v1171
    %1324 = vmatpush2.bf16.msra.mxu0 %v1170
    %1325 = vmatprep.subr.bf16.mxu0 %v1167
    %1326 = vmatpush2.bf16.msra.mxu0 %v1166
    %1327 = vmatprep.subr.bf16.mxu0 %v1163
    %1328 = vmatpush2.bf16.msra.mxu0 %v1162
    %1329 = vmatprep.mubr.bf16.mxu0 0
    %1330 = vmatmul.mubr.bf16.gmra.mxu0 %v871
    %v1331 = vpop.f32.mrf.mxu0
    %v1332 = vadd.f32 %v559, %v1331
    %v1333 = vpop.f32.mrf.mxu0
    %v1334 = vadd.f32 %v563, %v1333
    %v1335 = vpop.f32.mrf.mxu0
    %v1336 = vpop.f32.mrf.mxu0
    %1337 = vdwg.mxu0
    %v1338 = vsub.f32 0.0, %v1291
    %v1339 = vmul.f32 %v1338, 1.442695
    %v1340 = vpow.pop %v1339
    %v1341 = vadd.f32 %v1340, 1.0
    %v1342 = vrcp.pop %v1341
    %v1343 = vsub.f32 0.0, %v1293
    %v1344 = vmul.f32 %v1343, 1.442695
    %v1345 = vpow.pop %v1344
    %v1346 = vadd.f32 %v1345, 1.0
    %v1347 = vrcp.pop %v1346
    %v1348 = vtanh.pop %v1332
    %v1349 = vsub.f32 0.0, %v1334
    %v1350 = vmul.f32 %v1349, 1.442695
    %v1351 = vpow.pop %v1350
    %v1352 = vadd.f32 %v1351, 1.0
    %v1353 = vrcp.pop %v1352
    %v1354 = vmul.f32 %v1347, 0.0
    %v1355 = vmul.f32 %v1342, %v1348
    %v1356 = vadd.f32 %v1354, %v1355
    %v1357 = vtanh.pop %v1356
    %v1358 = vmul.f32 %v1353, %v1357
    %s1359 = scalar_lea.vmem [#allocation2], 32
    %v1360 = vld [vmem:[%s1359] sm:$0xff]
    %v1361 = vld [vmem:[%s1359 + $0x8] sm:$0xff]
    %v1362 = vld [vmem:[%s1359 + $0x10] sm:$0xff]
    %v1363 = vld [vmem:[%s1359 + $0x18] sm:$0xff]
    %1364 = vmatprep.subr.bf16.mxu0 %v729
    %1365 = vmatpush1.bf16.msra.mxu0 %v728
    %1366 = vmatprep.subr.bf16.mxu0 %v725
    %1367 = vmatpush1.bf16.msra.mxu0 %v724
    %1368 = vmatprep.subr.bf16.mxu0 %v721
    %1369 = vmatpush1.bf16.msra.mxu0 %v720
    %1370 = vmatprep.subr.bf16.mxu0 %v717
    %1371 = vmatpush1.bf16.msra.mxu0 %v716
    %1372 = vmatprep.subr.bf16.mxu0 %v713
    %1373 = vmatpush1.bf16.msra.mxu0 %v712
    %1374 = vmatprep.subr.bf16.mxu0 %v709
    %1375 = vmatpush1.bf16.msra.mxu0 %v708
    %1376 = vmatprep.subr.bf16.mxu0 %v705
    %1377 = vmatpush1.bf16.msra.mxu0 %v704
    %1378 = vmatprep.subr.bf16.mxu0 %v701
    %1379 = vmatpush1.bf16.msra.mxu0 %v700
    %1380 = vmatprep.subr.bf16.mxu0 0
    %1381 = vmatpush2.bf16.msra.mxu0 0
    %1382 = vmatprep.subr.bf16.mxu0 0
    %1383 = vmatpush2.bf16.msra.mxu0 0
    %1384 = vmatprep.subr.bf16.mxu0 0
    %1385 = vmatpush2.bf16.msra.mxu0 0
    %1386 = vmatprep.subr.bf16.mxu0 0
    %1387 = vmatpush2.bf16.msra.mxu0 0
    %1388 = vmatprep.subr.bf16.mxu0 0
    %1389 = vmatpush2.bf16.msra.mxu0 0
    %1390 = vmatprep.subr.bf16.mxu0 0
    %1391 = vmatpush2.bf16.msra.mxu0 0
    %1392 = vmatprep.subr.bf16.mxu0 0
    %1393 = vmatpush2.bf16.msra.mxu0 0
    %1394 = vmatprep.subr.bf16.mxu0 0
    %1395 = vmatpush2.bf16.msra.mxu0 0
    %1396 = vmatprep.mubr.bf16.mxu0 0
    %1397 = vmatmul.mubr.bf16.gmra.mxu0 %v871
    %v1398 = vpop.f32.mrf.mxu0
    %v1399 = vadd.f32 0.0, %v1398
    %v1400 = vpop.f32.mrf.mxu0
    %v1401 = vadd.f32 0.0, %v1400
    %v1402 = vpop.f32.mrf.mxu0
    %v1403 = vpop.f32.mrf.mxu0
    %1404 = vdwg.mxu0
    %1405 = vmatprep.subr.bf16.mxu0 %v731
    %1406 = vmatpush1.bf16.msra.mxu0 %v730
    %1407 = vmatprep.subr.bf16.mxu0 %v727
    %1408 = vmatpush1.bf16.msra.mxu0 %v726
    %1409 = vmatprep.subr.bf16.mxu0 %v723
    %1410 = vmatpush1.bf16.msra.mxu0 %v722
    %1411 = vmatprep.subr.bf16.mxu0 %v719
    %1412 = vmatpush1.bf16.msra.mxu0 %v718
    %1413 = vmatprep.subr.bf16.mxu0 %v715
    %1414 = vmatpush1.bf16.msra.mxu0 %v714
    %1415 = vmatprep.subr.bf16.mxu0 %v711
    %1416 = vmatpush1.bf16.msra.mxu0 %v710
    %1417 = vmatprep.subr.bf16.mxu0 %v707
    %1418 = vmatpush1.bf16.msra.mxu0 %v706
    %1419 = vmatprep.subr.bf16.mxu0 %v703
    %1420 = vmatpush1.bf16.msra.mxu0 %v702
    %1421 = vmatprep.subr.bf16.mxu0 0
    %1422 = vmatpush2.bf16.msra.mxu0 0
    %1423 = vmatprep.subr.bf16.mxu0 0
    %1424 = vmatpush2.bf16.msra.mxu0 0
    %1425 = vmatprep.subr.bf16.mxu0 0
    %1426 = vmatpush2.bf16.msra.mxu0 0
    %1427 = vmatprep.subr.bf16.mxu0 0
    %1428 = vmatpush2.bf16.msra.mxu0 0
    %1429 = vmatprep.subr.bf16.mxu0 0
    %1430 = vmatpush2.bf16.msra.mxu0 0
    %1431 = vmatprep.subr.bf16.mxu0 0
    %1432 = vmatpush2.bf16.msra.mxu0 0
    %1433 = vmatprep.subr.bf16.mxu0 0
    %1434 = vmatpush2.bf16.msra.mxu0 0
    %1435 = vmatprep.subr.bf16.mxu0 0
    %1436 = vmatpush2.bf16.msra.mxu0 0
    %1437 = vmatprep.mubr.bf16.mxu0 0
    %1438 = vmatmul.mubr.bf16.gmra.mxu0 %v871
    %v1439 = vpop.f32.mrf.mxu0
    %v1440 = vadd.f32 0.0, %v1439
    %v1441 = vpop.f32.mrf.mxu0
    %v1442 = vadd.f32 0.0, %v1441
    %v1443 = vpop.f32.mrf.mxu0
    %v1444 = vpop.f32.mrf.mxu0
    %1445 = vdwg.mxu0
    %v1446 = vadd.f32 %v1360, %v1399
    %v1447 = vadd.f32 %v1361, %v1401
    %v1448 = vadd.f32 %v1362, %v1440
    %v1449 = vadd.f32 %v1363, %v1442
    %v1450 = vsub.f32 0.0, %v1446
    %v1451 = vmul.f32 %v1450, 1.442695
    %v1452 = vpow.pop %v1451
    %v1453 = vadd.f32 %v1452, 1.0
    %v1454 = vrcp.pop %v1453
    %v1455 = vsub.f32 0.0, %v1447
    %v1456 = vmul.f32 %v1455, 1.442695
    %v1457 = vpow.pop %v1456
    %v1458 = vadd.f32 %v1457, 1.0
    %v1459 = vrcp.pop %v1458
    %v1460 = vtanh.pop %v1448
    %v1461 = vsub.f32 0.0, %v1449
    %v1462 = vmul.f32 %v1461, 1.442695
    %v1463 = vpow.pop %v1462
    %v1464 = vadd.f32 %v1463, 1.0
    %v1465 = vrcp.pop %v1464
    %v1466 = vmul.f32 %v1459, %v868
    %v1467 = vmul.f32 %v1454, %v1460
    %v1468 = vadd.f32 %v1466, %v1467
    %v1469 = vtanh.pop %v1468
    %v1470 = vmul.f32 %v1465, %v1469
    %v1471 = vpack.c.bf16 %v1470, %v1470
    %v1472 = vpack.c.bf16 %v1358, %v1358
    %1473 = vmatprep.subr.bf16.mxu0 %v1157
    %1474 = vmatpush1.bf16.msra.mxu0 %v1156
    %1475 = vmatprep.subr.bf16.mxu0 %v1153
    %1476 = vmatpush1.bf16.msra.mxu0 %v1152
    %1477 = vmatprep.subr.bf16.mxu0 %v1149
    %1478 = vmatpush1.bf16.msra.mxu0 %v1148
    %1479 = vmatprep.subr.bf16.mxu0 %v1145
    %1480 = vmatpush1.bf16.msra.mxu0 %v1144
    %1481 = vmatprep.subr.bf16.mxu0 %v1141
    %1482 = vmatpush1.bf16.msra.mxu0 %v1140
    %1483 = vmatprep.subr.bf16.mxu0 %v1137
    %1484 = vmatpush1.bf16.msra.mxu0 %v1136
    %1485 = vmatprep.subr.bf16.mxu0 %v1133
    %1486 = vmatpush1.bf16.msra.mxu0 %v1132
    %1487 = vmatprep.subr.bf16.mxu0 %v1129
    %1488 = vmatpush1.bf16.msra.mxu0 %v1128
    %1489 = vmatprep.subr.bf16.mxu0 %v1189
    %1490 = vmatpush2.bf16.msra.mxu0 %v1188
    %1491 = vmatprep.subr.bf16.mxu0 %v1185
    %1492 = vmatpush2.bf16.msra.mxu0 %v1184
    %1493 = vmatprep.subr.bf16.mxu0 %v1181
    %1494 = vmatpush2.bf16.msra.mxu0 %v1180
    %1495 = vmatprep.subr.bf16.mxu0 %v1177
    %1496 = vmatpush2.bf16.msra.mxu0 %v1176
    %1497 = vmatprep.subr.bf16.mxu0 %v1173
    %1498 = vmatpush2.bf16.msra.mxu0 %v1172
    %1499 = vmatprep.subr.bf16.mxu0 %v1169
    %1500 = vmatpush2.bf16.msra.mxu0 %v1168
    %1501 = vmatprep.subr.bf16.mxu0 %v1165
    %1502 = vmatpush2.bf16.msra.mxu0 %v1164
    %1503 = vmatprep.subr.bf16.mxu0 %v1161
    %1504 = vmatpush2.bf16.msra.mxu0 %v1160
    %1505 = vmatprep.mubr.bf16.mxu0 %v1472
    %1506 = vmatmul.mubr.bf16.gmra.mxu0 %v1471
    %v1507 = vpop.f32.mrf.mxu0
    %v1508 = vadd.f32 %v551, %v1507
    %v1509 = vpop.f32.mrf.mxu0
    %v1510 = vadd.f32 %v555, %v1509
    %v1511 = vpop.f32.mrf.mxu0
    %v1512 = vpop.f32.mrf.mxu0
    %1513 = vdwg.mxu0
    %1514 = vmatprep.subr.bf16.mxu0 %v1159
    %1515 = vmatpush1.bf16.msra.mxu0 %v1158
    %1516 = vmatprep.subr.bf16.mxu0 %v1155
    %1517 = vmatpush1.bf16.msra.mxu0 %v1154
    %1518 = vmatprep.subr.bf16.mxu0 %v1151
    %1519 = vmatpush1.bf16.msra.mxu0 %v1150
    %1520 = vmatprep.subr.bf16.mxu0 %v1147
    %1521 = vmatpush1.bf16.msra.mxu0 %v1146
    %1522 = vmatprep.subr.bf16.mxu0 %v1143
    %1523 = vmatpush1.bf16.msra.mxu0 %v1142
    %1524 = vmatprep.subr.bf16.mxu0 %v1139
    %1525 = vmatpush1.bf16.msra.mxu0 %v1138
    %1526 = vmatprep.subr.bf16.mxu0 %v1135
    %1527 = vmatpush1.bf16.msra.mxu0 %v1134
    %1528 = vmatprep.subr.bf16.mxu0 %v1131
    %1529 = vmatpush1.bf16.msra.mxu0 %v1130
    %1530 = vmatprep.subr.bf16.mxu0 %v1191
    %1531 = vmatpush2.bf16.msra.mxu0 %v1190
    %1532 = vmatprep.subr.bf16.mxu0 %v1187
    %1533 = vmatpush2.bf16.msra.mxu0 %v1186
    %1534 = vmatprep.subr.bf16.mxu0 %v1183
    %1535 = vmatpush2.bf16.msra.mxu0 %v1182
    %1536 = vmatprep.subr.bf16.mxu0 %v1179
    %1537 = vmatpush2.bf16.msra.mxu0 %v1178
    %1538 = vmatprep.subr.bf16.mxu0 %v1175
    %1539 = vmatpush2.bf16.msra.mxu0 %v1174
    %1540 = vmatprep.subr.bf16.mxu0 %v1171
    %1541 = vmatpush2.bf16.msra.mxu0 %v1170
    %1542 = vmatprep.subr.bf16.mxu0 %v1167
    %1543 = vmatpush2.bf16.msra.mxu0 %v1166
    %1544 = vmatprep.subr.bf16.mxu0 %v1163
    %1545 = vmatpush2.bf16.msra.mxu0 %v1162
    %1546 = vmatprep.mubr.bf16.mxu0 %v1472
    %1547 = vmatmul.mubr.bf16.gmra.mxu0 %v1471
    %v1548 = vpop.f32.mrf.mxu0
    %v1549 = vadd.f32 %v559, %v1548
    %v1550 = vpop.f32.mrf.mxu0
    %v1551 = vadd.f32 %v563, %v1550
    %v1552 = vpop.f32.mrf.mxu0
    %v1553 = vpop.f32.mrf.mxu0
    %1554 = vdwg.mxu0
    %v1555 = vsub.f32 0.0, %v1508
    %v1556 = vmul.f32 %v1555, 1.442695
    %v1557 = vpow.pop %v1556
    %v1558 = vadd.f32 %v1557, 1.0
    %v1559 = vrcp.pop %v1558
    %v1560 = vsub.f32 0.0, %v1510
    %v1561 = vmul.f32 %v1560, 1.442695
    %v1562 = vpow.pop %v1561
    %v1563 = vadd.f32 %v1562, 1.0
    %v1564 = vrcp.pop %v1563
    %v1565 = vtanh.pop %v1549
    %v1566 = vsub.f32 0.0, %v1551
    %v1567 = vmul.f32 %v1566, 1.442695
    %v1568 = vpow.pop %v1567
    %v1569 = vadd.f32 %v1568, 1.0
    %v1570 = vrcp.pop %v1569
    %v1571 = vmul.f32 %v1564, %v1356
    %v1572 = vmul.f32 %v1559, %v1565
    %v1573 = vadd.f32 %v1571, %v1572
    %v1574 = vtanh.pop %v1573
    %v1575 = vmul.f32 %v1570, %v1574
    %s1576 = scalar_lea.vmem [#allocation2], 64
    %v1577 = vld [vmem:[%s1576] sm:$0xff]
    %v1578 = vld [vmem:[%s1576 + $0x8] sm:$0xff]
    %v1579 = vld [vmem:[%s1576 + $0x10] sm:$0xff]
    %v1580 = vld [vmem:[%s1576 + $0x18] sm:$0xff]
    %1581 = vmatprep.subr.bf16.mxu0 %v729
    %1582 = vmatpush1.bf16.msra.mxu0 %v728
    %1583 = vmatprep.subr.bf16.mxu0 %v725
    %1584 = vmatpush1.bf16.msra.mxu0 %v724
    %1585 = vmatprep.subr.bf16.mxu0 %v721
    %1586 = vmatpush1.bf16.msra.mxu0 %v720
    %1587 = vmatprep.subr.bf16.mxu0 %v717
    %1588 = vmatpush1.bf16.msra.mxu0 %v716
    %1589 = vmatprep.subr.bf16.mxu0 %v713
    %1590 = vmatpush1.bf16.msra.mxu0 %v712
    %1591 = vmatprep.subr.bf16.mxu0 %v709
    %1592 = vmatpush1.bf16.msra.mxu0 %v708
    %1593 = vmatprep.subr.bf16.mxu0 %v705
    %1594 = vmatpush1.bf16.msra.mxu0 %v704
    %1595 = vmatprep.subr.bf16.mxu0 %v701
    %1596 = vmatpush1.bf16.msra.mxu0 %v700
    %1597 = vmatprep.subr.bf16.mxu0 0
    %1598 = vmatpush2.bf16.msra.mxu0 0
    %1599 = vmatprep.subr.bf16.mxu0 0
    %1600 = vmatpush2.bf16.msra.mxu0 0
    %1601 = vmatprep.subr.bf16.mxu0 0
    %1602 = vmatpush2.bf16.msra.mxu0 0
    %1603 = vmatprep.subr.bf16.mxu0 0
    %1604 = vmatpush2.bf16.msra.mxu0 0
    %1605 = vmatprep.subr.bf16.mxu0 0
    %1606 = vmatpush2.bf16.msra.mxu0 0
    %1607 = vmatprep.subr.bf16.mxu0 0
    %1608 = vmatpush2.bf16.msra.mxu0 0
    %1609 = vmatprep.subr.bf16.mxu0 0
    %1610 = vmatpush2.bf16.msra.mxu0 0
    %1611 = vmatprep.subr.bf16.mxu0 0
    %1612 = vmatpush2.bf16.msra.mxu0 0
    %1613 = vmatprep.mubr.bf16.mxu0 0
    %1614 = vmatmul.mubr.bf16.gmra.mxu0 %v1471
    %v1615 = vpop.f32.mrf.mxu0
    %v1616 = vadd.f32 0.0, %v1615
    %v1617 = vpop.f32.mrf.mxu0
    %v1618 = vadd.f32 0.0, %v1617
    %v1619 = vpop.f32.mrf.mxu0
    %v1620 = vpop.f32.mrf.mxu0
    %1621 = vdwg.mxu0
    %1622 = vmatprep.subr.bf16.mxu0 %v731
    %1623 = vmatpush1.bf16.msra.mxu0 %v730
    %1624 = vmatprep.subr.bf16.mxu0 %v727
    %1625 = vmatpush1.bf16.msra.mxu0 %v726
    %1626 = vmatprep.subr.bf16.mxu0 %v723
    %1627 = vmatpush1.bf16.msra.mxu0 %v722
    %1628 = vmatprep.subr.bf16.mxu0 %v719
    %1629 = vmatpush1.bf16.msra.mxu0 %v718
    %1630 = vmatprep.subr.bf16.mxu0 %v715
    %1631 = vmatpush1.bf16.msra.mxu0 %v714
    %1632 = vmatprep.subr.bf16.mxu0 %v711
    %1633 = vmatpush1.bf16.msra.mxu0 %v710
    %1634 = vmatprep.subr.bf16.mxu0 %v707
    %1635 = vmatpush1.bf16.msra.mxu0 %v706
    %1636 = vmatprep.subr.bf16.mxu0 %v703
    %1637 = vmatpush1.bf16.msra.mxu0 %v702
    %1638 = vmatprep.subr.bf16.mxu0 0
    %1639 = vmatpush2.bf16.msra.mxu0 0
    %1640 = vmatprep.subr.bf16.mxu0 0
    %1641 = vmatpush2.bf16.msra.mxu0 0
    %1642 = vmatprep.subr.bf16.mxu0 0
    %1643 = vmatpush2.bf16.msra.mxu0 0
    %1644 = vmatprep.subr.bf16.mxu0 0
    %1645 = vmatpush2.bf16.msra.mxu0 0
    %1646 = vmatprep.subr.bf16.mxu0 0
    %1647 = vmatpush2.bf16.msra.mxu0 0
    %1648 = vmatprep.subr.bf16.mxu0 0
    %1649 = vmatpush2.bf16.msra.mxu0 0
    %1650 = vmatprep.subr.bf16.mxu0 0
    %1651 = vmatpush2.bf16.msra.mxu0 0
    %1652 = vmatprep.subr.bf16.mxu0 0
    %1653 = vmatpush2.bf16.msra.mxu0 0
    %1654 = vmatprep.mubr.bf16.mxu0 0
    %1655 = vmatmul.mubr.bf16.gmra.mxu0 %v1471
    %v1656 = vpop.f32.mrf.mxu0
    %v1657 = vadd.f32 0.0, %v1656
    %v1658 = vpop.f32.mrf.mxu0
    %v1659 = vadd.f32 0.0, %v1658
    %v1660 = vpop.f32.mrf.mxu0
    %v1661 = vpop.f32.mrf.mxu0
    %1662 = vdwg.mxu0
    %v1663 = vadd.f32 %v1577, %v1616
    %v1664 = vadd.f32 %v1578, %v1618
    %v1665 = vadd.f32 %v1579, %v1657
    %v1666 = vadd.f32 %v1580, %v1659
    %v1667 = vsub.f32 0.0, %v1663
    %v1668 = vmul.f32 %v1667, 1.442695
    %v1669 = vpow.pop %v1668
    %v1670 = vadd.f32 %v1669, 1.0
    %v1671 = vrcp.pop %v1670
    %v1672 = vsub.f32 0.0, %v1664
    %v1673 = vmul.f32 %v1672, 1.442695
    %v1674 = vpow.pop %v1673
    %v1675 = vadd.f32 %v1674, 1.0
    %v1676 = vrcp.pop %v1675
    %v1677 = vtanh.pop %v1665
    %v1678 = vsub.f32 0.0, %v1666
    %v1679 = vmul.f32 %v1678, 1.442695
    %v1680 = vpow.pop %v1679
    %v1681 = vadd.f32 %v1680, 1.0
    %v1682 = vrcp.pop %v1681
    %v1683 = vmul.f32 %v1676, %v1468
    %v1684 = vmul.f32 %v1671, %v1677
    %v1685 = vadd.f32 %v1683, %v1684
    %v1686 = vtanh.pop %v1685
    %v1687 = vmul.f32 %v1682, %v1686
    %v1688 = vpack.c.bf16 %v1687, %v1687
    %v1689 = vpack.c.bf16 %v1575, %v1575
    %1690 = vmatprep.subr.bf16.mxu0 %v1157
    %1691 = vmatpush1.bf16.msra.mxu0 %v1156
    %1692 = vmatprep.subr.bf16.mxu0 %v1153
    %1693 = vmatpush1.bf16.msra.mxu0 %v1152
    %1694 = vmatprep.subr.bf16.mxu0 %v1149
    %1695 = vmatpush1.bf16.msra.mxu0 %v1148
    %1696 = vmatprep.subr.bf16.mxu0 %v1145
    %1697 = vmatpush1.bf16.msra.mxu0 %v1144
    %1698 = vmatprep.subr.bf16.mxu0 %v1141
    %1699 = vmatpush1.bf16.msra.mxu0 %v1140
    %1700 = vmatprep.subr.bf16.mxu0 %v1137
    %1701 = vmatpush1.bf16.msra.mxu0 %v1136
    %1702 = vmatprep.subr.bf16.mxu0 %v1133
    %1703 = vmatpush1.bf16.msra.mxu0 %v1132
    %1704 = vmatprep.subr.bf16.mxu0 %v1129
    %1705 = vmatpush1.bf16.msra.mxu0 %v1128
    %1706 = vmatprep.subr.bf16.mxu0 %v1189
    %1707 = vmatpush2.bf16.msra.mxu0 %v1188
    %1708 = vmatprep.subr.bf16.mxu0 %v1185
    %1709 = vmatpush2.bf16.msra.mxu0 %v1184
    %1710 = vmatprep.subr.bf16.mxu0 %v1181
    %1711 = vmatpush2.bf16.msra.mxu0 %v1180
    %1712 = vmatprep.subr.bf16.mxu0 %v1177
    %1713 = vmatpush2.bf16.msra.mxu0 %v1176
    %1714 = vmatprep.subr.bf16.mxu0 %v1173
    %1715 = vmatpush2.bf16.msra.mxu0 %v1172
    %1716 = vmatprep.subr.bf16.mxu0 %v1169
    %1717 = vmatpush2.bf16.msra.mxu0 %v1168
    %1718 = vmatprep.subr.bf16.mxu0 %v1165
    %1719 = vmatpush2.bf16.msra.mxu0 %v1164
    %1720 = vmatprep.subr.bf16.mxu0 %v1161
    %1721 = vmatpush2.bf16.msra.mxu0 %v1160
    %1722 = vmatprep.mubr.bf16.mxu0 %v1689
    %1723 = vmatmul.mubr.bf16.gmra.mxu0 %v1688
    %v1724 = vpop.f32.mrf.mxu0
    %v1725 = vadd.f32 %v551, %v1724
    %v1726 = vpop.f32.mrf.mxu0
    %v1727 = vadd.f32 %v555, %v1726
    %v1728 = vpop.f32.mrf.mxu0
    %v1729 = vpop.f32.mrf.mxu0
    %1730 = vdwg.mxu0
    %1731 = vmatprep.subr.bf16.mxu0 %v1159
    %1732 = vmatpush1.bf16.msra.mxu0 %v1158
    %1733 = vmatprep.subr.bf16.mxu0 %v1155
    %1734 = vmatpush1.bf16.msra.mxu0 %v1154
    %1735 = vmatprep.subr.bf16.mxu0 %v1151
    %1736 = vmatpush1.bf16.msra.mxu0 %v1150
    %1737 = vmatprep.subr.bf16.mxu0 %v1147
    %1738 = vmatpush1.bf16.msra.mxu0 %v1146
    %1739 = vmatprep.subr.bf16.mxu0 %v1143
    %1740 = vmatpush1.bf16.msra.mxu0 %v1142
    %1741 = vmatprep.subr.bf16.mxu0 %v1139
    %1742 = vmatpush1.bf16.msra.mxu0 %v1138
    %1743 = vmatprep.subr.bf16.mxu0 %v1135
    %1744 = vmatpush1.bf16.msra.mxu0 %v1134
    %1745 = vmatprep.subr.bf16.mxu0 %v1131
    %1746 = vmatpush1.bf16.msra.mxu0 %v1130
    %1747 = vmatprep.subr.bf16.mxu0 %v1191
    %1748 = vmatpush2.bf16.msra.mxu0 %v1190
    %1749 = vmatprep.subr.bf16.mxu0 %v1187
    %1750 = vmatpush2.bf16.msra.mxu0 %v1186
    %1751 = vmatprep.subr.bf16.mxu0 %v1183
    %1752 = vmatpush2.bf16.msra.mxu0 %v1182
    %1753 = vmatprep.subr.bf16.mxu0 %v1179
    %1754 = vmatpush2.bf16.msra.mxu0 %v1178
    %1755 = vmatprep.subr.bf16.mxu0 %v1175
    %1756 = vmatpush2.bf16.msra.mxu0 %v1174
    %1757 = vmatprep.subr.bf16.mxu0 %v1171
    %1758 = vmatpush2.bf16.msra.mxu0 %v1170
    %1759 = vmatprep.subr.bf16.mxu0 %v1167
    %1760 = vmatpush2.bf16.msra.mxu0 %v1166
    %1761 = vmatprep.subr.bf16.mxu0 %v1163
    %1762 = vmatpush2.bf16.msra.mxu0 %v1162
    %1763 = vmatprep.mubr.bf16.mxu0 %v1689
    %1764 = vmatmul.mubr.bf16.gmra.mxu0 %v1688
    %v1765 = vpop.f32.mrf.mxu0
    %v1766 = vadd.f32 %v559, %v1765
    %v1767 = vpop.f32.mrf.mxu0
    %v1768 = vadd.f32 %v563, %v1767
    %v1769 = vpop.f32.mrf.mxu0
    %v1770 = vpop.f32.mrf.mxu0
    %1771 = vdwg.mxu0
    %v1772 = vsub.f32 0.0, %v1725
    %v1773 = vmul.f32 %v1772, 1.442695
    %v1774 = vpow.pop %v1773
    %v1775 = vadd.f32 %v1774, 1.0
    %v1776 = vrcp.pop %v1775
    %v1777 = vsub.f32 0.0, %v1727
    %v1778 = vmul.f32 %v1777, 1.442695
    %v1779 = vpow.pop %v1778
    %v1780 = vadd.f32 %v1779, 1.0
    %v1781 = vrcp.pop %v1780
    %v1782 = vtanh.pop %v1766
    %v1783 = vsub.f32 0.0, %v1768
    %v1784 = vmul.f32 %v1783, 1.442695
    %v1785 = vpow.pop %v1784
    %v1786 = vadd.f32 %v1785, 1.0
    %v1787 = vrcp.pop %v1786
    %v1788 = vmul.f32 %v1781, %v1573
    %v1789 = vmul.f32 %v1776, %v1782
    %v1790 = vadd.f32 %v1788, %v1789
    %v1791 = vtanh.pop %v1790
    %v1792 = vmul.f32 %v1787, %v1791
    %s1793 = scalar_lea.vmem [#allocation2], 96
    %v1794 = vld [vmem:[%s1793] sm:$0xff]
    %v1795 = vld [vmem:[%s1793 + $0x8] sm:$0xff]
    %v1796 = vld [vmem:[%s1793 + $0x10] sm:$0xff]
    %v1797 = vld [vmem:[%s1793 + $0x18] sm:$0xff]
    %1798 = vmatprep.subr.bf16.mxu0 %v729
    %1799 = vmatpush1.bf16.msra.mxu0 %v728
    %1800 = vmatprep.subr.bf16.mxu0 %v725
    %1801 = vmatpush1.bf16.msra.mxu0 %v724
    %1802 = vmatprep.subr.bf16.mxu0 %v721
    %1803 = vmatpush1.bf16.msra.mxu0 %v720
    %1804 = vmatprep.subr.bf16.mxu0 %v717
    %1805 = vmatpush1.bf16.msra.mxu0 %v716
    %1806 = vmatprep.subr.bf16.mxu0 %v713
    %1807 = vmatpush1.bf16.msra.mxu0 %v712
    %1808 = vmatprep.subr.bf16.mxu0 %v709
    %1809 = vmatpush1.bf16.msra.mxu0 %v708
    %1810 = vmatprep.subr.bf16.mxu0 %v705
    %1811 = vmatpush1.bf16.msra.mxu0 %v704
    %1812 = vmatprep.subr.bf16.mxu0 %v701
    %1813 = vmatpush1.bf16.msra.mxu0 %v700
    %1814 = vmatprep.subr.bf16.mxu0 0
    %1815 = vmatpush2.bf16.msra.mxu0 0
    %1816 = vmatprep.subr.bf16.mxu0 0
    %1817 = vmatpush2.bf16.msra.mxu0 0
    %1818 = vmatprep.subr.bf16.mxu0 0
    %1819 = vmatpush2.bf16.msra.mxu0 0
    %1820 = vmatprep.subr.bf16.mxu0 0
    %1821 = vmatpush2.bf16.msra.mxu0 0
    %1822 = vmatprep.subr.bf16.mxu0 0
    %1823 = vmatpush2.bf16.msra.mxu0 0
    %1824 = vmatprep.subr.bf16.mxu0 0
    %1825 = vmatpush2.bf16.msra.mxu0 0
    %1826 = vmatprep.subr.bf16.mxu0 0
    %1827 = vmatpush2.bf16.msra.mxu0 0
    %1828 = vmatprep.subr.bf16.mxu0 0
    %1829 = vmatpush2.bf16.msra.mxu0 0
    %1830 = vmatprep.mubr.bf16.mxu0 0
    %1831 = vmatmul.mubr.bf16.gmra.mxu0 %v1688
    %v1832 = vpop.f32.mrf.mxu0
    %v1833 = vadd.f32 0.0, %v1832
    %v1834 = vpop.f32.mrf.mxu0
    %v1835 = vadd.f32 0.0, %v1834
    %v1836 = vpop.f32.mrf.mxu0
    %v1837 = vpop.f32.mrf.mxu0
    %1838 = vdwg.mxu0
    %1839 = vmatprep.subr.bf16.mxu0 %v731
    %1840 = vmatpush1.bf16.msra.mxu0 %v730
    %1841 = vmatprep.subr.bf16.mxu0 %v727
    %1842 = vmatpush1.bf16.msra.mxu0 %v726
    %1843 = vmatprep.subr.bf16.mxu0 %v723
    %1844 = vmatpush1.bf16.msra.mxu0 %v722
    %1845 = vmatprep.subr.bf16.mxu0 %v719
    %1846 = vmatpush1.bf16.msra.mxu0 %v718
    %1847 = vmatprep.subr.bf16.mxu0 %v715
    %1848 = vmatpush1.bf16.msra.mxu0 %v714
    %1849 = vmatprep.subr.bf16.mxu0 %v711
    %1850 = vmatpush1.bf16.msra.mxu0 %v710
    %1851 = vmatprep.subr.bf16.mxu0 %v707
    %1852 = vmatpush1.bf16.msra.mxu0 %v706
    %1853 = vmatprep.subr.bf16.mxu0 %v703
    %1854 = vmatpush1.bf16.msra.mxu0 %v702
    %1855 = vmatprep.subr.bf16.mxu0 0
    %1856 = vmatpush2.bf16.msra.mxu0 0
    %1857 = vmatprep.subr.bf16.mxu0 0
    %1858 = vmatpush2.bf16.msra.mxu0 0
    %1859 = vmatprep.subr.bf16.mxu0 0
    %1860 = vmatpush2.bf16.msra.mxu0 0
    %1861 = vmatprep.subr.bf16.mxu0 0
    %1862 = vmatpush2.bf16.msra.mxu0 0
    %1863 = vmatprep.subr.bf16.mxu0 0
    %1864 = vmatpush2.bf16.msra.mxu0 0
    %1865 = vmatprep.subr.bf16.mxu0 0
    %1866 = vmatpush2.bf16.msra.mxu0 0
    %1867 = vmatprep.subr.bf16.mxu0 0
    %1868 = vmatpush2.bf16.msra.mxu0 0
    %1869 = vmatprep.subr.bf16.mxu0 0
    %1870 = vmatpush2.bf16.msra.mxu0 0
    %1871 = vmatprep.mubr.bf16.mxu0 0
    %1872 = vmatmul.mubr.bf16.gmra.mxu0 %v1688
    %v1873 = vpop.f32.mrf.mxu0
    %v1874 = vadd.f32 0.0, %v1873
    %v1875 = vpop.f32.mrf.mxu0
    %v1876 = vadd.f32 0.0, %v1875
    %v1877 = vpop.f32.mrf.mxu0
    %v1878 = vpop.f32.mrf.mxu0
    %1879 = vdwg.mxu0
    %v1880 = vadd.f32 %v1794, %v1833
    %v1881 = vadd.f32 %v1795, %v1835
    %v1882 = vadd.f32 %v1796, %v1874
    %v1883 = vadd.f32 %v1797, %v1876
    %v1884 = vsub.f32 0.0, %v1880
    %v1885 = vmul.f32 %v1884, 1.442695
    %v1886 = vpow.pop %v1885
    %v1887 = vadd.f32 %v1886, 1.0
    %v1888 = vrcp.pop %v1887
    %v1889 = vsub.f32 0.0, %v1881
    %v1890 = vmul.f32 %v1889, 1.442695
    %v1891 = vpow.pop %v1890
    %v1892 = vadd.f32 %v1891, 1.0
    %v1893 = vrcp.pop %v1892
    %v1894 = vtanh.pop %v1882
    %v1895 = vsub.f32 0.0, %v1883
    %v1896 = vmul.f32 %v1895, 1.442695
    %v1897 = vpow.pop %v1896
    %v1898 = vadd.f32 %v1897, 1.0
    %v1899 = vrcp.pop %v1898
    %v1900 = vmul.f32 %v1893, %v1685
    %v1901 = vmul.f32 %v1888, %v1894
    %v1902 = vadd.f32 %v1900, %v1901
    %v1903 = vtanh.pop %v1902
    %v1904 = vmul.f32 %v1899, %v1903
    %v1905 = vpack.c.bf16 %v1904, %v1904
    %v1906 = vpack.c.bf16 %v1792, %v1792
    %1907 = vmatprep.subr.bf16.mxu0 %v1157
    %1908 = vmatpush1.bf16.msra.mxu0 %v1156
    %1909 = vmatprep.subr.bf16.mxu0 %v1153
    %1910 = vmatpush1.bf16.msra.mxu0 %v1152
    %1911 = vmatprep.subr.bf16.mxu0 %v1149
    %1912 = vmatpush1.bf16.msra.mxu0 %v1148
    %1913 = vmatprep.subr.bf16.mxu0 %v1145
    %1914 = vmatpush1.bf16.msra.mxu0 %v1144
    %1915 = vmatprep.subr.bf16.mxu0 %v1141
    %1916 = vmatpush1.bf16.msra.mxu0 %v1140
    %1917 = vmatprep.subr.bf16.mxu0 %v1137
    %1918 = vmatpush1.bf16.msra.mxu0 %v1136
    %1919 = vmatprep.subr.bf16.mxu0 %v1133
    %1920 = vmatpush1.bf16.msra.mxu0 %v1132
    %1921 = vmatprep.subr.bf16.mxu0 %v1129
    %1922 = vmatpush1.bf16.msra.mxu0 %v1128
    %1923 = vmatprep.subr.bf16.mxu0 %v1189
    %1924 = vmatpush2.bf16.msra.mxu0 %v1188
    %1925 = vmatprep.subr.bf16.mxu0 %v1185
    %1926 = vmatpush2.bf16.msra.mxu0 %v1184
    %1927 = vmatprep.subr.bf16.mxu0 %v1181
    %1928 = vmatpush2.bf16.msra.mxu0 %v1180
    %1929 = vmatprep.subr.bf16.mxu0 %v1177
    %1930 = vmatpush2.bf16.msra.mxu0 %v1176
    %1931 = vmatprep.subr.bf16.mxu0 %v1173
    %1932 = vmatpush2.bf16.msra.mxu0 %v1172
    %1933 = vmatprep.subr.bf16.mxu0 %v1169
    %1934 = vmatpush2.bf16.msra.mxu0 %v1168
    %1935 = vmatprep.subr.bf16.mxu0 %v1165
    %1936 = vmatpush2.bf16.msra.mxu0 %v1164
    %1937 = vmatprep.subr.bf16.mxu0 %v1161
    %1938 = vmatpush2.bf16.msra.mxu0 %v1160
    %1939 = vmatprep.mubr.bf16.mxu0 %v1906
    %1940 = vmatmul.mubr.bf16.gmra.mxu0 %v1905
    %v1941 = vpop.f32.mrf.mxu0
    %v1942 = vadd.f32 %v551, %v1941
    %v1943 = vpop.f32.mrf.mxu0
    %v1944 = vadd.f32 %v555, %v1943
    %v1945 = vpop.f32.mrf.mxu0
    %v1946 = vpop.f32.mrf.mxu0
    %1947 = vdwg.mxu0
    %1948 = vmatprep.subr.bf16.mxu0 %v1159
    %1949 = vmatpush1.bf16.msra.mxu0 %v1158
    %1950 = vmatprep.subr.bf16.mxu0 %v1155
    %1951 = vmatpush1.bf16.msra.mxu0 %v1154
    %1952 = vmatprep.subr.bf16.mxu0 %v1151
    %1953 = vmatpush1.bf16.msra.mxu0 %v1150
    %1954 = vmatprep.subr.bf16.mxu0 %v1147
    %1955 = vmatpush1.bf16.msra.mxu0 %v1146
    %1956 = vmatprep.subr.bf16.mxu0 %v1143
    %1957 = vmatpush1.bf16.msra.mxu0 %v1142
    %1958 = vmatprep.subr.bf16.mxu0 %v1139
    %1959 = vmatpush1.bf16.msra.mxu0 %v1138
    %1960 = vmatprep.subr.bf16.mxu0 %v1135
    %1961 = vmatpush1.bf16.msra.mxu0 %v1134
    %1962 = vmatprep.subr.bf16.mxu0 %v1131
    %1963 = vmatpush1.bf16.msra.mxu0 %v1130
    %1964 = vmatprep.subr.bf16.mxu0 %v1191
    %1965 = vmatpush2.bf16.msra.mxu0 %v1190
    %1966 = vmatprep.subr.bf16.mxu0 %v1187
    %1967 = vmatpush2.bf16.msra.mxu0 %v1186
    %1968 = vmatprep.subr.bf16.mxu0 %v1183
    %1969 = vmatpush2.bf16.msra.mxu0 %v1182
    %1970 = vmatprep.subr.bf16.mxu0 %v1179
    %1971 = vmatpush2.bf16.msra.mxu0 %v1178
    %1972 = vmatprep.subr.bf16.mxu0 %v1175
    %1973 = vmatpush2.bf16.msra.mxu0 %v1174
    %1974 = vmatprep.subr.bf16.mxu0 %v1171
    %1975 = vmatpush2.bf16.msra.mxu0 %v1170
    %1976 = vmatprep.subr.bf16.mxu0 %v1167
    %1977 = vmatpush2.bf16.msra.mxu0 %v1166
    %1978 = vmatprep.subr.bf16.mxu0 %v1163
    %1979 = vmatpush2.bf16.msra.mxu0 %v1162
    %1980 = vmatprep.mubr.bf16.mxu0 %v1906
    %1981 = vmatmul.mubr.bf16.gmra.mxu0 %v1905
    %v1982 = vpop.f32.mrf.mxu0
    %v1983 = vadd.f32 %v559, %v1982
    %v1984 = vpop.f32.mrf.mxu0
    %v1985 = vadd.f32 %v563, %v1984
    %v1986 = vpop.f32.mrf.mxu0
    %v1987 = vpop.f32.mrf.mxu0
    %1988 = vdwg.mxu0
    %v1989 = vsub.f32 0.0, %v1942
    %v1990 = vmul.f32 %v1989, 1.442695
    %v1991 = vpow.pop %v1990
    %v1992 = vadd.f32 %v1991, 1.0
    %v1993 = vrcp.pop %v1992
    %v1994 = vsub.f32 0.0, %v1944
    %v1995 = vmul.f32 %v1994, 1.442695
    %v1996 = vpow.pop %v1995
    %v1997 = vadd.f32 %v1996, 1.0
    %v1998 = vrcp.pop %v1997
    %v1999 = vtanh.pop %v1983
    %v2000 = vsub.f32 0.0, %v1985
    %v2001 = vmul.f32 %v2000, 1.442695
    %v2002 = vpow.pop %v2001
    %v2003 = vadd.f32 %v2002, 1.0
    %v2004 = vrcp.pop %v2003
    %v2005 = vmul.f32 %v1998, %v1790
    %v2006 = vmul.f32 %v1993, %v1999
    %v2007 = vadd.f32 %v2005, %v2006
    %v2008 = vtanh.pop %v2007
    %v2009 = vmul.f32 %v2004, %v2008
    %s2010 = scalar_lea.vmem [#allocation2], 128
    %v2011 = vld [vmem:[%s2010] sm:$0xff]
    %v2012 = vld [vmem:[%s2010 + $0x8] sm:$0xff]
    %v2013 = vld [vmem:[%s2010 + $0x10] sm:$0xff]
    %v2014 = vld [vmem:[%s2010 + $0x18] sm:$0xff]
    %2015 = vmatprep.subr.bf16.mxu0 %v729
    %2016 = vmatpush1.bf16.msra.mxu0 %v728
    %2017 = vmatprep.subr.bf16.mxu0 %v725
    %2018 = vmatpush1.bf16.msra.mxu0 %v724
    %2019 = vmatprep.subr.bf16.mxu0 %v721
    %2020 = vmatpush1.bf16.msra.mxu0 %v720
    %2021 = vmatprep.subr.bf16.mxu0 %v717
    %2022 = vmatpush1.bf16.msra.mxu0 %v716
    %2023 = vmatprep.subr.bf16.mxu0 %v713
    %2024 = vmatpush1.bf16.msra.mxu0 %v712
    %2025 = vmatprep.subr.bf16.mxu0 %v709
    %2026 = vmatpush1.bf16.msra.mxu0 %v708
    %2027 = vmatprep.subr.bf16.mxu0 %v705
    %2028 = vmatpush1.bf16.msra.mxu0 %v704
    %2029 = vmatprep.subr.bf16.mxu0 %v701
    %2030 = vmatpush1.bf16.msra.mxu0 %v700
    %2031 = vmatprep.subr.bf16.mxu0 0
    %2032 = vmatpush2.bf16.msra.mxu0 0
    %2033 = vmatprep.subr.bf16.mxu0 0
    %2034 = vmatpush2.bf16.msra.mxu0 0
    %2035 = vmatprep.subr.bf16.mxu0 0
    %2036 = vmatpush2.bf16.msra.mxu0 0
    %2037 = vmatprep.subr.bf16.mxu0 0
    %2038 = vmatpush2.bf16.msra.mxu0 0
    %2039 = vmatprep.subr.bf16.mxu0 0
    %2040 = vmatpush2.bf16.msra.mxu0 0
    %2041 = vmatprep.subr.bf16.mxu0 0
    %2042 = vmatpush2.bf16.msra.mxu0 0
    %2043 = vmatprep.subr.bf16.mxu0 0
    %2044 = vmatpush2.bf16.msra.mxu0 0
    %2045 = vmatprep.subr.bf16.mxu0 0
    %2046 = vmatpush2.bf16.msra.mxu0 0
    %2047 = vmatprep.mubr.bf16.mxu0 0
    %2048 = vmatmul.mubr.bf16.gmra.mxu0 %v1905
    %v2049 = vpop.f32.mrf.mxu0
    %v2050 = vadd.f32 0.0, %v2049
    %v2051 = vpop.f32.mrf.mxu0
    %v2052 = vadd.f32 0.0, %v2051
    %v2053 = vpop.f32.mrf.mxu0
    %v2054 = vpop.f32.mrf.mxu0
    %2055 = vdwg.mxu0
    %2056 = vmatprep.subr.bf16.mxu0 %v731
    %2057 = vmatpush1.bf16.msra.mxu0 %v730
    %2058 = vmatprep.subr.bf16.mxu0 %v727
    %2059 = vmatpush1.bf16.msra.mxu0 %v726
    %2060 = vmatprep.subr.bf16.mxu0 %v723
    %2061 = vmatpush1.bf16.msra.mxu0 %v722
    %2062 = vmatprep.subr.bf16.mxu0 %v719
    %2063 = vmatpush1.bf16.msra.mxu0 %v718
    %2064 = vmatprep.subr.bf16.mxu0 %v715
    %2065 = vmatpush1.bf16.msra.mxu0 %v714
    %2066 = vmatprep.subr.bf16.mxu0 %v711
    %2067 = vmatpush1.bf16.msra.mxu0 %v710
    %2068 = vmatprep.subr.bf16.mxu0 %v707
    %2069 = vmatpush1.bf16.msra.mxu0 %v706
    %2070 = vmatprep.subr.bf16.mxu0 %v703
    %2071 = vmatpush1.bf16.msra.mxu0 %v702
    %2072 = vmatprep.subr.bf16.mxu0 0
    %2073 = vmatpush2.bf16.msra.mxu0 0
    %2074 = vmatprep.subr.bf16.mxu0 0
    %2075 = vmatpush2.bf16.msra.mxu0 0
    %2076 = vmatprep.subr.bf16.mxu0 0
    %2077 = vmatpush2.bf16.msra.mxu0 0
    %2078 = vmatprep.subr.bf16.mxu0 0
    %2079 = vmatpush2.bf16.msra.mxu0 0
    %2080 = vmatprep.subr.bf16.mxu0 0
    %2081 = vmatpush2.bf16.msra.mxu0 0
    %2082 = vmatprep.subr.bf16.mxu0 0
    %2083 = vmatpush2.bf16.msra.mxu0 0
    %2084 = vmatprep.subr.bf16.mxu0 0
    %2085 = vmatpush2.bf16.msra.mxu0 0
    %2086 = vmatprep.subr.bf16.mxu0 0
    %2087 = vmatpush2.bf16.msra.mxu0 0
    %2088 = vmatprep.mubr.bf16.mxu0 0
    %2089 = vmatmul.mubr.bf16.gmra.mxu0 %v1905
    %v2090 = vpop.f32.mrf.mxu0
    %v2091 = vadd.f32 0.0, %v2090
    %v2092 = vpop.f32.mrf.mxu0
    %v2093 = vadd.f32 0.0, %v2092
    %v2094 = vpop.f32.mrf.mxu0
    %v2095 = vpop.f32.mrf.mxu0
    %2096 = vdwg.mxu0
    %v2097 = vadd.f32 %v2011, %v2050
    %v2098 = vadd.f32 %v2012, %v2052
    %v2099 = vadd.f32 %v2013, %v2091
    %v2100 = vadd.f32 %v2014, %v2093
    %v2101 = vsub.f32 0.0, %v2097
    %v2102 = vmul.f32 %v2101, 1.442695
    %v2103 = vpow.pop %v2102
    %v2104 = vadd.f32 %v2103, 1.0
    %v2105 = vrcp.pop %v2104
    %v2106 = vsub.f32 0.0, %v2098
    %v2107 = vmul.f32 %v2106, 1.442695
    %v2108 = vpow.pop %v2107
    %v2109 = vadd.f32 %v2108, 1.0
    %v2110 = vrcp.pop %v2109
    %v2111 = vtanh.pop %v2099
    %v2112 = vsub.f32 0.0, %v2100
    %v2113 = vmul.f32 %v2112, 1.442695
    %v2114 = vpow.pop %v2113
    %v2115 = vadd.f32 %v2114, 1.0
    %v2116 = vrcp.pop %v2115
    %v2117 = vmul.f32 %v2110, %v1902
    %v2118 = vmul.f32 %v2105, %v2111
    %v2119 = vadd.f32 %v2117, %v2118
    %v2120 = vtanh.pop %v2119
    %v2121 = vmul.f32 %v2116, %v2120
    %v2122 = vpack.c.bf16 %v2121, %v2121
    %v2123 = vpack.c.bf16 %v2009, %v2009
    %2124 = vmatprep.subr.bf16.mxu0 %v1157
    %2125 = vmatpush1.bf16.msra.mxu0 %v1156
    %2126 = vmatprep.subr.bf16.mxu0 %v1153
    %2127 = vmatpush1.bf16.msra.mxu0 %v1152
    %2128 = vmatprep.subr.bf16.mxu0 %v1149
    %2129 = vmatpush1.bf16.msra.mxu0 %v1148
    %2130 = vmatprep.subr.bf16.mxu0 %v1145
    %2131 = vmatpush1.bf16.msra.mxu0 %v1144
    %2132 = vmatprep.subr.bf16.mxu0 %v1141
    %2133 = vmatpush1.bf16.msra.mxu0 %v1140
    %2134 = vmatprep.subr.bf16.mxu0 %v1137
    %2135 = vmatpush1.bf16.msra.mxu0 %v1136
    %2136 = vmatprep.subr.bf16.mxu0 %v1133
    %2137 = vmatpush1.bf16.msra.mxu0 %v1132
    %2138 = vmatprep.subr.bf16.mxu0 %v1129
    %2139 = vmatpush1.bf16.msra.mxu0 %v1128
    %2140 = vmatprep.subr.bf16.mxu0 %v1189
    %2141 = vmatpush2.bf16.msra.mxu0 %v1188
    %2142 = vmatprep.subr.bf16.mxu0 %v1185
    %2143 = vmatpush2.bf16.msra.mxu0 %v1184
    %2144 = vmatprep.subr.bf16.mxu0 %v1181
    %2145 = vmatpush2.bf16.msra.mxu0 %v1180
    %2146 = vmatprep.subr.bf16.mxu0 %v1177
    %2147 = vmatpush2.bf16.msra.mxu0 %v1176
    %2148 = vmatprep.subr.bf16.mxu0 %v1173
    %2149 = vmatpush2.bf16.msra.mxu0 %v1172
    %2150 = vmatprep.subr.bf16.mxu0 %v1169
    %2151 = vmatpush2.bf16.msra.mxu0 %v1168
    %2152 = vmatprep.subr.bf16.mxu0 %v1165
    %2153 = vmatpush2.bf16.msra.mxu0 %v1164
    %2154 = vmatprep.subr.bf16.mxu0 %v1161
    %2155 = vmatpush2.bf16.msra.mxu0 %v1160
    %2156 = vmatprep.mubr.bf16.mxu0 %v2123
    %2157 = vmatmul.mubr.bf16.gmra.mxu0 %v2122
    %v2158 = vpop.f32.mrf.mxu0
    %v2159 = vadd.f32 %v551, %v2158
    %v2160 = vpop.f32.mrf.mxu0
    %v2161 = vadd.f32 %v555, %v2160
    %v2162 = vpop.f32.mrf.mxu0
    %v2163 = vpop.f32.mrf.mxu0
    %2164 = vdwg.mxu0
    %2165 = vmatprep.subr.bf16.mxu0 %v1159
    %2166 = vmatpush1.bf16.msra.mxu0 %v1158
    %2167 = vmatprep.subr.bf16.mxu0 %v1155
    %2168 = vmatpush1.bf16.msra.mxu0 %v1154
    %2169 = vmatprep.subr.bf16.mxu0 %v1151
    %2170 = vmatpush1.bf16.msra.mxu0 %v1150
    %2171 = vmatprep.subr.bf16.mxu0 %v1147
    %2172 = vmatpush1.bf16.msra.mxu0 %v1146
    %2173 = vmatprep.subr.bf16.mxu0 %v1143
    %2174 = vmatpush1.bf16.msra.mxu0 %v1142
    %2175 = vmatprep.subr.bf16.mxu0 %v1139
    %2176 = vmatpush1.bf16.msra.mxu0 %v1138
    %2177 = vmatprep.subr.bf16.mxu0 %v1135
    %2178 = vmatpush1.bf16.msra.mxu0 %v1134
    %2179 = vmatprep.subr.bf16.mxu0 %v1131
    %2180 = vmatpush1.bf16.msra.mxu0 %v1130
    %2181 = vmatprep.subr.bf16.mxu0 %v1191
    %2182 = vmatpush2.bf16.msra.mxu0 %v1190
    %2183 = vmatprep.subr.bf16.mxu0 %v1187
    %2184 = vmatpush2.bf16.msra.mxu0 %v1186
    %2185 = vmatprep.subr.bf16.mxu0 %v1183
    %2186 = vmatpush2.bf16.msra.mxu0 %v1182
    %2187 = vmatprep.subr.bf16.mxu0 %v1179
    %2188 = vmatpush2.bf16.msra.mxu0 %v1178
    %2189 = vmatprep.subr.bf16.mxu0 %v1175
    %2190 = vmatpush2.bf16.msra.mxu0 %v1174
    %2191 = vmatprep.subr.bf16.mxu0 %v1171
    %2192 = vmatpush2.bf16.msra.mxu0 %v1170
    %2193 = vmatprep.subr.bf16.mxu0 %v1167
    %2194 = vmatpush2.bf16.msra.mxu0 %v1166
    %2195 = vmatprep.subr.bf16.mxu0 %v1163
    %2196 = vmatpush2.bf16.msra.mxu0 %v1162
    %2197 = vmatprep.mubr.bf16.mxu0 %v2123
    %2198 = vmatmul.mubr.bf16.gmra.mxu0 %v2122
    %v2199 = vpop.f32.mrf.mxu0
    %v2200 = vadd.f32 %v559, %v2199
    %v2201 = vpop.f32.mrf.mxu0
    %v2202 = vadd.f32 %v563, %v2201
    %v2203 = vpop.f32.mrf.mxu0
    %v2204 = vpop.f32.mrf.mxu0
    %2205 = vdwg.mxu0
    %v2206 = vsub.f32 0.0, %v2159
    %v2207 = vmul.f32 %v2206, 1.442695
    %v2208 = vpow.pop %v2207
    %v2209 = vadd.f32 %v2208, 1.0
    %v2210 = vrcp.pop %v2209
    %v2211 = vsub.f32 0.0, %v2161
    %v2212 = vmul.f32 %v2211, 1.442695
    %v2213 = vpow.pop %v2212
    %v2214 = vadd.f32 %v2213, 1.0
    %v2215 = vrcp.pop %v2214
    %v2216 = vtanh.pop %v2200
    %v2217 = vsub.f32 0.0, %v2202
    %v2218 = vmul.f32 %v2217, 1.442695
    %v2219 = vpow.pop %v2218
    %v2220 = vadd.f32 %v2219, 1.0
    %v2221 = vrcp.pop %v2220
    %v2222 = vmul.f32 %v2215, %v2007
    %v2223 = vmul.f32 %v2210, %v2216
    %v2224 = vadd.f32 %v2222, %v2223
    %v2225 = vtanh.pop %v2224
    %v2226 = vmul.f32 %v2221, %v2225
    %s2227 = scalar_lea.vmem [#allocation2], 160
    %v2228 = vld [vmem:[%s2227] sm:$0xff]
    %v2229 = vld [vmem:[%s2227 + $0x8] sm:$0xff]
    %v2230 = vld [vmem:[%s2227 + $0x10] sm:$0xff]
    %v2231 = vld [vmem:[%s2227 + $0x18] sm:$0xff]
    %2232 = vmatprep.subr.bf16.mxu0 %v729
    %2233 = vmatpush1.bf16.msra.mxu0 %v728
    %2234 = vmatprep.subr.bf16.mxu0 %v725
    %2235 = vmatpush1.bf16.msra.mxu0 %v724
    %2236 = vmatprep.subr.bf16.mxu0 %v721
    %2237 = vmatpush1.bf16.msra.mxu0 %v720
    %2238 = vmatprep.subr.bf16.mxu0 %v717
    %2239 = vmatpush1.bf16.msra.mxu0 %v716
    %2240 = vmatprep.subr.bf16.mxu0 %v713
    %2241 = vmatpush1.bf16.msra.mxu0 %v712
    %2242 = vmatprep.subr.bf16.mxu0 %v709
    %2243 = vmatpush1.bf16.msra.mxu0 %v708
    %2244 = vmatprep.subr.bf16.mxu0 %v705
    %2245 = vmatpush1.bf16.msra.mxu0 %v704
    %2246 = vmatprep.subr.bf16.mxu0 %v701
    %2247 = vmatpush1.bf16.msra.mxu0 %v700
    %2248 = vmatprep.subr.bf16.mxu0 0
    %2249 = vmatpush2.bf16.msra.mxu0 0
    %2250 = vmatprep.subr.bf16.mxu0 0
    %2251 = vmatpush2.bf16.msra.mxu0 0
    %2252 = vmatprep.subr.bf16.mxu0 0
    %2253 = vmatpush2.bf16.msra.mxu0 0
    %2254 = vmatprep.subr.bf16.mxu0 0
    %2255 = vmatpush2.bf16.msra.mxu0 0
    %2256 = vmatprep.subr.bf16.mxu0 0
    %2257 = vmatpush2.bf16.msra.mxu0 0
    %2258 = vmatprep.subr.bf16.mxu0 0
    %2259 = vmatpush2.bf16.msra.mxu0 0
    %2260 = vmatprep.subr.bf16.mxu0 0
    %2261 = vmatpush2.bf16.msra.mxu0 0
    %2262 = vmatprep.subr.bf16.mxu0 0
    %2263 = vmatpush2.bf16.msra.mxu0 0
    %2264 = vmatprep.mubr.bf16.mxu0 0
    %2265 = vmatmul.mubr.bf16.gmra.mxu0 %v2122
    %v2266 = vpop.f32.mrf.mxu0
    %v2267 = vadd.f32 0.0, %v2266
    %v2268 = vpop.f32.mrf.mxu0
    %v2269 = vadd.f32 0.0, %v2268
    %v2270 = vpop.f32.mrf.mxu0
    %v2271 = vpop.f32.mrf.mxu0
    %2272 = vdwg.mxu0
    %2273 = vmatprep.subr.bf16.mxu0 %v731
    %2274 = vmatpush1.bf16.msra.mxu0 %v730
    %2275 = vmatprep.subr.bf16.mxu0 %v727
    %2276 = vmatpush1.bf16.msra.mxu0 %v726
    %2277 = vmatprep.subr.bf16.mxu0 %v723
    %2278 = vmatpush1.bf16.msra.mxu0 %v722
    %2279 = vmatprep.subr.bf16.mxu0 %v719
    %2280 = vmatpush1.bf16.msra.mxu0 %v718
    %2281 = vmatprep.subr.bf16.mxu0 %v715
    %2282 = vmatpush1.bf16.msra.mxu0 %v714
    %2283 = vmatprep.subr.bf16.mxu0 %v711
    %2284 = vmatpush1.bf16.msra.mxu0 %v710
    %2285 = vmatprep.subr.bf16.mxu0 %v707
    %2286 = vmatpush1.bf16.msra.mxu0 %v706
    %2287 = vmatprep.subr.bf16.mxu0 %v703
    %2288 = vmatpush1.bf16.msra.mxu0 %v702
    %2289 = vmatprep.subr.bf16.mxu0 0
    %2290 = vmatpush2.bf16.msra.mxu0 0
    %2291 = vmatprep.subr.bf16.mxu0 0
    %2292 = vmatpush2.bf16.msra.mxu0 0
    %2293 = vmatprep.subr.bf16.mxu0 0
    %2294 = vmatpush2.bf16.msra.mxu0 0
    %2295 = vmatprep.subr.bf16.mxu0 0
    %2296 = vmatpush2.bf16.msra.mxu0 0
    %2297 = vmatprep.subr.bf16.mxu0 0
    %2298 = vmatpush2.bf16.msra.mxu0 0
    %2299 = vmatprep.subr.bf16.mxu0 0
    %2300 = vmatpush2.bf16.msra.mxu0 0
    %2301 = vmatprep.subr.bf16.mxu0 0
    %2302 = vmatpush2.bf16.msra.mxu0 0
    %2303 = vmatprep.subr.bf16.mxu0 0
    %2304 = vmatpush2.bf16.msra.mxu0 0
    %2305 = vmatprep.mubr.bf16.mxu0 0
    %2306 = vmatmul.mubr.bf16.gmra.mxu0 %v2122
    %v2307 = vpop.f32.mrf.mxu0
    %v2308 = vadd.f32 0.0, %v2307
    %v2309 = vpop.f32.mrf.mxu0
    %v2310 = vadd.f32 0.0, %v2309
    %v2311 = vpop.f32.mrf.mxu0
    %v2312 = vpop.f32.mrf.mxu0
    %2313 = vdwg.mxu0
    %v2314 = vadd.f32 %v2228, %v2267
    %v2315 = vadd.f32 %v2229, %v2269
    %v2316 = vadd.f32 %v2230, %v2308
    %v2317 = vadd.f32 %v2231, %v2310
    %v2318 = vsub.f32 0.0, %v2314
    %v2319 = vmul.f32 %v2318, 1.442695
    %v2320 = vpow.pop %v2319
    %v2321 = vadd.f32 %v2320, 1.0
    %v2322 = vrcp.pop %v2321
    %v2323 = vsub.f32 0.0, %v2315
    %v2324 = vmul.f32 %v2323, 1.442695
    %v2325 = vpow.pop %v2324
    %v2326 = vadd.f32 %v2325, 1.0
    %v2327 = vrcp.pop %v2326
    %v2328 = vtanh.pop %v2316
    %v2329 = vsub.f32 0.0, %v2317
    %v2330 = vmul.f32 %v2329, 1.442695
    %v2331 = vpow.pop %v2330
    %v2332 = vadd.f32 %v2331, 1.0
    %v2333 = vrcp.pop %v2332
    %v2334 = vmul.f32 %v2327, %v2119
    %v2335 = vmul.f32 %v2322, %v2328
    %v2336 = vadd.f32 %v2334, %v2335
    %v2337 = vtanh.pop %v2336
    %v2338 = vmul.f32 %v2333, %v2337
    %v2339 = vpack.c.bf16 %v2338, %v2338
    %v2340 = vpack.c.bf16 %v2226, %v2226
    %2341 = vmatprep.subr.bf16.mxu0 %v1157
    %2342 = vmatpush1.bf16.msra.mxu0 %v1156
    %2343 = vmatprep.subr.bf16.mxu0 %v1153
    %2344 = vmatpush1.bf16.msra.mxu0 %v1152
    %2345 = vmatprep.subr.bf16.mxu0 %v1149
    %2346 = vmatpush1.bf16.msra.mxu0 %v1148
    %2347 = vmatprep.subr.bf16.mxu0 %v1145
    %2348 = vmatpush1.bf16.msra.mxu0 %v1144
    %2349 = vmatprep.subr.bf16.mxu0 %v1141
    %2350 = vmatpush1.bf16.msra.mxu0 %v1140
    %2351 = vmatprep.subr.bf16.mxu0 %v1137
    %2352 = vmatpush1.bf16.msra.mxu0 %v1136
    %2353 = vmatprep.subr.bf16.mxu0 %v1133
    %2354 = vmatpush1.bf16.msra.mxu0 %v1132
    %2355 = vmatprep.subr.bf16.mxu0 %v1129
    %2356 = vmatpush1.bf16.msra.mxu0 %v1128
    %2357 = vmatprep.subr.bf16.mxu0 %v1189
    %2358 = vmatpush2.bf16.msra.mxu0 %v1188
    %2359 = vmatprep.subr.bf16.mxu0 %v1185
    %2360 = vmatpush2.bf16.msra.mxu0 %v1184
    %2361 = vmatprep.subr.bf16.mxu0 %v1181
    %2362 = vmatpush2.bf16.msra.mxu0 %v1180
    %2363 = vmatprep.subr.bf16.mxu0 %v1177
    %2364 = vmatpush2.bf16.msra.mxu0 %v1176
    %2365 = vmatprep.subr.bf16.mxu0 %v1173
    %2366 = vmatpush2.bf16.msra.mxu0 %v1172
    %2367 = vmatprep.subr.bf16.mxu0 %v1169
    %2368 = vmatpush2.bf16.msra.mxu0 %v1168
    %2369 = vmatprep.subr.bf16.mxu0 %v1165
    %2370 = vmatpush2.bf16.msra.mxu0 %v1164
    %2371 = vmatprep.subr.bf16.mxu0 %v1161
    %2372 = vmatpush2.bf16.msra.mxu0 %v1160
    %2373 = vmatprep.mubr.bf16.mxu0 %v2340
    %2374 = vmatmul.mubr.bf16.gmra.mxu0 %v2339
    %v2375 = vpop.f32.mrf.mxu0
    %v2376 = vadd.f32 %v551, %v2375
    %v2377 = vpop.f32.mrf.mxu0
    %v2378 = vadd.f32 %v555, %v2377
    %v2379 = vpop.f32.mrf.mxu0
    %v2380 = vpop.f32.mrf.mxu0
    %2381 = vdwg.mxu0
    %2382 = vmatprep.subr.bf16.mxu0 %v1159
    %2383 = vmatpush1.bf16.msra.mxu0 %v1158
    %2384 = vmatprep.subr.bf16.mxu0 %v1155
    %2385 = vmatpush1.bf16.msra.mxu0 %v1154
    %2386 = vmatprep.subr.bf16.mxu0 %v1151
    %2387 = vmatpush1.bf16.msra.mxu0 %v1150
    %2388 = vmatprep.subr.bf16.mxu0 %v1147
    %2389 = vmatpush1.bf16.msra.mxu0 %v1146
    %2390 = vmatprep.subr.bf16.mxu0 %v1143
    %2391 = vmatpush1.bf16.msra.mxu0 %v1142
    %2392 = vmatprep.subr.bf16.mxu0 %v1139
    %2393 = vmatpush1.bf16.msra.mxu0 %v1138
    %2394 = vmatprep.subr.bf16.mxu0 %v1135
    %2395 = vmatpush1.bf16.msra.mxu0 %v1134
    %2396 = vmatprep.subr.bf16.mxu0 %v1131
    %2397 = vmatpush1.bf16.msra.mxu0 %v1130
    %2398 = vmatprep.subr.bf16.mxu0 %v1191
    %2399 = vmatpush2.bf16.msra.mxu0 %v1190
    %2400 = vmatprep.subr.bf16.mxu0 %v1187
    %2401 = vmatpush2.bf16.msra.mxu0 %v1186
    %2402 = vmatprep.subr.bf16.mxu0 %v1183
    %2403 = vmatpush2.bf16.msra.mxu0 %v1182
    %2404 = vmatprep.subr.bf16.mxu0 %v1179
    %2405 = vmatpush2.bf16.msra.mxu0 %v1178
    %2406 = vmatprep.subr.bf16.mxu0 %v1175
    %2407 = vmatpush2.bf16.msra.mxu0 %v1174
    %2408 = vmatprep.subr.bf16.mxu0 %v1171
    %2409 = vmatpush2.bf16.msra.mxu0 %v1170
    %2410 = vmatprep.subr.bf16.mxu0 %v1167
    %2411 = vmatpush2.bf16.msra.mxu0 %v1166
    %2412 = vmatprep.subr.bf16.mxu0 %v1163
    %2413 = vmatpush2.bf16.msra.mxu0 %v1162
    %2414 = vmatprep.mubr.bf16.mxu0 %v2340
    %2415 = vmatmul.mubr.bf16.gmra.mxu0 %v2339
    %v2416 = vpop.f32.mrf.mxu0
    %v2417 = vadd.f32 %v559, %v2416
    %v2418 = vpop.f32.mrf.mxu0
    %v2419 = vadd.f32 %v563, %v2418
    %v2420 = vpop.f32.mrf.mxu0
    %v2421 = vpop.f32.mrf.mxu0
    %2422 = vdwg.mxu0
    %v2423 = vsub.f32 0.0, %v2376
    %v2424 = vmul.f32 %v2423, 1.442695
    %v2425 = vpow.pop %v2424
    %v2426 = vadd.f32 %v2425, 1.0
    %v2427 = vrcp.pop %v2426
    %v2428 = vsub.f32 0.0, %v2378
    %v2429 = vmul.f32 %v2428, 1.442695
    %v2430 = vpow.pop %v2429
    %v2431 = vadd.f32 %v2430, 1.0
    %v2432 = vrcp.pop %v2431
    %v2433 = vtanh.pop %v2417
    %v2434 = vsub.f32 0.0, %v2419
    %v2435 = vmul.f32 %v2434, 1.442695
    %v2436 = vpow.pop %v2435
    %v2437 = vadd.f32 %v2436, 1.0
    %v2438 = vrcp.pop %v2437
    %v2439 = vmul.f32 %v2432, %v2224
    %v2440 = vmul.f32 %v2427, %v2433
    %v2441 = vadd.f32 %v2439, %v2440
    %v2442 = vtanh.pop %v2441
    %v2443 = vmul.f32 %v2438, %v2442
    %s2444 = scalar_lea.vmem [#allocation2], 192
    %v2445 = vld [vmem:[%s2444] sm:$0xff]
    %v2446 = vld [vmem:[%s2444 + $0x8] sm:$0xff]
    %v2447 = vld [vmem:[%s2444 + $0x10] sm:$0xff]
    %v2448 = vld [vmem:[%s2444 + $0x18] sm:$0xff]
    %2449 = vmatprep.subr.bf16.mxu0 %v729
    %2450 = vmatpush1.bf16.msra.mxu0 %v728
    %2451 = vmatprep.subr.bf16.mxu0 %v725
    %2452 = vmatpush1.bf16.msra.mxu0 %v724
    %2453 = vmatprep.subr.bf16.mxu0 %v721
    %2454 = vmatpush1.bf16.msra.mxu0 %v720
    %2455 = vmatprep.subr.bf16.mxu0 %v717
    %2456 = vmatpush1.bf16.msra.mxu0 %v716
    %2457 = vmatprep.subr.bf16.mxu0 %v713
    %2458 = vmatpush1.bf16.msra.mxu0 %v712
    %2459 = vmatprep.subr.bf16.mxu0 %v709
    %2460 = vmatpush1.bf16.msra.mxu0 %v708
    %2461 = vmatprep.subr.bf16.mxu0 %v705
    %2462 = vmatpush1.bf16.msra.mxu0 %v704
    %2463 = vmatprep.subr.bf16.mxu0 %v701
    %2464 = vmatpush1.bf16.msra.mxu0 %v700
    %2465 = vmatprep.subr.bf16.mxu0 0
    %2466 = vmatpush2.bf16.msra.mxu0 0
    %2467 = vmatprep.subr.bf16.mxu0 0
    %2468 = vmatpush2.bf16.msra.mxu0 0
    %2469 = vmatprep.subr.bf16.mxu0 0
    %2470 = vmatpush2.bf16.msra.mxu0 0
    %2471 = vmatprep.subr.bf16.mxu0 0
    %2472 = vmatpush2.bf16.msra.mxu0 0
    %2473 = vmatprep.subr.bf16.mxu0 0
    %2474 = vmatpush2.bf16.msra.mxu0 0
    %2475 = vmatprep.subr.bf16.mxu0 0
    %2476 = vmatpush2.bf16.msra.mxu0 0
    %2477 = vmatprep.subr.bf16.mxu0 0
    %2478 = vmatpush2.bf16.msra.mxu0 0
    %2479 = vmatprep.subr.bf16.mxu0 0
    %2480 = vmatpush2.bf16.msra.mxu0 0
    %2481 = vmatprep.mubr.bf16.mxu0 0
    %2482 = vmatmul.mubr.bf16.gmra.mxu0 %v2339
    %v2483 = vpop.f32.mrf.mxu0
    %v2484 = vadd.f32 0.0, %v2483
    %v2485 = vpop.f32.mrf.mxu0
    %v2486 = vadd.f32 0.0, %v2485
    %v2487 = vpop.f32.mrf.mxu0
    %v2488 = vpop.f32.mrf.mxu0
    %2489 = vdwg.mxu0
    %2490 = vmatprep.subr.bf16.mxu0 %v731
    %2491 = vmatpush1.bf16.msra.mxu0 %v730
    %2492 = vmatprep.subr.bf16.mxu0 %v727
    %2493 = vmatpush1.bf16.msra.mxu0 %v726
    %2494 = vmatprep.subr.bf16.mxu0 %v723
    %2495 = vmatpush1.bf16.msra.mxu0 %v722
    %2496 = vmatprep.subr.bf16.mxu0 %v719
    %2497 = vmatpush1.bf16.msra.mxu0 %v718
    %2498 = vmatprep.subr.bf16.mxu0 %v715
    %2499 = vmatpush1.bf16.msra.mxu0 %v714
    %2500 = vmatprep.subr.bf16.mxu0 %v711
    %2501 = vmatpush1.bf16.msra.mxu0 %v710
    %2502 = vmatprep.subr.bf16.mxu0 %v707
    %2503 = vmatpush1.bf16.msra.mxu0 %v706
    %2504 = vmatprep.subr.bf16.mxu0 %v703
    %2505 = vmatpush1.bf16.msra.mxu0 %v702
    %2506 = vmatprep.subr.bf16.mxu0 0
    %2507 = vmatpush2.bf16.msra.mxu0 0
    %2508 = vmatprep.subr.bf16.mxu0 0
    %2509 = vmatpush2.bf16.msra.mxu0 0
    %2510 = vmatprep.subr.bf16.mxu0 0
    %2511 = vmatpush2.bf16.msra.mxu0 0
    %2512 = vmatprep.subr.bf16.mxu0 0
    %2513 = vmatpush2.bf16.msra.mxu0 0
    %2514 = vmatprep.subr.bf16.mxu0 0
    %2515 = vmatpush2.bf16.msra.mxu0 0
    %2516 = vmatprep.subr.bf16.mxu0 0
    %2517 = vmatpush2.bf16.msra.mxu0 0
    %2518 = vmatprep.subr.bf16.mxu0 0
    %2519 = vmatpush2.bf16.msra.mxu0 0
    %2520 = vmatprep.subr.bf16.mxu0 0
    %2521 = vmatpush2.bf16.msra.mxu0 0
    %2522 = vmatprep.mubr.bf16.mxu0 0
    %2523 = vmatmul.mubr.bf16.gmra.mxu0 %v2339
    %v2524 = vpop.f32.mrf.mxu0
    %v2525 = vadd.f32 0.0, %v2524
    %v2526 = vpop.f32.mrf.mxu0
    %v2527 = vadd.f32 0.0, %v2526
    %v2528 = vpop.f32.mrf.mxu0
    %v2529 = vpop.f32.mrf.mxu0
    %2530 = vdwg.mxu0
    %v2531 = vadd.f32 %v2445, %v2484
    %v2532 = vadd.f32 %v2446, %v2486
    %v2533 = vadd.f32 %v2447, %v2525
    %v2534 = vadd.f32 %v2448, %v2527
    %v2535 = vsub.f32 0.0, %v2531
    %v2536 = vmul.f32 %v2535, 1.442695
    %v2537 = vpow.pop %v2536
    %v2538 = vadd.f32 %v2537, 1.0
    %v2539 = vrcp.pop %v2538
    %v2540 = vsub.f32 0.0, %v2532
    %v2541 = vmul.f32 %v2540, 1.442695
    %v2542 = vpow.pop %v2541
    %v2543 = vadd.f32 %v2542, 1.0
    %v2544 = vrcp.pop %v2543
    %v2545 = vtanh.pop %v2533
    %v2546 = vsub.f32 0.0, %v2534
    %v2547 = vmul.f32 %v2546, 1.442695
    %v2548 = vpow.pop %v2547
    %v2549 = vadd.f32 %v2548, 1.0
    %v2550 = vrcp.pop %v2549
    %v2551 = vmul.f32 %v2544, %v2336
    %v2552 = vmul.f32 %v2539, %v2545
    %v2553 = vadd.f32 %v2551, %v2552
    %v2554 = vtanh.pop %v2553
    %v2555 = vmul.f32 %v2550, %v2554
    %v2556 = vpack.c.bf16 %v2555, %v2555
    %v2557 = vpack.c.bf16 %v2443, %v2443
    %2558 = vmatprep.subr.bf16.mxu0 %v1157
    %2559 = vmatpush1.bf16.msra.mxu0 %v1156
    %2560 = vmatprep.subr.bf16.mxu0 %v1153
    %2561 = vmatpush1.bf16.msra.mxu0 %v1152
    %2562 = vmatprep.subr.bf16.mxu0 %v1149
    %2563 = vmatpush1.bf16.msra.mxu0 %v1148
    %2564 = vmatprep.subr.bf16.mxu0 %v1145
    %2565 = vmatpush1.bf16.msra.mxu0 %v1144
    %2566 = vmatprep.subr.bf16.mxu0 %v1141
    %2567 = vmatpush1.bf16.msra.mxu0 %v1140
    %2568 = vmatprep.subr.bf16.mxu0 %v1137
    %2569 = vmatpush1.bf16.msra.mxu0 %v1136
    %2570 = vmatprep.subr.bf16.mxu0 %v1133
    %2571 = vmatpush1.bf16.msra.mxu0 %v1132
    %2572 = vmatprep.subr.bf16.mxu0 %v1129
    %2573 = vmatpush1.bf16.msra.mxu0 %v1128
    %2574 = vmatprep.subr.bf16.mxu0 %v1189
    %2575 = vmatpush2.bf16.msra.mxu0 %v1188
    %2576 = vmatprep.subr.bf16.mxu0 %v1185
    %2577 = vmatpush2.bf16.msra.mxu0 %v1184
    %2578 = vmatprep.subr.bf16.mxu0 %v1181
    %2579 = vmatpush2.bf16.msra.mxu0 %v1180
    %2580 = vmatprep.subr.bf16.mxu0 %v1177
    %2581 = vmatpush2.bf16.msra.mxu0 %v1176
    %2582 = vmatprep.subr.bf16.mxu0 %v1173
    %2583 = vmatpush2.bf16.msra.mxu0 %v1172
    %2584 = vmatprep.subr.bf16.mxu0 %v1169
    %2585 = vmatpush2.bf16.msra.mxu0 %v1168
    %2586 = vmatprep.subr.bf16.mxu0 %v1165
    %2587 = vmatpush2.bf16.msra.mxu0 %v1164
    %2588 = vmatprep.subr.bf16.mxu0 %v1161
    %2589 = vmatpush2.bf16.msra.mxu0 %v1160
    %2590 = vmatprep.mubr.bf16.mxu0 %v2557
    %2591 = vmatmul.mubr.bf16.gmra.mxu0 %v2556
    %v2592 = vpop.f32.mrf.mxu0
    %v2593 = vadd.f32 %v551, %v2592
    %v2594 = vpop.f32.mrf.mxu0
    %v2595 = vadd.f32 %v555, %v2594
    %v2596 = vpop.f32.mrf.mxu0
    %v2597 = vpop.f32.mrf.mxu0
    %2598 = vdwg.mxu0
    %2599 = vmatprep.subr.bf16.mxu0 %v1159
    %2600 = vmatpush1.bf16.msra.mxu0 %v1158
    %2601 = vmatprep.subr.bf16.mxu0 %v1155
    %2602 = vmatpush1.bf16.msra.mxu0 %v1154
    %2603 = vmatprep.subr.bf16.mxu0 %v1151
    %2604 = vmatpush1.bf16.msra.mxu0 %v1150
    %2605 = vmatprep.subr.bf16.mxu0 %v1147
    %2606 = vmatpush1.bf16.msra.mxu0 %v1146
    %2607 = vmatprep.subr.bf16.mxu0 %v1143
    %2608 = vmatpush1.bf16.msra.mxu0 %v1142
    %2609 = vmatprep.subr.bf16.mxu0 %v1139
    %2610 = vmatpush1.bf16.msra.mxu0 %v1138
    %2611 = vmatprep.subr.bf16.mxu0 %v1135
    %2612 = vmatpush1.bf16.msra.mxu0 %v1134
    %2613 = vmatprep.subr.bf16.mxu0 %v1131
    %2614 = vmatpush1.bf16.msra.mxu0 %v1130
    %2615 = vmatprep.subr.bf16.mxu0 %v1191
    %2616 = vmatpush2.bf16.msra.mxu0 %v1190
    %2617 = vmatprep.subr.bf16.mxu0 %v1187
    %2618 = vmatpush2.bf16.msra.mxu0 %v1186
    %2619 = vmatprep.subr.bf16.mxu0 %v1183
    %2620 = vmatpush2.bf16.msra.mxu0 %v1182
    %2621 = vmatprep.subr.bf16.mxu0 %v1179
    %2622 = vmatpush2.bf16.msra.mxu0 %v1178
    %2623 = vmatprep.subr.bf16.mxu0 %v1175
    %2624 = vmatpush2.bf16.msra.mxu0 %v1174
    %2625 = vmatprep.subr.bf16.mxu0 %v1171
    %2626 = vmatpush2.bf16.msra.mxu0 %v1170
    %2627 = vmatprep.subr.bf16.mxu0 %v1167
    %2628 = vmatpush2.bf16.msra.mxu0 %v1166
    %2629 = vmatprep.subr.bf16.mxu0 %v1163
    %2630 = vmatpush2.bf16.msra.mxu0 %v1162
    %2631 = vmatprep.mubr.bf16.mxu0 %v2557
    %2632 = vmatmul.mubr.bf16.gmra.mxu0 %v2556
    %v2633 = vpop.f32.mrf.mxu0
    %v2634 = vadd.f32 %v559, %v2633
    %v2635 = vpop.f32.mrf.mxu0
    %v2636 = vadd.f32 %v563, %v2635
    %v2637 = vpop.f32.mrf.mxu0
    %v2638 = vpop.f32.mrf.mxu0
    %2639 = vdwg.mxu0
    %v2640 = vsub.f32 0.0, %v2593
    %v2641 = vmul.f32 %v2640, 1.442695
    %v2642 = vpow.pop %v2641
    %v2643 = vadd.f32 %v2642, 1.0
    %v2644 = vrcp.pop %v2643
    %v2645 = vsub.f32 0.0, %v2595
    %v2646 = vmul.f32 %v2645, 1.442695
    %v2647 = vpow.pop %v2646
    %v2648 = vadd.f32 %v2647, 1.0
    %v2649 = vrcp.pop %v2648
    %v2650 = vtanh.pop %v2634
    %v2651 = vsub.f32 0.0, %v2636
    %v2652 = vmul.f32 %v2651, 1.442695
    %v2653 = vpow.pop %v2652
    %v2654 = vadd.f32 %v2653, 1.0
    %v2655 = vrcp.pop %v2654
    %v2656 = vmul.f32 %v2649, %v2441
    %v2657 = vmul.f32 %v2644, %v2650
    %v2658 = vadd.f32 %v2656, %v2657
    %v2659 = vtanh.pop %v2658
    %v2660 = vmul.f32 %v2655, %v2659
    %s2661 = scalar_lea.vmem [#allocation2], 224
    %v2662 = vld [vmem:[%s2661] sm:$0xff]
    %v2663 = vld [vmem:[%s2661 + $0x8] sm:$0xff]
    %v2664 = vld [vmem:[%s2661 + $0x10] sm:$0xff]
    %v2665 = vld [vmem:[%s2661 + $0x18] sm:$0xff]
    %2666 = vmatprep.subr.bf16.mxu0 %v729
    %2667 = vmatpush1.bf16.msra.mxu0 %v728
    %2668 = vmatprep.subr.bf16.mxu0 %v725
    %2669 = vmatpush1.bf16.msra.mxu0 %v724
    %2670 = vmatprep.subr.bf16.mxu0 %v721
    %2671 = vmatpush1.bf16.msra.mxu0 %v720
    %2672 = vmatprep.subr.bf16.mxu0 %v717
    %2673 = vmatpush1.bf16.msra.mxu0 %v716
    %2674 = vmatprep.subr.bf16.mxu0 %v713
    %2675 = vmatpush1.bf16.msra.mxu0 %v712
    %2676 = vmatprep.subr.bf16.mxu0 %v709
    %2677 = vmatpush1.bf16.msra.mxu0 %v708
    %2678 = vmatprep.subr.bf16.mxu0 %v705
    %2679 = vmatpush1.bf16.msra.mxu0 %v704
    %2680 = vmatprep.subr.bf16.mxu0 %v701
    %2681 = vmatpush1.bf16.msra.mxu0 %v700
    %2682 = vmatprep.subr.bf16.mxu0 0
    %2683 = vmatpush2.bf16.msra.mxu0 0
    %2684 = vmatprep.subr.bf16.mxu0 0
    %2685 = vmatpush2.bf16.msra.mxu0 0
    %2686 = vmatprep.subr.bf16.mxu0 0
    %2687 = vmatpush2.bf16.msra.mxu0 0
    %2688 = vmatprep.subr.bf16.mxu0 0
    %2689 = vmatpush2.bf16.msra.mxu0 0
    %2690 = vmatprep.subr.bf16.mxu0 0
    %2691 = vmatpush2.bf16.msra.mxu0 0
    %2692 = vmatprep.subr.bf16.mxu0 0
    %2693 = vmatpush2.bf16.msra.mxu0 0
    %2694 = vmatprep.subr.bf16.mxu0 0
    %2695 = vmatpush2.bf16.msra.mxu0 0
    %2696 = vmatprep.subr.bf16.mxu0 0
    %2697 = vmatpush2.bf16.msra.mxu0 0
    %2698 = vmatprep.mubr.bf16.mxu0 0
    %2699 = vmatmul.mubr.bf16.gmra.mxu0 %v2556
    %v2700 = vpop.f32.mrf.mxu0
    %v2701 = vadd.f32 0.0, %v2700
    %v2702 = vpop.f32.mrf.mxu0
    %v2703 = vadd.f32 0.0, %v2702
    %v2704 = vpop.f32.mrf.mxu0
    %v2705 = vpop.f32.mrf.mxu0
    %2706 = vdwg.mxu0
    %2707 = vmatprep.subr.bf16.mxu0 %v731
    %2708 = vmatpush1.bf16.msra.mxu0 %v730
    %2709 = vmatprep.subr.bf16.mxu0 %v727
    %2710 = vmatpush1.bf16.msra.mxu0 %v726
    %2711 = vmatprep.subr.bf16.mxu0 %v723
    %2712 = vmatpush1.bf16.msra.mxu0 %v722
    %2713 = vmatprep.subr.bf16.mxu0 %v719
    %2714 = vmatpush1.bf16.msra.mxu0 %v718
    %2715 = vmatprep.subr.bf16.mxu0 %v715
    %2716 = vmatpush1.bf16.msra.mxu0 %v714
    %2717 = vmatprep.subr.bf16.mxu0 %v711
    %2718 = vmatpush1.bf16.msra.mxu0 %v710
    %2719 = vmatprep.subr.bf16.mxu0 %v707
    %2720 = vmatpush1.bf16.msra.mxu0 %v706
    %2721 = vmatprep.subr.bf16.mxu0 %v703
    %2722 = vmatpush1.bf16.msra.mxu0 %v702
    %2723 = vmatprep.subr.bf16.mxu0 0
    %2724 = vmatpush2.bf16.msra.mxu0 0
    %2725 = vmatprep.subr.bf16.mxu0 0
    %2726 = vmatpush2.bf16.msra.mxu0 0
    %2727 = vmatprep.subr.bf16.mxu0 0
    %2728 = vmatpush2.bf16.msra.mxu0 0
    %2729 = vmatprep.subr.bf16.mxu0 0
    %2730 = vmatpush2.bf16.msra.mxu0 0
    %2731 = vmatprep.subr.bf16.mxu0 0
    %2732 = vmatpush2.bf16.msra.mxu0 0
    %2733 = vmatprep.subr.bf16.mxu0 0
    %2734 = vmatpush2.bf16.msra.mxu0 0
    %2735 = vmatprep.subr.bf16.mxu0 0
    %2736 = vmatpush2.bf16.msra.mxu0 0
    %2737 = vmatprep.subr.bf16.mxu0 0
    %2738 = vmatpush2.bf16.msra.mxu0 0
    %2739 = vmatprep.mubr.bf16.mxu0 0
    %2740 = vmatmul.mubr.bf16.gmra.mxu0 %v2556
    %v2741 = vpop.f32.mrf.mxu0
    %v2742 = vadd.f32 0.0, %v2741
    %v2743 = vpop.f32.mrf.mxu0
    %v2744 = vadd.f32 0.0, %v2743
    %v2745 = vpop.f32.mrf.mxu0
    %v2746 = vpop.f32.mrf.mxu0
    %2747 = vdwg.mxu0
    %v2748 = vadd.f32 %v2662, %v2701
    %v2749 = vadd.f32 %v2663, %v2703
    %v2750 = vadd.f32 %v2664, %v2742
    %v2751 = vadd.f32 %v2665, %v2744
    %v2752 = vsub.f32 0.0, %v2748
    %v2753 = vmul.f32 %v2752, 1.442695
    %v2754 = vpow.pop %v2753
    %v2755 = vadd.f32 %v2754, 1.0
    %v2756 = vrcp.pop %v2755
    %v2757 = vsub.f32 0.0, %v2749
    %v2758 = vmul.f32 %v2757, 1.442695
    %v2759 = vpow.pop %v2758
    %v2760 = vadd.f32 %v2759, 1.0
    %v2761 = vrcp.pop %v2760
    %v2762 = vtanh.pop %v2750
    %v2763 = vsub.f32 0.0, %v2751
    %v2764 = vmul.f32 %v2763, 1.442695
    %v2765 = vpow.pop %v2764
    %v2766 = vadd.f32 %v2765, 1.0
    %v2767 = vrcp.pop %v2766
    %v2768 = vmul.f32 %v2761, %v2553
    %v2769 = vmul.f32 %v2756, %v2762
    %v2770 = vadd.f32 %v2768, %v2769
    %v2771 = vtanh.pop %v2770
    %v2772 = vmul.f32 %v2767, %v2771
    %v2773 = vpack.c.bf16 %v2772, %v2772
    %v2774 = vpack.c.bf16 %v2660, %v2660
    %2775 = vmatprep.subr.bf16.mxu0 %v1157
    %2776 = vmatpush1.bf16.msra.mxu0 %v1156
    %2777 = vmatprep.subr.bf16.mxu0 %v1153
    %2778 = vmatpush1.bf16.msra.mxu0 %v1152
    %2779 = vmatprep.subr.bf16.mxu0 %v1149
    %2780 = vmatpush1.bf16.msra.mxu0 %v1148
    %2781 = vmatprep.subr.bf16.mxu0 %v1145
    %2782 = vmatpush1.bf16.msra.mxu0 %v1144
    %2783 = vmatprep.subr.bf16.mxu0 %v1141
    %2784 = vmatpush1.bf16.msra.mxu0 %v1140
    %2785 = vmatprep.subr.bf16.mxu0 %v1137
    %2786 = vmatpush1.bf16.msra.mxu0 %v1136
    %2787 = vmatprep.subr.bf16.mxu0 %v1133
    %2788 = vmatpush1.bf16.msra.mxu0 %v1132
    %2789 = vmatprep.subr.bf16.mxu0 %v1129
    %2790 = vmatpush1.bf16.msra.mxu0 %v1128
    %2791 = vmatprep.subr.bf16.mxu0 %v1189
    %2792 = vmatpush2.bf16.msra.mxu0 %v1188
    %2793 = vmatprep.subr.bf16.mxu0 %v1185
    %2794 = vmatpush2.bf16.msra.mxu0 %v1184
    %2795 = vmatprep.subr.bf16.mxu0 %v1181
    %2796 = vmatpush2.bf16.msra.mxu0 %v1180
    %2797 = vmatprep.subr.bf16.mxu0 %v1177
    %2798 = vmatpush2.bf16.msra.mxu0 %v1176
    %2799 = vmatprep.subr.bf16.mxu0 %v1173
    %2800 = vmatpush2.bf16.msra.mxu0 %v1172
    %2801 = vmatprep.subr.bf16.mxu0 %v1169
    %2802 = vmatpush2.bf16.msra.mxu0 %v1168
    %2803 = vmatprep.subr.bf16.mxu0 %v1165
    %2804 = vmatpush2.bf16.msra.mxu0 %v1164
    %2805 = vmatprep.subr.bf16.mxu0 %v1161
    %2806 = vmatpush2.bf16.msra.mxu0 %v1160
    %2807 = vmatprep.mubr.bf16.mxu0 %v2774
    %2808 = vmatmul.mubr.bf16.gmra.mxu0 %v2773
    %v2809 = vpop.f32.mrf.mxu0
    %v2810 = vadd.f32 %v551, %v2809
    %v2811 = vpop.f32.mrf.mxu0
    %v2812 = vadd.f32 %v555, %v2811
    %v2813 = vpop.f32.mrf.mxu0
    %v2814 = vpop.f32.mrf.mxu0
    %2815 = vdwg.mxu0
    %2816 = vmatprep.subr.bf16.mxu0 %v1159
    %2817 = vmatpush1.bf16.msra.mxu0 %v1158
    %2818 = vmatprep.subr.bf16.mxu0 %v1155
    %2819 = vmatpush1.bf16.msra.mxu0 %v1154
    %2820 = vmatprep.subr.bf16.mxu0 %v1151
    %2821 = vmatpush1.bf16.msra.mxu0 %v1150
    %2822 = vmatprep.subr.bf16.mxu0 %v1147
    %2823 = vmatpush1.bf16.msra.mxu0 %v1146
    %2824 = vmatprep.subr.bf16.mxu0 %v1143
    %2825 = vmatpush1.bf16.msra.mxu0 %v1142
    %2826 = vmatprep.subr.bf16.mxu0 %v1139
    %2827 = vmatpush1.bf16.msra.mxu0 %v1138
    %2828 = vmatprep.subr.bf16.mxu0 %v1135
    %2829 = vmatpush1.bf16.msra.mxu0 %v1134
    %2830 = vmatprep.subr.bf16.mxu0 %v1131
    %2831 = vmatpush1.bf16.msra.mxu0 %v1130
    %2832 = vmatprep.subr.bf16.mxu0 %v1191
    %2833 = vmatpush2.bf16.msra.mxu0 %v1190
    %2834 = vmatprep.subr.bf16.mxu0 %v1187
    %2835 = vmatpush2.bf16.msra.mxu0 %v1186
    %2836 = vmatprep.subr.bf16.mxu0 %v1183
    %2837 = vmatpush2.bf16.msra.mxu0 %v1182
    %2838 = vmatprep.subr.bf16.mxu0 %v1179
    %2839 = vmatpush2.bf16.msra.mxu0 %v1178
    %2840 = vmatprep.subr.bf16.mxu0 %v1175
    %2841 = vmatpush2.bf16.msra.mxu0 %v1174
    %2842 = vmatprep.subr.bf16.mxu0 %v1171
    %2843 = vmatpush2.bf16.msra.mxu0 %v1170
    %2844 = vmatprep.subr.bf16.mxu0 %v1167
    %2845 = vmatpush2.bf16.msra.mxu0 %v1166
    %2846 = vmatprep.subr.bf16.mxu0 %v1163
    %2847 = vmatpush2.bf16.msra.mxu0 %v1162
    %2848 = vmatprep.mubr.bf16.mxu0 %v2774
    %2849 = vmatmul.mubr.bf16.gmra.mxu0 %v2773
    %v2850 = vpop.f32.mrf.mxu0
    %v2851 = vadd.f32 %v559, %v2850
    %v2852 = vpop.f32.mrf.mxu0
    %v2853 = vadd.f32 %v563, %v2852
    %v2854 = vpop.f32.mrf.mxu0
    %v2855 = vpop.f32.mrf.mxu0
    %2856 = vdwg.mxu0
    %v2857 = vsub.f32 0.0, %v2810
    %v2858 = vmul.f32 %v2857, 1.442695
    %v2859 = vpow.pop %v2858
    %v2860 = vadd.f32 %v2859, 1.0
    %v2861 = vrcp.pop %v2860
    %v2862 = vsub.f32 0.0, %v2812
    %v2863 = vmul.f32 %v2862, 1.442695
    %v2864 = vpow.pop %v2863
    %v2865 = vadd.f32 %v2864, 1.0
    %v2866 = vrcp.pop %v2865
    %v2867 = vtanh.pop %v2851
    %v2868 = vsub.f32 0.0, %v2853
    %v2869 = vmul.f32 %v2868, 1.442695
    %v2870 = vpow.pop %v2869
    %v2871 = vadd.f32 %v2870, 1.0
    %v2872 = vrcp.pop %v2871
    %v2873 = vmul.f32 %v2866, %v2658
    %v2874 = vmul.f32 %v2861, %v2867
    %v2875 = vadd.f32 %v2873, %v2874
    %v2876 = vtanh.pop %v2875
    %v2877 = vmul.f32 %v2872, %v2876
    %s2878 = scalar_lea.vmem [#allocation2], 256
    %v2879 = vld [vmem:[%s2878] sm:$0xff]
    %v2880 = vld [vmem:[%s2878 + $0x8] sm:$0xff]
    %v2881 = vld [vmem:[%s2878 + $0x10] sm:$0xff]
    %v2882 = vld [vmem:[%s2878 + $0x18] sm:$0xff]
    %2883 = vmatprep.subr.bf16.mxu0 %v729
    %2884 = vmatpush1.bf16.msra.mxu0 %v728
    %2885 = vmatprep.subr.bf16.mxu0 %v725
    %2886 = vmatpush1.bf16.msra.mxu0 %v724
    %2887 = vmatprep.subr.bf16.mxu0 %v721
    %2888 = vmatpush1.bf16.msra.mxu0 %v720
    %2889 = vmatprep.subr.bf16.mxu0 %v717
    %2890 = vmatpush1.bf16.msra.mxu0 %v716
    %2891 = vmatprep.subr.bf16.mxu0 %v713
    %2892 = vmatpush1.bf16.msra.mxu0 %v712
    %2893 = vmatprep.subr.bf16.mxu0 %v709
    %2894 = vmatpush1.bf16.msra.mxu0 %v708
    %2895 = vmatprep.subr.bf16.mxu0 %v705
    %2896 = vmatpush1.bf16.msra.mxu0 %v704
    %2897 = vmatprep.subr.bf16.mxu0 %v701
    %2898 = vmatpush1.bf16.msra.mxu0 %v700
    %2899 = vmatprep.subr.bf16.mxu0 0
    %2900 = vmatpush2.bf16.msra.mxu0 0
    %2901 = vmatprep.subr.bf16.mxu0 0
    %2902 = vmatpush2.bf16.msra.mxu0 0
    %2903 = vmatprep.subr.bf16.mxu0 0
    %2904 = vmatpush2.bf16.msra.mxu0 0
    %2905 = vmatprep.subr.bf16.mxu0 0
    %2906 = vmatpush2.bf16.msra.mxu0 0
    %2907 = vmatprep.subr.bf16.mxu0 0
    %2908 = vmatpush2.bf16.msra.mxu0 0
    %2909 = vmatprep.subr.bf16.mxu0 0
    %2910 = vmatpush2.bf16.msra.mxu0 0
    %2911 = vmatprep.subr.bf16.mxu0 0
    %2912 = vmatpush2.bf16.msra.mxu0 0
    %2913 = vmatprep.subr.bf16.mxu0 0
    %2914 = vmatpush2.bf16.msra.mxu0 0
    %2915 = vmatprep.mubr.bf16.mxu0 0
    %2916 = vmatmul.mubr.bf16.gmra.mxu0 %v2773
    %v2917 = vpop.f32.mrf.mxu0
    %v2918 = vadd.f32 0.0, %v2917
    %v2919 = vpop.f32.mrf.mxu0
    %v2920 = vadd.f32 0.0, %v2919
    %v2921 = vpop.f32.mrf.mxu0
    %v2922 = vpop.f32.mrf.mxu0
    %2923 = vdwg.mxu0
    %2924 = vmatprep.subr.bf16.mxu0 %v731
    %2925 = vmatpush1.bf16.msra.mxu0 %v730
    %2926 = vmatprep.subr.bf16.mxu0 %v727
    %2927 = vmatpush1.bf16.msra.mxu0 %v726
    %2928 = vmatprep.subr.bf16.mxu0 %v723
    %2929 = vmatpush1.bf16.msra.mxu0 %v722
    %2930 = vmatprep.subr.bf16.mxu0 %v719
    %2931 = vmatpush1.bf16.msra.mxu0 %v718
    %2932 = vmatprep.subr.bf16.mxu0 %v715
    %2933 = vmatpush1.bf16.msra.mxu0 %v714
    %2934 = vmatprep.subr.bf16.mxu0 %v711
    %2935 = vmatpush1.bf16.msra.mxu0 %v710
    %2936 = vmatprep.subr.bf16.mxu0 %v707
    %2937 = vmatpush1.bf16.msra.mxu0 %v706
    %2938 = vmatprep.subr.bf16.mxu0 %v703
    %2939 = vmatpush1.bf16.msra.mxu0 %v702
    %2940 = vmatprep.subr.bf16.mxu0 0
    %2941 = vmatpush2.bf16.msra.mxu0 0
    %2942 = vmatprep.subr.bf16.mxu0 0
    %2943 = vmatpush2.bf16.msra.mxu0 0
    %2944 = vmatprep.subr.bf16.mxu0 0
    %2945 = vmatpush2.bf16.msra.mxu0 0
    %2946 = vmatprep.subr.bf16.mxu0 0
    %2947 = vmatpush2.bf16.msra.mxu0 0
    %2948 = vmatprep.subr.bf16.mxu0 0
    %2949 = vmatpush2.bf16.msra.mxu0 0
    %2950 = vmatprep.subr.bf16.mxu0 0
    %2951 = vmatpush2.bf16.msra.mxu0 0
    %2952 = vmatprep.subr.bf16.mxu0 0
    %2953 = vmatpush2.bf16.msra.mxu0 0
    %2954 = vmatprep.subr.bf16.mxu0 0
    %2955 = vmatpush2.bf16.msra.mxu0 0
    %2956 = vmatprep.mubr.bf16.mxu0 0
    %2957 = vmatmul.mubr.bf16.gmra.mxu0 %v2773
    %v2958 = vpop.f32.mrf.mxu0
    %v2959 = vadd.f32 0.0, %v2958
    %v2960 = vpop.f32.mrf.mxu0
    %v2961 = vadd.f32 0.0, %v2960
    %v2962 = vpop.f32.mrf.mxu0
    %v2963 = vpop.f32.mrf.mxu0
    %2964 = vdwg.mxu0
    %v2965 = vadd.f32 %v2879, %v2918
    %v2966 = vadd.f32 %v2880, %v2920
    %v2967 = vadd.f32 %v2881, %v2959
    %v2968 = vadd.f32 %v2882, %v2961
    %v2969 = vsub.f32 0.0, %v2965
    %v2970 = vmul.f32 %v2969, 1.442695
    %v2971 = vpow.pop %v2970
    %v2972 = vadd.f32 %v2971, 1.0
    %v2973 = vrcp.pop %v2972
    %v2974 = vsub.f32 0.0, %v2966
    %v2975 = vmul.f32 %v2974, 1.442695
    %v2976 = vpow.pop %v2975
    %v2977 = vadd.f32 %v2976, 1.0
    %v2978 = vrcp.pop %v2977
    %v2979 = vtanh.pop %v2967
    %v2980 = vsub.f32 0.0, %v2968
    %v2981 = vmul.f32 %v2980, 1.442695
    %v2982 = vpow.pop %v2981
    %v2983 = vadd.f32 %v2982, 1.0
    %v2984 = vrcp.pop %v2983
    %v2985 = vmul.f32 %v2978, %v2770
    %v2986 = vmul.f32 %v2973, %v2979
    %v2987 = vadd.f32 %v2985, %v2986
    %v2988 = vtanh.pop %v2987
    %v2989 = vmul.f32 %v2984, %v2988
    %v2990 = vpack.c.bf16 %v2989, %v2989
    %v2991 = vpack.c.bf16 %v2877, %v2877
    %2992 = vmatprep.subr.bf16.mxu0 %v1157
    %2993 = vmatpush1.bf16.msra.mxu0 %v1156
    %2994 = vmatprep.subr.bf16.mxu0 %v1153
    %2995 = vmatpush1.bf16.msra.mxu0 %v1152
    %2996 = vmatprep.subr.bf16.mxu0 %v1149
    %2997 = vmatpush1.bf16.msra.mxu0 %v1148
    %2998 = vmatprep.subr.bf16.mxu0 %v1145
    %2999 = vmatpush1.bf16.msra.mxu0 %v1144
    %3000 = vmatprep.subr.bf16.mxu0 %v1141
    %3001 = vmatpush1.bf16.msra.mxu0 %v1140
    %3002 = vmatprep.subr.bf16.mxu0 %v1137
    %3003 = vmatpush1.bf16.msra.mxu0 %v1136
    %3004 = vmatprep.subr.bf16.mxu0 %v1133
    %3005 = vmatpush1.bf16.msra.mxu0 %v1132
    %3006 = vmatprep.subr.bf16.mxu0 %v1129
    %3007 = vmatpush1.bf16.msra.mxu0 %v1128
    %3008 = vmatprep.subr.bf16.mxu0 %v1189
    %3009 = vmatpush2.bf16.msra.mxu0 %v1188
    %3010 = vmatprep.subr.bf16.mxu0 %v1185
    %3011 = vmatpush2.bf16.msra.mxu0 %v1184
    %3012 = vmatprep.subr.bf16.mxu0 %v1181
    %3013 = vmatpush2.bf16.msra.mxu0 %v1180
    %3014 = vmatprep.subr.bf16.mxu0 %v1177
    %3015 = vmatpush2.bf16.msra.mxu0 %v1176
    %3016 = vmatprep.subr.bf16.mxu0 %v1173
    %3017 = vmatpush2.bf16.msra.mxu0 %v1172
    %3018 = vmatprep.subr.bf16.mxu0 %v1169
    %3019 = vmatpush2.bf16.msra.mxu0 %v1168
    %3020 = vmatprep.subr.bf16.mxu0 %v1165
    %3021 = vmatpush2.bf16.msra.mxu0 %v1164
    %3022 = vmatprep.subr.bf16.mxu0 %v1161
    %3023 = vmatpush2.bf16.msra.mxu0 %v1160
    %3024 = vmatprep.mubr.bf16.mxu0 %v2991
    %3025 = vmatmul.mubr.bf16.gmra.mxu0 %v2990
    %v3026 = vpop.f32.mrf.mxu0
    %v3027 = vadd.f32 %v551, %v3026
    %v3028 = vpop.f32.mrf.mxu0
    %v3029 = vadd.f32 %v555, %v3028
    %v3030 = vpop.f32.mrf.mxu0
    %v3031 = vpop.f32.mrf.mxu0
    %3032 = vdwg.mxu0
    %3033 = vmatprep.subr.bf16.mxu0 %v1159
    %3034 = vmatpush1.bf16.msra.mxu0 %v1158
    %3035 = vmatprep.subr.bf16.mxu0 %v1155
    %3036 = vmatpush1.bf16.msra.mxu0 %v1154
    %3037 = vmatprep.subr.bf16.mxu0 %v1151
    %3038 = vmatpush1.bf16.msra.mxu0 %v1150
    %3039 = vmatprep.subr.bf16.mxu0 %v1147
    %3040 = vmatpush1.bf16.msra.mxu0 %v1146
    %3041 = vmatprep.subr.bf16.mxu0 %v1143
    %3042 = vmatpush1.bf16.msra.mxu0 %v1142
    %3043 = vmatprep.subr.bf16.mxu0 %v1139
    %3044 = vmatpush1.bf16.msra.mxu0 %v1138
    %3045 = vmatprep.subr.bf16.mxu0 %v1135
    %3046 = vmatpush1.bf16.msra.mxu0 %v1134
    %3047 = vmatprep.subr.bf16.mxu0 %v1131
    %3048 = vmatpush1.bf16.msra.mxu0 %v1130
    %3049 = vmatprep.subr.bf16.mxu0 %v1191
    %3050 = vmatpush2.bf16.msra.mxu0 %v1190
    %3051 = vmatprep.subr.bf16.mxu0 %v1187
    %3052 = vmatpush2.bf16.msra.mxu0 %v1186
    %3053 = vmatprep.subr.bf16.mxu0 %v1183
    %3054 = vmatpush2.bf16.msra.mxu0 %v1182
    %3055 = vmatprep.subr.bf16.mxu0 %v1179
    %3056 = vmatpush2.bf16.msra.mxu0 %v1178
    %3057 = vmatprep.subr.bf16.mxu0 %v1175
    %3058 = vmatpush2.bf16.msra.mxu0 %v1174
    %3059 = vmatprep.subr.bf16.mxu0 %v1171
    %3060 = vmatpush2.bf16.msra.mxu0 %v1170
    %3061 = vmatprep.subr.bf16.mxu0 %v1167
    %3062 = vmatpush2.bf16.msra.mxu0 %v1166
    %3063 = vmatprep.subr.bf16.mxu0 %v1163
    %3064 = vmatpush2.bf16.msra.mxu0 %v1162
    %3065 = vmatprep.mubr.bf16.mxu0 %v2991
    %3066 = vmatmul.mubr.bf16.gmra.mxu0 %v2990
    %v3067 = vpop.f32.mrf.mxu0
    %v3068 = vadd.f32 %v559, %v3067
    %v3069 = vpop.f32.mrf.mxu0
    %v3070 = vadd.f32 %v563, %v3069
    %v3071 = vpop.f32.mrf.mxu0
    %v3072 = vpop.f32.mrf.mxu0
    %3073 = vdwg.mxu0
    %v3074 = vsub.f32 0.0, %v3027
    %v3075 = vmul.f32 %v3074, 1.442695
    %v3076 = vpow.pop %v3075
    %v3077 = vadd.f32 %v3076, 1.0
    %v3078 = vrcp.pop %v3077
    %v3079 = vsub.f32 0.0, %v3029
    %v3080 = vmul.f32 %v3079, 1.442695
    %v3081 = vpow.pop %v3080
    %v3082 = vadd.f32 %v3081, 1.0
    %v3083 = vrcp.pop %v3082
    %v3084 = vtanh.pop %v3068
    %v3085 = vsub.f32 0.0, %v3070
    %v3086 = vmul.f32 %v3085, 1.442695
    %v3087 = vpow.pop %v3086
    %v3088 = vadd.f32 %v3087, 1.0
    %v3089 = vrcp.pop %v3088
    %v3090 = vmul.f32 %v3083, %v2875
    %v3091 = vmul.f32 %v3078, %v3084
    %v3092 = vadd.f32 %v3090, %v3091
    %v3093 = vtanh.pop %v3092
    %v3094 = vmul.f32 %v3089, %v3093
    %s3095 = scalar_lea.vmem [#allocation2], 288
    %v3096 = vld [vmem:[%s3095] sm:$0xff]
    %v3097 = vld [vmem:[%s3095 + $0x8] sm:$0xff]
    %v3098 = vld [vmem:[%s3095 + $0x10] sm:$0xff]
    %v3099 = vld [vmem:[%s3095 + $0x18] sm:$0xff]
    %3100 = vmatprep.subr.bf16.mxu0 %v729
    %3101 = vmatpush1.bf16.msra.mxu0 %v728
    %3102 = vmatprep.subr.bf16.mxu0 %v725
    %3103 = vmatpush1.bf16.msra.mxu0 %v724
    %3104 = vmatprep.subr.bf16.mxu0 %v721
    %3105 = vmatpush1.bf16.msra.mxu0 %v720
    %3106 = vmatprep.subr.bf16.mxu0 %v717
    %3107 = vmatpush1.bf16.msra.mxu0 %v716
    %3108 = vmatprep.subr.bf16.mxu0 %v713
    %3109 = vmatpush1.bf16.msra.mxu0 %v712
    %3110 = vmatprep.subr.bf16.mxu0 %v709
    %3111 = vmatpush1.bf16.msra.mxu0 %v708
    %3112 = vmatprep.subr.bf16.mxu0 %v705
    %3113 = vmatpush1.bf16.msra.mxu0 %v704
    %3114 = vmatprep.subr.bf16.mxu0 %v701
    %3115 = vmatpush1.bf16.msra.mxu0 %v700
    %3116 = vmatprep.subr.bf16.mxu0 0
    %3117 = vmatpush2.bf16.msra.mxu0 0
    %3118 = vmatprep.subr.bf16.mxu0 0
    %3119 = vmatpush2.bf16.msra.mxu0 0
    %3120 = vmatprep.subr.bf16.mxu0 0
    %3121 = vmatpush2.bf16.msra.mxu0 0
    %3122 = vmatprep.subr.bf16.mxu0 0
    %3123 = vmatpush2.bf16.msra.mxu0 0
    %3124 = vmatprep.subr.bf16.mxu0 0
    %3125 = vmatpush2.bf16.msra.mxu0 0
    %3126 = vmatprep.subr.bf16.mxu0 0
    %3127 = vmatpush2.bf16.msra.mxu0 0
    %3128 = vmatprep.subr.bf16.mxu0 0
    %3129 = vmatpush2.bf16.msra.mxu0 0
    %3130 = vmatprep.subr.bf16.mxu0 0
    %3131 = vmatpush2.bf16.msra.mxu0 0
    %3132 = vmatprep.mubr.bf16.mxu0 0
    %3133 = vmatmul.mubr.bf16.gmra.mxu0 %v2990
    %v3134 = vpop.f32.mrf.mxu0
    %v3135 = vadd.f32 0.0, %v3134
    %v3136 = vpop.f32.mrf.mxu0
    %v3137 = vadd.f32 0.0, %v3136
    %v3138 = vpop.f32.mrf.mxu0
    %v3139 = vpop.f32.mrf.mxu0
    %3140 = vdwg.mxu0
    %3141 = vmatprep.subr.bf16.mxu0 %v731
    %3142 = vmatpush1.bf16.msra.mxu0 %v730
    %3143 = vmatprep.subr.bf16.mxu0 %v727
    %3144 = vmatpush1.bf16.msra.mxu0 %v726
    %3145 = vmatprep.subr.bf16.mxu0 %v723
    %3146 = vmatpush1.bf16.msra.mxu0 %v722
    %3147 = vmatprep.subr.bf16.mxu0 %v719
    %3148 = vmatpush1.bf16.msra.mxu0 %v718
    %3149 = vmatprep.subr.bf16.mxu0 %v715
    %3150 = vmatpush1.bf16.msra.mxu0 %v714
    %3151 = vmatprep.subr.bf16.mxu0 %v711
    %3152 = vmatpush1.bf16.msra.mxu0 %v710
    %3153 = vmatprep.subr.bf16.mxu0 %v707
    %3154 = vmatpush1.bf16.msra.mxu0 %v706
    %3155 = vmatprep.subr.bf16.mxu0 %v703
    %3156 = vmatpush1.bf16.msra.mxu0 %v702
    %3157 = vmatprep.subr.bf16.mxu0 0
    %3158 = vmatpush2.bf16.msra.mxu0 0
    %3159 = vmatprep.subr.bf16.mxu0 0
    %3160 = vmatpush2.bf16.msra.mxu0 0
    %3161 = vmatprep.subr.bf16.mxu0 0
    %3162 = vmatpush2.bf16.msra.mxu0 0
    %3163 = vmatprep.subr.bf16.mxu0 0
    %3164 = vmatpush2.bf16.msra.mxu0 0
    %3165 = vmatprep.subr.bf16.mxu0 0
    %3166 = vmatpush2.bf16.msra.mxu0 0
    %3167 = vmatprep.subr.bf16.mxu0 0
    %3168 = vmatpush2.bf16.msra.mxu0 0
    %3169 = vmatprep.subr.bf16.mxu0 0
    %3170 = vmatpush2.bf16.msra.mxu0 0
    %3171 = vmatprep.subr.bf16.mxu0 0
    %3172 = vmatpush2.bf16.msra.mxu0 0
    %3173 = vmatprep.mubr.bf16.mxu0 0
    %3174 = vmatmul.mubr.bf16.gmra.mxu0 %v2990
    %v3175 = vpop.f32.mrf.mxu0
    %v3176 = vadd.f32 0.0, %v3175
    %v3177 = vpop.f32.mrf.mxu0
    %v3178 = vadd.f32 0.0, %v3177
    %v3179 = vpop.f32.mrf.mxu0
    %v3180 = vpop.f32.mrf.mxu0
    %3181 = vdwg.mxu0
    %v3182 = vadd.f32 %v3096, %v3135
    %v3183 = vadd.f32 %v3097, %v3137
    %v3184 = vadd.f32 %v3098, %v3176
    %v3185 = vadd.f32 %v3099, %v3178
    %v3186 = vsub.f32 0.0, %v3182
    %v3187 = vmul.f32 %v3186, 1.442695
    %v3188 = vpow.pop %v3187
    %v3189 = vadd.f32 %v3188, 1.0
    %v3190 = vrcp.pop %v3189
    %v3191 = vsub.f32 0.0, %v3183
    %v3192 = vmul.f32 %v3191, 1.442695
    %v3193 = vpow.pop %v3192
    %v3194 = vadd.f32 %v3193, 1.0
    %v3195 = vrcp.pop %v3194
    %v3196 = vtanh.pop %v3184
    %v3197 = vsub.f32 0.0, %v3185
    %v3198 = vmul.f32 %v3197, 1.442695
    %v3199 = vpow.pop %v3198
    %v3200 = vadd.f32 %v3199, 1.0
    %v3201 = vrcp.pop %v3200
    %v3202 = vmul.f32 %v3195, %v2987
    %v3203 = vmul.f32 %v3190, %v3196
    %v3204 = vadd.f32 %v3202, %v3203
    %v3205 = vtanh.pop %v3204
    %v3206 = vmul.f32 %v3201, %v3205
    %v3207 = vpack.c.bf16 %v3206, %v3206
    %v3208 = vpack.c.bf16 %v3094, %v3094
    %3209 = vmatprep.subr.bf16.mxu0 %v1157
    %3210 = vmatpush1.bf16.msra.mxu0 %v1156
    %3211 = vmatprep.subr.bf16.mxu0 %v1153
    %3212 = vmatpush1.bf16.msra.mxu0 %v1152
    %3213 = vmatprep.subr.bf16.mxu0 %v1149
    %3214 = vmatpush1.bf16.msra.mxu0 %v1148
    %3215 = vmatprep.subr.bf16.mxu0 %v1145
    %3216 = vmatpush1.bf16.msra.mxu0 %v1144
    %3217 = vmatprep.subr.bf16.mxu0 %v1141
    %3218 = vmatpush1.bf16.msra.mxu0 %v1140
    %3219 = vmatprep.subr.bf16.mxu0 %v1137
    %3220 = vmatpush1.bf16.msra.mxu0 %v1136
    %3221 = vmatprep.subr.bf16.mxu0 %v1133
    %3222 = vmatpush1.bf16.msra.mxu0 %v1132
    %3223 = vmatprep.subr.bf16.mxu0 %v1129
    %3224 = vmatpush1.bf16.msra.mxu0 %v1128
    %3225 = vmatprep.subr.bf16.mxu0 %v1189
    %3226 = vmatpush2.bf16.msra.mxu0 %v1188
    %3227 = vmatprep.subr.bf16.mxu0 %v1185
    %3228 = vmatpush2.bf16.msra.mxu0 %v1184
    %3229 = vmatprep.subr.bf16.mxu0 %v1181
    %3230 = vmatpush2.bf16.msra.mxu0 %v1180
    %3231 = vmatprep.subr.bf16.mxu0 %v1177
    %3232 = vmatpush2.bf16.msra.mxu0 %v1176
    %3233 = vmatprep.subr.bf16.mxu0 %v1173
    %3234 = vmatpush2.bf16.msra.mxu0 %v1172
    %3235 = vmatprep.subr.bf16.mxu0 %v1169
    %3236 = vmatpush2.bf16.msra.mxu0 %v1168
    %3237 = vmatprep.subr.bf16.mxu0 %v1165
    %3238 = vmatpush2.bf16.msra.mxu0 %v1164
    %3239 = vmatprep.subr.bf16.mxu0 %v1161
    %3240 = vmatpush2.bf16.msra.mxu0 %v1160
    %3241 = vmatprep.mubr.bf16.mxu0 %v3208
    %3242 = vmatmul.mubr.bf16.gmra.mxu0 %v3207
    %v3243 = vpop.f32.mrf.mxu0
    %v3244 = vadd.f32 %v551, %v3243
    %v3245 = vpop.f32.mrf.mxu0
    %v3246 = vadd.f32 %v555, %v3245
    %v3247 = vpop.f32.mrf.mxu0
    %v3248 = vpop.f32.mrf.mxu0
    %3249 = vdwg.mxu0
    %3250 = vmatprep.subr.bf16.mxu0 %v1159
    %3251 = vmatpush1.bf16.msra.mxu0 %v1158
    %3252 = vmatprep.subr.bf16.mxu0 %v1155
    %3253 = vmatpush1.bf16.msra.mxu0 %v1154
    %3254 = vmatprep.subr.bf16.mxu0 %v1151
    %3255 = vmatpush1.bf16.msra.mxu0 %v1150
    %3256 = vmatprep.subr.bf16.mxu0 %v1147
    %3257 = vmatpush1.bf16.msra.mxu0 %v1146
    %3258 = vmatprep.subr.bf16.mxu0 %v1143
    %3259 = vmatpush1.bf16.msra.mxu0 %v1142
    %3260 = vmatprep.subr.bf16.mxu0 %v1139
    %3261 = vmatpush1.bf16.msra.mxu0 %v1138
    %3262 = vmatprep.subr.bf16.mxu0 %v1135
    %3263 = vmatpush1.bf16.msra.mxu0 %v1134
    %3264 = vmatprep.subr.bf16.mxu0 %v1131
    %3265 = vmatpush1.bf16.msra.mxu0 %v1130
    %3266 = vmatprep.subr.bf16.mxu0 %v1191
    %3267 = vmatpush2.bf16.msra.mxu0 %v1190
    %3268 = vmatprep.subr.bf16.mxu0 %v1187
    %3269 = vmatpush2.bf16.msra.mxu0 %v1186
    %3270 = vmatprep.subr.bf16.mxu0 %v1183
    %3271 = vmatpush2.bf16.msra.mxu0 %v1182
    %3272 = vmatprep.subr.bf16.mxu0 %v1179
    %3273 = vmatpush2.bf16.msra.mxu0 %v1178
    %3274 = vmatprep.subr.bf16.mxu0 %v1175
    %3275 = vmatpush2.bf16.msra.mxu0 %v1174
    %3276 = vmatprep.subr.bf16.mxu0 %v1171
    %3277 = vmatpush2.bf16.msra.mxu0 %v1170
    %3278 = vmatprep.subr.bf16.mxu0 %v1167
    %3279 = vmatpush2.bf16.msra.mxu0 %v1166
    %3280 = vmatprep.subr.bf16.mxu0 %v1163
    %3281 = vmatpush2.bf16.msra.mxu0 %v1162
    %3282 = vmatprep.mubr.bf16.mxu0 %v3208
    %3283 = vmatmul.mubr.bf16.gmra.mxu0 %v3207
    %v3284 = vpop.f32.mrf.mxu0
    %v3285 = vadd.f32 %v559, %v3284
    %v3286 = vpop.f32.mrf.mxu0
    %v3287 = vadd.f32 %v563, %v3286
    %v3288 = vpop.f32.mrf.mxu0
    %v3289 = vpop.f32.mrf.mxu0
    %3290 = vdwg.mxu0
    %v3291 = vsub.f32 0.0, %v3244
    %v3292 = vmul.f32 %v3291, 1.442695
    %v3293 = vpow.pop %v3292
    %v3294 = vadd.f32 %v3293, 1.0
    %v3295 = vrcp.pop %v3294
    %v3296 = vsub.f32 0.0, %v3246
    %v3297 = vmul.f32 %v3296, 1.442695
    %v3298 = vpow.pop %v3297
    %v3299 = vadd.f32 %v3298, 1.0
    %v3300 = vrcp.pop %v3299
    %v3301 = vtanh.pop %v3285
    %v3302 = vsub.f32 0.0, %v3287
    %v3303 = vmul.f32 %v3302, 1.442695
    %v3304 = vpow.pop %v3303
    %v3305 = vadd.f32 %v3304, 1.0
    %v3306 = vrcp.pop %v3305
    %v3307 = vmul.f32 %v3300, %v3092
    %v3308 = vmul.f32 %v3295, %v3301
    %v3309 = vadd.f32 %v3307, %v3308
    %v3310 = vtanh.pop %v3309
    %v3311 = vmul.f32 %v3306, %v3310
    %s3312 = scalar_lea.vmem [#allocation2], 320
    %v3313 = vld [vmem:[%s3312] sm:$0xff]
    %v3314 = vld [vmem:[%s3312 + $0x8] sm:$0xff]
    %v3315 = vld [vmem:[%s3312 + $0x10] sm:$0xff]
    %v3316 = vld [vmem:[%s3312 + $0x18] sm:$0xff]
    %3317 = vmatprep.subr.bf16.mxu0 %v729
    %3318 = vmatpush1.bf16.msra.mxu0 %v728
    %3319 = vmatprep.subr.bf16.mxu0 %v725
    %3320 = vmatpush1.bf16.msra.mxu0 %v724
    %3321 = vmatprep.subr.bf16.mxu0 %v721
    %3322 = vmatpush1.bf16.msra.mxu0 %v720
    %3323 = vmatprep.subr.bf16.mxu0 %v717
    %3324 = vmatpush1.bf16.msra.mxu0 %v716
    %3325 = vmatprep.subr.bf16.mxu0 %v713
    %3326 = vmatpush1.bf16.msra.mxu0 %v712
    %3327 = vmatprep.subr.bf16.mxu0 %v709
    %3328 = vmatpush1.bf16.msra.mxu0 %v708
    %3329 = vmatprep.subr.bf16.mxu0 %v705
    %3330 = vmatpush1.bf16.msra.mxu0 %v704
    %3331 = vmatprep.subr.bf16.mxu0 %v701
    %3332 = vmatpush1.bf16.msra.mxu0 %v700
    %3333 = vmatprep.subr.bf16.mxu0 0
    %3334 = vmatpush2.bf16.msra.mxu0 0
    %3335 = vmatprep.subr.bf16.mxu0 0
    %3336 = vmatpush2.bf16.msra.mxu0 0
    %3337 = vmatprep.subr.bf16.mxu0 0
    %3338 = vmatpush2.bf16.msra.mxu0 0
    %3339 = vmatprep.subr.bf16.mxu0 0
    %3340 = vmatpush2.bf16.msra.mxu0 0
    %3341 = vmatprep.subr.bf16.mxu0 0
    %3342 = vmatpush2.bf16.msra.mxu0 0
    %3343 = vmatprep.subr.bf16.mxu0 0
    %3344 = vmatpush2.bf16.msra.mxu0 0
    %3345 = vmatprep.subr.bf16.mxu0 0
    %3346 = vmatpush2.bf16.msra.mxu0 0
    %3347 = vmatprep.subr.bf16.mxu0 0
    %3348 = vmatpush2.bf16.msra.mxu0 0
    %3349 = vmatprep.mubr.bf16.mxu0 0
    %3350 = vmatmul.mubr.bf16.gmra.mxu0 %v3207
    %v3351 = vpop.f32.mrf.mxu0
    %v3352 = vadd.f32 0.0, %v3351
    %v3353 = vpop.f32.mrf.mxu0
    %v3354 = vadd.f32 0.0, %v3353
    %v3355 = vpop.f32.mrf.mxu0
    %v3356 = vpop.f32.mrf.mxu0
    %3357 = vdwg.mxu0
    %3358 = vmatprep.subr.bf16.mxu0 %v731
    %3359 = vmatpush1.bf16.msra.mxu0 %v730
    %3360 = vmatprep.subr.bf16.mxu0 %v727
    %3361 = vmatpush1.bf16.msra.mxu0 %v726
    %3362 = vmatprep.subr.bf16.mxu0 %v723
    %3363 = vmatpush1.bf16.msra.mxu0 %v722
    %3364 = vmatprep.subr.bf16.mxu0 %v719
    %3365 = vmatpush1.bf16.msra.mxu0 %v718
    %3366 = vmatprep.subr.bf16.mxu0 %v715
    %3367 = vmatpush1.bf16.msra.mxu0 %v714
    %3368 = vmatprep.subr.bf16.mxu0 %v711
    %3369 = vmatpush1.bf16.msra.mxu0 %v710
    %3370 = vmatprep.subr.bf16.mxu0 %v707
    %3371 = vmatpush1.bf16.msra.mxu0 %v706
    %3372 = vmatprep.subr.bf16.mxu0 %v703
    %3373 = vmatpush1.bf16.msra.mxu0 %v702
    %3374 = vmatprep.subr.bf16.mxu0 0
    %3375 = vmatpush2.bf16.msra.mxu0 0
    %3376 = vmatprep.subr.bf16.mxu0 0
    %3377 = vmatpush2.bf16.msra.mxu0 0
    %3378 = vmatprep.subr.bf16.mxu0 0
    %3379 = vmatpush2.bf16.msra.mxu0 0
    %3380 = vmatprep.subr.bf16.mxu0 0
    %3381 = vmatpush2.bf16.msra.mxu0 0
    %3382 = vmatprep.subr.bf16.mxu0 0
    %3383 = vmatpush2.bf16.msra.mxu0 0
    %3384 = vmatprep.subr.bf16.mxu0 0
    %3385 = vmatpush2.bf16.msra.mxu0 0
    %3386 = vmatprep.subr.bf16.mxu0 0
    %3387 = vmatpush2.bf16.msra.mxu0 0
    %3388 = vmatprep.subr.bf16.mxu0 0
    %3389 = vmatpush2.bf16.msra.mxu0 0
    %3390 = vmatprep.mubr.bf16.mxu0 0
    %3391 = vmatmul.mubr.bf16.gmra.mxu0 %v3207
    %v3392 = vpop.f32.mrf.mxu0
    %v3393 = vadd.f32 0.0, %v3392
    %v3394 = vpop.f32.mrf.mxu0
    %v3395 = vadd.f32 0.0, %v3394
    %v3396 = vpop.f32.mrf.mxu0
    %v3397 = vpop.f32.mrf.mxu0
    %3398 = vdwg.mxu0
    %v3399 = vadd.f32 %v3313, %v3352
    %v3400 = vadd.f32 %v3314, %v3354
    %v3401 = vadd.f32 %v3315, %v3393
    %v3402 = vadd.f32 %v3316, %v3395
    %v3403 = vsub.f32 0.0, %v3399
    %v3404 = vmul.f32 %v3403, 1.442695
    %v3405 = vpow.pop %v3404
    %v3406 = vadd.f32 %v3405, 1.0
    %v3407 = vrcp.pop %v3406
    %v3408 = vsub.f32 0.0, %v3400
    %v3409 = vmul.f32 %v3408, 1.442695
    %v3410 = vpow.pop %v3409
    %v3411 = vadd.f32 %v3410, 1.0
    %v3412 = vrcp.pop %v3411
    %v3413 = vtanh.pop %v3401
    %v3414 = vsub.f32 0.0, %v3402
    %v3415 = vmul.f32 %v3414, 1.442695
    %v3416 = vpow.pop %v3415
    %v3417 = vadd.f32 %v3416, 1.0
    %v3418 = vrcp.pop %v3417
    %v3419 = vmul.f32 %v3412, %v3204
    %v3420 = vmul.f32 %v3407, %v3413
    %v3421 = vadd.f32 %v3419, %v3420
    %v3422 = vtanh.pop %v3421
    %v3423 = vmul.f32 %v3418, %v3422
    %v3424 = vpack.c.bf16 %v3423, %v3423
    %v3425 = vpack.c.bf16 %v3311, %v3311
    %3426 = vmatprep.subr.bf16.mxu0 %v1157
    %3427 = vmatpush1.bf16.msra.mxu0 %v1156
    %3428 = vmatprep.subr.bf16.mxu0 %v1153
    %3429 = vmatpush1.bf16.msra.mxu0 %v1152
    %3430 = vmatprep.subr.bf16.mxu0 %v1149
    %3431 = vmatpush1.bf16.msra.mxu0 %v1148
    %3432 = vmatprep.subr.bf16.mxu0 %v1145
    %3433 = vmatpush1.bf16.msra.mxu0 %v1144
    %3434 = vmatprep.subr.bf16.mxu0 %v1141
    %3435 = vmatpush1.bf16.msra.mxu0 %v1140
    %3436 = vmatprep.subr.bf16.mxu0 %v1137
    %3437 = vmatpush1.bf16.msra.mxu0 %v1136
    %3438 = vmatprep.subr.bf16.mxu0 %v1133
    %3439 = vmatpush1.bf16.msra.mxu0 %v1132
    %3440 = vmatprep.subr.bf16.mxu0 %v1129
    %3441 = vmatpush1.bf16.msra.mxu0 %v1128
    %3442 = vmatprep.subr.bf16.mxu0 %v1189
    %3443 = vmatpush2.bf16.msra.mxu0 %v1188
    %3444 = vmatprep.subr.bf16.mxu0 %v1185
    %3445 = vmatpush2.bf16.msra.mxu0 %v1184
    %3446 = vmatprep.subr.bf16.mxu0 %v1181
    %3447 = vmatpush2.bf16.msra.mxu0 %v1180
    %3448 = vmatprep.subr.bf16.mxu0 %v1177
    %3449 = vmatpush2.bf16.msra.mxu0 %v1176
    %3450 = vmatprep.subr.bf16.mxu0 %v1173
    %3451 = vmatpush2.bf16.msra.mxu0 %v1172
    %3452 = vmatprep.subr.bf16.mxu0 %v1169
    %3453 = vmatpush2.bf16.msra.mxu0 %v1168
    %3454 = vmatprep.subr.bf16.mxu0 %v1165
    %3455 = vmatpush2.bf16.msra.mxu0 %v1164
    %3456 = vmatprep.subr.bf16.mxu0 %v1161
    %3457 = vmatpush2.bf16.msra.mxu0 %v1160
    %3458 = vmatprep.mubr.bf16.mxu0 %v3425
    %3459 = vmatmul.mubr.bf16.gmra.mxu0 %v3424
    %v3460 = vpop.f32.mrf.mxu0
    %v3461 = vadd.f32 %v551, %v3460
    %v3462 = vpop.f32.mrf.mxu0
    %v3463 = vadd.f32 %v555, %v3462
    %v3464 = vpop.f32.mrf.mxu0
    %v3465 = vpop.f32.mrf.mxu0
    %3466 = vdwg.mxu0
    %3467 = vmatprep.subr.bf16.mxu0 %v1159
    %3468 = vmatpush1.bf16.msra.mxu0 %v1158
    %3469 = vmatprep.subr.bf16.mxu0 %v1155
    %3470 = vmatpush1.bf16.msra.mxu0 %v1154
    %3471 = vmatprep.subr.bf16.mxu0 %v1151
    %3472 = vmatpush1.bf16.msra.mxu0 %v1150
    %3473 = vmatprep.subr.bf16.mxu0 %v1147
    %3474 = vmatpush1.bf16.msra.mxu0 %v1146
    %3475 = vmatprep.subr.bf16.mxu0 %v1143
    %3476 = vmatpush1.bf16.msra.mxu0 %v1142
    %3477 = vmatprep.subr.bf16.mxu0 %v1139
    %3478 = vmatpush1.bf16.msra.mxu0 %v1138
    %3479 = vmatprep.subr.bf16.mxu0 %v1135
    %3480 = vmatpush1.bf16.msra.mxu0 %v1134
    %3481 = vmatprep.subr.bf16.mxu0 %v1131
    %3482 = vmatpush1.bf16.msra.mxu0 %v1130
    %3483 = vmatprep.subr.bf16.mxu0 %v1191
    %3484 = vmatpush2.bf16.msra.mxu0 %v1190
    %3485 = vmatprep.subr.bf16.mxu0 %v1187
    %3486 = vmatpush2.bf16.msra.mxu0 %v1186
    %3487 = vmatprep.subr.bf16.mxu0 %v1183
    %3488 = vmatpush2.bf16.msra.mxu0 %v1182
    %3489 = vmatprep.subr.bf16.mxu0 %v1179
    %3490 = vmatpush2.bf16.msra.mxu0 %v1178
    %3491 = vmatprep.subr.bf16.mxu0 %v1175
    %3492 = vmatpush2.bf16.msra.mxu0 %v1174
    %3493 = vmatprep.subr.bf16.mxu0 %v1171
    %3494 = vmatpush2.bf16.msra.mxu0 %v1170
    %3495 = vmatprep.subr.bf16.mxu0 %v1167
    %3496 = vmatpush2.bf16.msra.mxu0 %v1166
    %3497 = vmatprep.subr.bf16.mxu0 %v1163
    %3498 = vmatpush2.bf16.msra.mxu0 %v1162
    %3499 = vmatprep.mubr.bf16.mxu0 %v3425
    %3500 = vmatmul.mubr.bf16.gmra.mxu0 %v3424
    %v3501 = vpop.f32.mrf.mxu0
    %v3502 = vadd.f32 %v559, %v3501
    %v3503 = vpop.f32.mrf.mxu0
    %v3504 = vadd.f32 %v563, %v3503
    %v3505 = vpop.f32.mrf.mxu0
    %v3506 = vpop.f32.mrf.mxu0
    %3507 = vdwg.mxu0
    %v3508 = vsub.f32 0.0, %v3461
    %v3509 = vmul.f32 %v3508, 1.442695
    %v3510 = vpow.pop %v3509
    %v3511 = vadd.f32 %v3510, 1.0
    %v3512 = vrcp.pop %v3511
    %v3513 = vsub.f32 0.0, %v3463
    %v3514 = vmul.f32 %v3513, 1.442695
    %v3515 = vpow.pop %v3514
    %v3516 = vadd.f32 %v3515, 1.0
    %v3517 = vrcp.pop %v3516
    %v3518 = vtanh.pop %v3502
    %v3519 = vsub.f32 0.0, %v3504
    %v3520 = vmul.f32 %v3519, 1.442695
    %v3521 = vpow.pop %v3520
    %v3522 = vadd.f32 %v3521, 1.0
    %v3523 = vrcp.pop %v3522
    %v3524 = vmul.f32 %v3517, %v3309
    %v3525 = vmul.f32 %v3512, %v3518
    %v3526 = vadd.f32 %v3524, %v3525
    %v3527 = vtanh.pop %v3526
    %v3528 = vmul.f32 %v3523, %v3527
    %s3529 = scalar_lea.vmem [#allocation2], 352
    %v3530 = vld [vmem:[%s3529] sm:$0xff]
    %v3531 = vld [vmem:[%s3529 + $0x8] sm:$0xff]
    %v3532 = vld [vmem:[%s3529 + $0x10] sm:$0xff]
    %v3533 = vld [vmem:[%s3529 + $0x18] sm:$0xff]
    %3534 = vmatprep.subr.bf16.mxu0 %v729
    %3535 = vmatpush1.bf16.msra.mxu0 %v728
    %3536 = vmatprep.subr.bf16.mxu0 %v725
    %3537 = vmatpush1.bf16.msra.mxu0 %v724
    %3538 = vmatprep.subr.bf16.mxu0 %v721
    %3539 = vmatpush1.bf16.msra.mxu0 %v720
    %3540 = vmatprep.subr.bf16.mxu0 %v717
    %3541 = vmatpush1.bf16.msra.mxu0 %v716
    %3542 = vmatprep.subr.bf16.mxu0 %v713
    %3543 = vmatpush1.bf16.msra.mxu0 %v712
    %3544 = vmatprep.subr.bf16.mxu0 %v709
    %3545 = vmatpush1.bf16.msra.mxu0 %v708
    %3546 = vmatprep.subr.bf16.mxu0 %v705
    %3547 = vmatpush1.bf16.msra.mxu0 %v704
    %3548 = vmatprep.subr.bf16.mxu0 %v701
    %3549 = vmatpush1.bf16.msra.mxu0 %v700
    %3550 = vmatprep.subr.bf16.mxu0 0
    %3551 = vmatpush2.bf16.msra.mxu0 0
    %3552 = vmatprep.subr.bf16.mxu0 0
    %3553 = vmatpush2.bf16.msra.mxu0 0
    %3554 = vmatprep.subr.bf16.mxu0 0
    %3555 = vmatpush2.bf16.msra.mxu0 0
    %3556 = vmatprep.subr.bf16.mxu0 0
    %3557 = vmatpush2.bf16.msra.mxu0 0
    %3558 = vmatprep.subr.bf16.mxu0 0
    %3559 = vmatpush2.bf16.msra.mxu0 0
    %3560 = vmatprep.subr.bf16.mxu0 0
    %3561 = vmatpush2.bf16.msra.mxu0 0
    %3562 = vmatprep.subr.bf16.mxu0 0
    %3563 = vmatpush2.bf16.msra.mxu0 0
    %3564 = vmatprep.subr.bf16.mxu0 0
    %3565 = vmatpush2.bf16.msra.mxu0 0
    %3566 = vmatprep.mubr.bf16.mxu0 0
    %3567 = vmatmul.mubr.bf16.gmra.mxu0 %v3424
    %v3568 = vpop.f32.mrf.mxu0
    %v3569 = vadd.f32 0.0, %v3568
    %v3570 = vpop.f32.mrf.mxu0
    %v3571 = vadd.f32 0.0, %v3570
    %v3572 = vpop.f32.mrf.mxu0
    %v3573 = vpop.f32.mrf.mxu0
    %3574 = vdwg.mxu0
    %3575 = vmatprep.subr.bf16.mxu0 %v731
    %3576 = vmatpush1.bf16.msra.mxu0 %v730
    %3577 = vmatprep.subr.bf16.mxu0 %v727
    %3578 = vmatpush1.bf16.msra.mxu0 %v726
    %3579 = vmatprep.subr.bf16.mxu0 %v723
    %3580 = vmatpush1.bf16.msra.mxu0 %v722
    %3581 = vmatprep.subr.bf16.mxu0 %v719
    %3582 = vmatpush1.bf16.msra.mxu0 %v718
    %3583 = vmatprep.subr.bf16.mxu0 %v715
    %3584 = vmatpush1.bf16.msra.mxu0 %v714
    %3585 = vmatprep.subr.bf16.mxu0 %v711
    %3586 = vmatpush1.bf16.msra.mxu0 %v710
    %3587 = vmatprep.subr.bf16.mxu0 %v707
    %3588 = vmatpush1.bf16.msra.mxu0 %v706
    %3589 = vmatprep.subr.bf16.mxu0 %v703
    %3590 = vmatpush1.bf16.msra.mxu0 %v702
    %3591 = vmatprep.subr.bf16.mxu0 0
    %3592 = vmatpush2.bf16.msra.mxu0 0
    %3593 = vmatprep.subr.bf16.mxu0 0
    %3594 = vmatpush2.bf16.msra.mxu0 0
    %3595 = vmatprep.subr.bf16.mxu0 0
    %3596 = vmatpush2.bf16.msra.mxu0 0
    %3597 = vmatprep.subr.bf16.mxu0 0
    %3598 = vmatpush2.bf16.msra.mxu0 0
    %3599 = vmatprep.subr.bf16.mxu0 0
    %3600 = vmatpush2.bf16.msra.mxu0 0
    %3601 = vmatprep.subr.bf16.mxu0 0
    %3602 = vmatpush2.bf16.msra.mxu0 0
    %3603 = vmatprep.subr.bf16.mxu0 0
    %3604 = vmatpush2.bf16.msra.mxu0 0
    %3605 = vmatprep.subr.bf16.mxu0 0
    %3606 = vmatpush2.bf16.msra.mxu0 0
    %3607 = vmatprep.mubr.bf16.mxu0 0
    %3608 = vmatmul.mubr.bf16.gmra.mxu0 %v3424
    %v3609 = vpop.f32.mrf.mxu0
    %v3610 = vadd.f32 0.0, %v3609
    %v3611 = vpop.f32.mrf.mxu0
    %v3612 = vadd.f32 0.0, %v3611
    %v3613 = vpop.f32.mrf.mxu0
    %v3614 = vpop.f32.mrf.mxu0
    %3615 = vdwg.mxu0
    %v3616 = vadd.f32 %v3530, %v3569
    %v3617 = vadd.f32 %v3531, %v3571
    %v3618 = vadd.f32 %v3532, %v3610
    %v3619 = vadd.f32 %v3533, %v3612
    %v3620 = vsub.f32 0.0, %v3616
    %v3621 = vmul.f32 %v3620, 1.442695
    %v3622 = vpow.pop %v3621
    %v3623 = vadd.f32 %v3622, 1.0
    %v3624 = vrcp.pop %v3623
    %v3625 = vsub.f32 0.0, %v3617
    %v3626 = vmul.f32 %v3625, 1.442695
    %v3627 = vpow.pop %v3626
    %v3628 = vadd.f32 %v3627, 1.0
    %v3629 = vrcp.pop %v3628
    %v3630 = vtanh.pop %v3618
    %v3631 = vsub.f32 0.0, %v3619
    %v3632 = vmul.f32 %v3631, 1.442695
    %v3633 = vpow.pop %v3632
    %v3634 = vadd.f32 %v3633, 1.0
    %v3635 = vrcp.pop %v3634
    %v3636 = vmul.f32 %v3629, %v3421
    %v3637 = vmul.f32 %v3624, %v3630
    %v3638 = vadd.f32 %v3636, %v3637
    %v3639 = vtanh.pop %v3638
    %v3640 = vmul.f32 %v3635, %v3639
    %v3641 = vpack.c.bf16 %v3640, %v3640
    %v3642 = vpack.c.bf16 %v3528, %v3528
    %3643 = vmatprep.subr.bf16.mxu0 %v1157
    %3644 = vmatpush1.bf16.msra.mxu0 %v1156
    %3645 = vmatprep.subr.bf16.mxu0 %v1153
    %3646 = vmatpush1.bf16.msra.mxu0 %v1152
    %3647 = vmatprep.subr.bf16.mxu0 %v1149
    %3648 = vmatpush1.bf16.msra.mxu0 %v1148
    %3649 = vmatprep.subr.bf16.mxu0 %v1145
    %3650 = vmatpush1.bf16.msra.mxu0 %v1144
    %3651 = vmatprep.subr.bf16.mxu0 %v1141
    %3652 = vmatpush1.bf16.msra.mxu0 %v1140
    %3653 = vmatprep.subr.bf16.mxu0 %v1137
    %3654 = vmatpush1.bf16.msra.mxu0 %v1136
    %3655 = vmatprep.subr.bf16.mxu0 %v1133
    %3656 = vmatpush1.bf16.msra.mxu0 %v1132
    %3657 = vmatprep.subr.bf16.mxu0 %v1129
    %3658 = vmatpush1.bf16.msra.mxu0 %v1128
    %3659 = vmatprep.subr.bf16.mxu0 %v1189
    %3660 = vmatpush2.bf16.msra.mxu0 %v1188
    %3661 = vmatprep.subr.bf16.mxu0 %v1185
    %3662 = vmatpush2.bf16.msra.mxu0 %v1184
    %3663 = vmatprep.subr.bf16.mxu0 %v1181
    %3664 = vmatpush2.bf16.msra.mxu0 %v1180
    %3665 = vmatprep.subr.bf16.mxu0 %v1177
    %3666 = vmatpush2.bf16.msra.mxu0 %v1176
    %3667 = vmatprep.subr.bf16.mxu0 %v1173
    %3668 = vmatpush2.bf16.msra.mxu0 %v1172
    %3669 = vmatprep.subr.bf16.mxu0 %v1169
    %3670 = vmatpush2.bf16.msra.mxu0 %v1168
    %3671 = vmatprep.subr.bf16.mxu0 %v1165
    %3672 = vmatpush2.bf16.msra.mxu0 %v1164
    %3673 = vmatprep.subr.bf16.mxu0 %v1161
    %3674 = vmatpush2.bf16.msra.mxu0 %v1160
    %3675 = vmatprep.mubr.bf16.mxu0 %v3642
    %3676 = vmatmul.mubr.bf16.gmra.mxu0 %v3641
    %v3677 = vpop.f32.mrf.mxu0
    %v3678 = vadd.f32 %v551, %v3677
    %v3679 = vpop.f32.mrf.mxu0
    %v3680 = vadd.f32 %v555, %v3679
    %v3681 = vpop.f32.mrf.mxu0
    %v3682 = vpop.f32.mrf.mxu0
    %3683 = vdwg.mxu0
    %3684 = vmatprep.subr.bf16.mxu0 %v1159
    %3685 = vmatpush1.bf16.msra.mxu0 %v1158
    %3686 = vmatprep.subr.bf16.mxu0 %v1155
    %3687 = vmatpush1.bf16.msra.mxu0 %v1154
    %3688 = vmatprep.subr.bf16.mxu0 %v1151
    %3689 = vmatpush1.bf16.msra.mxu0 %v1150
    %3690 = vmatprep.subr.bf16.mxu0 %v1147
    %3691 = vmatpush1.bf16.msra.mxu0 %v1146
    %3692 = vmatprep.subr.bf16.mxu0 %v1143
    %3693 = vmatpush1.bf16.msra.mxu0 %v1142
    %3694 = vmatprep.subr.bf16.mxu0 %v1139
    %3695 = vmatpush1.bf16.msra.mxu0 %v1138
    %3696 = vmatprep.subr.bf16.mxu0 %v1135
    %3697 = vmatpush1.bf16.msra.mxu0 %v1134
    %3698 = vmatprep.subr.bf16.mxu0 %v1131
    %3699 = vmatpush1.bf16.msra.mxu0 %v1130
    %3700 = vmatprep.subr.bf16.mxu0 %v1191
    %3701 = vmatpush2.bf16.msra.mxu0 %v1190
    %3702 = vmatprep.subr.bf16.mxu0 %v1187
    %3703 = vmatpush2.bf16.msra.mxu0 %v1186
    %3704 = vmatprep.subr.bf16.mxu0 %v1183
    %3705 = vmatpush2.bf16.msra.mxu0 %v1182
    %3706 = vmatprep.subr.bf16.mxu0 %v1179
    %3707 = vmatpush2.bf16.msra.mxu0 %v1178
    %3708 = vmatprep.subr.bf16.mxu0 %v1175
    %3709 = vmatpush2.bf16.msra.mxu0 %v1174
    %3710 = vmatprep.subr.bf16.mxu0 %v1171
    %3711 = vmatpush2.bf16.msra.mxu0 %v1170
    %3712 = vmatprep.subr.bf16.mxu0 %v1167
    %3713 = vmatpush2.bf16.msra.mxu0 %v1166
    %3714 = vmatprep.subr.bf16.mxu0 %v1163
    %3715 = vmatpush2.bf16.msra.mxu0 %v1162
    %3716 = vmatprep.mubr.bf16.mxu0 %v3642
    %3717 = vmatmul.mubr.bf16.gmra.mxu0 %v3641
    %v3718 = vpop.f32.mrf.mxu0
    %v3719 = vadd.f32 %v559, %v3718
    %v3720 = vpop.f32.mrf.mxu0
    %v3721 = vadd.f32 %v563, %v3720
    %v3722 = vpop.f32.mrf.mxu0
    %v3723 = vpop.f32.mrf.mxu0
    %3724 = vdwg.mxu0
    %v3725 = vsub.f32 0.0, %v3678
    %v3726 = vmul.f32 %v3725, 1.442695
    %v3727 = vpow.pop %v3726
    %v3728 = vadd.f32 %v3727, 1.0
    %v3729 = vrcp.pop %v3728
    %v3730 = vsub.f32 0.0, %v3680
    %v3731 = vmul.f32 %v3730, 1.442695
    %v3732 = vpow.pop %v3731
    %v3733 = vadd.f32 %v3732, 1.0
    %v3734 = vrcp.pop %v3733
    %v3735 = vtanh.pop %v3719
    %v3736 = vsub.f32 0.0, %v3721
    %v3737 = vmul.f32 %v3736, 1.442695
    %v3738 = vpow.pop %v3737
    %v3739 = vadd.f32 %v3738, 1.0
    %v3740 = vrcp.pop %v3739
    %v3741 = vmul.f32 %v3734, %v3526
    %v3742 = vmul.f32 %v3729, %v3735
    %v3743 = vadd.f32 %v3741, %v3742
    %v3744 = vtanh.pop %v3743
    %v3745 = vmul.f32 %v3740, %v3744
    %s3746 = scalar_lea.vmem [#allocation2], 384
    %v3747 = vld [vmem:[%s3746] sm:$0xff]
    %v3748 = vld [vmem:[%s3746 + $0x8] sm:$0xff]
    %v3749 = vld [vmem:[%s3746 + $0x10] sm:$0xff]
    %v3750 = vld [vmem:[%s3746 + $0x18] sm:$0xff]
    %3751 = vmatprep.subr.bf16.mxu0 %v729
    %3752 = vmatpush1.bf16.msra.mxu0 %v728
    %3753 = vmatprep.subr.bf16.mxu0 %v725
    %3754 = vmatpush1.bf16.msra.mxu0 %v724
    %3755 = vmatprep.subr.bf16.mxu0 %v721
    %3756 = vmatpush1.bf16.msra.mxu0 %v720
    %3757 = vmatprep.subr.bf16.mxu0 %v717
    %3758 = vmatpush1.bf16.msra.mxu0 %v716
    %3759 = vmatprep.subr.bf16.mxu0 %v713
    %3760 = vmatpush1.bf16.msra.mxu0 %v712
    %3761 = vmatprep.subr.bf16.mxu0 %v709
    %3762 = vmatpush1.bf16.msra.mxu0 %v708
    %3763 = vmatprep.subr.bf16.mxu0 %v705
    %3764 = vmatpush1.bf16.msra.mxu0 %v704
    %3765 = vmatprep.subr.bf16.mxu0 %v701
    %3766 = vmatpush1.bf16.msra.mxu0 %v700
    %3767 = vmatprep.subr.bf16.mxu0 0
    %3768 = vmatpush2.bf16.msra.mxu0 0
    %3769 = vmatprep.subr.bf16.mxu0 0
    %3770 = vmatpush2.bf16.msra.mxu0 0
    %3771 = vmatprep.subr.bf16.mxu0 0
    %3772 = vmatpush2.bf16.msra.mxu0 0
    %3773 = vmatprep.subr.bf16.mxu0 0
    %3774 = vmatpush2.bf16.msra.mxu0 0
    %3775 = vmatprep.subr.bf16.mxu0 0
    %3776 = vmatpush2.bf16.msra.mxu0 0
    %3777 = vmatprep.subr.bf16.mxu0 0
    %3778 = vmatpush2.bf16.msra.mxu0 0
    %3779 = vmatprep.subr.bf16.mxu0 0
    %3780 = vmatpush2.bf16.msra.mxu0 0
    %3781 = vmatprep.subr.bf16.mxu0 0
    %3782 = vmatpush2.bf16.msra.mxu0 0
    %3783 = vmatprep.mubr.bf16.mxu0 0
    %3784 = vmatmul.mubr.bf16.gmra.mxu0 %v3641
    %v3785 = vpop.f32.mrf.mxu0
    %v3786 = vadd.f32 0.0, %v3785
    %v3787 = vpop.f32.mrf.mxu0
    %v3788 = vadd.f32 0.0, %v3787
    %v3789 = vpop.f32.mrf.mxu0
    %v3790 = vpop.f32.mrf.mxu0
    %3791 = vdwg.mxu0
    %3792 = vmatprep.subr.bf16.mxu0 %v731
    %3793 = vmatpush1.bf16.msra.mxu0 %v730
    %3794 = vmatprep.subr.bf16.mxu0 %v727
    %3795 = vmatpush1.bf16.msra.mxu0 %v726
    %3796 = vmatprep.subr.bf16.mxu0 %v723
    %3797 = vmatpush1.bf16.msra.mxu0 %v722
    %3798 = vmatprep.subr.bf16.mxu0 %v719
    %3799 = vmatpush1.bf16.msra.mxu0 %v718
    %3800 = vmatprep.subr.bf16.mxu0 %v715
    %3801 = vmatpush1.bf16.msra.mxu0 %v714
    %3802 = vmatprep.subr.bf16.mxu0 %v711
    %3803 = vmatpush1.bf16.msra.mxu0 %v710
    %3804 = vmatprep.subr.bf16.mxu0 %v707
    %3805 = vmatpush1.bf16.msra.mxu0 %v706
    %3806 = vmatprep.subr.bf16.mxu0 %v703
    %3807 = vmatpush1.bf16.msra.mxu0 %v702
    %3808 = vmatprep.subr.bf16.mxu0 0
    %3809 = vmatpush2.bf16.msra.mxu0 0
    %3810 = vmatprep.subr.bf16.mxu0 0
    %3811 = vmatpush2.bf16.msra.mxu0 0
    %3812 = vmatprep.subr.bf16.mxu0 0
    %3813 = vmatpush2.bf16.msra.mxu0 0
    %3814 = vmatprep.subr.bf16.mxu0 0
    %3815 = vmatpush2.bf16.msra.mxu0 0
    %3816 = vmatprep.subr.bf16.mxu0 0
    %3817 = vmatpush2.bf16.msra.mxu0 0
    %3818 = vmatprep.subr.bf16.mxu0 0
    %3819 = vmatpush2.bf16.msra.mxu0 0
    %3820 = vmatprep.subr.bf16.mxu0 0
    %3821 = vmatpush2.bf16.msra.mxu0 0
    %3822 = vmatprep.subr.bf16.mxu0 0
    %3823 = vmatpush2.bf16.msra.mxu0 0
    %3824 = vmatprep.mubr.bf16.mxu0 0
    %3825 = vmatmul.mubr.bf16.gmra.mxu0 %v3641
    %v3826 = vpop.f32.mrf.mxu0
    %v3827 = vadd.f32 0.0, %v3826
    %v3828 = vpop.f32.mrf.mxu0
    %v3829 = vadd.f32 0.0, %v3828
    %v3830 = vpop.f32.mrf.mxu0
    %v3831 = vpop.f32.mrf.mxu0
    %3832 = vdwg.mxu0
    %v3833 = vadd.f32 %v3747, %v3786
    %v3834 = vadd.f32 %v3748, %v3788
    %v3835 = vadd.f32 %v3749, %v3827
    %v3836 = vadd.f32 %v3750, %v3829
    %v3837 = vsub.f32 0.0, %v3833
    %v3838 = vmul.f32 %v3837, 1.442695
    %v3839 = vpow.pop %v3838
    %v3840 = vadd.f32 %v3839, 1.0
    %v3841 = vrcp.pop %v3840
    %v3842 = vsub.f32 0.0, %v3834
    %v3843 = vmul.f32 %v3842, 1.442695
    %v3844 = vpow.pop %v3843
    %v3845 = vadd.f32 %v3844, 1.0
    %v3846 = vrcp.pop %v3845
    %v3847 = vtanh.pop %v3835
    %v3848 = vsub.f32 0.0, %v3836
    %v3849 = vmul.f32 %v3848, 1.442695
    %v3850 = vpow.pop %v3849
    %v3851 = vadd.f32 %v3850, 1.0
    %v3852 = vrcp.pop %v3851
    %v3853 = vmul.f32 %v3846, %v3638
    %v3854 = vmul.f32 %v3841, %v3847
    %v3855 = vadd.f32 %v3853, %v3854
    %v3856 = vtanh.pop %v3855
    %v3857 = vmul.f32 %v3852, %v3856
    %v3858 = vpack.c.bf16 %v3857, %v3857
    %v3859 = vpack.c.bf16 %v3745, %v3745
    %3860 = vmatprep.subr.bf16.mxu0 %v1157
    %3861 = vmatpush1.bf16.msra.mxu0 %v1156
    %3862 = vmatprep.subr.bf16.mxu0 %v1153
    %3863 = vmatpush1.bf16.msra.mxu0 %v1152
    %3864 = vmatprep.subr.bf16.mxu0 %v1149
    %3865 = vmatpush1.bf16.msra.mxu0 %v1148
    %3866 = vmatprep.subr.bf16.mxu0 %v1145
    %3867 = vmatpush1.bf16.msra.mxu0 %v1144
    %3868 = vmatprep.subr.bf16.mxu0 %v1141
    %3869 = vmatpush1.bf16.msra.mxu0 %v1140
    %3870 = vmatprep.subr.bf16.mxu0 %v1137
    %3871 = vmatpush1.bf16.msra.mxu0 %v1136
    %3872 = vmatprep.subr.bf16.mxu0 %v1133
    %3873 = vmatpush1.bf16.msra.mxu0 %v1132
    %3874 = vmatprep.subr.bf16.mxu0 %v1129
    %3875 = vmatpush1.bf16.msra.mxu0 %v1128
    %3876 = vmatprep.subr.bf16.mxu0 %v1189
    %3877 = vmatpush2.bf16.msra.mxu0 %v1188
    %3878 = vmatprep.subr.bf16.mxu0 %v1185
    %3879 = vmatpush2.bf16.msra.mxu0 %v1184
    %3880 = vmatprep.subr.bf16.mxu0 %v1181
    %3881 = vmatpush2.bf16.msra.mxu0 %v1180
    %3882 = vmatprep.subr.bf16.mxu0 %v1177
    %3883 = vmatpush2.bf16.msra.mxu0 %v1176
    %3884 = vmatprep.subr.bf16.mxu0 %v1173
    %3885 = vmatpush2.bf16.msra.mxu0 %v1172
    %3886 = vmatprep.subr.bf16.mxu0 %v1169
    %3887 = vmatpush2.bf16.msra.mxu0 %v1168
    %3888 = vmatprep.subr.bf16.mxu0 %v1165
    %3889 = vmatpush2.bf16.msra.mxu0 %v1164
    %3890 = vmatprep.subr.bf16.mxu0 %v1161
    %3891 = vmatpush2.bf16.msra.mxu0 %v1160
    %3892 = vmatprep.mubr.bf16.mxu0 %v3859
    %3893 = vmatmul.mubr.bf16.gmra.mxu0 %v3858
    %v3894 = vpop.f32.mrf.mxu0
    %v3895 = vadd.f32 %v551, %v3894
    %v3896 = vpop.f32.mrf.mxu0
    %v3897 = vadd.f32 %v555, %v3896
    %v3898 = vpop.f32.mrf.mxu0
    %v3899 = vpop.f32.mrf.mxu0
    %3900 = vdwg.mxu0
    %3901 = vmatprep.subr.bf16.mxu0 %v1159
    %3902 = vmatpush1.bf16.msra.mxu0 %v1158
    %3903 = vmatprep.subr.bf16.mxu0 %v1155
    %3904 = vmatpush1.bf16.msra.mxu0 %v1154
    %3905 = vmatprep.subr.bf16.mxu0 %v1151
    %3906 = vmatpush1.bf16.msra.mxu0 %v1150
    %3907 = vmatprep.subr.bf16.mxu0 %v1147
    %3908 = vmatpush1.bf16.msra.mxu0 %v1146
    %3909 = vmatprep.subr.bf16.mxu0 %v1143
    %3910 = vmatpush1.bf16.msra.mxu0 %v1142
    %3911 = vmatprep.subr.bf16.mxu0 %v1139
    %3912 = vmatpush1.bf16.msra.mxu0 %v1138
    %3913 = vmatprep.subr.bf16.mxu0 %v1135
    %3914 = vmatpush1.bf16.msra.mxu0 %v1134
    %3915 = vmatprep.subr.bf16.mxu0 %v1131
    %3916 = vmatpush1.bf16.msra.mxu0 %v1130
    %3917 = vmatprep.subr.bf16.mxu0 %v1191
    %3918 = vmatpush2.bf16.msra.mxu0 %v1190
    %3919 = vmatprep.subr.bf16.mxu0 %v1187
    %3920 = vmatpush2.bf16.msra.mxu0 %v1186
    %3921 = vmatprep.subr.bf16.mxu0 %v1183
    %3922 = vmatpush2.bf16.msra.mxu0 %v1182
    %3923 = vmatprep.subr.bf16.mxu0 %v1179
    %3924 = vmatpush2.bf16.msra.mxu0 %v1178
    %3925 = vmatprep.subr.bf16.mxu0 %v1175
    %3926 = vmatpush2.bf16.msra.mxu0 %v1174
    %3927 = vmatprep.subr.bf16.mxu0 %v1171
    %3928 = vmatpush2.bf16.msra.mxu0 %v1170
    %3929 = vmatprep.subr.bf16.mxu0 %v1167
    %3930 = vmatpush2.bf16.msra.mxu0 %v1166
    %3931 = vmatprep.subr.bf16.mxu0 %v1163
    %3932 = vmatpush2.bf16.msra.mxu0 %v1162
    %3933 = vmatprep.mubr.bf16.mxu0 %v3859
    %3934 = vmatmul.mubr.bf16.gmra.mxu0 %v3858
    %v3935 = vpop.f32.mrf.mxu0
    %v3936 = vadd.f32 %v559, %v3935
    %v3937 = vpop.f32.mrf.mxu0
    %v3938 = vadd.f32 %v563, %v3937
    %v3939 = vpop.f32.mrf.mxu0
    %v3940 = vpop.f32.mrf.mxu0
    %3941 = vdwg.mxu0
    %v3942 = vsub.f32 0.0, %v3895
    %v3943 = vmul.f32 %v3942, 1.442695
    %v3944 = vpow.pop %v3943
    %v3945 = vadd.f32 %v3944, 1.0
    %v3946 = vrcp.pop %v3945
    %v3947 = vsub.f32 0.0, %v3897
    %v3948 = vmul.f32 %v3947, 1.442695
    %v3949 = vpow.pop %v3948
    %v3950 = vadd.f32 %v3949, 1.0
    %v3951 = vrcp.pop %v3950
    %v3952 = vtanh.pop %v3936
    %v3953 = vsub.f32 0.0, %v3938
    %v3954 = vmul.f32 %v3953, 1.442695
    %v3955 = vpow.pop %v3954
    %v3956 = vadd.f32 %v3955, 1.0
    %v3957 = vrcp.pop %v3956
    %v3958 = vmul.f32 %v3951, %v3743
    %v3959 = vmul.f32 %v3946, %v3952
    %v3960 = vadd.f32 %v3958, %v3959
    %v3961 = vtanh.pop %v3960
    %v3962 = vmul.f32 %v3957, %v3961
    %s3963 = scalar_lea.vmem [#allocation2], 416
    %v3964 = vld [vmem:[%s3963] sm:$0xff]
    %v3965 = vld [vmem:[%s3963 + $0x8] sm:$0xff]
    %v3966 = vld [vmem:[%s3963 + $0x10] sm:$0xff]
    %v3967 = vld [vmem:[%s3963 + $0x18] sm:$0xff]
    %3968 = vmatprep.subr.bf16.mxu0 %v729
    %3969 = vmatpush1.bf16.msra.mxu0 %v728
    %3970 = vmatprep.subr.bf16.mxu0 %v725
    %3971 = vmatpush1.bf16.msra.mxu0 %v724
    %3972 = vmatprep.subr.bf16.mxu0 %v721
    %3973 = vmatpush1.bf16.msra.mxu0 %v720
    %3974 = vmatprep.subr.bf16.mxu0 %v717
    %3975 = vmatpush1.bf16.msra.mxu0 %v716
    %3976 = vmatprep.subr.bf16.mxu0 %v713
    %3977 = vmatpush1.bf16.msra.mxu0 %v712
    %3978 = vmatprep.subr.bf16.mxu0 %v709
    %3979 = vmatpush1.bf16.msra.mxu0 %v708
    %3980 = vmatprep.subr.bf16.mxu0 %v705
    %3981 = vmatpush1.bf16.msra.mxu0 %v704
    %3982 = vmatprep.subr.bf16.mxu0 %v701
    %3983 = vmatpush1.bf16.msra.mxu0 %v700
    %3984 = vmatprep.subr.bf16.mxu0 0
    %3985 = vmatpush2.bf16.msra.mxu0 0
    %3986 = vmatprep.subr.bf16.mxu0 0
    %3987 = vmatpush2.bf16.msra.mxu0 0
    %3988 = vmatprep.subr.bf16.mxu0 0
    %3989 = vmatpush2.bf16.msra.mxu0 0
    %3990 = vmatprep.subr.bf16.mxu0 0
    %3991 = vmatpush2.bf16.msra.mxu0 0
    %3992 = vmatprep.subr.bf16.mxu0 0
    %3993 = vmatpush2.bf16.msra.mxu0 0
    %3994 = vmatprep.subr.bf16.mxu0 0
    %3995 = vmatpush2.bf16.msra.mxu0 0
    %3996 = vmatprep.subr.bf16.mxu0 0
    %3997 = vmatpush2.bf16.msra.mxu0 0
    %3998 = vmatprep.subr.bf16.mxu0 0
    %3999 = vmatpush2.bf16.msra.mxu0 0
    %4000 = vmatprep.mubr.bf16.mxu0 0
    %4001 = vmatmul.mubr.bf16.gmra.mxu0 %v3858
    %v4002 = vpop.f32.mrf.mxu0
    %v4003 = vadd.f32 0.0, %v4002
    %v4004 = vpop.f32.mrf.mxu0
    %v4005 = vadd.f32 0.0, %v4004
    %v4006 = vpop.f32.mrf.mxu0
    %v4007 = vpop.f32.mrf.mxu0
    %4008 = vdwg.mxu0
    %4009 = vmatprep.subr.bf16.mxu0 %v731
    %4010 = vmatpush1.bf16.msra.mxu0 %v730
    %4011 = vmatprep.subr.bf16.mxu0 %v727
    %4012 = vmatpush1.bf16.msra.mxu0 %v726
    %4013 = vmatprep.subr.bf16.mxu0 %v723
    %4014 = vmatpush1.bf16.msra.mxu0 %v722
    %4015 = vmatprep.subr.bf16.mxu0 %v719
    %4016 = vmatpush1.bf16.msra.mxu0 %v718
    %4017 = vmatprep.subr.bf16.mxu0 %v715
    %4018 = vmatpush1.bf16.msra.mxu0 %v714
    %4019 = vmatprep.subr.bf16.mxu0 %v711
    %4020 = vmatpush1.bf16.msra.mxu0 %v710
    %4021 = vmatprep.subr.bf16.mxu0 %v707
    %4022 = vmatpush1.bf16.msra.mxu0 %v706
    %4023 = vmatprep.subr.bf16.mxu0 %v703
    %4024 = vmatpush1.bf16.msra.mxu0 %v702
    %4025 = vmatprep.subr.bf16.mxu0 0
    %4026 = vmatpush2.bf16.msra.mxu0 0
    %4027 = vmatprep.subr.bf16.mxu0 0
    %4028 = vmatpush2.bf16.msra.mxu0 0
    %4029 = vmatprep.subr.bf16.mxu0 0
    %4030 = vmatpush2.bf16.msra.mxu0 0
    %4031 = vmatprep.subr.bf16.mxu0 0
    %4032 = vmatpush2.bf16.msra.mxu0 0
    %4033 = vmatprep.subr.bf16.mxu0 0
    %4034 = vmatpush2.bf16.msra.mxu0 0
    %4035 = vmatprep.subr.bf16.mxu0 0
    %4036 = vmatpush2.bf16.msra.mxu0 0
    %4037 = vmatprep.subr.bf16.mxu0 0
    %4038 = vmatpush2.bf16.msra.mxu0 0
    %4039 = vmatprep.subr.bf16.mxu0 0
    %4040 = vmatpush2.bf16.msra.mxu0 0
    %4041 = vmatprep.mubr.bf16.mxu0 0
    %4042 = vmatmul.mubr.bf16.gmra.mxu0 %v3858
    %v4043 = vpop.f32.mrf.mxu0
    %v4044 = vadd.f32 0.0, %v4043
    %v4045 = vpop.f32.mrf.mxu0
    %v4046 = vadd.f32 0.0, %v4045
    %v4047 = vpop.f32.mrf.mxu0
    %v4048 = vpop.f32.mrf.mxu0
    %4049 = vdwg.mxu0
    %v4050 = vadd.f32 %v3964, %v4003
    %v4051 = vadd.f32 %v3965, %v4005
    %v4052 = vadd.f32 %v3966, %v4044
    %v4053 = vadd.f32 %v3967, %v4046
    %v4054 = vsub.f32 0.0, %v4050
    %v4055 = vmul.f32 %v4054, 1.442695
    %v4056 = vpow.pop %v4055
    %v4057 = vadd.f32 %v4056, 1.0
    %v4058 = vrcp.pop %v4057
    %v4059 = vsub.f32 0.0, %v4051
    %v4060 = vmul.f32 %v4059, 1.442695
    %v4061 = vpow.pop %v4060
    %v4062 = vadd.f32 %v4061, 1.0
    %v4063 = vrcp.pop %v4062
    %v4064 = vtanh.pop %v4052
    %v4065 = vsub.f32 0.0, %v4053
    %v4066 = vmul.f32 %v4065, 1.442695
    %v4067 = vpow.pop %v4066
    %v4068 = vadd.f32 %v4067, 1.0
    %v4069 = vrcp.pop %v4068
    %v4070 = vmul.f32 %v4063, %v3855
    %v4071 = vmul.f32 %v4058, %v4064
    %v4072 = vadd.f32 %v4070, %v4071
    %v4073 = vtanh.pop %v4072
    %v4074 = vmul.f32 %v4069, %v4073
    %v4075 = vpack.c.bf16 %v4074, %v4074
    %v4076 = vpack.c.bf16 %v3962, %v3962
    %4077 = vmatprep.subr.bf16.mxu0 %v1157
    %4078 = vmatpush1.bf16.msra.mxu0 %v1156
    %4079 = vmatprep.subr.bf16.mxu0 %v1153
    %4080 = vmatpush1.bf16.msra.mxu0 %v1152
    %4081 = vmatprep.subr.bf16.mxu0 %v1149
    %4082 = vmatpush1.bf16.msra.mxu0 %v1148
    %4083 = vmatprep.subr.bf16.mxu0 %v1145
    %4084 = vmatpush1.bf16.msra.mxu0 %v1144
    %4085 = vmatprep.subr.bf16.mxu0 %v1141
    %4086 = vmatpush1.bf16.msra.mxu0 %v1140
    %4087 = vmatprep.subr.bf16.mxu0 %v1137
    %4088 = vmatpush1.bf16.msra.mxu0 %v1136
    %4089 = vmatprep.subr.bf16.mxu0 %v1133
    %4090 = vmatpush1.bf16.msra.mxu0 %v1132
    %4091 = vmatprep.subr.bf16.mxu0 %v1129
    %4092 = vmatpush1.bf16.msra.mxu0 %v1128
    %4093 = vmatprep.subr.bf16.mxu0 %v1189
    %4094 = vmatpush2.bf16.msra.mxu0 %v1188
    %4095 = vmatprep.subr.bf16.mxu0 %v1185
    %4096 = vmatpush2.bf16.msra.mxu0 %v1184
    %4097 = vmatprep.subr.bf16.mxu0 %v1181
    %4098 = vmatpush2.bf16.msra.mxu0 %v1180
    %4099 = vmatprep.subr.bf16.mxu0 %v1177
    %4100 = vmatpush2.bf16.msra.mxu0 %v1176
    %4101 = vmatprep.subr.bf16.mxu0 %v1173
    %4102 = vmatpush2.bf16.msra.mxu0 %v1172
    %4103 = vmatprep.subr.bf16.mxu0 %v1169
    %4104 = vmatpush2.bf16.msra.mxu0 %v1168
    %4105 = vmatprep.subr.bf16.mxu0 %v1165
    %4106 = vmatpush2.bf16.msra.mxu0 %v1164
    %4107 = vmatprep.subr.bf16.mxu0 %v1161
    %4108 = vmatpush2.bf16.msra.mxu0 %v1160
    %4109 = vmatprep.mubr.bf16.mxu0 %v4076
    %4110 = vmatmul.mubr.bf16.gmra.mxu0 %v4075
    %v4111 = vpop.f32.mrf.mxu0
    %v4112 = vadd.f32 %v551, %v4111
    %v4113 = vpop.f32.mrf.mxu0
    %v4114 = vadd.f32 %v555, %v4113
    %v4115 = vpop.f32.mrf.mxu0
    %v4116 = vpop.f32.mrf.mxu0
    %4117 = vdwg.mxu0
    %4118 = vmatprep.subr.bf16.mxu0 %v1159
    %4119 = vmatpush1.bf16.msra.mxu0 %v1158
    %4120 = vmatprep.subr.bf16.mxu0 %v1155
    %4121 = vmatpush1.bf16.msra.mxu0 %v1154
    %4122 = vmatprep.subr.bf16.mxu0 %v1151
    %4123 = vmatpush1.bf16.msra.mxu0 %v1150
    %4124 = vmatprep.subr.bf16.mxu0 %v1147
    %4125 = vmatpush1.bf16.msra.mxu0 %v1146
    %4126 = vmatprep.subr.bf16.mxu0 %v1143
    %4127 = vmatpush1.bf16.msra.mxu0 %v1142
    %4128 = vmatprep.subr.bf16.mxu0 %v1139
    %4129 = vmatpush1.bf16.msra.mxu0 %v1138
    %4130 = vmatprep.subr.bf16.mxu0 %v1135
    %4131 = vmatpush1.bf16.msra.mxu0 %v1134
    %4132 = vmatprep.subr.bf16.mxu0 %v1131
    %4133 = vmatpush1.bf16.msra.mxu0 %v1130
    %4134 = vmatprep.subr.bf16.mxu0 %v1191
    %4135 = vmatpush2.bf16.msra.mxu0 %v1190
    %4136 = vmatprep.subr.bf16.mxu0 %v1187
    %4137 = vmatpush2.bf16.msra.mxu0 %v1186
    %4138 = vmatprep.subr.bf16.mxu0 %v1183
    %4139 = vmatpush2.bf16.msra.mxu0 %v1182
    %4140 = vmatprep.subr.bf16.mxu0 %v1179
    %4141 = vmatpush2.bf16.msra.mxu0 %v1178
    %4142 = vmatprep.subr.bf16.mxu0 %v1175
    %4143 = vmatpush2.bf16.msra.mxu0 %v1174
    %4144 = vmatprep.subr.bf16.mxu0 %v1171
    %4145 = vmatpush2.bf16.msra.mxu0 %v1170
    %4146 = vmatprep.subr.bf16.mxu0 %v1167
    %4147 = vmatpush2.bf16.msra.mxu0 %v1166
    %4148 = vmatprep.subr.bf16.mxu0 %v1163
    %4149 = vmatpush2.bf16.msra.mxu0 %v1162
    %4150 = vmatprep.mubr.bf16.mxu0 %v4076
    %4151 = vmatmul.mubr.bf16.gmra.mxu0 %v4075
    %v4152 = vpop.f32.mrf.mxu0
    %v4153 = vadd.f32 %v559, %v4152
    %v4154 = vpop.f32.mrf.mxu0
    %v4155 = vadd.f32 %v563, %v4154
    %v4156 = vpop.f32.mrf.mxu0
    %v4157 = vpop.f32.mrf.mxu0
    %4158 = vdwg.mxu0
    %v4159 = vsub.f32 0.0, %v4112
    %v4160 = vmul.f32 %v4159, 1.442695
    %v4161 = vpow.pop %v4160
    %v4162 = vadd.f32 %v4161, 1.0
    %v4163 = vrcp.pop %v4162
    %v4164 = vsub.f32 0.0, %v4114
    %v4165 = vmul.f32 %v4164, 1.442695
    %v4166 = vpow.pop %v4165
    %v4167 = vadd.f32 %v4166, 1.0
    %v4168 = vrcp.pop %v4167
    %v4169 = vtanh.pop %v4153
    %v4170 = vsub.f32 0.0, %v4155
    %v4171 = vmul.f32 %v4170, 1.442695
    %v4172 = vpow.pop %v4171
    %v4173 = vadd.f32 %v4172, 1.0
    %v4174 = vrcp.pop %v4173
    %v4175 = vmul.f32 %v4168, %v3960
    %v4176 = vmul.f32 %v4163, %v4169
    %v4177 = vadd.f32 %v4175, %v4176
    %v4178 = vtanh.pop %v4177
    %v4179 = vmul.f32 %v4174, %v4178
    %s4180 = scalar_lea.vmem [#allocation2], 448
    %v4181 = vld [vmem:[%s4180] sm:$0xff]
    %v4182 = vld [vmem:[%s4180 + $0x8] sm:$0xff]
    %v4183 = vld [vmem:[%s4180 + $0x10] sm:$0xff]
    %v4184 = vld [vmem:[%s4180 + $0x18] sm:$0xff]
    %4185 = vmatprep.subr.bf16.mxu0 %v729
    %4186 = vmatpush1.bf16.msra.mxu0 %v728
    %4187 = vmatprep.subr.bf16.mxu0 %v725
    %4188 = vmatpush1.bf16.msra.mxu0 %v724
    %4189 = vmatprep.subr.bf16.mxu0 %v721
    %4190 = vmatpush1.bf16.msra.mxu0 %v720
    %4191 = vmatprep.subr.bf16.mxu0 %v717
    %4192 = vmatpush1.bf16.msra.mxu0 %v716
    %4193 = vmatprep.subr.bf16.mxu0 %v713
    %4194 = vmatpush1.bf16.msra.mxu0 %v712
    %4195 = vmatprep.subr.bf16.mxu0 %v709
    %4196 = vmatpush1.bf16.msra.mxu0 %v708
    %4197 = vmatprep.subr.bf16.mxu0 %v705
    %4198 = vmatpush1.bf16.msra.mxu0 %v704
    %4199 = vmatprep.subr.bf16.mxu0 %v701
    %4200 = vmatpush1.bf16.msra.mxu0 %v700
    %4201 = vmatprep.subr.bf16.mxu0 0
    %4202 = vmatpush2.bf16.msra.mxu0 0
    %4203 = vmatprep.subr.bf16.mxu0 0
    %4204 = vmatpush2.bf16.msra.mxu0 0
    %4205 = vmatprep.subr.bf16.mxu0 0
    %4206 = vmatpush2.bf16.msra.mxu0 0
    %4207 = vmatprep.subr.bf16.mxu0 0
    %4208 = vmatpush2.bf16.msra.mxu0 0
    %4209 = vmatprep.subr.bf16.mxu0 0
    %4210 = vmatpush2.bf16.msra.mxu0 0
    %4211 = vmatprep.subr.bf16.mxu0 0
    %4212 = vmatpush2.bf16.msra.mxu0 0
    %4213 = vmatprep.subr.bf16.mxu0 0
    %4214 = vmatpush2.bf16.msra.mxu0 0
    %4215 = vmatprep.subr.bf16.mxu0 0
    %4216 = vmatpush2.bf16.msra.mxu0 0
    %4217 = vmatprep.mubr.bf16.mxu0 0
    %4218 = vmatmul.mubr.bf16.gmra.mxu0 %v4075
    %v4219 = vpop.f32.mrf.mxu0
    %v4220 = vadd.f32 0.0, %v4219
    %v4221 = vpop.f32.mrf.mxu0
    %v4222 = vadd.f32 0.0, %v4221
    %v4223 = vpop.f32.mrf.mxu0
    %v4224 = vpop.f32.mrf.mxu0
    %4225 = vdwg.mxu0
    %4226 = vmatprep.subr.bf16.mxu0 %v731
    %4227 = vmatpush1.bf16.msra.mxu0 %v730
    %4228 = vmatprep.subr.bf16.mxu0 %v727
    %4229 = vmatpush1.bf16.msra.mxu0 %v726
    %4230 = vmatprep.subr.bf16.mxu0 %v723
    %4231 = vmatpush1.bf16.msra.mxu0 %v722
    %4232 = vmatprep.subr.bf16.mxu0 %v719
    %4233 = vmatpush1.bf16.msra.mxu0 %v718
    %4234 = vmatprep.subr.bf16.mxu0 %v715
    %4235 = vmatpush1.bf16.msra.mxu0 %v714
    %4236 = vmatprep.subr.bf16.mxu0 %v711
    %4237 = vmatpush1.bf16.msra.mxu0 %v710
    %4238 = vmatprep.subr.bf16.mxu0 %v707
    %4239 = vmatpush1.bf16.msra.mxu0 %v706
    %4240 = vmatprep.subr.bf16.mxu0 %v703
    %4241 = vmatpush1.bf16.msra.mxu0 %v702
    %4242 = vmatprep.subr.bf16.mxu0 0
    %4243 = vmatpush2.bf16.msra.mxu0 0
    %4244 = vmatprep.subr.bf16.mxu0 0
    %4245 = vmatpush2.bf16.msra.mxu0 0
    %4246 = vmatprep.subr.bf16.mxu0 0
    %4247 = vmatpush2.bf16.msra.mxu0 0
    %4248 = vmatprep.subr.bf16.mxu0 0
    %4249 = vmatpush2.bf16.msra.mxu0 0
    %4250 = vmatprep.subr.bf16.mxu0 0
    %4251 = vmatpush2.bf16.msra.mxu0 0
    %4252 = vmatprep.subr.bf16.mxu0 0
    %4253 = vmatpush2.bf16.msra.mxu0 0
    %4254 = vmatprep.subr.bf16.mxu0 0
    %4255 = vmatpush2.bf16.msra.mxu0 0
    %4256 = vmatprep.subr.bf16.mxu0 0
    %4257 = vmatpush2.bf16.msra.mxu0 0
    %4258 = vmatprep.mubr.bf16.mxu0 0
    %4259 = vmatmul.mubr.bf16.gmra.mxu0 %v4075
    %v4260 = vpop.f32.mrf.mxu0
    %v4261 = vadd.f32 0.0, %v4260
    %v4262 = vpop.f32.mrf.mxu0
    %v4263 = vadd.f32 0.0, %v4262
    %v4264 = vpop.f32.mrf.mxu0
    %v4265 = vpop.f32.mrf.mxu0
    %4266 = vdwg.mxu0
    %v4267 = vadd.f32 %v4181, %v4220
    %v4268 = vadd.f32 %v4182, %v4222
    %v4269 = vadd.f32 %v4183, %v4261
    %v4270 = vadd.f32 %v4184, %v4263
    %v4271 = vsub.f32 0.0, %v4267
    %v4272 = vmul.f32 %v4271, 1.442695
    %v4273 = vpow.pop %v4272
    %v4274 = vadd.f32 %v4273, 1.0
    %v4275 = vrcp.pop %v4274
    %v4276 = vsub.f32 0.0, %v4268
    %v4277 = vmul.f32 %v4276, 1.442695
    %v4278 = vpow.pop %v4277
    %v4279 = vadd.f32 %v4278, 1.0
    %v4280 = vrcp.pop %v4279
    %v4281 = vtanh.pop %v4269
    %v4282 = vsub.f32 0.0, %v4270
    %v4283 = vmul.f32 %v4282, 1.442695
    %v4284 = vpow.pop %v4283
    %v4285 = vadd.f32 %v4284, 1.0
    %v4286 = vrcp.pop %v4285
    %v4287 = vmul.f32 %v4280, %v4072
    %v4288 = vmul.f32 %v4275, %v4281
    %v4289 = vadd.f32 %v4287, %v4288
    %v4290 = vtanh.pop %v4289
    %v4291 = vmul.f32 %v4286, %v4290
    %v4292 = vpack.c.bf16 %v4291, %v4291
    %v4293 = vpack.c.bf16 %v4179, %v4179
    %4294 = vmatprep.subr.bf16.mxu0 %v1157
    %4295 = vmatpush1.bf16.msra.mxu0 %v1156
    %4296 = vmatprep.subr.bf16.mxu0 %v1153
    %4297 = vmatpush1.bf16.msra.mxu0 %v1152
    %4298 = vmatprep.subr.bf16.mxu0 %v1149
    %4299 = vmatpush1.bf16.msra.mxu0 %v1148
    %4300 = vmatprep.subr.bf16.mxu0 %v1145
    %4301 = vmatpush1.bf16.msra.mxu0 %v1144
    %4302 = vmatprep.subr.bf16.mxu0 %v1141
    %4303 = vmatpush1.bf16.msra.mxu0 %v1140
    %4304 = vmatprep.subr.bf16.mxu0 %v1137
    %4305 = vmatpush1.bf16.msra.mxu0 %v1136
    %4306 = vmatprep.subr.bf16.mxu0 %v1133
    %4307 = vmatpush1.bf16.msra.mxu0 %v1132
    %4308 = vmatprep.subr.bf16.mxu0 %v1129
    %4309 = vmatpush1.bf16.msra.mxu0 %v1128
    %4310 = vmatprep.subr.bf16.mxu0 %v1189
    %4311 = vmatpush2.bf16.msra.mxu0 %v1188
    %4312 = vmatprep.subr.bf16.mxu0 %v1185
    %4313 = vmatpush2.bf16.msra.mxu0 %v1184
    %4314 = vmatprep.subr.bf16.mxu0 %v1181
    %4315 = vmatpush2.bf16.msra.mxu0 %v1180
    %4316 = vmatprep.subr.bf16.mxu0 %v1177
    %4317 = vmatpush2.bf16.msra.mxu0 %v1176
    %4318 = vmatprep.subr.bf16.mxu0 %v1173
    %4319 = vmatpush2.bf16.msra.mxu0 %v1172
    %4320 = vmatprep.subr.bf16.mxu0 %v1169
    %4321 = vmatpush2.bf16.msra.mxu0 %v1168
    %4322 = vmatprep.subr.bf16.mxu0 %v1165
    %4323 = vmatpush2.bf16.msra.mxu0 %v1164
    %4324 = vmatprep.subr.bf16.mxu0 %v1161
    %4325 = vmatpush2.bf16.msra.mxu0 %v1160
    %4326 = vmatprep.mubr.bf16.mxu0 %v4293
    %4327 = vmatmul.mubr.bf16.gmra.mxu0 %v4292
    %v4328 = vpop.f32.mrf.mxu0
    %v4329 = vadd.f32 %v551, %v4328
    %v4330 = vpop.f32.mrf.mxu0
    %v4331 = vadd.f32 %v555, %v4330
    %v4332 = vpop.f32.mrf.mxu0
    %v4333 = vpop.f32.mrf.mxu0
    %4334 = vdwg.mxu0
    %4335 = vmatprep.subr.bf16.mxu0 %v1159
    %4336 = vmatpush1.bf16.msra.mxu0 %v1158
    %4337 = vmatprep.subr.bf16.mxu0 %v1155
    %4338 = vmatpush1.bf16.msra.mxu0 %v1154
    %4339 = vmatprep.subr.bf16.mxu0 %v1151
    %4340 = vmatpush1.bf16.msra.mxu0 %v1150
    %4341 = vmatprep.subr.bf16.mxu0 %v1147
    %4342 = vmatpush1.bf16.msra.mxu0 %v1146
    %4343 = vmatprep.subr.bf16.mxu0 %v1143
    %4344 = vmatpush1.bf16.msra.mxu0 %v1142
    %4345 = vmatprep.subr.bf16.mxu0 %v1139
    %4346 = vmatpush1.bf16.msra.mxu0 %v1138
    %4347 = vmatprep.subr.bf16.mxu0 %v1135
    %4348 = vmatpush1.bf16.msra.mxu0 %v1134
    %4349 = vmatprep.subr.bf16.mxu0 %v1131
    %4350 = vmatpush1.bf16.msra.mxu0 %v1130
    %4351 = vmatprep.subr.bf16.mxu0 %v1191
    %4352 = vmatpush2.bf16.msra.mxu0 %v1190
    %4353 = vmatprep.subr.bf16.mxu0 %v1187
    %4354 = vmatpush2.bf16.msra.mxu0 %v1186
    %4355 = vmatprep.subr.bf16.mxu0 %v1183
    %4356 = vmatpush2.bf16.msra.mxu0 %v1182
    %4357 = vmatprep.subr.bf16.mxu0 %v1179
    %4358 = vmatpush2.bf16.msra.mxu0 %v1178
    %4359 = vmatprep.subr.bf16.mxu0 %v1175
    %4360 = vmatpush2.bf16.msra.mxu0 %v1174
    %4361 = vmatprep.subr.bf16.mxu0 %v1171
    %4362 = vmatpush2.bf16.msra.mxu0 %v1170
    %4363 = vmatprep.subr.bf16.mxu0 %v1167
    %4364 = vmatpush2.bf16.msra.mxu0 %v1166
    %4365 = vmatprep.subr.bf16.mxu0 %v1163
    %4366 = vmatpush2.bf16.msra.mxu0 %v1162
    %4367 = vmatprep.mubr.bf16.mxu0 %v4293
    %4368 = vmatmul.mubr.bf16.gmra.mxu0 %v4292
    %v4369 = vpop.f32.mrf.mxu0
    %v4370 = vadd.f32 %v559, %v4369
    %v4371 = vpop.f32.mrf.mxu0
    %v4372 = vadd.f32 %v563, %v4371
    %v4373 = vpop.f32.mrf.mxu0
    %v4374 = vpop.f32.mrf.mxu0
    %4375 = vdwg.mxu0
    %v4376 = vsub.f32 0.0, %v4329
    %v4377 = vmul.f32 %v4376, 1.442695
    %v4378 = vpow.pop %v4377
    %v4379 = vadd.f32 %v4378, 1.0
    %v4380 = vrcp.pop %v4379
    %v4381 = vsub.f32 0.0, %v4331
    %v4382 = vmul.f32 %v4381, 1.442695
    %v4383 = vpow.pop %v4382
    %v4384 = vadd.f32 %v4383, 1.0
    %v4385 = vrcp.pop %v4384
    %v4386 = vtanh.pop %v4370
    %v4387 = vsub.f32 0.0, %v4372
    %v4388 = vmul.f32 %v4387, 1.442695
    %v4389 = vpow.pop %v4388
    %v4390 = vadd.f32 %v4389, 1.0
    %v4391 = vrcp.pop %v4390
    %v4392 = vmul.f32 %v4385, %v4177
    %v4393 = vmul.f32 %v4380, %v4386
    %v4394 = vadd.f32 %v4392, %v4393
    %v4395 = vtanh.pop %v4394
    %v4396 = vmul.f32 %v4391, %v4395
    %s4397 = scalar_lea.vmem [#allocation2], 480
    %v4398 = vld [vmem:[%s4397] sm:$0xff]
    %v4399 = vld [vmem:[%s4397 + $0x8] sm:$0xff]
    %v4400 = vld [vmem:[%s4397 + $0x10] sm:$0xff]
    %v4401 = vld [vmem:[%s4397 + $0x18] sm:$0xff]
    %4402 = vmatprep.subr.bf16.mxu0 %v729
    %4403 = vmatpush1.bf16.msra.mxu0 %v728
    %4404 = vmatprep.subr.bf16.mxu0 %v725
    %4405 = vmatpush1.bf16.msra.mxu0 %v724
    %4406 = vmatprep.subr.bf16.mxu0 %v721
    %4407 = vmatpush1.bf16.msra.mxu0 %v720
    %4408 = vmatprep.subr.bf16.mxu0 %v717
    %4409 = vmatpush1.bf16.msra.mxu0 %v716
    %4410 = vmatprep.subr.bf16.mxu0 %v713
    %4411 = vmatpush1.bf16.msra.mxu0 %v712
    %4412 = vmatprep.subr.bf16.mxu0 %v709
    %4413 = vmatpush1.bf16.msra.mxu0 %v708
    %4414 = vmatprep.subr.bf16.mxu0 %v705
    %4415 = vmatpush1.bf16.msra.mxu0 %v704
    %4416 = vmatprep.subr.bf16.mxu0 %v701
    %4417 = vmatpush1.bf16.msra.mxu0 %v700
    %4418 = vmatprep.subr.bf16.mxu0 0
    %4419 = vmatpush2.bf16.msra.mxu0 0
    %4420 = vmatprep.subr.bf16.mxu0 0
    %4421 = vmatpush2.bf16.msra.mxu0 0
    %4422 = vmatprep.subr.bf16.mxu0 0
    %4423 = vmatpush2.bf16.msra.mxu0 0
    %4424 = vmatprep.subr.bf16.mxu0 0
    %4425 = vmatpush2.bf16.msra.mxu0 0
    %4426 = vmatprep.subr.bf16.mxu0 0
    %4427 = vmatpush2.bf16.msra.mxu0 0
    %4428 = vmatprep.subr.bf16.mxu0 0
    %4429 = vmatpush2.bf16.msra.mxu0 0
    %4430 = vmatprep.subr.bf16.mxu0 0
    %4431 = vmatpush2.bf16.msra.mxu0 0
    %4432 = vmatprep.subr.bf16.mxu0 0
    %4433 = vmatpush2.bf16.msra.mxu0 0
    %4434 = vmatprep.mubr.bf16.mxu0 0
    %4435 = vmatmul.mubr.bf16.gmra.mxu0 %v4292
    %v4436 = vpop.f32.mrf.mxu0
    %v4437 = vadd.f32 0.0, %v4436
    %v4438 = vpop.f32.mrf.mxu0
    %v4439 = vadd.f32 0.0, %v4438
    %v4440 = vpop.f32.mrf.mxu0
    %v4441 = vpop.f32.mrf.mxu0
    %4442 = vdwg.mxu0
    %4443 = vmatprep.subr.bf16.mxu0 %v731
    %4444 = vmatpush1.bf16.msra.mxu0 %v730
    %4445 = vmatprep.subr.bf16.mxu0 %v727
    %4446 = vmatpush1.bf16.msra.mxu0 %v726
    %4447 = vmatprep.subr.bf16.mxu0 %v723
    %4448 = vmatpush1.bf16.msra.mxu0 %v722
    %4449 = vmatprep.subr.bf16.mxu0 %v719
    %4450 = vmatpush1.bf16.msra.mxu0 %v718
    %4451 = vmatprep.subr.bf16.mxu0 %v715
    %4452 = vmatpush1.bf16.msra.mxu0 %v714
    %4453 = vmatprep.subr.bf16.mxu0 %v711
    %4454 = vmatpush1.bf16.msra.mxu0 %v710
    %4455 = vmatprep.subr.bf16.mxu0 %v707
    %4456 = vmatpush1.bf16.msra.mxu0 %v706
    %4457 = vmatprep.subr.bf16.mxu0 %v703
    %4458 = vmatpush1.bf16.msra.mxu0 %v702
    %4459 = vmatprep.subr.bf16.mxu0 0
    %4460 = vmatpush2.bf16.msra.mxu0 0
    %4461 = vmatprep.subr.bf16.mxu0 0
    %4462 = vmatpush2.bf16.msra.mxu0 0
    %4463 = vmatprep.subr.bf16.mxu0 0
    %4464 = vmatpush2.bf16.msra.mxu0 0
    %4465 = vmatprep.subr.bf16.mxu0 0
    %4466 = vmatpush2.bf16.msra.mxu0 0
    %4467 = vmatprep.subr.bf16.mxu0 0
    %4468 = vmatpush2.bf16.msra.mxu0 0
    %4469 = vmatprep.subr.bf16.mxu0 0
    %4470 = vmatpush2.bf16.msra.mxu0 0
    %4471 = vmatprep.subr.bf16.mxu0 0
    %4472 = vmatpush2.bf16.msra.mxu0 0
    %4473 = vmatprep.subr.bf16.mxu0 0
    %4474 = vmatpush2.bf16.msra.mxu0 0
    %4475 = vmatprep.mubr.bf16.mxu0 0
    %4476 = vmatmul.mubr.bf16.gmra.mxu0 %v4292
    %v4477 = vpop.f32.mrf.mxu0
    %v4478 = vadd.f32 0.0, %v4477
    %v4479 = vpop.f32.mrf.mxu0
    %v4480 = vadd.f32 0.0, %v4479
    %v4481 = vpop.f32.mrf.mxu0
    %v4482 = vpop.f32.mrf.mxu0
    %4483 = vdwg.mxu0
    %v4484 = vadd.f32 %v4398, %v4437
    %v4485 = vadd.f32 %v4399, %v4439
    %v4486 = vadd.f32 %v4400, %v4478
    %v4487 = vadd.f32 %v4401, %v4480
    %v4488 = vsub.f32 0.0, %v4484
    %v4489 = vmul.f32 %v4488, 1.442695
    %v4490 = vpow.pop %v4489
    %v4491 = vadd.f32 %v4490, 1.0
    %v4492 = vrcp.pop %v4491
    %v4493 = vsub.f32 0.0, %v4485
    %v4494 = vmul.f32 %v4493, 1.442695
    %v4495 = vpow.pop %v4494
    %v4496 = vadd.f32 %v4495, 1.0
    %v4497 = vrcp.pop %v4496
    %v4498 = vtanh.pop %v4486
    %v4499 = vsub.f32 0.0, %v4487
    %v4500 = vmul.f32 %v4499, 1.442695
    %v4501 = vpow.pop %v4500
    %v4502 = vadd.f32 %v4501, 1.0
    %v4503 = vrcp.pop %v4502
    %v4504 = vmul.f32 %v4497, %v4289
    %v4505 = vmul.f32 %v4492, %v4498
    %v4506 = vadd.f32 %v4504, %v4505
    %v4507 = vtanh.pop %v4506
    %v4508 = vmul.f32 %v4503, %v4507
    %v4509 = vpack.c.bf16 %v4508, %v4508
    %v4510 = vpack.c.bf16 %v4396, %v4396
    %4511 = vmatprep.subr.bf16.mxu0 %v1157
    %4512 = vmatpush1.bf16.msra.mxu0 %v1156
    %4513 = vmatprep.subr.bf16.mxu0 %v1153
    %4514 = vmatpush1.bf16.msra.mxu0 %v1152
    %4515 = vmatprep.subr.bf16.mxu0 %v1149
    %4516 = vmatpush1.bf16.msra.mxu0 %v1148
    %4517 = vmatprep.subr.bf16.mxu0 %v1145
    %4518 = vmatpush1.bf16.msra.mxu0 %v1144
    %4519 = vmatprep.subr.bf16.mxu0 %v1141
    %4520 = vmatpush1.bf16.msra.mxu0 %v1140
    %4521 = vmatprep.subr.bf16.mxu0 %v1137
    %4522 = vmatpush1.bf16.msra.mxu0 %v1136
    %4523 = vmatprep.subr.bf16.mxu0 %v1133
    %4524 = vmatpush1.bf16.msra.mxu0 %v1132
    %4525 = vmatprep.subr.bf16.mxu0 %v1129
    %4526 = vmatpush1.bf16.msra.mxu0 %v1128
    %4527 = vmatprep.subr.bf16.mxu0 %v1189
    %4528 = vmatpush2.bf16.msra.mxu0 %v1188
    %4529 = vmatprep.subr.bf16.mxu0 %v1185
    %4530 = vmatpush2.bf16.msra.mxu0 %v1184
    %4531 = vmatprep.subr.bf16.mxu0 %v1181
    %4532 = vmatpush2.bf16.msra.mxu0 %v1180
    %4533 = vmatprep.subr.bf16.mxu0 %v1177
    %4534 = vmatpush2.bf16.msra.mxu0 %v1176
    %4535 = vmatprep.subr.bf16.mxu0 %v1173
    %4536 = vmatpush2.bf16.msra.mxu0 %v1172
    %4537 = vmatprep.subr.bf16.mxu0 %v1169
    %4538 = vmatpush2.bf16.msra.mxu0 %v1168
    %4539 = vmatprep.subr.bf16.mxu0 %v1165
    %4540 = vmatpush2.bf16.msra.mxu0 %v1164
    %4541 = vmatprep.subr.bf16.mxu0 %v1161
    %4542 = vmatpush2.bf16.msra.mxu0 %v1160
    %4543 = vmatprep.mubr.bf16.mxu0 %v4510
    %4544 = vmatmul.mubr.bf16.gmra.mxu0 %v4509
    %v4545 = vpop.f32.mrf.mxu0
    %v4546 = vadd.f32 %v551, %v4545
    %v4547 = vpop.f32.mrf.mxu0
    %v4548 = vadd.f32 %v555, %v4547
    %v4549 = vpop.f32.mrf.mxu0
    %v4550 = vpop.f32.mrf.mxu0
    %4551 = vdwg.mxu0
    %4552 = vmatprep.subr.bf16.mxu0 %v1159
    %4553 = vmatpush1.bf16.msra.mxu0 %v1158
    %4554 = vmatprep.subr.bf16.mxu0 %v1155
    %4555 = vmatpush1.bf16.msra.mxu0 %v1154
    %4556 = vmatprep.subr.bf16.mxu0 %v1151
    %4557 = vmatpush1.bf16.msra.mxu0 %v1150
    %4558 = vmatprep.subr.bf16.mxu0 %v1147
    %4559 = vmatpush1.bf16.msra.mxu0 %v1146
    %4560 = vmatprep.subr.bf16.mxu0 %v1143
    %4561 = vmatpush1.bf16.msra.mxu0 %v1142
    %4562 = vmatprep.subr.bf16.mxu0 %v1139
    %4563 = vmatpush1.bf16.msra.mxu0 %v1138
    %4564 = vmatprep.subr.bf16.mxu0 %v1135
    %4565 = vmatpush1.bf16.msra.mxu0 %v1134
    %4566 = vmatprep.subr.bf16.mxu0 %v1131
    %4567 = vmatpush1.bf16.msra.mxu0 %v1130
    %4568 = vmatprep.subr.bf16.mxu0 %v1191
    %4569 = vmatpush2.bf16.msra.mxu0 %v1190
    %4570 = vmatprep.subr.bf16.mxu0 %v1187
    %4571 = vmatpush2.bf16.msra.mxu0 %v1186
    %4572 = vmatprep.subr.bf16.mxu0 %v1183
    %4573 = vmatpush2.bf16.msra.mxu0 %v1182
    %4574 = vmatprep.subr.bf16.mxu0 %v1179
    %4575 = vmatpush2.bf16.msra.mxu0 %v1178
    %4576 = vmatprep.subr.bf16.mxu0 %v1175
    %4577 = vmatpush2.bf16.msra.mxu0 %v1174
    %4578 = vmatprep.subr.bf16.mxu0 %v1171
    %4579 = vmatpush2.bf16.msra.mxu0 %v1170
    %4580 = vmatprep.subr.bf16.mxu0 %v1167
    %4581 = vmatpush2.bf16.msra.mxu0 %v1166
    %4582 = vmatprep.subr.bf16.mxu0 %v1163
    %4583 = vmatpush2.bf16.msra.mxu0 %v1162
    %4584 = vmatprep.mubr.bf16.mxu0 %v4510
    %4585 = vmatmul.mubr.bf16.gmra.mxu0 %v4509
    %v4586 = vpop.f32.mrf.mxu0
    %v4587 = vadd.f32 %v559, %v4586
    %v4588 = vpop.f32.mrf.mxu0
    %v4589 = vadd.f32 %v563, %v4588
    %v4590 = vpop.f32.mrf.mxu0
    %v4591 = vpop.f32.mrf.mxu0
    %4592 = vdwg.mxu0
    %v4593 = vsub.f32 0.0, %v4546
    %v4594 = vmul.f32 %v4593, 1.442695
    %v4595 = vpow.pop %v4594
    %v4596 = vadd.f32 %v4595, 1.0
    %v4597 = vrcp.pop %v4596
    %v4598 = vsub.f32 0.0, %v4548
    %v4599 = vmul.f32 %v4598, 1.442695
    %v4600 = vpow.pop %v4599
    %v4601 = vadd.f32 %v4600, 1.0
    %v4602 = vrcp.pop %v4601
    %v4603 = vtanh.pop %v4587
    %v4604 = vsub.f32 0.0, %v4589
    %v4605 = vmul.f32 %v4604, 1.442695
    %v4606 = vpow.pop %v4605
    %v4607 = vadd.f32 %v4606, 1.0
    %v4608 = vrcp.pop %v4607
    %v4609 = vmul.f32 %v4602, %v4394
    %v4610 = vmul.f32 %v4597, %v4603
    %v4611 = vadd.f32 %v4609, %v4610
    %v4612 = vtanh.pop %v4611
    %v4613 = vmul.f32 %v4608, %v4612
    %v4614 = vld [vmem:[%s6] sm:$0xff]
    %v4615 = vld [vmem:[%s6 + $0x8] sm:$0xff]
    %v4616 = vld [vmem:[%s6 + $0x10] sm:$0xff]
    %v4617 = vld [vmem:[%s6 + $0x18] sm:$0xff]
    %v4618 = vld [vmem:[%s6 + $0x20] sm:$0xff]
    %v4619 = vld [vmem:[%s6 + $0x28] sm:$0xff]
    %v4620 = vld [vmem:[%s6 + $0x30] sm:$0xff]
    %v4621 = vld [vmem:[%s6 + $0x38] sm:$0xff]
    %v4622 = vld [vmem:[%s6 + $0x40] sm:$0xff]
    %v4623 = vld [vmem:[%s6 + $0x48] sm:$0xff]
    %v4624 = vld [vmem:[%s6 + $0x50] sm:$0xff]
    %v4625 = vld [vmem:[%s6 + $0x58] sm:$0xff]
    %v4626 = vld [vmem:[%s6 + $0x60] sm:$0xff]
    %v4627 = vld [vmem:[%s6 + $0x68] sm:$0xff]
    %v4628 = vld [vmem:[%s6 + $0x70] sm:$0xff]
    %v4629 = vld [vmem:[%s6 + $0x78] sm:$0xff]
    %v4630 = vld [vmem:[%s7] sm:$0x1]
    %v4632 = vlaneseq
    %v4633 = vshrl.u32 %v4632, 7
    %v4634 = vsub.s32 0, %v4633
    %v4635 = vrot.slane %v4630, %v4634
    %4637 = vmatprep.subr.mxu0 0.0
    %4638 = vmatpush1.msra.mxu0 %v4629
    %4639 = vmatprep.subr.mxu0 0.0
    %4640 = vmatpush1.msra.mxu0 %v4628
    %4641 = vmatprep.subr.mxu0 0.0
    %4642 = vmatpush1.msra.mxu0 %v4627
    %4643 = vmatprep.subr.mxu0 0.0
    %4644 = vmatpush1.msra.mxu0 %v4626
    %4645 = vmatprep.subr.mxu0 0.0
    %4646 = vmatpush1.msra.mxu0 %v4625
    %4647 = vmatprep.subr.mxu0 0.0
    %4648 = vmatpush1.msra.mxu0 %v4624
    %4649 = vmatprep.subr.mxu0 0.0
    %4650 = vmatpush1.msra.mxu0 %v4623
    %4651 = vmatprep.subr.mxu0 0.0
    %4652 = vmatpush1.msra.mxu0 %v4622
    %4653 = vmatprep.subr.mxu0 0.0
    %4654 = vmatpush1.msra.mxu0 %v4621
    %4655 = vmatprep.subr.mxu0 0.0
    %4656 = vmatpush1.msra.mxu0 %v4620
    %4657 = vmatprep.subr.mxu0 0.0
    %4658 = vmatpush1.msra.mxu0 %v4619
    %4659 = vmatprep.subr.mxu0 0.0
    %4660 = vmatpush1.msra.mxu0 %v4618
    %4661 = vmatprep.subr.mxu0 0.0
    %4662 = vmatpush1.msra.mxu0 %v4617
    %4663 = vmatprep.subr.mxu0 0.0
    %4664 = vmatpush1.msra.mxu0 %v4616
    %4665 = vmatprep.subr.mxu0 0.0
    %4666 = vmatpush1.msra.mxu0 %v4615
    %4667 = vmatprep.subr.mxu0 0.0
    %4668 = vmatpush1.msra.mxu0 %v4614
    %4669 = vmatprep.subr.mxu0 0.0
    %4670 = vmatpush2.msra.mxu0 0.0
    %4671 = vmatprep.subr.mxu0 0.0
    %4672 = vmatpush2.msra.mxu0 0.0
    %4673 = vmatprep.subr.mxu0 0.0
    %4674 = vmatpush2.msra.mxu0 0.0
    %4675 = vmatprep.subr.mxu0 0.0
    %4676 = vmatpush2.msra.mxu0 0.0
    %4677 = vmatprep.subr.mxu0 0.0
    %4678 = vmatpush2.msra.mxu0 0.0
    %4679 = vmatprep.subr.mxu0 0.0
    %4680 = vmatpush2.msra.mxu0 0.0
    %4681 = vmatprep.subr.mxu0 0.0
    %4682 = vmatpush2.msra.mxu0 0.0
    %4683 = vmatprep.subr.mxu0 0.0
    %4684 = vmatpush2.msra.mxu0 0.0
    %4685 = vmatprep.subr.mxu0 0.0
    %4686 = vmatpush2.msra.mxu0 0.0
    %4687 = vmatprep.subr.mxu0 0.0
    %4688 = vmatpush2.msra.mxu0 0.0
    %4689 = vmatprep.subr.mxu0 0.0
    %4690 = vmatpush2.msra.mxu0 0.0
    %4691 = vmatprep.subr.mxu0 0.0
    %4692 = vmatpush2.msra.mxu0 0.0
    %4693 = vmatprep.subr.mxu0 0.0
    %4694 = vmatpush2.msra.mxu0 0.0
    %4695 = vmatprep.subr.mxu0 0.0
    %4696 = vmatpush2.msra.mxu0 0.0
    %4697 = vmatprep.subr.mxu0 0.0
    %4698 = vmatpush2.msra.mxu0 0.0
    %4699 = vmatprep.subr.mxu0 0.0
    %4700 = vmatpush2.msra.mxu0 0.0
    %4701 = vmatprep.mubr.f32.mxu0 0.0
    %4702 = vmatmul.mubr.f32.gmra.mxu0 %v4613
    %v4703 = vpop.f32.mrf.mxu0
    %v4704 = vadd.f32 %v4635, %v4703
    %v4705 = vpop.f32.mrf.mxu0
    %4706 = vdwg.mxu0
    %vm4707 = vcmask 89088
    %4708 = vst.msk [vmem:[#allocation6] sm:$0xff] %vm4707, %v4704
    // Predicated region
    $region38: #{lstm_model_forward.1} parent=1 // pred_check
      _
    $region39: #{lstm_model_forward.1} parent=1 // pred_check_branch
      %4710 = sbr.rel (0) target = $region41
    $region40: #{lstm_model_forward.1} parent=1 // pred_region
      %s4712 = ssub.s32 128, 128
      %4713 = vsyncadd [#allocation5], %s4712
      %s4715 = sshll.u32 [#allocation6], 4
      %s4716 = int_to_ptr.vmem [resolvable:$true] %s4715
      %4718 = dma.vmem_to_hbm [thread:$0]  %s4716, 128, %s8, [#allocation5]
    $region41: #{lstm_model_forward.1} parent=1 // pred_fallthru
      _
    // Predicated region
    $region42: #{lstm_model_forward.1} parent=1 // pred_check
      _
    $region43: #{lstm_model_forward.1} parent=1 // pred_check_branch
      %4720 = sbr.rel (0) target = $region45
    $region44: #{lstm_model_forward.1} parent=1 // pred_region
      %4721 = dma.done [#allocation5], 128
    $region45: #{lstm_model_forward.1} parent=1 // pred_fallthru
      _
    %4722 = vsyncpa [#allocation4], 1
    %4723 = vsyncpa [#allocation5], 1

</llo_original>
